<compile_context>
chip_gen: v6e
topology: v6e:2x2x1
jax: 0.10.0
libtpu: 0.0.40
codegen_flags: <defaults>
</compile_context>

<pallas_src>
import jax
import jax.numpy as jnp
from jax.experimental import pallas as pl
from jax.experimental.pallas import tpu as pltpu


def _silu(z):
    # SiLU in f32. exp and the approximate reciprocal both run on the EUP,
    # keeping VALU slots free for bias adds / residual add.
    return z * pl.reciprocal(1.0 + jnp.exp(-z), approx=True)


def repc3_kernel(x_ref, wcat_ref, bcat_ref, w3_ref, rb_ref, o_ref, pad_ref):
    """One batch element per grid step (NHWC, channels on lanes).

    x_ref    : (1, H, W, C1p)    bf16 input tile
    wcat_ref : (C1p, 2*C2p)      bf16 fused [cv1 | cv2] 1x1 weights (BN folded)
    bcat_ref : (1, 2*C2p)        f32 fused [cv1 | cv2] biases
    w3_ref   : (n, 9*C2p, C2p)   bf16 per-RepConv im2col weights, tap-major
                                 (3x3+BN folded, 1x1 branch folded into center tap)
    rb_ref   : (n, 1, C2p)       f32 per-RepConv summed biases (3x3 + 1x1 branch)
    o_ref    : (1, H, W, C2p)    f32 output tile
    pad_ref  : (H+2, W+2, C2p)   f32 VMEM scratch, zero-padded activations
    """
    _, H, W, C1p = x_ref.shape
    C2p = w3_ref.shape[2]
    n_rep = w3_ref.shape[0]

    x = x_ref[0].reshape(H * W, C1p)                          # bf16 (H*W, C1p)

    # Fused cv1 / cv2: one matmul over the concatenated output channels.
    hy = _silu(jnp.dot(x, wcat_ref[...], preferred_element_type=jnp.float32)
               + bcat_ref[...])                               # f32 (H*W, 2*C2p)
    h = hy[:, :C2p]                                           # cv1 path
    y2 = hy[:, C2p:]                                          # cv2 path

    # Zero-padded activation buffer; the 1-wide border stays zero ("same" pad).
    # Zeroed once per grid step; activations stay resident here between reps.
    pad_ref[...] = jnp.zeros(pad_ref.shape, pad_ref.dtype)
    pad_ref[1:H + 1, 1:W + 1, :] = h.reshape(H, W, C2p)

    for i in range(n_rep):
        # im2col: the 9 shifted views of the padded buffer concatenated along
        # channels -> a single K = 9*C2p matmul that accumulates in the MXU.
        patches = jnp.concatenate(
            [pad_ref[dy:dy + H, dx:dx + W, :]
                 .reshape(H * W, C2p).astype(jnp.bfloat16)
             for dy in range(3) for dx in range(3)],
            axis=-1)                                          # bf16 (H*W, 9*C2p)
        acc = jnp.dot(patches, w3_ref[i],
                      preferred_element_type=jnp.float32) + rb_ref[i]
        h = _silu(acc)                                        # f32 (H*W, C2p)
        if i + 1 < n_rep:
            pad_ref[1:H + 1, 1:W + 1, :] = h.reshape(H, W, C2p)

    o_ref[0] = (h + y2).reshape(H, W, C2p).astype(o_ref.dtype)


def _round_up(v, m):
    return (v + m - 1) // m * m


def repc3_forward(x_nchw, params):
    """NCHW in/out wrapper (matches the PyTorch module interface).

    # TODO(synk): if the surrounding graph is NHWC, drop these boundary
    # transposes (they are full-tensor HBM-bandwidth XLA ops).
    """
    cv1w, cv1b, cv2w, cv2b, w3, rb = params        # logical (unpadded, f32) params
    N, C1, H, W = x_nchw.shape
    C2 = cv1w.shape[1]
    n_rep = w3.shape[0]

    # Lane-dense channel padding (exact: padded channels stay identically zero).
    C1p = _round_up(C1, 128)
    C2p = _round_up(C2, 128)

    def pad2(w, r, c):
        return jnp.pad(w, ((0, r - w.shape[0]), (0, c - w.shape[1])))

    wcat = jnp.concatenate([pad2(cv1w, C1p, C2p), pad2(cv2w, C1p, C2p)],
                           axis=1).astype(jnp.bfloat16)            # (C1p, 2*C2p)
    bcat = jnp.concatenate([jnp.pad(cv1b, (0, C2p - C2)),
                            jnp.pad(cv2b, (0, C2p - C2))]
                           ).reshape(1, 2 * C2p).astype(jnp.float32)
    w3p = jnp.pad(w3, ((0, 0), (0, 0), (0, C2p - C2), (0, C2p - C2))
                  ).reshape(n_rep, 9 * C2p, C2p).astype(jnp.bfloat16)
    rbp = jnp.pad(rb, ((0, 0), (0, C2p - C2))
                  ).reshape(n_rep, 1, C2p).astype(jnp.float32)

    x = jnp.transpose(x_nchw, (0, 2, 3, 1))                        # NHWC
    x = jnp.pad(x, ((0, 0), (0, 0), (0, 0), (0, C1p - C1))).astype(jnp.bfloat16)

    # Explicit VMEM budget from the actual tile sizes (important on v7x).
    act = H * W
    bytes_est = (
        2 * act * C1p * 2                  # x block (double-buffered, bf16)
        + 2 * C1p * (2 * C2p) * 2          # fused cv1/cv2 weights (x2 buffers)
        + 2 * n_rep * 9 * C2p * C2p * 2    # RepConv weights (x2 buffers)
        + 2 * act * C2p * 4                # out block (double-buffered, f32)
        + (H + 2) * (W + 2) * C2p * 4      # padded activation scratch (f32)
        + act * 9 * C2p * 2                # im2col patches (bf16)
        + 4 * act * C2p * 4                # f32 temporaries (hy, acc, h, y2)
    )
    vmem_limit = int(min(max(2 * bytes_est + (4 << 20), 32 << 20), 60 << 20))

    out = pl.pallas_call(
        repc3_kernel,
        out_shape=jax.ShapeDtypeStruct((N, H, W, C2p), jnp.float32),
        grid_spec=pltpu.PrefetchScalarGridSpec(
            num_scalar_prefetch=0,
            grid=(N,),
            in_specs=[
                pl.BlockSpec((1, H, W, C1p), lambda b: (b, 0, 0, 0)),
                # Weights: constant index_map -> fetched once, reused each step.
                # TODO(synk): single-buffer the weight inputs once Buffered(1)
                # pipeline_mode is load-bearing, to halve their VMEM footprint.
                pl.BlockSpec((C1p, 2 * C2p), lambda b: (0, 0)),
                pl.BlockSpec((1, 2 * C2p), lambda b: (0, 0)),
                pl.BlockSpec((n_rep, 9 * C2p, C2p), lambda b: (0, 0, 0)),
                pl.BlockSpec((n_rep, 1, C2p), lambda b: (0, 0, 0)),
            ],
            out_specs=pl.BlockSpec((1, H, W, C2p), lambda b: (b, 0, 0, 0)),
            scratch_shapes=[pltpu.VMEM((H + 2, W + 2, C2p), jnp.float32)],
        ),
        compiler_params=pltpu.CompilerParams(
            dimension_semantics=("parallel",),   # batch across TCs (v7x megacore)
            vmem_limit_bytes=vmem_limit),
    )(x, wcat, bcat, w3p, rbp)

    # TODO(synk): for very large feature maps, add a parallel H-tile grid axis
    # with a 1-row halo so the per-step working set fits v7x's 64 MiB VMEM.
    out = out[..., :C2]                                            # drop channel pad
    return jnp.transpose(out, (0, 3, 1, 2))                        # back to NCHW


# ---------------------------------------------------------------------------
# Deterministic parameter construction (mirrors the PyTorch module's shapes),
# BN folding, and RepVGG 1x1-into-center-tap re-parameterization.
# ---------------------------------------------------------------------------
def _bn_params(key, c):
    k1, k2, k3, k4 = jax.random.split(key, 4)
    gamma = 1.0 + 0.1 * jax.random.normal(k1, (c,), jnp.float32)
    beta = 0.1 * jax.random.normal(k2, (c,), jnp.float32)
    mean = 0.1 * jax.random.normal(k3, (c,), jnp.float32)
    var = jnp.abs(jax.random.normal(k4, (c,), jnp.float32)) + 0.5
    return gamma, beta, mean, var


def _fold_bn(w_oihw, bn, eps=1e-5):
    """Fold eval-mode BatchNorm into a bias-free conv: returns (W_folded, bias)."""
    gamma, beta, mean, var = bn
    scale = gamma / jnp.sqrt(var + eps)
    return w_oihw * scale[:, None, None, None], beta - mean * scale


def init_repc3_params(key, c1, c2, n=3, e=1.0):
    """Returns BN-folded, re-parameterized logical f32 params:
       cv1w (c1,c2), cv1b (c2,), cv2w, cv2b, w3 (n,9,c2,c2) tap-major (in,out), rb (n,c2)."""
    c_ = int(c2 * e)
    assert c_ == c2, "cv3 must be Identity for this kernel (e=1.0)"
    keys = jax.random.split(key, 4 + 4 * n)

    def make_1x1(kw, kb, cin, cout):
        w = 0.1 * jax.random.normal(kw, (cout, cin, 1, 1), jnp.float32)
        wf, bf = _fold_bn(w, _bn_params(kb, cout))
        return wf[:, :, 0, 0].T, bf                       # (cin,cout), (cout,)

    cv1w, cv1b = make_1x1(keys[0], keys[1], c1, c2)
    cv2w, cv2b = make_1x1(keys[2], keys[3], c1, c2)

    w3_list, rb_list = [], []
    for i in range(n):
        k3w, k3b, k1w, k1b = keys[4 + 4 * i: 8 + 4 * i]
        w3_raw = 0.1 * jax.random.normal(k3w, (c_, c_, 3, 3), jnp.float32)
        w3f, b3 = _fold_bn(w3_raw, _bn_params(k3b, c_))
        w1_raw = 0.1 * jax.random.normal(k1w, (c_, c_, 1, 1), jnp.float32)
        w1f, b1 = _fold_bn(w1_raw, _bn_params(k1b, c_))
        taps = jnp.transpose(w3f, (2, 3, 1, 0)).reshape(9, c_, c_)  # (tap, in, out)
        # RepVGG re-parameterization: fold the 1x1 branch into the center tap.
        taps = taps.at[4].add(w1f[:, :, 0, 0].T)
        w3_list.append(taps)
        rb_list.append(b3 + b1)

    return (cv1w, cv1b, cv2w, cv2b,
            jnp.stack(w3_list, axis=0), jnp.stack(rb_list, axis=0))


# ---------------------------------------------------------------------------
# Plain-JAX f32 reference (same math as the eval-mode PyTorch forward).
# ---------------------------------------------------------------------------
def repc3_reference(x_nchw, params):
    cv1w, cv1b, cv2w, cv2b, w3, rb = params
    x = jnp.transpose(x_nchw, (0, 2, 3, 1)).astype(jnp.float32)
    N, H, W, _ = x.shape
    silu = lambda z: z * jax.nn.sigmoid(z)
    h = silu(jnp.einsum('nhwc,cd->nhwd', x, cv1w) + cv1b)
    y2 = silu(jnp.einsum('nhwc,cd->nhwd', x, cv2w) + cv2b)
    for i in range(w3.shape[0]):
        hp = jnp.pad(h, ((0, 0), (1, 1), (1, 1), (0, 0)))
        acc = jnp.broadcast_to(rb[i], h.shape).astype(jnp.float32)
        for dy in range(3):
            for dx in range(3):
                acc = acc + jnp.einsum('nhwc,cd->nhwd',
                                       hp[:, dy:dy + H, dx:dx + W, :],
                                       w3[i, dy * 3 + dx])
        h = silu(acc)
    return jnp.transpose(h + y2, (0, 3, 1, 2))


if __name__ == "__main__":
    # Small deterministic example consistent with RepC3(c1=4, c2=8, n=3, e=1.0)
    N, C1, C2, H, W, n_rep = 2, 4, 8, 16, 16, 3

    key = jax.random.PRNGKey(0)
    kx, kp = jax.random.split(key)
    x = jax.random.normal(kx, (N, C1, H, W), jnp.float32)        # NCHW input
    params = init_repc3_params(kp, C1, C2, n=n_rep, e=1.0)

    out = jax.jit(repc3_forward)(x, params)
    out = jax.block_until_ready(out)

    ref = repc3_reference(x, params)
    assert out.shape == (N, C2, H, W), out.shape
    # bf16 MXU operands + EUP approximate reciprocal in SiLU -> looser tolerance
    # than the pure-f32 version.
    err = jnp.max(jnp.abs(out - ref))
    assert jnp.allclose(out, ref, rtol=5e-2, atol=5e-2), f"max abs err = {err}"

    print("KERNEL_OK")
</pallas_src>

<mosaic_0001>
module attributes {stable_mosaic.version = 11 : i64} {
  func.func @repc3_kernel(%arg0: i32, %arg1: memref<1x16x16x128xbf16, #tpu.memory_space<vmem>>, %arg2: memref<128x256xbf16, #tpu.memory_space<vmem>>, %arg3: memref<1x256xf32, #tpu.memory_space<vmem>>, %arg4: memref<3x1152x128xbf16, #tpu.memory_space<vmem>>, %arg5: memref<3x1x128xf32, #tpu.memory_space<vmem>>, %arg6: memref<1x16x16x128xf32, #tpu.memory_space<vmem>>, %arg7: memref<18x18x128xf32, #tpu.memory_space<vmem>>) attributes {dimension_semantics = [#tpu.dimension_semantics<parallel>], iteration_bounds = array<i64: 2>, scalar_prefetch = 0 : i64, scratch_operands = 1 : i64, tpu.core_type = #tpu.core_type<tc>, window_params = [{transform_indices = @transform_0, window_bounds = array<i64: 1, 16, 16, 128>}, {pipeline_mode = #tpu.pipeline_mode<synchronous>, transform_indices = @transform_1, window_bounds = array<i64: 128, 256>}, {pipeline_mode = #tpu.pipeline_mode<synchronous>, transform_indices = @transform_2, window_bounds = array<i64: 1, 256>}, {pipeline_mode = #tpu.pipeline_mode<synchronous>, transform_indices = @transform_3, window_bounds = array<i64: 3, 1152, 128>}, {pipeline_mode = #tpu.pipeline_mode<synchronous>, transform_indices = @transform_4, window_bounds = array<i64: 3, 1, 128>}, {transform_indices = @transform_5, window_bounds = array<i64: 1, 16, 16, 128>}]} {
    %c0 = arith.constant 0 : index
    %c0_0 = arith.constant 0 : index
    %c0_1 = arith.constant 0 : index
    %c0_2 = arith.constant 0 : index
    %0 = vector.load %arg1[%c0, %c0_0, %c0_1, %c0_2] : memref<1x16x16x128xbf16, #tpu.memory_space<vmem>>, vector<1x16x16x128xbf16>
    %1 = vector.shape_cast %0 : vector<1x16x16x128xbf16> to vector<16x16x128xbf16>
    %2 = vector.shape_cast %1 : vector<16x16x128xbf16> to vector<256x128xbf16>
    %c0_3 = arith.constant 0 : index
    %c0_4 = arith.constant 0 : index
    %3 = vector.load %arg2[%c0_3, %c0_4] : memref<128x256xbf16, #tpu.memory_space<vmem>>, vector<128x256xbf16>
    %cst = arith.constant dense<0.000000e+00> : vector<256x256xf32>
    %4 = tpu.matmul %2, %3, %cst {dimension_numbers = #tpu.dot_dimension_numbers<[1], [0], [0], [1], [0, 0, 1, 1], [], []>} : vector<256x128xbf16>, vector<128x256xbf16>, vector<256x256xf32> -> vector<256x256xf32>
    %c0_5 = arith.constant 0 : index
    %c0_6 = arith.constant 0 : index
    %5 = vector.load %arg3[%c0_5, %c0_6] : memref<1x256xf32, #tpu.memory_space<vmem>>, vector<1x256xf32>
    %6 = vector.broadcast %5 : vector<1x256xf32> to vector<256x256xf32>
    %7 = arith.addf %4, %6 : vector<256x256xf32>
    %cst_7 = arith.constant 0.000000e+00 : f32
    %8 = vector.broadcast %cst_7 : f32 to vector<256x256xf32>
    %9 = arith.subf %8, %7 : vector<256x256xf32>
    %10 = math.exp %9 : vector<256x256xf32>
    %cst_8 = arith.constant 1.000000e+00 : f32
    %11 = vector.broadcast %cst_8 : f32 to vector<256x256xf32>
    %12 = arith.addf %11, %10 : vector<256x256xf32>
    %13 = tpu.reciprocal %12 {approx = true} : vector<256x256xf32> -> vector<256x256xf32>
    %14 = arith.mulf %7, %13 : vector<256x256xf32>
    %15 = vector.extract_strided_slice %14 {offsets = [0, 0], sizes = [256, 128], strides = [1, 1]} : vector<256x256xf32> to vector<256x128xf32>
    %16 = vector.extract_strided_slice %14 {offsets = [0, 128], sizes = [256, 128], strides = [1, 1]} : vector<256x256xf32> to vector<256x128xf32>
    %cst_9 = arith.constant 0.000000e+00 : f32
    %17 = vector.broadcast %cst_9 : f32 to vector<18x18x128xf32>
    %c0_10 = arith.constant 0 : index
    %c0_11 = arith.constant 0 : index
    %c0_12 = arith.constant 0 : index
    %18 = vector.load %arg7[%c0_10, %c0_11, %c0_12] : memref<18x18x128xf32, #tpu.memory_space<vmem>>, vector<18x18x128xf32>
    tpu.vector_store %arg7[%c0_10, %c0_11, %c0_12], %17 {strides = array<i32>} : memref<18x18x128xf32, #tpu.memory_space<vmem>>, vector<18x18x128xf32>,
    %19 = vector.shape_cast %15 : vector<256x128xf32> to vector<16x16x128xf32>
    %c1 = arith.constant 1 : index
    %c1_13 = arith.constant 1 : index
    %c0_14 = arith.constant 0 : index
    %20 = vector.load %arg7[%c1, %c1_13, %c0_14] : memref<18x18x128xf32, #tpu.memory_space<vmem>>, vector<16x16x128xf32>
    tpu.vector_store %arg7[%c1, %c1_13, %c0_14], %19 {strides = array<i32>} : memref<18x18x128xf32, #tpu.memory_space<vmem>>, vector<16x16x128xf32>,
    %c0_15 = arith.constant 0 : index
    %c0_16 = arith.constant 0 : index
    %c0_17 = arith.constant 0 : index
    %21 = vector.load %arg7[%c0_15, %c0_16, %c0_17] : memref<18x18x128xf32, #tpu.memory_space<vmem>>, vector<16x16x128xf32>
    %22 = vector.shape_cast %21 : vector<16x16x128xf32> to vector<256x128xf32>
    %23 = arith.truncf %22 : vector<256x128xf32> to vector<256x128xbf16>
    %c0_18 = arith.constant 0 : index
    %c1_19 = arith.constant 1 : index
    %c0_20 = arith.constant 0 : index
    %24 = vector.load %arg7[%c0_18, %c1_19, %c0_20] : memref<18x18x128xf32, #tpu.memory_space<vmem>>, vector<16x16x128xf32>
    %25 = vector.shape_cast %24 : vector<16x16x128xf32> to vector<256x128xf32>
    %26 = arith.truncf %25 : vector<256x128xf32> to vector<256x128xbf16>
    %c0_21 = arith.constant 0 : index
    %c2 = arith.constant 2 : index
    %c0_22 = arith.constant 0 : index
    %27 = vector.load %arg7[%c0_21, %c2, %c0_22] : memref<18x18x128xf32, #tpu.memory_space<vmem>>, vector<16x16x128xf32>
    %28 = vector.shape_cast %27 : vector<16x16x128xf32> to vector<256x128xf32>
    %29 = arith.truncf %28 : vector<256x128xf32> to vector<256x128xbf16>
    %c1_23 = arith.constant 1 : index
    %c0_24 = arith.constant 0 : index
    %c0_25 = arith.constant 0 : index
    %30 = vector.load %arg7[%c1_23, %c0_24, %c0_25] : memref<18x18x128xf32, #tpu.memory_space<vmem>>, vector<16x16x128xf32>
    %31 = vector.shape_cast %30 : vector<16x16x128xf32> to vector<256x128xf32>
    %32 = arith.truncf %31 : vector<256x128xf32> to vector<256x128xbf16>
    %c1_26 = arith.constant 1 : index
    %c1_27 = arith.constant 1 : index
    %c0_28 = arith.constant 0 : index
    %33 = vector.load %arg7[%c1_26, %c1_27, %c0_28] : memref<18x18x128xf32, #tpu.memory_space<vmem>>, vector<16x16x128xf32>
    %34 = vector.shape_cast %33 : vector<16x16x128xf32> to vector<256x128xf32>
    %35 = arith.truncf %34 : vector<256x128xf32> to vector<256x128xbf16>
    %c1_29 = arith.constant 1 : index
    %c2_30 = arith.constant 2 : index
    %c0_31 = arith.constant 0 : index
    %36 = vector.load %arg7[%c1_29, %c2_30, %c0_31] : memref<18x18x128xf32, #tpu.memory_space<vmem>>, vector<16x16x128xf32>
    %37 = vector.shape_cast %36 : vector<16x16x128xf32> to vector<256x128xf32>
    %38 = arith.truncf %37 : vector<256x128xf32> to vector<256x128xbf16>
    %c2_32 = arith.constant 2 : index
    %c0_33 = arith.constant 0 : index
    %c0_34 = arith.constant 0 : index
    %39 = vector.load %arg7[%c2_32, %c0_33, %c0_34] : memref<18x18x128xf32, #tpu.memory_space<vmem>>, vector<16x16x128xf32>
    %40 = vector.shape_cast %39 : vector<16x16x128xf32> to vector<256x128xf32>
    %41 = arith.truncf %40 : vector<256x128xf32> to vector<256x128xbf16>
    %c2_35 = arith.constant 2 : index
    %c1_36 = arith.constant 1 : index
    %c0_37 = arith.constant 0 : index
    %42 = vector.load %arg7[%c2_35, %c1_36, %c0_37] : memref<18x18x128xf32, #tpu.memory_space<vmem>>, vector<16x16x128xf32>
    %43 = vector.shape_cast %42 : vector<16x16x128xf32> to vector<256x128xf32>
    %44 = arith.truncf %43 : vector<256x128xf32> to vector<256x128xbf16>
    %c2_38 = arith.constant 2 : index
    %c2_39 = arith.constant 2 : index
    %c0_40 = arith.constant 0 : index
    %45 = vector.load %arg7[%c2_38, %c2_39, %c0_40] : memref<18x18x128xf32, #tpu.memory_space<vmem>>, vector<16x16x128xf32>
    %46 = vector.shape_cast %45 : vector<16x16x128xf32> to vector<256x128xf32>
    %47 = arith.truncf %46 : vector<256x128xf32> to vector<256x128xbf16>
    %48 = tpu.concatenate %23, %26, %29, %32, %35, %38, %41, %44, %47 in 1 : vector<256x128xbf16>, vector<256x128xbf16>, vector<256x128xbf16>, vector<256x128xbf16>, vector<256x128xbf16>, vector<256x128xbf16>, vector<256x128xbf16>, vector<256x128xbf16>, vector<256x128xbf16> -> vector<256x1152xbf16>
    %c0_41 = arith.constant 0 : index
    %c0_42 = arith.constant 0 : index
    %c0_43 = arith.constant 0 : index
    %49 = vector.load %arg4[%c0_41, %c0_42, %c0_43] : memref<3x1152x128xbf16, #tpu.memory_space<vmem>>, vector<1x1152x128xbf16>
    %50 = vector.shape_cast %49 : vector<1x1152x128xbf16> to vector<1152x128xbf16>
    %cst_44 = arith.constant dense<0.000000e+00> : vector<256x128xf32>
    %51 = tpu.matmul %48, %50, %cst_44 {dimension_numbers = #tpu.dot_dimension_numbers<[1], [0], [0], [1], [0, 0, 1, 1], [], []>} : vector<256x1152xbf16>, vector<1152x128xbf16>, vector<256x128xf32> -> vector<256x128xf32>
    %c0_45 = arith.constant 0 : index
    %c0_46 = arith.constant 0 : index
    %c0_47 = arith.constant 0 : index
    %52 = vector.load %arg5[%c0_45, %c0_46, %c0_47] : memref<3x1x128xf32, #tpu.memory_space<vmem>>, vector<1x1x128xf32>
    %53 = vector.shape_cast %52 : vector<1x1x128xf32> to vector<1x128xf32>
    %54 = vector.broadcast %53 : vector<1x128xf32> to vector<256x128xf32>
    %55 = arith.addf %51, %54 : vector<256x128xf32>
    %cst_48 = arith.constant 0.000000e+00 : f32
    %56 = vector.broadcast %cst_48 : f32 to vector<256x128xf32>
    %57 = arith.subf %56, %55 : vector<256x128xf32>
    %58 = math.exp %57 : vector<256x128xf32>
    %cst_49 = arith.constant 1.000000e+00 : f32
    %59 = vector.broadcast %cst_49 : f32 to vector<256x128xf32>
    %60 = arith.addf %59, %58 : vector<256x128xf32>
    %61 = tpu.reciprocal %60 {approx = true} : vector<256x128xf32> -> vector<256x128xf32>
    %62 = arith.mulf %55, %61 : vector<256x128xf32>
    %63 = vector.shape_cast %62 : vector<256x128xf32> to vector<16x16x128xf32>
    %c1_50 = arith.constant 1 : index
    %c1_51 = arith.constant 1 : index
    %c0_52 = arith.constant 0 : index
    %64 = vector.load %arg7[%c1_50, %c1_51, %c0_52] : memref<18x18x128xf32, #tpu.memory_space<vmem>>, vector<16x16x128xf32>
    tpu.vector_store %arg7[%c1_50, %c1_51, %c0_52], %63 {strides = array<i32>} : memref<18x18x128xf32, #tpu.memory_space<vmem>>, vector<16x16x128xf32>,
    %c0_53 = arith.constant 0 : index
    %c0_54 = arith.constant 0 : index
    %c0_55 = arith.constant 0 : index
    %65 = vector.load %arg7[%c0_53, %c0_54, %c0_55] : memref<18x18x128xf32, #tpu.memory_space<vmem>>, vector<16x16x128xf32>
    %66 = vector.shape_cast %65 : vector<16x16x128xf32> to vector<256x128xf32>
    %67 = arith.truncf %66 : vector<256x128xf32> to vector<256x128xbf16>
    %c0_56 = arith.constant 0 : index
    %c1_57 = arith.constant 1 : index
    %c0_58 = arith.constant 0 : index
    %68 = vector.load %arg7[%c0_56, %c1_57, %c0_58] : memref<18x18x128xf32, #tpu.memory_space<vmem>>, vector<16x16x128xf32>
    %69 = vector.shape_cast %68 : vector<16x16x128xf32> to vector<256x128xf32>
    %70 = arith.truncf %69 : vector<256x128xf32> to vector<256x128xbf16>
    %c0_59 = arith.constant 0 : index
    %c2_60 = arith.constant 2 : index
    %c0_61 = arith.constant 0 : index
    %71 = vector.load %arg7[%c0_59, %c2_60, %c0_61] : memref<18x18x128xf32, #tpu.memory_space<vmem>>, vector<16x16x128xf32>
    %72 = vector.shape_cast %71 : vector<16x16x128xf32> to vector<256x128xf32>
    %73 = arith.truncf %72 : vector<256x128xf32> to vector<256x128xbf16>
    %c1_62 = arith.constant 1 : index
    %c0_63 = arith.constant 0 : index
    %c0_64 = arith.constant 0 : index
    %74 = vector.load %arg7[%c1_62, %c0_63, %c0_64] : memref<18x18x128xf32, #tpu.memory_space<vmem>>, vector<16x16x128xf32>
    %75 = vector.shape_cast %74 : vector<16x16x128xf32> to vector<256x128xf32>
    %76 = arith.truncf %75 : vector<256x128xf32> to vector<256x128xbf16>
    %c1_65 = arith.constant 1 : index
    %c1_66 = arith.constant 1 : index
    %c0_67 = arith.constant 0 : index
    %77 = vector.load %arg7[%c1_65, %c1_66, %c0_67] : memref<18x18x128xf32, #tpu.memory_space<vmem>>, vector<16x16x128xf32>
    %78 = vector.shape_cast %77 : vector<16x16x128xf32> to vector<256x128xf32>
    %79 = arith.truncf %78 : vector<256x128xf32> to vector<256x128xbf16>
    %c1_68 = arith.constant 1 : index
    %c2_69 = arith.constant 2 : index
    %c0_70 = arith.constant 0 : index
    %80 = vector.load %arg7[%c1_68, %c2_69, %c0_70] : memref<18x18x128xf32, #tpu.memory_space<vmem>>, vector<16x16x128xf32>
    %81 = vector.shape_cast %80 : vector<16x16x128xf32> to vector<256x128xf32>
    %82 = arith.truncf %81 : vector<256x128xf32> to vector<256x128xbf16>
    %c2_71 = arith.constant 2 : index
    %c0_72 = arith.constant 0 : index
    %c0_73 = arith.constant 0 : index
    %83 = vector.load %arg7[%c2_71, %c0_72, %c0_73] : memref<18x18x128xf32, #tpu.memory_space<vmem>>, vector<16x16x128xf32>
    %84 = vector.shape_cast %83 : vector<16x16x128xf32> to vector<256x128xf32>
    %85 = arith.truncf %84 : vector<256x128xf32> to vector<256x128xbf16>
    %c2_74 = arith.constant 2 : index
    %c1_75 = arith.constant 1 : index
    %c0_76 = arith.constant 0 : index
    %86 = vector.load %arg7[%c2_74, %c1_75, %c0_76] : memref<18x18x128xf32, #tpu.memory_space<vmem>>, vector<16x16x128xf32>
    %87 = vector.shape_cast %86 : vector<16x16x128xf32> to vector<256x128xf32>
    %88 = arith.truncf %87 : vector<256x128xf32> to vector<256x128xbf16>
    %c2_77 = arith.constant 2 : index
    %c2_78 = arith.constant 2 : index
    %c0_79 = arith.constant 0 : index
    %89 = vector.load %arg7[%c2_77, %c2_78, %c0_79] : memref<18x18x128xf32, #tpu.memory_space<vmem>>, vector<16x16x128xf32>
    %90 = vector.shape_cast %89 : vector<16x16x128xf32> to vector<256x128xf32>
    %91 = arith.truncf %90 : vector<256x128xf32> to vector<256x128xbf16>
    %92 = tpu.concatenate %67, %70, %73, %76, %79, %82, %85, %88, %91 in 1 : vector<256x128xbf16>, vector<256x128xbf16>, vector<256x128xbf16>, vector<256x128xbf16>, vector<256x128xbf16>, vector<256x128xbf16>, vector<256x128xbf16>, vector<256x128xbf16>, vector<256x128xbf16> -> vector<256x1152xbf16>
    %c1_80 = arith.constant 1 : index
    %c0_81 = arith.constant 0 : index
    %c0_82 = arith.constant 0 : index
    %93 = vector.load %arg4[%c1_80, %c0_81, %c0_82] : memref<3x1152x128xbf16, #tpu.memory_space<vmem>>, vector<1x1152x128xbf16>
    %94 = vector.shape_cast %93 : vector<1x1152x128xbf16> to vector<1152x128xbf16>
    %cst_83 = arith.constant dense<0.000000e+00> : vector<256x128xf32>
    %95 = tpu.matmul %92, %94, %cst_83 {dimension_numbers = #tpu.dot_dimension_numbers<[1], [0], [0], [1], [0, 0, 1, 1], [], []>} : vector<256x1152xbf16>, vector<1152x128xbf16>, vector<256x128xf32> -> vector<256x128xf32>
    %c1_84 = arith.constant 1 : index
    %c0_85 = arith.constant 0 : index
    %c0_86 = arith.constant 0 : index
    %96 = vector.load %arg5[%c1_84, %c0_85, %c0_86] : memref<3x1x128xf32, #tpu.memory_space<vmem>>, vector<1x1x128xf32>
    %97 = vector.shape_cast %96 : vector<1x1x128xf32> to vector<1x128xf32>
    %98 = vector.broadcast %97 : vector<1x128xf32> to vector<256x128xf32>
    %99 = arith.addf %95, %98 : vector<256x128xf32>
    %cst_87 = arith.constant 0.000000e+00 : f32
    %100 = vector.broadcast %cst_87 : f32 to vector<256x128xf32>
    %101 = arith.subf %100, %99 : vector<256x128xf32>
    %102 = math.exp %101 : vector<256x128xf32>
    %cst_88 = arith.constant 1.000000e+00 : f32
    %103 = vector.broadcast %cst_88 : f32 to vector<256x128xf32>
    %104 = arith.addf %103, %102 : vector<256x128xf32>
    %105 = tpu.reciprocal %104 {approx = true} : vector<256x128xf32> -> vector<256x128xf32>
    %106 = arith.mulf %99, %105 : vector<256x128xf32>
    %107 = vector.shape_cast %106 : vector<256x128xf32> to vector<16x16x128xf32>
    %c1_89 = arith.constant 1 : index
    %c1_90 = arith.constant 1 : index
    %c0_91 = arith.constant 0 : index
    %108 = vector.load %arg7[%c1_89, %c1_90, %c0_91] : memref<18x18x128xf32, #tpu.memory_space<vmem>>, vector<16x16x128xf32>
    tpu.vector_store %arg7[%c1_89, %c1_90, %c0_91], %107 {strides = array<i32>} : memref<18x18x128xf32, #tpu.memory_space<vmem>>, vector<16x16x128xf32>,
    %c0_92 = arith.constant 0 : index
    %c0_93 = arith.constant 0 : index
    %c0_94 = arith.constant 0 : index
    %109 = vector.load %arg7[%c0_92, %c0_93, %c0_94] : memref<18x18x128xf32, #tpu.memory_space<vmem>>, vector<16x16x128xf32>
    %110 = vector.shape_cast %109 : vector<16x16x128xf32> to vector<256x128xf32>
    %111 = arith.truncf %110 : vector<256x128xf32> to vector<256x128xbf16>
    %c0_95 = arith.constant 0 : index
    %c1_96 = arith.constant 1 : index
    %c0_97 = arith.constant 0 : index
    %112 = vector.load %arg7[%c0_95, %c1_96, %c0_97] : memref<18x18x128xf32, #tpu.memory_space<vmem>>, vector<16x16x128xf32>
    %113 = vector.shape_cast %112 : vector<16x16x128xf32> to vector<256x128xf32>
    %114 = arith.truncf %113 : vector<256x128xf32> to vector<256x128xbf16>
    %c0_98 = arith.constant 0 : index
    %c2_99 = arith.constant 2 : index
    %c0_100 = arith.constant 0 : index
    %115 = vector.load %arg7[%c0_98, %c2_99, %c0_100] : memref<18x18x128xf32, #tpu.memory_space<vmem>>, vector<16x16x128xf32>
    %116 = vector.shape_cast %115 : vector<16x16x128xf32> to vector<256x128xf32>
    %117 = arith.truncf %116 : vector<256x128xf32> to vector<256x128xbf16>
    %c1_101 = arith.constant 1 : index
    %c0_102 = arith.constant 0 : index
    %c0_103 = arith.constant 0 : index
    %118 = vector.load %arg7[%c1_101, %c0_102, %c0_103] : memref<18x18x128xf32, #tpu.memory_space<vmem>>, vector<16x16x128xf32>
    %119 = vector.shape_cast %118 : vector<16x16x128xf32> to vector<256x128xf32>
    %120 = arith.truncf %119 : vector<256x128xf32> to vector<256x128xbf16>
    %c1_104 = arith.constant 1 : index
    %c1_105 = arith.constant 1 : index
    %c0_106 = arith.constant 0 : index
    %121 = vector.load %arg7[%c1_104, %c1_105, %c0_106] : memref<18x18x128xf32, #tpu.memory_space<vmem>>, vector<16x16x128xf32>
    %122 = vector.shape_cast %121 : vector<16x16x128xf32> to vector<256x128xf32>
    %123 = arith.truncf %122 : vector<256x128xf32> to vector<256x128xbf16>
    %c1_107 = arith.constant 1 : index
    %c2_108 = arith.constant 2 : index
    %c0_109 = arith.constant 0 : index
    %124 = vector.load %arg7[%c1_107, %c2_108, %c0_109] : memref<18x18x128xf32, #tpu.memory_space<vmem>>, vector<16x16x128xf32>
    %125 = vector.shape_cast %124 : vector<16x16x128xf32> to vector<256x128xf32>
    %126 = arith.truncf %125 : vector<256x128xf32> to vector<256x128xbf16>
    %c2_110 = arith.constant 2 : index
    %c0_111 = arith.constant 0 : index
    %c0_112 = arith.constant 0 : index
    %127 = vector.load %arg7[%c2_110, %c0_111, %c0_112] : memref<18x18x128xf32, #tpu.memory_space<vmem>>, vector<16x16x128xf32>
    %128 = vector.shape_cast %127 : vector<16x16x128xf32> to vector<256x128xf32>
    %129 = arith.truncf %128 : vector<256x128xf32> to vector<256x128xbf16>
    %c2_113 = arith.constant 2 : index
    %c1_114 = arith.constant 1 : index
    %c0_115 = arith.constant 0 : index
    %130 = vector.load %arg7[%c2_113, %c1_114, %c0_115] : memref<18x18x128xf32, #tpu.memory_space<vmem>>, vector<16x16x128xf32>
    %131 = vector.shape_cast %130 : vector<16x16x128xf32> to vector<256x128xf32>
    %132 = arith.truncf %131 : vector<256x128xf32> to vector<256x128xbf16>
    %c2_116 = arith.constant 2 : index
    %c2_117 = arith.constant 2 : index
    %c0_118 = arith.constant 0 : index
    %133 = vector.load %arg7[%c2_116, %c2_117, %c0_118] : memref<18x18x128xf32, #tpu.memory_space<vmem>>, vector<16x16x128xf32>
    %134 = vector.shape_cast %133 : vector<16x16x128xf32> to vector<256x128xf32>
    %135 = arith.truncf %134 : vector<256x128xf32> to vector<256x128xbf16>
    %136 = tpu.concatenate %111, %114, %117, %120, %123, %126, %129, %132, %135 in 1 : vector<256x128xbf16>, vector<256x128xbf16>, vector<256x128xbf16>, vector<256x128xbf16>, vector<256x128xbf16>, vector<256x128xbf16>, vector<256x128xbf16>, vector<256x128xbf16>, vector<256x128xbf16> -> vector<256x1152xbf16>
    %c2_119 = arith.constant 2 : index
    %c0_120 = arith.constant 0 : index
    %c0_121 = arith.constant 0 : index
    %137 = vector.load %arg4[%c2_119, %c0_120, %c0_121] : memref<3x1152x128xbf16, #tpu.memory_space<vmem>>, vector<1x1152x128xbf16>
    %138 = vector.shape_cast %137 : vector<1x1152x128xbf16> to vector<1152x128xbf16>
    %cst_122 = arith.constant dense<0.000000e+00> : vector<256x128xf32>
    %139 = tpu.matmul %136, %138, %cst_122 {dimension_numbers = #tpu.dot_dimension_numbers<[1], [0], [0], [1], [0, 0, 1, 1], [], []>} : vector<256x1152xbf16>, vector<1152x128xbf16>, vector<256x128xf32> -> vector<256x128xf32>
    %c2_123 = arith.constant 2 : index
    %c0_124 = arith.constant 0 : index
    %c0_125 = arith.constant 0 : index
    %140 = vector.load %arg5[%c2_123, %c0_124, %c0_125] : memref<3x1x128xf32, #tpu.memory_space<vmem>>, vector<1x1x128xf32>
    %141 = vector.shape_cast %140 : vector<1x1x128xf32> to vector<1x128xf32>
    %142 = vector.broadcast %141 : vector<1x128xf32> to vector<256x128xf32>
    %143 = arith.addf %139, %142 : vector<256x128xf32>
    %cst_126 = arith.constant 0.000000e+00 : f32
    %144 = vector.broadcast %cst_126 : f32 to vector<256x128xf32>
    %145 = arith.subf %144, %143 : vector<256x128xf32>
    %146 = math.exp %145 : vector<256x128xf32>
    %cst_127 = arith.constant 1.000000e+00 : f32
    %147 = vector.broadcast %cst_127 : f32 to vector<256x128xf32>
    %148 = arith.addf %147, %146 : vector<256x128xf32>
    %149 = tpu.reciprocal %148 {approx = true} : vector<256x128xf32> -> vector<256x128xf32>
    %150 = arith.mulf %143, %149 : vector<256x128xf32>
    %151 = arith.addf %150, %16 : vector<256x128xf32>
    %152 = vector.shape_cast %151 : vector<256x128xf32> to vector<16x16x128xf32>
    %c0_128 = arith.constant 0 : index
    %c0_129 = arith.constant 0 : index
    %c0_130 = arith.constant 0 : index
    %c0_131 = arith.constant 0 : index
    %153 = vector.load %arg6[%c0_128, %c0_129, %c0_130, %c0_131] : memref<1x16x16x128xf32, #tpu.memory_space<vmem>>, vector<1x16x16x128xf32>
    %154 = vector.shape_cast %153 : vector<1x16x16x128xf32> to vector<16x16x128xf32>
    %155 = vector.shape_cast %152 : vector<16x16x128xf32> to vector<1x16x16x128xf32>
    tpu.vector_store %arg6[%c0_128, %c0_129, %c0_130, %c0_131], %155 {strides = array<i32>} : memref<1x16x16x128xf32, #tpu.memory_space<vmem>>, vector<1x16x16x128xf32>,
    return
  }
  func.func @transform_0(%arg0: i32) -> (i32, i32, i32, i32) {
    %c0_i32 = arith.constant 0 : i32
    %c0_i32_0 = arith.constant 0 : i32
    %c0_i32_1 = arith.constant 0 : i32
    %c0_i32_2 = arith.constant 0 : i32
    return %arg0, %c0_i32, %c0_i32_0, %c0_i32_1 : i32, i32, i32, i32
  }
  func.func @transform_1(%arg0: i32) -> (i32, i32) {
    %c0_i32 = arith.constant 0 : i32
    %c0_i32_0 = arith.constant 0 : i32
    %c0_i32_1 = arith.constant 0 : i32
    return %c0_i32, %c0_i32_0 : i32, i32
  }
  func.func @transform_2(%arg0: i32) -> (i32, i32) {
    %c0_i32 = arith.constant 0 : i32
    %c0_i32_0 = arith.constant 0 : i32
    %c0_i32_1 = arith.constant 0 : i32
    return %c0_i32, %c0_i32_0 : i32, i32
  }
  func.func @transform_3(%arg0: i32) -> (i32, i32, i32) {
    %c0_i32 = arith.constant 0 : i32
    %c0_i32_0 = arith.constant 0 : i32
    %c0_i32_1 = arith.constant 0 : i32
    %c0_i32_2 = arith.constant 0 : i32
    return %c0_i32, %c0_i32_0, %c0_i32_1 : i32, i32, i32
  }
  func.func @transform_4(%arg0: i32) -> (i32, i32, i32) {
    %c0_i32 = arith.constant 0 : i32
    %c0_i32_0 = arith.constant 0 : i32
    %c0_i32_1 = arith.constant 0 : i32
    %c0_i32_2 = arith.constant 0 : i32
    return %c0_i32, %c0_i32_0, %c0_i32_1 : i32, i32, i32
  }
  func.func @transform_5(%arg0: i32) -> (i32, i32, i32, i32) {
    %c0_i32 = arith.constant 0 : i32
    %c0_i32_0 = arith.constant 0 : i32
    %c0_i32_1 = arith.constant 0 : i32
    %c0_i32_2 = arith.constant 0 : i32
    return %arg0, %c0_i32, %c0_i32_0, %c0_i32_1 : i32, i32, i32, i32
  }
}

</mosaic_0001>

<llo_original>
// kernel: repc3_forward.1
$region0: #{repc3_forward.1}
  #allocation0 [shape = 'u32[]', space=smem, size = 0x4, offset = 0x4, fixed_abs, tag = 'smem constant byte address 0x4 - core index']
  #allocation1 [shape = 'u32[144,128]{1,0:T(1,128)}', space=vmem, size = 0x12000, scoped, tag = 'internal scratch']
  #allocation2 [shape = 'f32[18,18,128]{2,1,0:T(8,128)}', space=vmem, size = 0x36000, scoped, tag = 'scratch operand']
  %s0 = inlined_call_operand.vmem [shape: bf16[2,16,16,128], index: 0, kind: input, shape index: {}]
  %s1 = inlined_call_operand.vmem [shape: bf16[128,256], index: 1, kind: input, shape index: {}]
  %s2 = inlined_call_operand.vmem [shape: f32[1,256], index: 2, kind: input, shape index: {}]
  %s3 = inlined_call_operand.vmem [shape: bf16[3,1152,128], index: 3, kind: input, shape index: {}]
  %s4 = inlined_call_operand.vmem [shape: f32[3,1,128], index: 4, kind: input, shape index: {}]
  %s5 = inlined_call_operand.vmem [shape: f32[2,16,16,128], index: 5, kind: output, shape index: {}]
  %s6 = sld [smem:[#allocation0]]
  $region53: #{repc3_forward.1} parent=0
    _
  %s8 = ssub.s32 1, %s6
  %s9 = scalar_select 0, %s8, %s6
  loop: start=0, step=1, limit=4
  $region2: #{repc3_forward.1} parent=0 // loop_pre_header
    _
  $region3: #{repc3_forward.1} parent=0 // loop_header
    %s11 = sphi 0, %s15
    %p12 = scmp.ge.s32.totalorder %s11, 4
    %s21 = sphi 0, %s23
    %s24 = sphi 0, %s21
    %s25 = sphi 0, %s24
    %s41 = sphi 0, %s25
    %s45 = sphi 0, %s45
    %s47 = sphi 0, %s45
    %s48 = sphi 0, %s47
    %s62 = sphi 0, %s48
    %s66 = sphi 0, %s66
    %s68 = sphi 0, %s66
    %s69 = sphi 0, %s68
    %s83 = sphi 0, %s69
    %s87 = sphi 0, %s87
    %s89 = sphi 0, %s87
    %s90 = sphi 0, %s89
    %s104 = sphi 0, %s90
    %s108 = sphi 0, %s108
    %s110 = sphi 0, %s108
    %s111 = sphi 0, %s110
    %s125 = sphi 0, %s111
    %s131 = sphi 0, %s133
    %s134 = sphi 0, %s131
    %s135 = sphi 0, %s134
    %s151 = sphi 0, %s135
  $region4: #{repc3_forward.1} parent=0 // loop_header_branch
    %14 = sbr.rel (%p12) target = $region8
  $region5: #{repc3_forward.1} parent=0 // loop_body
    %s16 = ssub.s32 %s11, 1
    %s17 = ssub.s32 %s11, 2
    %s18 = sadd.s32 %s11, 1
    %s19 = ssub.s32 %s11, %s18
    %p20 = scmp.eq.s32.totalorder %s19, 0
    %s22 = sadd.s32 %s21, 1
    %s23 = scalar_select %p20, %s21, %s22
    %p26 = pneg %p20
    %p27 = scmp.eq.s32.totalorder %s11, 1
    %p28 = por %p26, %p27
    %p29 = scmp.ne.s32.totalorder %s21, %s24
    %p30 = scmp.eq.s32.totalorder %s11, 0
    %p31 = por %p29, %p30
    %p32 = scmp.ne.s32.totalorder %s21, %s24
    %p33 = scmp.eq.s32.totalorder %s16, 1
    %p34 = por %p32, %p33
    %p35 = scmp.ne.s32.totalorder %s24, %s25
    %p36 = scmp.eq.s32.totalorder %s16, 0
    %p37 = por %p35, %p36
    %p38 = scmp.ne.s32.totalorder %s24, %s25
    %p39 = scmp.eq.s32.totalorder %s17, 1
    %p40 = por %p38, %p39
    %p42 = scmp.ne.s32.totalorder %s25, %s41
    %p43 = scmp.eq.s32.totalorder %s17, 0
    %p44 = por %p42, %p43
    %s46 = sadd.s32 %s45, 1
    %p49 = scmp.eq.s32.totalorder %s11, 1
    %p50 = scmp.ne.s32.totalorder %s45, %s47
    %p51 = scmp.eq.s32.totalorder %s11, 0
    %p52 = por %p50, %p51
    %p53 = scmp.ne.s32.totalorder %s45, %s47
    %p54 = scmp.eq.s32.totalorder %s16, 1
    %p55 = por %p53, %p54
    %p56 = scmp.ne.s32.totalorder %s47, %s48
    %p57 = scmp.eq.s32.totalorder %s16, 0
    %p58 = por %p56, %p57
    %p59 = scmp.ne.s32.totalorder %s47, %s48
    %p60 = scmp.eq.s32.totalorder %s17, 1
    %p61 = por %p59, %p60
    %p63 = scmp.ne.s32.totalorder %s48, %s62
    %p64 = scmp.eq.s32.totalorder %s17, 0
    %p65 = por %p63, %p64
    %s67 = sadd.s32 %s66, 1
    %p70 = scmp.eq.s32.totalorder %s11, 1
    %p71 = scmp.ne.s32.totalorder %s66, %s68
    %p72 = scmp.eq.s32.totalorder %s11, 0
    %p73 = por %p71, %p72
    %p74 = scmp.ne.s32.totalorder %s66, %s68
    %p75 = scmp.eq.s32.totalorder %s16, 1
    %p76 = por %p74, %p75
    %p77 = scmp.ne.s32.totalorder %s68, %s69
    %p78 = scmp.eq.s32.totalorder %s16, 0
    %p79 = por %p77, %p78
    %p80 = scmp.ne.s32.totalorder %s68, %s69
    %p81 = scmp.eq.s32.totalorder %s17, 1
    %p82 = por %p80, %p81
    %p84 = scmp.ne.s32.totalorder %s69, %s83
    %p85 = scmp.eq.s32.totalorder %s17, 0
    %p86 = por %p84, %p85
    %s88 = sadd.s32 %s87, 1
    %p91 = scmp.eq.s32.totalorder %s11, 1
    %p92 = scmp.ne.s32.totalorder %s87, %s89
    %p93 = scmp.eq.s32.totalorder %s11, 0
    %p94 = por %p92, %p93
    %p95 = scmp.ne.s32.totalorder %s87, %s89
    %p96 = scmp.eq.s32.totalorder %s16, 1
    %p97 = por %p95, %p96
    %p98 = scmp.ne.s32.totalorder %s89, %s90
    %p99 = scmp.eq.s32.totalorder %s16, 0
    %p100 = por %p98, %p99
    %p101 = scmp.ne.s32.totalorder %s89, %s90
    %p102 = scmp.eq.s32.totalorder %s17, 1
    %p103 = por %p101, %p102
    %p105 = scmp.ne.s32.totalorder %s90, %s104
    %p106 = scmp.eq.s32.totalorder %s17, 0
    %p107 = por %p105, %p106
    %s109 = sadd.s32 %s108, 1
    %p112 = scmp.eq.s32.totalorder %s11, 1
    %p113 = scmp.ne.s32.totalorder %s108, %s110
    %p114 = scmp.eq.s32.totalorder %s11, 0
    %p115 = por %p113, %p114
    %p116 = scmp.ne.s32.totalorder %s108, %s110
    %p117 = scmp.eq.s32.totalorder %s16, 1
    %p118 = por %p116, %p117
    %p119 = scmp.ne.s32.totalorder %s110, %s111
    %p120 = scmp.eq.s32.totalorder %s16, 0
    %p121 = por %p119, %p120
    %p122 = scmp.ne.s32.totalorder %s110, %s111
    %p123 = scmp.eq.s32.totalorder %s17, 1
    %p124 = por %p122, %p123
    %p126 = scmp.ne.s32.totalorder %s111, %s125
    %p127 = scmp.eq.s32.totalorder %s17, 0
    %p128 = por %p126, %p127
    %s129 = ssub.s32 %s11, %s18
    %p130 = scmp.eq.s32.totalorder %s129, 0
    %s132 = sadd.s32 %s131, 1
    %s133 = scalar_select %p130, %s131, %s132
    %p136 = pneg %p130
    %p137 = scmp.eq.s32.totalorder %s11, 1
    %p138 = por %p136, %p137
    %p139 = scmp.ne.s32.totalorder %s131, %s134
    %p140 = scmp.eq.s32.totalorder %s11, 0
    %p141 = por %p139, %p140
    %p142 = scmp.ne.s32.totalorder %s131, %s134
    %p143 = scmp.eq.s32.totalorder %s16, 1
    %p144 = por %p142, %p143
    %p145 = scmp.ne.s32.totalorder %s134, %s135
    %p146 = scmp.eq.s32.totalorder %s16, 0
    %p147 = por %p145, %p146
    %p148 = scmp.ne.s32.totalorder %s134, %s135
    %p149 = scmp.eq.s32.totalorder %s17, 1
    %p150 = por %p148, %p149
    %p152 = scmp.ne.s32.totalorder %s135, %s151
    %p153 = scmp.eq.s32.totalorder %s17, 0
    %p154 = por %p152, %p153
    %p155 = scmp.le.s32.totalorder 1, %s11
    %p156 = scmp.lt.s32.totalorder %s11, 3
    %p157 = pnand %p155, %p156
    %p158 = pneg %p157
    // Predicated region
    $region9: #{repc3_forward.1} parent=5 // pred_check
      _
    $region10: #{repc3_forward.1} parent=5 // pred_check_branch
      %160 = sbr.rel (%p157) target = $region12
    $region11: #{repc3_forward.1} parent=5 // pred_region
      %s161 = ssub.s32 %s11, 1
      // Predicated region
      $region13: #{repc3_forward.1} parent=11 // pred_check
        %p162 = pneg %p58
      $region14: #{repc3_forward.1} parent=11 // pred_check_branch
        %164 = sbr.rel (%p162) target = $region16
      $region15: #{repc3_forward.1} parent=11 // pred_region
        _
      $region16: #{repc3_forward.1} parent=11 // pred_fallthru
        _
      // Predicated region
      $region17: #{repc3_forward.1} parent=11 // pred_check
        %p165 = pneg %p79
      $region18: #{repc3_forward.1} parent=11 // pred_check_branch
        %167 = sbr.rel (%p165) target = $region20
      $region19: #{repc3_forward.1} parent=11 // pred_region
        _
      $region20: #{repc3_forward.1} parent=11 // pred_fallthru
        _
      // Predicated region
      $region21: #{repc3_forward.1} parent=11 // pred_check
        %p168 = pneg %p100
      $region22: #{repc3_forward.1} parent=11 // pred_check_branch
        %170 = sbr.rel (%p168) target = $region24
      $region23: #{repc3_forward.1} parent=11 // pred_region
        _
      $region24: #{repc3_forward.1} parent=11 // pred_fallthru
        _
      // Predicated region
      $region25: #{repc3_forward.1} parent=11 // pred_check
        %p171 = pneg %p121
      $region26: #{repc3_forward.1} parent=11 // pred_check_branch
        %173 = sbr.rel (%p171) target = $region28
      $region27: #{repc3_forward.1} parent=11 // pred_region
        _
      $region28: #{repc3_forward.1} parent=11 // pred_fallthru
        _
    $region12: #{repc3_forward.1} parent=5 // pred_fallthru
      _
    %p174 = scmp.lt.s32.totalorder %s11, 2
    // Predicated region
    $region29: #{repc3_forward.1} parent=5 // pred_check
      %p175 = pneg %p174
    $region30: #{repc3_forward.1} parent=5 // pred_check_branch
      %177 = sbr.rel (%p175) target = $region32
    $region31: #{repc3_forward.1} parent=5 // pred_region
      // Predicated region
      $region33: #{repc3_forward.1} parent=31 // pred_check
        %p178 = pneg %p31
      $region34: #{repc3_forward.1} parent=31 // pred_check_branch
        %180 = sbr.rel (%p178) target = $region36
      $region35: #{repc3_forward.1} parent=31 // pred_region
        %p181 = scmp.lt.s32.totalorder %s11, 1
        %s182 = scalar_select %p181, %s11, 1
        %s183 = smul.addr %s182, 32
        %s184 = smul.addr %s183, 4
        %s185 = scalar_lea.vmem %s0, %s184
      $region36: #{repc3_forward.1} parent=31 // pred_fallthru
        _
    $region32: #{repc3_forward.1} parent=5 // pred_fallthru
      _
    %p186 = scmp.le.s32.totalorder 1, %s11
    %p187 = scmp.lt.s32.totalorder %s11, 3
    %p188 = pnand %p186, %p187
    %p189 = pneg %p188
    // Predicated region
    $region37: #{repc3_forward.1} parent=5 // pred_check
      _
    $region38: #{repc3_forward.1} parent=5 // pred_check_branch
      %191 = sbr.rel (%p188) target = $region40
    $region39: #{repc3_forward.1} parent=5 // pred_region
      %s192 = ssub.s32 %s11, 1
      %p193 = scmp.lt.s32.totalorder %s16, 1
      %s194 = scalar_select %p193, %s16, 1
      %s195 = smul.addr %s194, 32
      %s196 = smul.addr %s195, 4
      %s197 = scalar_lea.vmem %s0, %s196
      %p198 = pneg %p37
      %p199 = pneg %p34
      %p200 = pneg %p58
      %p201 = pneg %p55
      %p202 = pneg %p79
      %p203 = pneg %p76
      %p204 = pneg %p100
      %p205 = pneg %p97
      %p206 = pneg %p121
      %p207 = pneg %p118
      %p208 = pneg %p147
      %p209 = pneg %p144
      %p210 = scmp.lt.s32.totalorder %s16, 1
      %s211 = scalar_select %p210, %s16, 1
      %s212 = smul.addr %s211, 32
      %s213 = smul.addr %s212, 8
      %s214 = scalar_lea.vmem %s5, %s213
      %p215 = scmp.lt.s32.totalorder %s16, 1
      %s216 = scalar_select %p215, %s16, 1
      %s217 = smul.addr %s216, 32
      %s218 = smul.addr %s217, 4
      %s219 = scalar_lea.vmem %s0, %s218
      %p220 = scmp.lt.s32.totalorder %s16, 1
      %s221 = scalar_select %p220, %s16, 1
      %s222 = smul.addr %s221, 32
      %s223 = smul.addr %s222, 8
      %s224 = scalar_lea.vmem %s5, %s223
      %v226 = vld [vmem:[%s219] sm:$0xf]
      %v227 = vld [vmem:[%s219 + $0x4] sm:$0xf]
      %v228 = vld [vmem:[%s219 + $0x8] sm:$0xf]
      %v229 = vld [vmem:[%s219 + $0xc] sm:$0xf]
      %v230 = vld [vmem:[%s219 + $0x10] sm:$0xf]
      %v231 = vld [vmem:[%s219 + $0x14] sm:$0xf]
      %v232 = vld [vmem:[%s219 + $0x18] sm:$0xf]
      %v233 = vld [vmem:[%s219 + $0x1c] sm:$0xf]
      %v234 = vld [vmem:[%s219 + $0x20] sm:$0xf]
      %v235 = vld [vmem:[%s219 + $0x24] sm:$0xf]
      %v236 = vld [vmem:[%s219 + $0x28] sm:$0xf]
      %v237 = vld [vmem:[%s219 + $0x2c] sm:$0xf]
      %v238 = vld [vmem:[%s219 + $0x30] sm:$0xf]
      %v239 = vld [vmem:[%s219 + $0x34] sm:$0xf]
      %v240 = vld [vmem:[%s219 + $0x38] sm:$0xf]
      %v241 = vld [vmem:[%s219 + $0x3c] sm:$0xf]
      %v242 = vld [vmem:[%s219 + $0x40] sm:$0xf]
      %v243 = vld [vmem:[%s219 + $0x44] sm:$0xf]
      %v244 = vld [vmem:[%s219 + $0x48] sm:$0xf]
      %v245 = vld [vmem:[%s219 + $0x4c] sm:$0xf]
      %v246 = vld [vmem:[%s219 + $0x50] sm:$0xf]
      %v247 = vld [vmem:[%s219 + $0x54] sm:$0xf]
      %v248 = vld [vmem:[%s219 + $0x58] sm:$0xf]
      %v249 = vld [vmem:[%s219 + $0x5c] sm:$0xf]
      %v250 = vld [vmem:[%s219 + $0x60] sm:$0xf]
      %v251 = vld [vmem:[%s219 + $0x64] sm:$0xf]
      %v252 = vld [vmem:[%s219 + $0x68] sm:$0xf]
      %v253 = vld [vmem:[%s219 + $0x6c] sm:$0xf]
      %v254 = vld [vmem:[%s219 + $0x70] sm:$0xf]
      %v255 = vld [vmem:[%s219 + $0x74] sm:$0xf]
      %v256 = vld [vmem:[%s219 + $0x78] sm:$0xf]
      %v257 = vld [vmem:[%s219 + $0x7c] sm:$0xf]
      %v258 = vld [vmem:[%s1] sm:$0xff]
      %v259 = vld [vmem:[%s1 + $0x8] sm:$0xff]
      %v260 = vld [vmem:[%s1 + $0x10] sm:$0xff]
      %v261 = vld [vmem:[%s1 + $0x18] sm:$0xff]
      %v262 = vld [vmem:[%s1 + $0x20] sm:$0xff]
      %v263 = vld [vmem:[%s1 + $0x28] sm:$0xff]
      %v264 = vld [vmem:[%s1 + $0x30] sm:$0xff]
      %v265 = vld [vmem:[%s1 + $0x38] sm:$0xff]
      %v266 = vld [vmem:[%s1 + $0x40] sm:$0xff]
      %v267 = vld [vmem:[%s1 + $0x48] sm:$0xff]
      %v268 = vld [vmem:[%s1 + $0x50] sm:$0xff]
      %v269 = vld [vmem:[%s1 + $0x58] sm:$0xff]
      %v270 = vld [vmem:[%s1 + $0x60] sm:$0xff]
      %v271 = vld [vmem:[%s1 + $0x68] sm:$0xff]
      %v272 = vld [vmem:[%s1 + $0x70] sm:$0xff]
      %v273 = vld [vmem:[%s1 + $0x78] sm:$0xff]
      %v274 = vld [vmem:[%s2] sm:$0x3]
      %v276 = vlaneseq
      %v277 = vshrl.u32 %v276, 7
      %v278 = vsub.s32 0, %v277
      %v279 = vrot.slane %v274, %v278
      %v280 = vlaneseq
      %v281 = vshrl.u32 %v280, 7
      %v282 = vsub.s32 1, %v281
      %v283 = vrot.slane %v274, %v282
      %v318 = vunpack.c.l.b16 %v226
      %v319 = vunpack.c.l.b16 %v227
      %v320 = vunpack.c.l.b16 %v228
      %v321 = vunpack.c.l.b16 %v229
      %v322 = vunpack.c.l.b16 %v230
      %v323 = vunpack.c.l.b16 %v231
      %v324 = vunpack.c.l.b16 %v232
      %v325 = vunpack.c.l.b16 %v233
      %v326 = vunpack.c.l.b16 %v234
      %v327 = vunpack.c.l.b16 %v235
      %v328 = vunpack.c.l.b16 %v236
      %v329 = vunpack.c.l.b16 %v237
      %v330 = vunpack.c.l.b16 %v238
      %v331 = vunpack.c.l.b16 %v239
      %v332 = vunpack.c.l.b16 %v240
      %v333 = vunpack.c.l.b16 %v241
      %v334 = vunpack.c.l.b16 %v242
      %v335 = vunpack.c.l.b16 %v243
      %v336 = vunpack.c.l.b16 %v244
      %v337 = vunpack.c.l.b16 %v245
      %v338 = vunpack.c.l.b16 %v246
      %v339 = vunpack.c.l.b16 %v247
      %v340 = vunpack.c.l.b16 %v248
      %v341 = vunpack.c.l.b16 %v249
      %v342 = vunpack.c.l.b16 %v250
      %v343 = vunpack.c.l.b16 %v251
      %v344 = vunpack.c.l.b16 %v252
      %v345 = vunpack.c.l.b16 %v253
      %v346 = vunpack.c.l.b16 %v254
      %v347 = vunpack.c.l.b16 %v255
      %v348 = vunpack.c.l.b16 %v256
      %v349 = vunpack.c.l.b16 %v257
      %v350 = vpack.c.b16 %v319, %v318
      %v351 = vpack.c.b16 %v321, %v320
      %v352 = vpack.c.b16 %v323, %v322
      %v353 = vpack.c.b16 %v325, %v324
      %v354 = vpack.c.b16 %v327, %v326
      %v355 = vpack.c.b16 %v329, %v328
      %v356 = vpack.c.b16 %v331, %v330
      %v357 = vpack.c.b16 %v333, %v332
      %v358 = vpack.c.b16 %v335, %v334
      %v359 = vpack.c.b16 %v337, %v336
      %v360 = vpack.c.b16 %v339, %v338
      %v361 = vpack.c.b16 %v341, %v340
      %v362 = vpack.c.b16 %v343, %v342
      %v363 = vpack.c.b16 %v345, %v344
      %v364 = vpack.c.b16 %v347, %v346
      %v365 = vpack.c.b16 %v349, %v348
      %v398 = vunpack.c.l.b16 %v258
      %v399 = vunpack.c.h.b16 %v258
      %v400 = vunpack.c.l.b16 %v259
      %v401 = vunpack.c.h.b16 %v259
      %v402 = vunpack.c.l.b16 %v260
      %v403 = vunpack.c.h.b16 %v260
      %v404 = vunpack.c.l.b16 %v261
      %v405 = vunpack.c.h.b16 %v261
      %v406 = vunpack.c.l.b16 %v262
      %v407 = vunpack.c.h.b16 %v262
      %v408 = vunpack.c.l.b16 %v263
      %v409 = vunpack.c.h.b16 %v263
      %v410 = vunpack.c.l.b16 %v264
      %v411 = vunpack.c.h.b16 %v264
      %v412 = vunpack.c.l.b16 %v265
      %v413 = vunpack.c.h.b16 %v265
      %v414 = vunpack.c.l.b16 %v266
      %v415 = vunpack.c.h.b16 %v266
      %v416 = vunpack.c.l.b16 %v267
      %v417 = vunpack.c.h.b16 %v267
      %v418 = vunpack.c.l.b16 %v268
      %v419 = vunpack.c.h.b16 %v268
      %v420 = vunpack.c.l.b16 %v269
      %v421 = vunpack.c.h.b16 %v269
      %v422 = vunpack.c.l.b16 %v270
      %v423 = vunpack.c.h.b16 %v270
      %v424 = vunpack.c.l.b16 %v271
      %v425 = vunpack.c.h.b16 %v271
      %v426 = vunpack.c.l.b16 %v272
      %v427 = vunpack.c.h.b16 %v272
      %v428 = vunpack.c.l.b16 %v273
      %v429 = vunpack.c.h.b16 %v273
      %v430 = vpack.c.b16 %v400, %v398
      %v431 = vpack.c.b16 %v401, %v399
      %v432 = vpack.c.b16 %v404, %v402
      %v433 = vpack.c.b16 %v405, %v403
      %v434 = vpack.c.b16 %v408, %v406
      %v435 = vpack.c.b16 %v409, %v407
      %v436 = vpack.c.b16 %v412, %v410
      %v437 = vpack.c.b16 %v413, %v411
      %v438 = vpack.c.b16 %v416, %v414
      %v439 = vpack.c.b16 %v417, %v415
      %v440 = vpack.c.b16 %v420, %v418
      %v441 = vpack.c.b16 %v421, %v419
      %v442 = vpack.c.b16 %v424, %v422
      %v443 = vpack.c.b16 %v425, %v423
      %v444 = vpack.c.b16 %v428, %v426
      %v445 = vpack.c.b16 %v429, %v427
      %462 = vmatprep.subr.bf16.mxu0 %v445
      %463 = vmatpush1.bf16.msra.mxu0 %v444
      %464 = vmatprep.subr.bf16.mxu0 %v443
      %465 = vmatpush1.bf16.msra.mxu0 %v442
      %466 = vmatprep.subr.bf16.mxu0 %v441
      %467 = vmatpush1.bf16.msra.mxu0 %v440
      %468 = vmatprep.subr.bf16.mxu0 %v439
      %469 = vmatpush1.bf16.msra.mxu0 %v438
      %470 = vmatprep.subr.bf16.mxu0 %v437
      %471 = vmatpush1.bf16.msra.mxu0 %v436
      %472 = vmatprep.subr.bf16.mxu0 %v435
      %473 = vmatpush1.bf16.msra.mxu0 %v434
      %474 = vmatprep.subr.bf16.mxu0 %v433
      %475 = vmatpush1.bf16.msra.mxu0 %v432
      %476 = vmatprep.subr.bf16.mxu0 %v431
      %477 = vmatpush1.bf16.msra.mxu0 %v430
      %478 = vmatprep.subr.bf16.mxu0 0
      %479 = vmatpush2.bf16.msra.mxu0 0
      %480 = vmatprep.subr.bf16.mxu0 0
      %481 = vmatpush2.bf16.msra.mxu0 0
      %482 = vmatprep.subr.bf16.mxu0 0
      %483 = vmatpush2.bf16.msra.mxu0 0
      %484 = vmatprep.subr.bf16.mxu0 0
      %485 = vmatpush2.bf16.msra.mxu0 0
      %486 = vmatprep.subr.bf16.mxu0 0
      %487 = vmatpush2.bf16.msra.mxu0 0
      %488 = vmatprep.subr.bf16.mxu0 0
      %489 = vmatpush2.bf16.msra.mxu0 0
      %490 = vmatprep.subr.bf16.mxu0 0
      %491 = vmatpush2.bf16.msra.mxu0 0
      %492 = vmatprep.subr.bf16.mxu0 0
      %493 = vmatpush2.bf16.msra.mxu0 0
      %494 = vmatprep.mubr.bf16.mxu0 0
      %495 = vmatmul.mubr.bf16.gmra.mxu0 %v350
      %v496 = vpop.f32.mrf.mxu0
      %v497 = vadd.f32 %v279, %v496
      %v498 = vpop.f32.mrf.mxu0
      %v499 = vadd.f32 %v283, %v498
      %v500 = vpop.f32.mrf.mxu0
      %v501 = vadd.f32 %v279, %v500
      %v502 = vpop.f32.mrf.mxu0
      %v503 = vadd.f32 %v283, %v502
      %504 = vmatprep.mubr.bf16.mxu0 0
      %505 = vmatmul.mubr.bf16.gmra.mxu0 %v351
      %v506 = vpop.f32.mrf.mxu0
      %v507 = vadd.f32 %v279, %v506
      %v508 = vpop.f32.mrf.mxu0
      %v509 = vadd.f32 %v283, %v508
      %v510 = vpop.f32.mrf.mxu0
      %v511 = vadd.f32 %v279, %v510
      %v512 = vpop.f32.mrf.mxu0
      %v513 = vadd.f32 %v283, %v512
      %514 = vmatprep.mubr.bf16.mxu0 0
      %515 = vmatmul.mubr.bf16.gmra.mxu0 %v352
      %v516 = vpop.f32.mrf.mxu0
      %v517 = vadd.f32 %v279, %v516
      %v518 = vpop.f32.mrf.mxu0
      %v519 = vadd.f32 %v283, %v518
      %v520 = vpop.f32.mrf.mxu0
      %v521 = vadd.f32 %v279, %v520
      %v522 = vpop.f32.mrf.mxu0
      %v523 = vadd.f32 %v283, %v522
      %524 = vmatprep.mubr.bf16.mxu0 0
      %525 = vmatmul.mubr.bf16.gmra.mxu0 %v353
      %v526 = vpop.f32.mrf.mxu0
      %v527 = vadd.f32 %v279, %v526
      %v528 = vpop.f32.mrf.mxu0
      %v529 = vadd.f32 %v283, %v528
      %v530 = vpop.f32.mrf.mxu0
      %v531 = vadd.f32 %v279, %v530
      %v532 = vpop.f32.mrf.mxu0
      %v533 = vadd.f32 %v283, %v532
      %534 = vmatprep.mubr.bf16.mxu0 0
      %535 = vmatmul.mubr.bf16.gmra.mxu0 %v354
      %v536 = vpop.f32.mrf.mxu0
      %v537 = vadd.f32 %v279, %v536
      %v538 = vpop.f32.mrf.mxu0
      %v539 = vadd.f32 %v283, %v538
      %v540 = vpop.f32.mrf.mxu0
      %v541 = vadd.f32 %v279, %v540
      %v542 = vpop.f32.mrf.mxu0
      %v543 = vadd.f32 %v283, %v542
      %544 = vmatprep.mubr.bf16.mxu0 0
      %545 = vmatmul.mubr.bf16.gmra.mxu0 %v355
      %v546 = vpop.f32.mrf.mxu0
      %v547 = vadd.f32 %v279, %v546
      %v548 = vpop.f32.mrf.mxu0
      %v549 = vadd.f32 %v283, %v548
      %v550 = vpop.f32.mrf.mxu0
      %v551 = vadd.f32 %v279, %v550
      %v552 = vpop.f32.mrf.mxu0
      %v553 = vadd.f32 %v283, %v552
      %554 = vmatprep.mubr.bf16.mxu0 0
      %555 = vmatmul.mubr.bf16.gmra.mxu0 %v356
      %v556 = vpop.f32.mrf.mxu0
      %v557 = vadd.f32 %v279, %v556
      %v558 = vpop.f32.mrf.mxu0
      %v559 = vadd.f32 %v283, %v558
      %v560 = vpop.f32.mrf.mxu0
      %v561 = vadd.f32 %v279, %v560
      %v562 = vpop.f32.mrf.mxu0
      %v563 = vadd.f32 %v283, %v562
      %564 = vmatprep.mubr.bf16.mxu0 0
      %565 = vmatmul.mubr.bf16.gmra.mxu0 %v357
      %v566 = vpop.f32.mrf.mxu0
      %v567 = vadd.f32 %v279, %v566
      %v568 = vpop.f32.mrf.mxu0
      %v569 = vadd.f32 %v283, %v568
      %v570 = vpop.f32.mrf.mxu0
      %v571 = vadd.f32 %v279, %v570
      %v572 = vpop.f32.mrf.mxu0
      %v573 = vadd.f32 %v283, %v572
      %574 = vmatprep.mubr.bf16.mxu0 0
      %575 = vmatmul.mubr.bf16.gmra.mxu0 %v358
      %v576 = vpop.f32.mrf.mxu0
      %v577 = vadd.f32 %v279, %v576
      %v578 = vpop.f32.mrf.mxu0
      %v579 = vadd.f32 %v283, %v578
      %v580 = vpop.f32.mrf.mxu0
      %v581 = vadd.f32 %v279, %v580
      %v582 = vpop.f32.mrf.mxu0
      %v583 = vadd.f32 %v283, %v582
      %584 = vmatprep.mubr.bf16.mxu0 0
      %585 = vmatmul.mubr.bf16.gmra.mxu0 %v359
      %v586 = vpop.f32.mrf.mxu0
      %v587 = vadd.f32 %v279, %v586
      %v588 = vpop.f32.mrf.mxu0
      %v589 = vadd.f32 %v283, %v588
      %v590 = vpop.f32.mrf.mxu0
      %v591 = vadd.f32 %v279, %v590
      %v592 = vpop.f32.mrf.mxu0
      %v593 = vadd.f32 %v283, %v592
      %594 = vmatprep.mubr.bf16.mxu0 0
      %595 = vmatmul.mubr.bf16.gmra.mxu0 %v360
      %v596 = vpop.f32.mrf.mxu0
      %v597 = vadd.f32 %v279, %v596
      %v598 = vpop.f32.mrf.mxu0
      %v599 = vadd.f32 %v283, %v598
      %v600 = vpop.f32.mrf.mxu0
      %v601 = vadd.f32 %v279, %v600
      %v602 = vpop.f32.mrf.mxu0
      %v603 = vadd.f32 %v283, %v602
      %604 = vmatprep.mubr.bf16.mxu0 0
      %605 = vmatmul.mubr.bf16.gmra.mxu0 %v361
      %v606 = vpop.f32.mrf.mxu0
      %v607 = vadd.f32 %v279, %v606
      %v608 = vpop.f32.mrf.mxu0
      %v609 = vadd.f32 %v283, %v608
      %v610 = vpop.f32.mrf.mxu0
      %v611 = vadd.f32 %v279, %v610
      %v612 = vpop.f32.mrf.mxu0
      %v613 = vadd.f32 %v283, %v612
      %614 = vmatprep.mubr.bf16.mxu0 0
      %615 = vmatmul.mubr.bf16.gmra.mxu0 %v362
      %v616 = vpop.f32.mrf.mxu0
      %v617 = vadd.f32 %v279, %v616
      %v618 = vpop.f32.mrf.mxu0
      %v619 = vadd.f32 %v283, %v618
      %v620 = vpop.f32.mrf.mxu0
      %v621 = vadd.f32 %v279, %v620
      %v622 = vpop.f32.mrf.mxu0
      %v623 = vadd.f32 %v283, %v622
      %624 = vmatprep.mubr.bf16.mxu0 0
      %625 = vmatmul.mubr.bf16.gmra.mxu0 %v363
      %v626 = vpop.f32.mrf.mxu0
      %v627 = vadd.f32 %v279, %v626
      %v628 = vpop.f32.mrf.mxu0
      %v629 = vadd.f32 %v283, %v628
      %v630 = vpop.f32.mrf.mxu0
      %v631 = vadd.f32 %v279, %v630
      %v632 = vpop.f32.mrf.mxu0
      %v633 = vadd.f32 %v283, %v632
      %634 = vmatprep.mubr.bf16.mxu0 0
      %635 = vmatmul.mubr.bf16.gmra.mxu0 %v364
      %v636 = vpop.f32.mrf.mxu0
      %v637 = vadd.f32 %v279, %v636
      %v638 = vpop.f32.mrf.mxu0
      %v639 = vadd.f32 %v283, %v638
      %v640 = vpop.f32.mrf.mxu0
      %v641 = vadd.f32 %v279, %v640
      %v642 = vpop.f32.mrf.mxu0
      %v643 = vadd.f32 %v283, %v642
      %644 = vmatprep.mubr.bf16.mxu0 0
      %645 = vmatmul.mubr.bf16.gmra.mxu0 %v365
      %v646 = vpop.f32.mrf.mxu0
      %v647 = vadd.f32 %v279, %v646
      %v648 = vpop.f32.mrf.mxu0
      %v649 = vadd.f32 %v283, %v648
      %v650 = vpop.f32.mrf.mxu0
      %v651 = vadd.f32 %v279, %v650
      %v652 = vpop.f32.mrf.mxu0
      %v653 = vadd.f32 %v283, %v652
      %654 = vdwg.mxu0
      %v655 = vsub.f32 0.0, %v497
      %v656 = vsub.f32 0.0, %v499
      %v657 = vsub.f32 0.0, %v501
      %v658 = vsub.f32 0.0, %v503
      %v659 = vsub.f32 0.0, %v507
      %v660 = vsub.f32 0.0, %v509
      %v661 = vsub.f32 0.0, %v511
      %v662 = vsub.f32 0.0, %v513
      %v663 = vsub.f32 0.0, %v517
      %v664 = vsub.f32 0.0, %v519
      %v665 = vsub.f32 0.0, %v521
      %v666 = vsub.f32 0.0, %v523
      %v667 = vsub.f32 0.0, %v527
      %v668 = vsub.f32 0.0, %v529
      %v669 = vsub.f32 0.0, %v531
      %v670 = vsub.f32 0.0, %v533
      %v671 = vsub.f32 0.0, %v537
      %v672 = vsub.f32 0.0, %v539
      %v673 = vsub.f32 0.0, %v541
      %v674 = vsub.f32 0.0, %v543
      %v675 = vsub.f32 0.0, %v547
      %v676 = vsub.f32 0.0, %v549
      %v677 = vsub.f32 0.0, %v551
      %v678 = vsub.f32 0.0, %v553
      %v679 = vsub.f32 0.0, %v557
      %v680 = vsub.f32 0.0, %v559
      %v681 = vsub.f32 0.0, %v561
      %v682 = vsub.f32 0.0, %v563
      %v683 = vsub.f32 0.0, %v567
      %v684 = vsub.f32 0.0, %v569
      %v685 = vsub.f32 0.0, %v571
      %v686 = vsub.f32 0.0, %v573
      %v687 = vsub.f32 0.0, %v577
      %v688 = vsub.f32 0.0, %v579
      %v689 = vsub.f32 0.0, %v581
      %v690 = vsub.f32 0.0, %v583
      %v691 = vsub.f32 0.0, %v587
      %v692 = vsub.f32 0.0, %v589
      %v693 = vsub.f32 0.0, %v591
      %v694 = vsub.f32 0.0, %v593
      %v695 = vsub.f32 0.0, %v597
      %v696 = vsub.f32 0.0, %v599
      %v697 = vsub.f32 0.0, %v601
      %v698 = vsub.f32 0.0, %v603
      %v699 = vsub.f32 0.0, %v607
      %v700 = vsub.f32 0.0, %v609
      %v701 = vsub.f32 0.0, %v611
      %v702 = vsub.f32 0.0, %v613
      %v703 = vsub.f32 0.0, %v617
      %v704 = vsub.f32 0.0, %v619
      %v705 = vsub.f32 0.0, %v621
      %v706 = vsub.f32 0.0, %v623
      %v707 = vsub.f32 0.0, %v627
      %v708 = vsub.f32 0.0, %v629
      %v709 = vsub.f32 0.0, %v631
      %v710 = vsub.f32 0.0, %v633
      %v711 = vsub.f32 0.0, %v637
      %v712 = vsub.f32 0.0, %v639
      %v713 = vsub.f32 0.0, %v641
      %v714 = vsub.f32 0.0, %v643
      %v715 = vsub.f32 0.0, %v647
      %v716 = vsub.f32 0.0, %v649
      %v717 = vsub.f32 0.0, %v651
      %v718 = vsub.f32 0.0, %v653
      %v719 = vmul.f32 %v655, 1.442695
      %v720 = vpow.pop %v719
      %v721 = vmul.f32 %v656, 1.442695
      %v722 = vpow.pop %v721
      %v723 = vmul.f32 %v657, 1.442695
      %v724 = vpow.pop %v723
      %v725 = vmul.f32 %v658, 1.442695
      %v726 = vpow.pop %v725
      %v727 = vmul.f32 %v659, 1.442695
      %v728 = vpow.pop %v727
      %v729 = vmul.f32 %v660, 1.442695
      %v730 = vpow.pop %v729
      %v731 = vmul.f32 %v661, 1.442695
      %v732 = vpow.pop %v731
      %v733 = vmul.f32 %v662, 1.442695
      %v734 = vpow.pop %v733
      %v735 = vmul.f32 %v663, 1.442695
      %v736 = vpow.pop %v735
      %v737 = vmul.f32 %v664, 1.442695
      %v738 = vpow.pop %v737
      %v739 = vmul.f32 %v665, 1.442695
      %v740 = vpow.pop %v739
      %v741 = vmul.f32 %v666, 1.442695
      %v742 = vpow.pop %v741
      %v743 = vmul.f32 %v667, 1.442695
      %v744 = vpow.pop %v743
      %v745 = vmul.f32 %v668, 1.442695
      %v746 = vpow.pop %v745
      %v747 = vmul.f32 %v669, 1.442695
      %v748 = vpow.pop %v747
      %v749 = vmul.f32 %v670, 1.442695
      %v750 = vpow.pop %v749
      %v751 = vmul.f32 %v671, 1.442695
      %v752 = vpow.pop %v751
      %v753 = vmul.f32 %v672, 1.442695
      %v754 = vpow.pop %v753
      %v755 = vmul.f32 %v673, 1.442695
      %v756 = vpow.pop %v755
      %v757 = vmul.f32 %v674, 1.442695
      %v758 = vpow.pop %v757
      %v759 = vmul.f32 %v675, 1.442695
      %v760 = vpow.pop %v759
      %v761 = vmul.f32 %v676, 1.442695
      %v762 = vpow.pop %v761
      %v763 = vmul.f32 %v677, 1.442695
      %v764 = vpow.pop %v763
      %v765 = vmul.f32 %v678, 1.442695
      %v766 = vpow.pop %v765
      %v767 = vmul.f32 %v679, 1.442695
      %v768 = vpow.pop %v767
      %v769 = vmul.f32 %v680, 1.442695
      %v770 = vpow.pop %v769
      %v771 = vmul.f32 %v681, 1.442695
      %v772 = vpow.pop %v771
      %v773 = vmul.f32 %v682, 1.442695
      %v774 = vpow.pop %v773
      %v775 = vmul.f32 %v683, 1.442695
      %v776 = vpow.pop %v775
      %v777 = vmul.f32 %v684, 1.442695
      %v778 = vpow.pop %v777
      %v779 = vmul.f32 %v685, 1.442695
      %v780 = vpow.pop %v779
      %v781 = vmul.f32 %v686, 1.442695
      %v782 = vpow.pop %v781
      %v783 = vmul.f32 %v687, 1.442695
      %v784 = vpow.pop %v783
      %v785 = vmul.f32 %v688, 1.442695
      %v786 = vpow.pop %v785
      %v787 = vmul.f32 %v689, 1.442695
      %v788 = vpow.pop %v787
      %v789 = vmul.f32 %v690, 1.442695
      %v790 = vpow.pop %v789
      %v791 = vmul.f32 %v691, 1.442695
      %v792 = vpow.pop %v791
      %v793 = vmul.f32 %v692, 1.442695
      %v794 = vpow.pop %v793
      %v795 = vmul.f32 %v693, 1.442695
      %v796 = vpow.pop %v795
      %v797 = vmul.f32 %v694, 1.442695
      %v798 = vpow.pop %v797
      %v799 = vmul.f32 %v695, 1.442695
      %v800 = vpow.pop %v799
      %v801 = vmul.f32 %v696, 1.442695
      %v802 = vpow.pop %v801
      %v803 = vmul.f32 %v697, 1.442695
      %v804 = vpow.pop %v803
      %v805 = vmul.f32 %v698, 1.442695
      %v806 = vpow.pop %v805
      %v807 = vmul.f32 %v699, 1.442695
      %v808 = vpow.pop %v807
      %v809 = vmul.f32 %v700, 1.442695
      %v810 = vpow.pop %v809
      %v811 = vmul.f32 %v701, 1.442695
      %v812 = vpow.pop %v811
      %v813 = vmul.f32 %v702, 1.442695
      %v814 = vpow.pop %v813
      %v815 = vmul.f32 %v703, 1.442695
      %v816 = vpow.pop %v815
      %v817 = vmul.f32 %v704, 1.442695
      %v818 = vpow.pop %v817
      %v819 = vmul.f32 %v705, 1.442695
      %v820 = vpow.pop %v819
      %v821 = vmul.f32 %v706, 1.442695
      %v822 = vpow.pop %v821
      %v823 = vmul.f32 %v707, 1.442695
      %v824 = vpow.pop %v823
      %v825 = vmul.f32 %v708, 1.442695
      %v826 = vpow.pop %v825
      %v827 = vmul.f32 %v709, 1.442695
      %v828 = vpow.pop %v827
      %v829 = vmul.f32 %v710, 1.442695
      %v830 = vpow.pop %v829
      %v831 = vmul.f32 %v711, 1.442695
      %v832 = vpow.pop %v831
      %v833 = vmul.f32 %v712, 1.442695
      %v834 = vpow.pop %v833
      %v835 = vmul.f32 %v713, 1.442695
      %v836 = vpow.pop %v835
      %v837 = vmul.f32 %v714, 1.442695
      %v838 = vpow.pop %v837
      %v839 = vmul.f32 %v715, 1.442695
      %v840 = vpow.pop %v839
      %v841 = vmul.f32 %v716, 1.442695
      %v842 = vpow.pop %v841
      %v843 = vmul.f32 %v717, 1.442695
      %v844 = vpow.pop %v843
      %v845 = vmul.f32 %v718, 1.442695
      %v846 = vpow.pop %v845
      %v847 = vadd.f32 %v720, 1.0
      %v848 = vadd.f32 %v722, 1.0
      %v849 = vadd.f32 %v724, 1.0
      %v850 = vadd.f32 %v726, 1.0
      %v851 = vadd.f32 %v728, 1.0
      %v852 = vadd.f32 %v730, 1.0
      %v853 = vadd.f32 %v732, 1.0
      %v854 = vadd.f32 %v734, 1.0
      %v855 = vadd.f32 %v736, 1.0
      %v856 = vadd.f32 %v738, 1.0
      %v857 = vadd.f32 %v740, 1.0
      %v858 = vadd.f32 %v742, 1.0
      %v859 = vadd.f32 %v744, 1.0
      %v860 = vadd.f32 %v746, 1.0
      %v861 = vadd.f32 %v748, 1.0
      %v862 = vadd.f32 %v750, 1.0
      %v863 = vadd.f32 %v752, 1.0
      %v864 = vadd.f32 %v754, 1.0
      %v865 = vadd.f32 %v756, 1.0
      %v866 = vadd.f32 %v758, 1.0
      %v867 = vadd.f32 %v760, 1.0
      %v868 = vadd.f32 %v762, 1.0
      %v869 = vadd.f32 %v764, 1.0
      %v870 = vadd.f32 %v766, 1.0
      %v871 = vadd.f32 %v768, 1.0
      %v872 = vadd.f32 %v770, 1.0
      %v873 = vadd.f32 %v772, 1.0
      %v874 = vadd.f32 %v774, 1.0
      %v875 = vadd.f32 %v776, 1.0
      %v876 = vadd.f32 %v778, 1.0
      %v877 = vadd.f32 %v780, 1.0
      %v878 = vadd.f32 %v782, 1.0
      %v879 = vadd.f32 %v784, 1.0
      %v880 = vadd.f32 %v786, 1.0
      %v881 = vadd.f32 %v788, 1.0
      %v882 = vadd.f32 %v790, 1.0
      %v883 = vadd.f32 %v792, 1.0
      %v884 = vadd.f32 %v794, 1.0
      %v885 = vadd.f32 %v796, 1.0
      %v886 = vadd.f32 %v798, 1.0
      %v887 = vadd.f32 %v800, 1.0
      %v888 = vadd.f32 %v802, 1.0
      %v889 = vadd.f32 %v804, 1.0
      %v890 = vadd.f32 %v806, 1.0
      %v891 = vadd.f32 %v808, 1.0
      %v892 = vadd.f32 %v810, 1.0
      %v893 = vadd.f32 %v812, 1.0
      %v894 = vadd.f32 %v814, 1.0
      %v895 = vadd.f32 %v816, 1.0
      %v896 = vadd.f32 %v818, 1.0
      %v897 = vadd.f32 %v820, 1.0
      %v898 = vadd.f32 %v822, 1.0
      %v899 = vadd.f32 %v824, 1.0
      %v900 = vadd.f32 %v826, 1.0
      %v901 = vadd.f32 %v828, 1.0
      %v902 = vadd.f32 %v830, 1.0
      %v903 = vadd.f32 %v832, 1.0
      %v904 = vadd.f32 %v834, 1.0
      %v905 = vadd.f32 %v836, 1.0
      %v906 = vadd.f32 %v838, 1.0
      %v907 = vadd.f32 %v840, 1.0
      %v908 = vadd.f32 %v842, 1.0
      %v909 = vadd.f32 %v844, 1.0
      %v910 = vadd.f32 %v846, 1.0
      %v911 = vrcp.pop %v847
      %v912 = vrcp.pop %v848
      %v913 = vrcp.pop %v849
      %v914 = vrcp.pop %v850
      %v915 = vrcp.pop %v851
      %v916 = vrcp.pop %v852
      %v917 = vrcp.pop %v853
      %v918 = vrcp.pop %v854
      %v919 = vrcp.pop %v855
      %v920 = vrcp.pop %v856
      %v921 = vrcp.pop %v857
      %v922 = vrcp.pop %v858
      %v923 = vrcp.pop %v859
      %v924 = vrcp.pop %v860
      %v925 = vrcp.pop %v861
      %v926 = vrcp.pop %v862
      %v927 = vrcp.pop %v863
      %v928 = vrcp.pop %v864
      %v929 = vrcp.pop %v865
      %v930 = vrcp.pop %v866
      %v931 = vrcp.pop %v867
      %v932 = vrcp.pop %v868
      %v933 = vrcp.pop %v869
      %v934 = vrcp.pop %v870
      %v935 = vrcp.pop %v871
      %v936 = vrcp.pop %v872
      %v937 = vrcp.pop %v873
      %v938 = vrcp.pop %v874
      %v939 = vrcp.pop %v875
      %v940 = vrcp.pop %v876
      %v941 = vrcp.pop %v877
      %v942 = vrcp.pop %v878
      %v943 = vrcp.pop %v879
      %v944 = vrcp.pop %v880
      %v945 = vrcp.pop %v881
      %v946 = vrcp.pop %v882
      %v947 = vrcp.pop %v883
      %v948 = vrcp.pop %v884
      %v949 = vrcp.pop %v885
      %v950 = vrcp.pop %v886
      %v951 = vrcp.pop %v887
      %v952 = vrcp.pop %v888
      %v953 = vrcp.pop %v889
      %v954 = vrcp.pop %v890
      %v955 = vrcp.pop %v891
      %v956 = vrcp.pop %v892
      %v957 = vrcp.pop %v893
      %v958 = vrcp.pop %v894
      %v959 = vrcp.pop %v895
      %v960 = vrcp.pop %v896
      %v961 = vrcp.pop %v897
      %v962 = vrcp.pop %v898
      %v963 = vrcp.pop %v899
      %v964 = vrcp.pop %v900
      %v965 = vrcp.pop %v901
      %v966 = vrcp.pop %v902
      %v967 = vrcp.pop %v903
      %v968 = vrcp.pop %v904
      %v969 = vrcp.pop %v905
      %v970 = vrcp.pop %v906
      %v971 = vrcp.pop %v907
      %v972 = vrcp.pop %v908
      %v973 = vrcp.pop %v909
      %v974 = vrcp.pop %v910
      %v975 = vmul.f32 %v497, %v911
      %v976 = vmul.f32 %v499, %v912
      %v977 = vmul.f32 %v501, %v913
      %v978 = vmul.f32 %v503, %v914
      %v979 = vmul.f32 %v507, %v915
      %v980 = vmul.f32 %v509, %v916
      %v981 = vmul.f32 %v511, %v917
      %v982 = vmul.f32 %v513, %v918
      %v983 = vmul.f32 %v517, %v919
      %v984 = vmul.f32 %v519, %v920
      %v985 = vmul.f32 %v521, %v921
      %v986 = vmul.f32 %v523, %v922
      %v987 = vmul.f32 %v527, %v923
      %v988 = vmul.f32 %v529, %v924
      %v989 = vmul.f32 %v531, %v925
      %v990 = vmul.f32 %v533, %v926
      %v991 = vmul.f32 %v537, %v927
      %v992 = vmul.f32 %v539, %v928
      %v993 = vmul.f32 %v541, %v929
      %v994 = vmul.f32 %v543, %v930
      %v995 = vmul.f32 %v547, %v931
      %v996 = vmul.f32 %v549, %v932
      %v997 = vmul.f32 %v551, %v933
      %v998 = vmul.f32 %v553, %v934
      %v999 = vmul.f32 %v557, %v935
      %v1000 = vmul.f32 %v559, %v936
      %v1001 = vmul.f32 %v561, %v937
      %v1002 = vmul.f32 %v563, %v938
      %v1003 = vmul.f32 %v567, %v939
      %v1004 = vmul.f32 %v569, %v940
      %v1005 = vmul.f32 %v571, %v941
      %v1006 = vmul.f32 %v573, %v942
      %v1007 = vmul.f32 %v577, %v943
      %v1008 = vmul.f32 %v579, %v944
      %v1009 = vmul.f32 %v581, %v945
      %v1010 = vmul.f32 %v583, %v946
      %v1011 = vmul.f32 %v587, %v947
      %v1012 = vmul.f32 %v589, %v948
      %v1013 = vmul.f32 %v591, %v949
      %v1014 = vmul.f32 %v593, %v950
      %v1015 = vmul.f32 %v597, %v951
      %v1016 = vmul.f32 %v599, %v952
      %v1017 = vmul.f32 %v601, %v953
      %v1018 = vmul.f32 %v603, %v954
      %v1019 = vmul.f32 %v607, %v955
      %v1020 = vmul.f32 %v609, %v956
      %v1021 = vmul.f32 %v611, %v957
      %v1022 = vmul.f32 %v613, %v958
      %v1023 = vmul.f32 %v617, %v959
      %v1024 = vmul.f32 %v619, %v960
      %v1025 = vmul.f32 %v621, %v961
      %v1026 = vmul.f32 %v623, %v962
      %v1027 = vmul.f32 %v627, %v963
      %v1028 = vmul.f32 %v629, %v964
      %v1029 = vmul.f32 %v631, %v965
      %v1030 = vmul.f32 %v633, %v966
      %v1031 = vmul.f32 %v637, %v967
      %v1032 = vmul.f32 %v639, %v968
      %v1033 = vmul.f32 %v641, %v969
      %v1034 = vmul.f32 %v643, %v970
      %v1035 = vmul.f32 %v647, %v971
      %v1036 = vmul.f32 %v649, %v972
      %v1037 = vmul.f32 %v651, %v973
      %v1038 = vmul.f32 %v653, %v974
      %1039 = vst [vmem:[#allocation2] sm:$0xff] 0.0
      %1040 = vst [vmem:[#allocation2 + $0x8] sm:$0xff] 0.0
      %1041 = vst [vmem:[#allocation2 + $0x10] sm:$0x3] 0.0
      %1042 = vst [vmem:[#allocation2 + $0x18] sm:$0xff] 0.0
      %1043 = vst [vmem:[#allocation2 + $0x20] sm:$0xff] 0.0
      %1044 = vst [vmem:[#allocation2 + $0x28] sm:$0x3] 0.0
      %1045 = vst [vmem:[#allocation2 + $0x30] sm:$0xff] 0.0
      %1046 = vst [vmem:[#allocation2 + $0x38] sm:$0xff] 0.0
      %1047 = vst [vmem:[#allocation2 + $0x40] sm:$0x3] 0.0
      %1048 = vst [vmem:[#allocation2 + $0x48] sm:$0xff] 0.0
      %1049 = vst [vmem:[#allocation2 + $0x50] sm:$0xff] 0.0
      %1050 = vst [vmem:[#allocation2 + $0x58] sm:$0x3] 0.0
      %1051 = vst [vmem:[#allocation2 + $0x60] sm:$0xff] 0.0
      %1052 = vst [vmem:[#allocation2 + $0x68] sm:$0xff] 0.0
      %1053 = vst [vmem:[#allocation2 + $0x70] sm:$0x3] 0.0
      %1054 = vst [vmem:[#allocation2 + $0x78] sm:$0xff] 0.0
      %1055 = vst [vmem:[#allocation2 + $0x80] sm:$0xff] 0.0
      %1056 = vst [vmem:[#allocation2 + $0x88] sm:$0x3] 0.0
      %1057 = vst [vmem:[#allocation2 + $0x90] sm:$0xff] 0.0
      %1058 = vst [vmem:[#allocation2 + $0x98] sm:$0xff] 0.0
      %1059 = vst [vmem:[#allocation2 + $0xa0] sm:$0x3] 0.0
      %1060 = vst [vmem:[#allocation2 + $0xa8] sm:$0xff] 0.0
      %1061 = vst [vmem:[#allocation2 + $0xb0] sm:$0xff] 0.0
      %1062 = vst [vmem:[#allocation2 + $0xb8] sm:$0x3] 0.0
      %1063 = vst [vmem:[#allocation2 + $0xc0] sm:$0xff] 0.0
      %1064 = vst [vmem:[#allocation2 + $0xc8] sm:$0xff] 0.0
      %1065 = vst [vmem:[#allocation2 + $0xd0] sm:$0x3] 0.0
      %1066 = vst [vmem:[#allocation2 + $0xd8] sm:$0xff] 0.0
      %1067 = vst [vmem:[#allocation2 + $0xe0] sm:$0xff] 0.0
      %1068 = vst [vmem:[#allocation2 + $0xe8] sm:$0x3] 0.0
      %1069 = vst [vmem:[#allocation2 + $0xf0] sm:$0xff] 0.0
      %1070 = vst [vmem:[#allocation2 + $0xf8] sm:$0xff] 0.0
      %1071 = vst [vmem:[#allocation2 + $0x100] sm:$0x3] 0.0
      %1072 = vst [vmem:[#allocation2 + $0x108] sm:$0xff] 0.0
      %1073 = vst [vmem:[#allocation2 + $0x110] sm:$0xff] 0.0
      %1074 = vst [vmem:[#allocation2 + $0x118] sm:$0x3] 0.0
      %1075 = vst [vmem:[#allocation2 + $0x120] sm:$0xff] 0.0
      %1076 = vst [vmem:[#allocation2 + $0x128] sm:$0xff] 0.0
      %1077 = vst [vmem:[#allocation2 + $0x130] sm:$0x3] 0.0
      %1078 = vst [vmem:[#allocation2 + $0x138] sm:$0xff] 0.0
      %1079 = vst [vmem:[#allocation2 + $0x140] sm:$0xff] 0.0
      %1080 = vst [vmem:[#allocation2 + $0x148] sm:$0x3] 0.0
      %1081 = vst [vmem:[#allocation2 + $0x150] sm:$0xff] 0.0
      %1082 = vst [vmem:[#allocation2 + $0x158] sm:$0xff] 0.0
      %1083 = vst [vmem:[#allocation2 + $0x160] sm:$0x3] 0.0
      %1084 = vst [vmem:[#allocation2 + $0x168] sm:$0xff] 0.0
      %1085 = vst [vmem:[#allocation2 + $0x170] sm:$0xff] 0.0
      %1086 = vst [vmem:[#allocation2 + $0x178] sm:$0x3] 0.0
      %1087 = vst [vmem:[#allocation2 + $0x180] sm:$0xff] 0.0
      %1088 = vst [vmem:[#allocation2 + $0x188] sm:$0xff] 0.0
      %1089 = vst [vmem:[#allocation2 + $0x190] sm:$0x3] 0.0
      %1090 = vst [vmem:[#allocation2 + $0x198] sm:$0xff] 0.0
      %1091 = vst [vmem:[#allocation2 + $0x1a0] sm:$0xff] 0.0
      %1092 = vst [vmem:[#allocation2 + $0x1a8] sm:$0x3] 0.0
      %s1093 = scalar_lea.vmem [#allocation2], 24
      %1094 = vst [vmem:[%s1093 + $0x1] sm:$0xff] %v975
      %1095 = vst [vmem:[%s1093 + $0x9] sm:$0xff] %v977
      %1096 = vst [vmem:[%s1093 + $0x19] sm:$0xff] %v979
      %1097 = vst [vmem:[%s1093 + $0x21] sm:$0xff] %v981
      %1098 = vst [vmem:[%s1093 + $0x31] sm:$0xff] %v983
      %1099 = vst [vmem:[%s1093 + $0x39] sm:$0xff] %v985
      %1100 = vst [vmem:[%s1093 + $0x49] sm:$0xff] %v987
      %1101 = vst [vmem:[%s1093 + $0x51] sm:$0xff] %v989
      %1102 = vst [vmem:[%s1093 + $0x61] sm:$0xff] %v991
      %1103 = vst [vmem:[%s1093 + $0x69] sm:$0xff] %v993
      %1104 = vst [vmem:[%s1093 + $0x79] sm:$0xff] %v995
      %1105 = vst [vmem:[%s1093 + $0x81] sm:$0xff] %v997
      %1106 = vst [vmem:[%s1093 + $0x91] sm:$0xff] %v999
      %1107 = vst [vmem:[%s1093 + $0x99] sm:$0xff] %v1001
      %1108 = vst [vmem:[%s1093 + $0xa9] sm:$0xff] %v1003
      %1109 = vst [vmem:[%s1093 + $0xb1] sm:$0xff] %v1005
      %1110 = vst [vmem:[%s1093 + $0xc1] sm:$0xff] %v1007
      %1111 = vst [vmem:[%s1093 + $0xc9] sm:$0xff] %v1009
      %1112 = vst [vmem:[%s1093 + $0xd9] sm:$0xff] %v1011
      %1113 = vst [vmem:[%s1093 + $0xe1] sm:$0xff] %v1013
      %1114 = vst [vmem:[%s1093 + $0xf1] sm:$0xff] %v1015
      %1115 = vst [vmem:[%s1093 + $0xf9] sm:$0xff] %v1017
      %1116 = vst [vmem:[%s1093 + $0x109] sm:$0xff] %v1019
      %1117 = vst [vmem:[%s1093 + $0x111] sm:$0xff] %v1021
      %1118 = vst [vmem:[%s1093 + $0x121] sm:$0xff] %v1023
      %1119 = vst [vmem:[%s1093 + $0x129] sm:$0xff] %v1025
      %1120 = vst [vmem:[%s1093 + $0x139] sm:$0xff] %v1027
      %1121 = vst [vmem:[%s1093 + $0x141] sm:$0xff] %v1029
      %1122 = vst [vmem:[%s1093 + $0x151] sm:$0xff] %v1031
      %1123 = vst [vmem:[%s1093 + $0x159] sm:$0xff] %v1033
      %1124 = vst [vmem:[%s1093 + $0x169] sm:$0xff] %v1035
      %1125 = vst [vmem:[%s1093 + $0x171] sm:$0xff] %v1037
      %v1126 = vld [vmem:[#allocation2] sm:$0xff]
      %v1127 = vld [vmem:[#allocation2 + $0x8] sm:$0xff]
      %v1128 = vld [vmem:[#allocation2 + $0x18] sm:$0xff]
      %v1129 = vld [vmem:[#allocation2 + $0x20] sm:$0xff]
      %v1130 = vld [vmem:[#allocation2 + $0x30] sm:$0xff]
      %v1131 = vld [vmem:[#allocation2 + $0x38] sm:$0xff]
      %v1132 = vld [vmem:[#allocation2 + $0x48] sm:$0xff]
      %v1133 = vld [vmem:[#allocation2 + $0x50] sm:$0xff]
      %v1134 = vld [vmem:[#allocation2 + $0x60] sm:$0xff]
      %v1135 = vld [vmem:[#allocation2 + $0x68] sm:$0xff]
      %v1136 = vld [vmem:[#allocation2 + $0x78] sm:$0xff]
      %v1137 = vld [vmem:[#allocation2 + $0x80] sm:$0xff]
      %v1138 = vld [vmem:[#allocation2 + $0x90] sm:$0xff]
      %v1139 = vld [vmem:[#allocation2 + $0x98] sm:$0xff]
      %v1140 = vld [vmem:[#allocation2 + $0xa8] sm:$0xff]
      %v1141 = vld [vmem:[#allocation2 + $0xb0] sm:$0xff]
      %v1142 = vld [vmem:[#allocation2 + $0xc0] sm:$0xff]
      %v1143 = vld [vmem:[#allocation2 + $0xc8] sm:$0xff]
      %v1144 = vld [vmem:[#allocation2 + $0xd8] sm:$0xff]
      %v1145 = vld [vmem:[#allocation2 + $0xe0] sm:$0xff]
      %v1146 = vld [vmem:[#allocation2 + $0xf0] sm:$0xff]
      %v1147 = vld [vmem:[#allocation2 + $0xf8] sm:$0xff]
      %v1148 = vld [vmem:[#allocation2 + $0x108] sm:$0xff]
      %v1149 = vld [vmem:[#allocation2 + $0x110] sm:$0xff]
      %v1150 = vld [vmem:[#allocation2 + $0x120] sm:$0xff]
      %v1151 = vld [vmem:[#allocation2 + $0x128] sm:$0xff]
      %v1152 = vld [vmem:[#allocation2 + $0x138] sm:$0xff]
      %v1153 = vld [vmem:[#allocation2 + $0x140] sm:$0xff]
      %v1154 = vld [vmem:[#allocation2 + $0x150] sm:$0xff]
      %v1155 = vld [vmem:[#allocation2 + $0x158] sm:$0xff]
      %v1156 = vld [vmem:[#allocation2 + $0x168] sm:$0xff]
      %v1157 = vld [vmem:[#allocation2 + $0x170] sm:$0xff]
      %v1158 = vpack.c.bf16 %v1127, %v1126
      %v1159 = vpack.c.bf16 %v1129, %v1128
      %v1160 = vpack.c.bf16 %v1131, %v1130
      %v1161 = vpack.c.bf16 %v1133, %v1132
      %v1162 = vpack.c.bf16 %v1135, %v1134
      %v1163 = vpack.c.bf16 %v1137, %v1136
      %v1164 = vpack.c.bf16 %v1139, %v1138
      %v1165 = vpack.c.bf16 %v1141, %v1140
      %v1166 = vpack.c.bf16 %v1143, %v1142
      %v1167 = vpack.c.bf16 %v1145, %v1144
      %v1168 = vpack.c.bf16 %v1147, %v1146
      %v1169 = vpack.c.bf16 %v1149, %v1148
      %v1170 = vpack.c.bf16 %v1151, %v1150
      %v1171 = vpack.c.bf16 %v1153, %v1152
      %v1172 = vpack.c.bf16 %v1155, %v1154
      %v1173 = vpack.c.bf16 %v1157, %v1156
      %v1174 = vld [vmem:[#allocation2 + $0x1] sm:$0xff]
      %v1175 = vld [vmem:[#allocation2 + $0x9] sm:$0xff]
      %v1176 = vld [vmem:[#allocation2 + $0x19] sm:$0xff]
      %v1177 = vld [vmem:[#allocation2 + $0x21] sm:$0xff]
      %v1178 = vld [vmem:[#allocation2 + $0x31] sm:$0xff]
      %v1179 = vld [vmem:[#allocation2 + $0x39] sm:$0xff]
      %v1180 = vld [vmem:[#allocation2 + $0x49] sm:$0xff]
      %v1181 = vld [vmem:[#allocation2 + $0x51] sm:$0xff]
      %v1182 = vld [vmem:[#allocation2 + $0x61] sm:$0xff]
      %v1183 = vld [vmem:[#allocation2 + $0x69] sm:$0xff]
      %v1184 = vld [vmem:[#allocation2 + $0x79] sm:$0xff]
      %v1185 = vld [vmem:[#allocation2 + $0x81] sm:$0xff]
      %v1186 = vld [vmem:[#allocation2 + $0x91] sm:$0xff]
      %v1187 = vld [vmem:[#allocation2 + $0x99] sm:$0xff]
      %v1188 = vld [vmem:[#allocation2 + $0xa9] sm:$0xff]
      %v1189 = vld [vmem:[#allocation2 + $0xb1] sm:$0xff]
      %v1190 = vld [vmem:[#allocation2 + $0xc1] sm:$0xff]
      %v1191 = vld [vmem:[#allocation2 + $0xc9] sm:$0xff]
      %v1192 = vld [vmem:[#allocation2 + $0xd9] sm:$0xff]
      %v1193 = vld [vmem:[#allocation2 + $0xe1] sm:$0xff]
      %v1194 = vld [vmem:[#allocation2 + $0xf1] sm:$0xff]
      %v1195 = vld [vmem:[#allocation2 + $0xf9] sm:$0xff]
      %v1196 = vld [vmem:[#allocation2 + $0x109] sm:$0xff]
      %v1197 = vld [vmem:[#allocation2 + $0x111] sm:$0xff]
      %v1198 = vld [vmem:[#allocation2 + $0x121] sm:$0xff]
      %v1199 = vld [vmem:[#allocation2 + $0x129] sm:$0xff]
      %v1200 = vld [vmem:[#allocation2 + $0x139] sm:$0xff]
      %v1201 = vld [vmem:[#allocation2 + $0x141] sm:$0xff]
      %v1202 = vld [vmem:[#allocation2 + $0x151] sm:$0xff]
      %v1203 = vld [vmem:[#allocation2 + $0x159] sm:$0xff]
      %v1204 = vld [vmem:[#allocation2 + $0x169] sm:$0xff]
      %v1205 = vld [vmem:[#allocation2 + $0x171] sm:$0xff]
      %v1206 = vpack.c.bf16 %v1175, %v1174
      %v1207 = vpack.c.bf16 %v1177, %v1176
      %v1208 = vpack.c.bf16 %v1179, %v1178
      %v1209 = vpack.c.bf16 %v1181, %v1180
      %v1210 = vpack.c.bf16 %v1183, %v1182
      %v1211 = vpack.c.bf16 %v1185, %v1184
      %v1212 = vpack.c.bf16 %v1187, %v1186
      %v1213 = vpack.c.bf16 %v1189, %v1188
      %v1214 = vpack.c.bf16 %v1191, %v1190
      %v1215 = vpack.c.bf16 %v1193, %v1192
      %v1216 = vpack.c.bf16 %v1195, %v1194
      %v1217 = vpack.c.bf16 %v1197, %v1196
      %v1218 = vpack.c.bf16 %v1199, %v1198
      %v1219 = vpack.c.bf16 %v1201, %v1200
      %v1220 = vpack.c.bf16 %v1203, %v1202
      %v1221 = vpack.c.bf16 %v1205, %v1204
      %v1222 = vld [vmem:[#allocation2 + $0x2] sm:$0xff]
      %v1223 = vld [vmem:[#allocation2 + $0xa] sm:$0xff]
      %v1224 = vld [vmem:[#allocation2 + $0x1a] sm:$0xff]
      %v1225 = vld [vmem:[#allocation2 + $0x22] sm:$0xff]
      %v1226 = vld [vmem:[#allocation2 + $0x32] sm:$0xff]
      %v1227 = vld [vmem:[#allocation2 + $0x3a] sm:$0xff]
      %v1228 = vld [vmem:[#allocation2 + $0x4a] sm:$0xff]
      %v1229 = vld [vmem:[#allocation2 + $0x52] sm:$0xff]
      %v1230 = vld [vmem:[#allocation2 + $0x62] sm:$0xff]
      %v1231 = vld [vmem:[#allocation2 + $0x6a] sm:$0xff]
      %v1232 = vld [vmem:[#allocation2 + $0x7a] sm:$0xff]
      %v1233 = vld [vmem:[#allocation2 + $0x82] sm:$0xff]
      %v1234 = vld [vmem:[#allocation2 + $0x92] sm:$0xff]
      %v1235 = vld [vmem:[#allocation2 + $0x9a] sm:$0xff]
      %v1236 = vld [vmem:[#allocation2 + $0xaa] sm:$0xff]
      %v1237 = vld [vmem:[#allocation2 + $0xb2] sm:$0xff]
      %v1238 = vld [vmem:[#allocation2 + $0xc2] sm:$0xff]
      %v1239 = vld [vmem:[#allocation2 + $0xca] sm:$0xff]
      %v1240 = vld [vmem:[#allocation2 + $0xda] sm:$0xff]
      %v1241 = vld [vmem:[#allocation2 + $0xe2] sm:$0xff]
      %v1242 = vld [vmem:[#allocation2 + $0xf2] sm:$0xff]
      %v1243 = vld [vmem:[#allocation2 + $0xfa] sm:$0xff]
      %v1244 = vld [vmem:[#allocation2 + $0x10a] sm:$0xff]
      %v1245 = vld [vmem:[#allocation2 + $0x112] sm:$0xff]
      %v1246 = vld [vmem:[#allocation2 + $0x122] sm:$0xff]
      %v1247 = vld [vmem:[#allocation2 + $0x12a] sm:$0xff]
      %v1248 = vld [vmem:[#allocation2 + $0x13a] sm:$0xff]
      %v1249 = vld [vmem:[#allocation2 + $0x142] sm:$0xff]
      %v1250 = vld [vmem:[#allocation2 + $0x152] sm:$0xff]
      %v1251 = vld [vmem:[#allocation2 + $0x15a] sm:$0xff]
      %v1252 = vld [vmem:[#allocation2 + $0x16a] sm:$0xff]
      %v1253 = vld [vmem:[#allocation2 + $0x172] sm:$0xff]
      %v1254 = vpack.c.bf16 %v1223, %v1222
      %v1255 = vpack.c.bf16 %v1225, %v1224
      %v1256 = vpack.c.bf16 %v1227, %v1226
      %v1257 = vpack.c.bf16 %v1229, %v1228
      %v1258 = vpack.c.bf16 %v1231, %v1230
      %v1259 = vpack.c.bf16 %v1233, %v1232
      %v1260 = vpack.c.bf16 %v1235, %v1234
      %v1261 = vpack.c.bf16 %v1237, %v1236
      %v1262 = vpack.c.bf16 %v1239, %v1238
      %v1263 = vpack.c.bf16 %v1241, %v1240
      %v1264 = vpack.c.bf16 %v1243, %v1242
      %v1265 = vpack.c.bf16 %v1245, %v1244
      %v1266 = vpack.c.bf16 %v1247, %v1246
      %v1267 = vpack.c.bf16 %v1249, %v1248
      %v1268 = vpack.c.bf16 %v1251, %v1250
      %v1269 = vpack.c.bf16 %v1253, %v1252
      %v1270 = vld [vmem:[%s1093] sm:$0xff]
      %v1271 = vld [vmem:[%s1093 + $0x8] sm:$0xff]
      %v1272 = vld [vmem:[%s1093 + $0x18] sm:$0xff]
      %v1273 = vld [vmem:[%s1093 + $0x20] sm:$0xff]
      %v1274 = vld [vmem:[%s1093 + $0x30] sm:$0xff]
      %v1275 = vld [vmem:[%s1093 + $0x38] sm:$0xff]
      %v1276 = vld [vmem:[%s1093 + $0x48] sm:$0xff]
      %v1277 = vld [vmem:[%s1093 + $0x50] sm:$0xff]
      %v1278 = vld [vmem:[%s1093 + $0x60] sm:$0xff]
      %v1279 = vld [vmem:[%s1093 + $0x68] sm:$0xff]
      %v1280 = vld [vmem:[%s1093 + $0x78] sm:$0xff]
      %v1281 = vld [vmem:[%s1093 + $0x80] sm:$0xff]
      %v1282 = vld [vmem:[%s1093 + $0x90] sm:$0xff]
      %v1283 = vld [vmem:[%s1093 + $0x98] sm:$0xff]
      %v1284 = vld [vmem:[%s1093 + $0xa8] sm:$0xff]
      %v1285 = vld [vmem:[%s1093 + $0xb0] sm:$0xff]
      %v1286 = vld [vmem:[%s1093 + $0xc0] sm:$0xff]
      %v1287 = vld [vmem:[%s1093 + $0xc8] sm:$0xff]
      %v1288 = vld [vmem:[%s1093 + $0xd8] sm:$0xff]
      %v1289 = vld [vmem:[%s1093 + $0xe0] sm:$0xff]
      %v1290 = vld [vmem:[%s1093 + $0xf0] sm:$0xff]
      %v1291 = vld [vmem:[%s1093 + $0xf8] sm:$0xff]
      %v1292 = vld [vmem:[%s1093 + $0x108] sm:$0xff]
      %v1293 = vld [vmem:[%s1093 + $0x110] sm:$0xff]
      %v1294 = vld [vmem:[%s1093 + $0x120] sm:$0xff]
      %v1295 = vld [vmem:[%s1093 + $0x128] sm:$0xff]
      %v1296 = vld [vmem:[%s1093 + $0x138] sm:$0xff]
      %v1297 = vld [vmem:[%s1093 + $0x140] sm:$0xff]
      %v1298 = vld [vmem:[%s1093 + $0x150] sm:$0xff]
      %v1299 = vld [vmem:[%s1093 + $0x158] sm:$0xff]
      %v1300 = vld [vmem:[%s1093 + $0x168] sm:$0xff]
      %v1301 = vld [vmem:[%s1093 + $0x170] sm:$0xff]
      %v1302 = vpack.c.bf16 %v1271, %v1270
      %v1303 = vpack.c.bf16 %v1273, %v1272
      %v1304 = vpack.c.bf16 %v1275, %v1274
      %v1305 = vpack.c.bf16 %v1277, %v1276
      %v1306 = vpack.c.bf16 %v1279, %v1278
      %v1307 = vpack.c.bf16 %v1281, %v1280
      %v1308 = vpack.c.bf16 %v1283, %v1282
      %v1309 = vpack.c.bf16 %v1285, %v1284
      %v1310 = vpack.c.bf16 %v1287, %v1286
      %v1311 = vpack.c.bf16 %v1289, %v1288
      %v1312 = vpack.c.bf16 %v1291, %v1290
      %v1313 = vpack.c.bf16 %v1293, %v1292
      %v1314 = vpack.c.bf16 %v1295, %v1294
      %v1315 = vpack.c.bf16 %v1297, %v1296
      %v1316 = vpack.c.bf16 %v1299, %v1298
      %v1317 = vpack.c.bf16 %v1301, %v1300
      %v1318 = vld [vmem:[%s1093 + $0x1] sm:$0xff]
      %v1319 = vld [vmem:[%s1093 + $0x9] sm:$0xff]
      %v1320 = vld [vmem:[%s1093 + $0x19] sm:$0xff]
      %v1321 = vld [vmem:[%s1093 + $0x21] sm:$0xff]
      %v1322 = vld [vmem:[%s1093 + $0x31] sm:$0xff]
      %v1323 = vld [vmem:[%s1093 + $0x39] sm:$0xff]
      %v1324 = vld [vmem:[%s1093 + $0x49] sm:$0xff]
      %v1325 = vld [vmem:[%s1093 + $0x51] sm:$0xff]
      %v1326 = vld [vmem:[%s1093 + $0x61] sm:$0xff]
      %v1327 = vld [vmem:[%s1093 + $0x69] sm:$0xff]
      %v1328 = vld [vmem:[%s1093 + $0x79] sm:$0xff]
      %v1329 = vld [vmem:[%s1093 + $0x81] sm:$0xff]
      %v1330 = vld [vmem:[%s1093 + $0x91] sm:$0xff]
      %v1331 = vld [vmem:[%s1093 + $0x99] sm:$0xff]
      %v1332 = vld [vmem:[%s1093 + $0xa9] sm:$0xff]
      %v1333 = vld [vmem:[%s1093 + $0xb1] sm:$0xff]
      %v1334 = vld [vmem:[%s1093 + $0xc1] sm:$0xff]
      %v1335 = vld [vmem:[%s1093 + $0xc9] sm:$0xff]
      %v1336 = vld [vmem:[%s1093 + $0xd9] sm:$0xff]
      %v1337 = vld [vmem:[%s1093 + $0xe1] sm:$0xff]
      %v1338 = vld [vmem:[%s1093 + $0xf1] sm:$0xff]
      %v1339 = vld [vmem:[%s1093 + $0xf9] sm:$0xff]
      %v1340 = vld [vmem:[%s1093 + $0x109] sm:$0xff]
      %v1341 = vld [vmem:[%s1093 + $0x111] sm:$0xff]
      %v1342 = vld [vmem:[%s1093 + $0x121] sm:$0xff]
      %v1343 = vld [vmem:[%s1093 + $0x129] sm:$0xff]
      %v1344 = vld [vmem:[%s1093 + $0x139] sm:$0xff]
      %v1345 = vld [vmem:[%s1093 + $0x141] sm:$0xff]
      %v1346 = vld [vmem:[%s1093 + $0x151] sm:$0xff]
      %v1347 = vld [vmem:[%s1093 + $0x159] sm:$0xff]
      %v1348 = vld [vmem:[%s1093 + $0x169] sm:$0xff]
      %v1349 = vld [vmem:[%s1093 + $0x171] sm:$0xff]
      %v1350 = vpack.c.bf16 %v1319, %v1318
      %v1351 = vpack.c.bf16 %v1321, %v1320
      %v1352 = vpack.c.bf16 %v1323, %v1322
      %v1353 = vpack.c.bf16 %v1325, %v1324
      %v1354 = vpack.c.bf16 %v1327, %v1326
      %v1355 = vpack.c.bf16 %v1329, %v1328
      %v1356 = vpack.c.bf16 %v1331, %v1330
      %v1357 = vpack.c.bf16 %v1333, %v1332
      %v1358 = vpack.c.bf16 %v1335, %v1334
      %v1359 = vpack.c.bf16 %v1337, %v1336
      %v1360 = vpack.c.bf16 %v1339, %v1338
      %v1361 = vpack.c.bf16 %v1341, %v1340
      %v1362 = vpack.c.bf16 %v1343, %v1342
      %v1363 = vpack.c.bf16 %v1345, %v1344
      %v1364 = vpack.c.bf16 %v1347, %v1346
      %v1365 = vpack.c.bf16 %v1349, %v1348
      %v1366 = vld [vmem:[%s1093 + $0x2] sm:$0xff]
      %v1367 = vld [vmem:[%s1093 + $0xa] sm:$0xff]
      %v1368 = vld [vmem:[%s1093 + $0x1a] sm:$0xff]
      %v1369 = vld [vmem:[%s1093 + $0x22] sm:$0xff]
      %v1370 = vld [vmem:[%s1093 + $0x32] sm:$0xff]
      %v1371 = vld [vmem:[%s1093 + $0x3a] sm:$0xff]
      %v1372 = vld [vmem:[%s1093 + $0x4a] sm:$0xff]
      %v1373 = vld [vmem:[%s1093 + $0x52] sm:$0xff]
      %v1374 = vld [vmem:[%s1093 + $0x62] sm:$0xff]
      %v1375 = vld [vmem:[%s1093 + $0x6a] sm:$0xff]
      %v1376 = vld [vmem:[%s1093 + $0x7a] sm:$0xff]
      %v1377 = vld [vmem:[%s1093 + $0x82] sm:$0xff]
      %v1378 = vld [vmem:[%s1093 + $0x92] sm:$0xff]
      %v1379 = vld [vmem:[%s1093 + $0x9a] sm:$0xff]
      %v1380 = vld [vmem:[%s1093 + $0xaa] sm:$0xff]
      %v1381 = vld [vmem:[%s1093 + $0xb2] sm:$0xff]
      %v1382 = vld [vmem:[%s1093 + $0xc2] sm:$0xff]
      %v1383 = vld [vmem:[%s1093 + $0xca] sm:$0xff]
      %v1384 = vld [vmem:[%s1093 + $0xda] sm:$0xff]
      %v1385 = vld [vmem:[%s1093 + $0xe2] sm:$0xff]
      %v1386 = vld [vmem:[%s1093 + $0xf2] sm:$0xff]
      %v1387 = vld [vmem:[%s1093 + $0xfa] sm:$0xff]
      %v1388 = vld [vmem:[%s1093 + $0x10a] sm:$0xff]
      %v1389 = vld [vmem:[%s1093 + $0x112] sm:$0xff]
      %v1390 = vld [vmem:[%s1093 + $0x122] sm:$0xff]
      %v1391 = vld [vmem:[%s1093 + $0x12a] sm:$0xff]
      %v1392 = vld [vmem:[%s1093 + $0x13a] sm:$0xff]
      %v1393 = vld [vmem:[%s1093 + $0x142] sm:$0xff]
      %v1394 = vld [vmem:[%s1093 + $0x152] sm:$0xff]
      %v1395 = vld [vmem:[%s1093 + $0x15a] sm:$0xff]
      %v1396 = vld [vmem:[%s1093 + $0x16a] sm:$0xff]
      %v1397 = vld [vmem:[%s1093 + $0x172] sm:$0xff]
      %v1398 = vpack.c.bf16 %v1367, %v1366
      %v1399 = vpack.c.bf16 %v1369, %v1368
      %v1400 = vpack.c.bf16 %v1371, %v1370
      %v1401 = vpack.c.bf16 %v1373, %v1372
      %v1402 = vpack.c.bf16 %v1375, %v1374
      %v1403 = vpack.c.bf16 %v1377, %v1376
      %v1404 = vpack.c.bf16 %v1379, %v1378
      %v1405 = vpack.c.bf16 %v1381, %v1380
      %v1406 = vpack.c.bf16 %v1383, %v1382
      %v1407 = vpack.c.bf16 %v1385, %v1384
      %v1408 = vpack.c.bf16 %v1387, %v1386
      %v1409 = vpack.c.bf16 %v1389, %v1388
      %v1410 = vpack.c.bf16 %v1391, %v1390
      %v1411 = vpack.c.bf16 %v1393, %v1392
      %v1412 = vpack.c.bf16 %v1395, %v1394
      %v1413 = vpack.c.bf16 %v1397, %v1396
      %s1414 = scalar_lea.vmem [#allocation2], 48
      %v1415 = vld [vmem:[%s1414] sm:$0xff]
      %v1416 = vld [vmem:[%s1414 + $0x8] sm:$0xff]
      %v1417 = vld [vmem:[%s1414 + $0x18] sm:$0xff]
      %v1418 = vld [vmem:[%s1414 + $0x20] sm:$0xff]
      %v1419 = vld [vmem:[%s1414 + $0x30] sm:$0xff]
      %v1420 = vld [vmem:[%s1414 + $0x38] sm:$0xff]
      %v1421 = vld [vmem:[%s1414 + $0x48] sm:$0xff]
      %v1422 = vld [vmem:[%s1414 + $0x50] sm:$0xff]
      %v1423 = vld [vmem:[%s1414 + $0x60] sm:$0xff]
      %v1424 = vld [vmem:[%s1414 + $0x68] sm:$0xff]
      %v1425 = vld [vmem:[%s1414 + $0x78] sm:$0xff]
      %v1426 = vld [vmem:[%s1414 + $0x80] sm:$0xff]
      %v1427 = vld [vmem:[%s1414 + $0x90] sm:$0xff]
      %v1428 = vld [vmem:[%s1414 + $0x98] sm:$0xff]
      %v1429 = vld [vmem:[%s1414 + $0xa8] sm:$0xff]
      %v1430 = vld [vmem:[%s1414 + $0xb0] sm:$0xff]
      %v1431 = vld [vmem:[%s1414 + $0xc0] sm:$0xff]
      %v1432 = vld [vmem:[%s1414 + $0xc8] sm:$0xff]
      %v1433 = vld [vmem:[%s1414 + $0xd8] sm:$0xff]
      %v1434 = vld [vmem:[%s1414 + $0xe0] sm:$0xff]
      %v1435 = vld [vmem:[%s1414 + $0xf0] sm:$0xff]
      %v1436 = vld [vmem:[%s1414 + $0xf8] sm:$0xff]
      %v1437 = vld [vmem:[%s1414 + $0x108] sm:$0xff]
      %v1438 = vld [vmem:[%s1414 + $0x110] sm:$0xff]
      %v1439 = vld [vmem:[%s1414 + $0x120] sm:$0xff]
      %v1440 = vld [vmem:[%s1414 + $0x128] sm:$0xff]
      %v1441 = vld [vmem:[%s1414 + $0x138] sm:$0xff]
      %v1442 = vld [vmem:[%s1414 + $0x140] sm:$0xff]
      %v1443 = vld [vmem:[%s1414 + $0x150] sm:$0xff]
      %v1444 = vld [vmem:[%s1414 + $0x158] sm:$0xff]
      %v1445 = vld [vmem:[%s1414 + $0x168] sm:$0xff]
      %v1446 = vld [vmem:[%s1414 + $0x170] sm:$0xff]
      %v1447 = vpack.c.bf16 %v1416, %v1415
      %v1448 = vpack.c.bf16 %v1418, %v1417
      %v1449 = vpack.c.bf16 %v1420, %v1419
      %v1450 = vpack.c.bf16 %v1422, %v1421
      %v1451 = vpack.c.bf16 %v1424, %v1423
      %v1452 = vpack.c.bf16 %v1426, %v1425
      %v1453 = vpack.c.bf16 %v1428, %v1427
      %v1454 = vpack.c.bf16 %v1430, %v1429
      %v1455 = vpack.c.bf16 %v1432, %v1431
      %v1456 = vpack.c.bf16 %v1434, %v1433
      %v1457 = vpack.c.bf16 %v1436, %v1435
      %v1458 = vpack.c.bf16 %v1438, %v1437
      %v1459 = vpack.c.bf16 %v1440, %v1439
      %v1460 = vpack.c.bf16 %v1442, %v1441
      %v1461 = vpack.c.bf16 %v1444, %v1443
      %v1462 = vpack.c.bf16 %v1446, %v1445
      %v1463 = vld [vmem:[%s1414 + $0x1] sm:$0xff]
      %v1464 = vld [vmem:[%s1414 + $0x9] sm:$0xff]
      %v1465 = vld [vmem:[%s1414 + $0x19] sm:$0xff]
      %v1466 = vld [vmem:[%s1414 + $0x21] sm:$0xff]
      %v1467 = vld [vmem:[%s1414 + $0x31] sm:$0xff]
      %v1468 = vld [vmem:[%s1414 + $0x39] sm:$0xff]
      %v1469 = vld [vmem:[%s1414 + $0x49] sm:$0xff]
      %v1470 = vld [vmem:[%s1414 + $0x51] sm:$0xff]
      %v1471 = vld [vmem:[%s1414 + $0x61] sm:$0xff]
      %v1472 = vld [vmem:[%s1414 + $0x69] sm:$0xff]
      %v1473 = vld [vmem:[%s1414 + $0x79] sm:$0xff]
      %v1474 = vld [vmem:[%s1414 + $0x81] sm:$0xff]
      %v1475 = vld [vmem:[%s1414 + $0x91] sm:$0xff]
      %v1476 = vld [vmem:[%s1414 + $0x99] sm:$0xff]
      %v1477 = vld [vmem:[%s1414 + $0xa9] sm:$0xff]
      %v1478 = vld [vmem:[%s1414 + $0xb1] sm:$0xff]
      %v1479 = vld [vmem:[%s1414 + $0xc1] sm:$0xff]
      %v1480 = vld [vmem:[%s1414 + $0xc9] sm:$0xff]
      %v1481 = vld [vmem:[%s1414 + $0xd9] sm:$0xff]
      %v1482 = vld [vmem:[%s1414 + $0xe1] sm:$0xff]
      %v1483 = vld [vmem:[%s1414 + $0xf1] sm:$0xff]
      %v1484 = vld [vmem:[%s1414 + $0xf9] sm:$0xff]
      %v1485 = vld [vmem:[%s1414 + $0x109] sm:$0xff]
      %v1486 = vld [vmem:[%s1414 + $0x111] sm:$0xff]
      %v1487 = vld [vmem:[%s1414 + $0x121] sm:$0xff]
      %v1488 = vld [vmem:[%s1414 + $0x129] sm:$0xff]
      %v1489 = vld [vmem:[%s1414 + $0x139] sm:$0xff]
      %v1490 = vld [vmem:[%s1414 + $0x141] sm:$0xff]
      %v1491 = vld [vmem:[%s1414 + $0x151] sm:$0xff]
      %v1492 = vld [vmem:[%s1414 + $0x159] sm:$0xff]
      %v1493 = vld [vmem:[%s1414 + $0x169] sm:$0xff]
      %v1494 = vld [vmem:[%s1414 + $0x171] sm:$0xff]
      %v1495 = vpack.c.bf16 %v1464, %v1463
      %v1496 = vpack.c.bf16 %v1466, %v1465
      %v1497 = vpack.c.bf16 %v1468, %v1467
      %v1498 = vpack.c.bf16 %v1470, %v1469
      %v1499 = vpack.c.bf16 %v1472, %v1471
      %v1500 = vpack.c.bf16 %v1474, %v1473
      %v1501 = vpack.c.bf16 %v1476, %v1475
      %v1502 = vpack.c.bf16 %v1478, %v1477
      %v1503 = vpack.c.bf16 %v1480, %v1479
      %v1504 = vpack.c.bf16 %v1482, %v1481
      %v1505 = vpack.c.bf16 %v1484, %v1483
      %v1506 = vpack.c.bf16 %v1486, %v1485
      %v1507 = vpack.c.bf16 %v1488, %v1487
      %v1508 = vpack.c.bf16 %v1490, %v1489
      %v1509 = vpack.c.bf16 %v1492, %v1491
      %v1510 = vpack.c.bf16 %v1494, %v1493
      %v1511 = vld [vmem:[%s1414 + $0x2] sm:$0xff]
      %v1512 = vld [vmem:[%s1414 + $0xa] sm:$0xff]
      %v1513 = vld [vmem:[%s1414 + $0x1a] sm:$0xff]
      %v1514 = vld [vmem:[%s1414 + $0x22] sm:$0xff]
      %v1515 = vld [vmem:[%s1414 + $0x32] sm:$0xff]
      %v1516 = vld [vmem:[%s1414 + $0x3a] sm:$0xff]
      %v1517 = vld [vmem:[%s1414 + $0x4a] sm:$0xff]
      %v1518 = vld [vmem:[%s1414 + $0x52] sm:$0xff]
      %v1519 = vld [vmem:[%s1414 + $0x62] sm:$0xff]
      %v1520 = vld [vmem:[%s1414 + $0x6a] sm:$0xff]
      %v1521 = vld [vmem:[%s1414 + $0x7a] sm:$0xff]
      %v1522 = vld [vmem:[%s1414 + $0x82] sm:$0xff]
      %v1523 = vld [vmem:[%s1414 + $0x92] sm:$0xff]
      %v1524 = vld [vmem:[%s1414 + $0x9a] sm:$0xff]
      %v1525 = vld [vmem:[%s1414 + $0xaa] sm:$0xff]
      %v1526 = vld [vmem:[%s1414 + $0xb2] sm:$0xff]
      %v1527 = vld [vmem:[%s1414 + $0xc2] sm:$0xff]
      %v1528 = vld [vmem:[%s1414 + $0xca] sm:$0xff]
      %v1529 = vld [vmem:[%s1414 + $0xda] sm:$0xff]
      %v1530 = vld [vmem:[%s1414 + $0xe2] sm:$0xff]
      %v1531 = vld [vmem:[%s1414 + $0xf2] sm:$0xff]
      %v1532 = vld [vmem:[%s1414 + $0xfa] sm:$0xff]
      %v1533 = vld [vmem:[%s1414 + $0x10a] sm:$0xff]
      %v1534 = vld [vmem:[%s1414 + $0x112] sm:$0xff]
      %v1535 = vld [vmem:[%s1414 + $0x122] sm:$0xff]
      %v1536 = vld [vmem:[%s1414 + $0x12a] sm:$0xff]
      %v1537 = vld [vmem:[%s1414 + $0x13a] sm:$0xff]
      %v1538 = vld [vmem:[%s1414 + $0x142] sm:$0xff]
      %v1539 = vld [vmem:[%s1414 + $0x152] sm:$0xff]
      %v1540 = vld [vmem:[%s1414 + $0x15a] sm:$0xff]
      %v1541 = vld [vmem:[%s1414 + $0x16a] sm:$0xff]
      %v1542 = vld [vmem:[%s1414 + $0x172] sm:$0xff]
      %v1543 = vpack.c.bf16 %v1512, %v1511
      %v1544 = vpack.c.bf16 %v1514, %v1513
      %v1545 = vpack.c.bf16 %v1516, %v1515
      %v1546 = vpack.c.bf16 %v1518, %v1517
      %v1547 = vpack.c.bf16 %v1520, %v1519
      %v1548 = vpack.c.bf16 %v1522, %v1521
      %v1549 = vpack.c.bf16 %v1524, %v1523
      %v1550 = vpack.c.bf16 %v1526, %v1525
      %v1551 = vpack.c.bf16 %v1528, %v1527
      %v1552 = vpack.c.bf16 %v1530, %v1529
      %v1553 = vpack.c.bf16 %v1532, %v1531
      %v1554 = vpack.c.bf16 %v1534, %v1533
      %v1555 = vpack.c.bf16 %v1536, %v1535
      %v1556 = vpack.c.bf16 %v1538, %v1537
      %v1557 = vpack.c.bf16 %v1540, %v1539
      %v1558 = vpack.c.bf16 %v1542, %v1541
      %v1559 = vld [vmem:[%s3] sm:$0xf]
      %v1560 = vld [vmem:[%s3 + $0x4] sm:$0xf]
      %v1561 = vld [vmem:[%s3 + $0x8] sm:$0xf]
      %v1562 = vld [vmem:[%s3 + $0xc] sm:$0xf]
      %v1563 = vld [vmem:[%s3 + $0x10] sm:$0xf]
      %v1564 = vld [vmem:[%s3 + $0x14] sm:$0xf]
      %v1565 = vld [vmem:[%s3 + $0x18] sm:$0xf]
      %v1566 = vld [vmem:[%s3 + $0x1c] sm:$0xf]
      %v1567 = vld [vmem:[%s3 + $0x20] sm:$0xf]
      %v1568 = vld [vmem:[%s3 + $0x24] sm:$0xf]
      %v1569 = vld [vmem:[%s3 + $0x28] sm:$0xf]
      %v1570 = vld [vmem:[%s3 + $0x2c] sm:$0xf]
      %v1571 = vld [vmem:[%s3 + $0x30] sm:$0xf]
      %v1572 = vld [vmem:[%s3 + $0x34] sm:$0xf]
      %v1573 = vld [vmem:[%s3 + $0x38] sm:$0xf]
      %v1574 = vld [vmem:[%s3 + $0x3c] sm:$0xf]
      %v1575 = vld [vmem:[%s3 + $0x40] sm:$0xf]
      %v1576 = vld [vmem:[%s3 + $0x44] sm:$0xf]
      %v1577 = vld [vmem:[%s3 + $0x48] sm:$0xf]
      %v1578 = vld [vmem:[%s3 + $0x4c] sm:$0xf]
      %v1579 = vld [vmem:[%s3 + $0x50] sm:$0xf]
      %v1580 = vld [vmem:[%s3 + $0x54] sm:$0xf]
      %v1581 = vld [vmem:[%s3 + $0x58] sm:$0xf]
      %v1582 = vld [vmem:[%s3 + $0x5c] sm:$0xf]
      %v1583 = vld [vmem:[%s3 + $0x60] sm:$0xf]
      %v1584 = vld [vmem:[%s3 + $0x64] sm:$0xf]
      %v1585 = vld [vmem:[%s3 + $0x68] sm:$0xf]
      %v1586 = vld [vmem:[%s3 + $0x6c] sm:$0xf]
      %v1587 = vld [vmem:[%s3 + $0x70] sm:$0xf]
      %v1588 = vld [vmem:[%s3 + $0x74] sm:$0xf]
      %v1589 = vld [vmem:[%s3 + $0x78] sm:$0xf]
      %v1590 = vld [vmem:[%s3 + $0x7c] sm:$0xf]
      %v1591 = vld [vmem:[%s3 + $0x80] sm:$0xf]
      %v1592 = vld [vmem:[%s3 + $0x84] sm:$0xf]
      %v1593 = vld [vmem:[%s3 + $0x88] sm:$0xf]
      %v1594 = vld [vmem:[%s3 + $0x8c] sm:$0xf]
      %v1595 = vld [vmem:[%s3 + $0x90] sm:$0xf]
      %v1596 = vld [vmem:[%s3 + $0x94] sm:$0xf]
      %v1597 = vld [vmem:[%s3 + $0x98] sm:$0xf]
      %v1598 = vld [vmem:[%s3 + $0x9c] sm:$0xf]
      %v1599 = vld [vmem:[%s3 + $0xa0] sm:$0xf]
      %v1600 = vld [vmem:[%s3 + $0xa4] sm:$0xf]
      %v1601 = vld [vmem:[%s3 + $0xa8] sm:$0xf]
      %v1602 = vld [vmem:[%s3 + $0xac] sm:$0xf]
      %v1603 = vld [vmem:[%s3 + $0xb0] sm:$0xf]
      %v1604 = vld [vmem:[%s3 + $0xb4] sm:$0xf]
      %v1605 = vld [vmem:[%s3 + $0xb8] sm:$0xf]
      %v1606 = vld [vmem:[%s3 + $0xbc] sm:$0xf]
      %v1607 = vld [vmem:[%s3 + $0xc0] sm:$0xf]
      %v1608 = vld [vmem:[%s3 + $0xc4] sm:$0xf]
      %v1609 = vld [vmem:[%s3 + $0xc8] sm:$0xf]
      %v1610 = vld [vmem:[%s3 + $0xcc] sm:$0xf]
      %v1611 = vld [vmem:[%s3 + $0xd0] sm:$0xf]
      %v1612 = vld [vmem:[%s3 + $0xd4] sm:$0xf]
      %v1613 = vld [vmem:[%s3 + $0xd8] sm:$0xf]
      %v1614 = vld [vmem:[%s3 + $0xdc] sm:$0xf]
      %v1615 = vld [vmem:[%s3 + $0xe0] sm:$0xf]
      %v1616 = vld [vmem:[%s3 + $0xe4] sm:$0xf]
      %v1617 = vld [vmem:[%s3 + $0xe8] sm:$0xf]
      %v1618 = vld [vmem:[%s3 + $0xec] sm:$0xf]
      %v1619 = vld [vmem:[%s3 + $0xf0] sm:$0xf]
      %v1620 = vld [vmem:[%s3 + $0xf4] sm:$0xf]
      %v1621 = vld [vmem:[%s3 + $0xf8] sm:$0xf]
      %v1622 = vld [vmem:[%s3 + $0xfc] sm:$0xf]
      %v1623 = vld [vmem:[%s3 + $0x100] sm:$0xf]
      %v1624 = vld [vmem:[%s3 + $0x104] sm:$0xf]
      %v1625 = vld [vmem:[%s3 + $0x108] sm:$0xf]
      %v1626 = vld [vmem:[%s3 + $0x10c] sm:$0xf]
      %v1627 = vld [vmem:[%s3 + $0x110] sm:$0xf]
      %v1628 = vld [vmem:[%s3 + $0x114] sm:$0xf]
      %v1629 = vld [vmem:[%s3 + $0x118] sm:$0xf]
      %v1630 = vld [vmem:[%s3 + $0x11c] sm:$0xf]
      %v1631 = vld [vmem:[%s3 + $0x120] sm:$0xf]
      %v1632 = vld [vmem:[%s3 + $0x124] sm:$0xf]
      %v1633 = vld [vmem:[%s3 + $0x128] sm:$0xf]
      %v1634 = vld [vmem:[%s3 + $0x12c] sm:$0xf]
      %v1635 = vld [vmem:[%s3 + $0x130] sm:$0xf]
      %v1636 = vld [vmem:[%s3 + $0x134] sm:$0xf]
      %v1637 = vld [vmem:[%s3 + $0x138] sm:$0xf]
      %v1638 = vld [vmem:[%s3 + $0x13c] sm:$0xf]
      %v1639 = vld [vmem:[%s3 + $0x140] sm:$0xf]
      %v1640 = vld [vmem:[%s3 + $0x144] sm:$0xf]
      %v1641 = vld [vmem:[%s3 + $0x148] sm:$0xf]
      %v1642 = vld [vmem:[%s3 + $0x14c] sm:$0xf]
      %v1643 = vld [vmem:[%s3 + $0x150] sm:$0xf]
      %v1644 = vld [vmem:[%s3 + $0x154] sm:$0xf]
      %v1645 = vld [vmem:[%s3 + $0x158] sm:$0xf]
      %v1646 = vld [vmem:[%s3 + $0x15c] sm:$0xf]
      %v1647 = vld [vmem:[%s3 + $0x160] sm:$0xf]
      %v1648 = vld [vmem:[%s3 + $0x164] sm:$0xf]
      %v1649 = vld [vmem:[%s3 + $0x168] sm:$0xf]
      %v1650 = vld [vmem:[%s3 + $0x16c] sm:$0xf]
      %v1651 = vld [vmem:[%s3 + $0x170] sm:$0xf]
      %v1652 = vld [vmem:[%s3 + $0x174] sm:$0xf]
      %v1653 = vld [vmem:[%s3 + $0x178] sm:$0xf]
      %v1654 = vld [vmem:[%s3 + $0x17c] sm:$0xf]
      %v1655 = vld [vmem:[%s3 + $0x180] sm:$0xf]
      %v1656 = vld [vmem:[%s3 + $0x184] sm:$0xf]
      %v1657 = vld [vmem:[%s3 + $0x188] sm:$0xf]
      %v1658 = vld [vmem:[%s3 + $0x18c] sm:$0xf]
      %v1659 = vld [vmem:[%s3 + $0x190] sm:$0xf]
      %v1660 = vld [vmem:[%s3 + $0x194] sm:$0xf]
      %v1661 = vld [vmem:[%s3 + $0x198] sm:$0xf]
      %v1662 = vld [vmem:[%s3 + $0x19c] sm:$0xf]
      %v1663 = vld [vmem:[%s3 + $0x1a0] sm:$0xf]
      %v1664 = vld [vmem:[%s3 + $0x1a4] sm:$0xf]
      %v1665 = vld [vmem:[%s3 + $0x1a8] sm:$0xf]
      %v1666 = vld [vmem:[%s3 + $0x1ac] sm:$0xf]
      %v1667 = vld [vmem:[%s3 + $0x1b0] sm:$0xf]
      %v1668 = vld [vmem:[%s3 + $0x1b4] sm:$0xf]
      %v1669 = vld [vmem:[%s3 + $0x1b8] sm:$0xf]
      %v1670 = vld [vmem:[%s3 + $0x1bc] sm:$0xf]
      %v1671 = vld [vmem:[%s3 + $0x1c0] sm:$0xf]
      %v1672 = vld [vmem:[%s3 + $0x1c4] sm:$0xf]
      %v1673 = vld [vmem:[%s3 + $0x1c8] sm:$0xf]
      %v1674 = vld [vmem:[%s3 + $0x1cc] sm:$0xf]
      %v1675 = vld [vmem:[%s3 + $0x1d0] sm:$0xf]
      %v1676 = vld [vmem:[%s3 + $0x1d4] sm:$0xf]
      %v1677 = vld [vmem:[%s3 + $0x1d8] sm:$0xf]
      %v1678 = vld [vmem:[%s3 + $0x1dc] sm:$0xf]
      %v1679 = vld [vmem:[%s3 + $0x1e0] sm:$0xf]
      %v1680 = vld [vmem:[%s3 + $0x1e4] sm:$0xf]
      %v1681 = vld [vmem:[%s3 + $0x1e8] sm:$0xf]
      %v1682 = vld [vmem:[%s3 + $0x1ec] sm:$0xf]
      %v1683 = vld [vmem:[%s3 + $0x1f0] sm:$0xf]
      %v1684 = vld [vmem:[%s3 + $0x1f4] sm:$0xf]
      %v1685 = vld [vmem:[%s3 + $0x1f8] sm:$0xf]
      %v1686 = vld [vmem:[%s3 + $0x1fc] sm:$0xf]
      %v1687 = vld [vmem:[%s3 + $0x200] sm:$0xf]
      %v1688 = vld [vmem:[%s3 + $0x204] sm:$0xf]
      %v1689 = vld [vmem:[%s3 + $0x208] sm:$0xf]
      %v1690 = vld [vmem:[%s3 + $0x20c] sm:$0xf]
      %v1691 = vld [vmem:[%s3 + $0x210] sm:$0xf]
      %v1692 = vld [vmem:[%s3 + $0x214] sm:$0xf]
      %v1693 = vld [vmem:[%s3 + $0x218] sm:$0xf]
      %v1694 = vld [vmem:[%s3 + $0x21c] sm:$0xf]
      %v1695 = vld [vmem:[%s3 + $0x220] sm:$0xf]
      %v1696 = vld [vmem:[%s3 + $0x224] sm:$0xf]
      %v1697 = vld [vmem:[%s3 + $0x228] sm:$0xf]
      %v1698 = vld [vmem:[%s3 + $0x22c] sm:$0xf]
      %v1699 = vld [vmem:[%s3 + $0x230] sm:$0xf]
      %v1700 = vld [vmem:[%s3 + $0x234] sm:$0xf]
      %v1701 = vld [vmem:[%s3 + $0x238] sm:$0xf]
      %v1702 = vld [vmem:[%s3 + $0x23c] sm:$0xf]
      %v1703 = vld [vmem:[%s4] sm:$0x1]
      %v1705 = vlaneseq
      %v1706 = vshrl.u32 %v1705, 7
      %v1707 = vsub.s32 0, %v1706
      %v1708 = vrot.slane %v1703, %v1707
      %v1854 = vunpack.c.l.b16 %v1559
      %v1855 = vunpack.c.l.b16 %v1560
      %v1856 = vunpack.c.l.b16 %v1561
      %v1857 = vunpack.c.l.b16 %v1562
      %v1858 = vunpack.c.l.b16 %v1563
      %v1859 = vunpack.c.l.b16 %v1564
      %v1860 = vunpack.c.l.b16 %v1565
      %v1861 = vunpack.c.l.b16 %v1566
      %v1862 = vunpack.c.l.b16 %v1567
      %v1863 = vunpack.c.l.b16 %v1568
      %v1864 = vunpack.c.l.b16 %v1569
      %v1865 = vunpack.c.l.b16 %v1570
      %v1866 = vunpack.c.l.b16 %v1571
      %v1867 = vunpack.c.l.b16 %v1572
      %v1868 = vunpack.c.l.b16 %v1573
      %v1869 = vunpack.c.l.b16 %v1574
      %v1870 = vunpack.c.l.b16 %v1575
      %v1871 = vunpack.c.l.b16 %v1576
      %v1872 = vunpack.c.l.b16 %v1577
      %v1873 = vunpack.c.l.b16 %v1578
      %v1874 = vunpack.c.l.b16 %v1579
      %v1875 = vunpack.c.l.b16 %v1580
      %v1876 = vunpack.c.l.b16 %v1581
      %v1877 = vunpack.c.l.b16 %v1582
      %v1878 = vunpack.c.l.b16 %v1583
      %v1879 = vunpack.c.l.b16 %v1584
      %v1880 = vunpack.c.l.b16 %v1585
      %v1881 = vunpack.c.l.b16 %v1586
      %v1882 = vunpack.c.l.b16 %v1587
      %v1883 = vunpack.c.l.b16 %v1588
      %v1884 = vunpack.c.l.b16 %v1589
      %v1885 = vunpack.c.l.b16 %v1590
      %v1886 = vunpack.c.l.b16 %v1591
      %v1887 = vunpack.c.l.b16 %v1592
      %v1888 = vunpack.c.l.b16 %v1593
      %v1889 = vunpack.c.l.b16 %v1594
      %v1890 = vunpack.c.l.b16 %v1595
      %v1891 = vunpack.c.l.b16 %v1596
      %v1892 = vunpack.c.l.b16 %v1597
      %v1893 = vunpack.c.l.b16 %v1598
      %v1894 = vunpack.c.l.b16 %v1599
      %v1895 = vunpack.c.l.b16 %v1600
      %v1896 = vunpack.c.l.b16 %v1601
      %v1897 = vunpack.c.l.b16 %v1602
      %v1898 = vunpack.c.l.b16 %v1603
      %v1899 = vunpack.c.l.b16 %v1604
      %v1900 = vunpack.c.l.b16 %v1605
      %v1901 = vunpack.c.l.b16 %v1606
      %v1902 = vunpack.c.l.b16 %v1607
      %v1903 = vunpack.c.l.b16 %v1608
      %v1904 = vunpack.c.l.b16 %v1609
      %v1905 = vunpack.c.l.b16 %v1610
      %v1906 = vunpack.c.l.b16 %v1611
      %v1907 = vunpack.c.l.b16 %v1612
      %v1908 = vunpack.c.l.b16 %v1613
      %v1909 = vunpack.c.l.b16 %v1614
      %v1910 = vunpack.c.l.b16 %v1615
      %v1911 = vunpack.c.l.b16 %v1616
      %v1912 = vunpack.c.l.b16 %v1617
      %v1913 = vunpack.c.l.b16 %v1618
      %v1914 = vunpack.c.l.b16 %v1619
      %v1915 = vunpack.c.l.b16 %v1620
      %v1916 = vunpack.c.l.b16 %v1621
      %v1917 = vunpack.c.l.b16 %v1622
      %v1918 = vunpack.c.l.b16 %v1623
      %v1919 = vunpack.c.l.b16 %v1624
      %v1920 = vunpack.c.l.b16 %v1625
      %v1921 = vunpack.c.l.b16 %v1626
      %v1922 = vunpack.c.l.b16 %v1627
      %v1923 = vunpack.c.l.b16 %v1628
      %v1924 = vunpack.c.l.b16 %v1629
      %v1925 = vunpack.c.l.b16 %v1630
      %v1926 = vunpack.c.l.b16 %v1631
      %v1927 = vunpack.c.l.b16 %v1632
      %v1928 = vunpack.c.l.b16 %v1633
      %v1929 = vunpack.c.l.b16 %v1634
      %v1930 = vunpack.c.l.b16 %v1635
      %v1931 = vunpack.c.l.b16 %v1636
      %v1932 = vunpack.c.l.b16 %v1637
      %v1933 = vunpack.c.l.b16 %v1638
      %v1934 = vunpack.c.l.b16 %v1639
      %v1935 = vunpack.c.l.b16 %v1640
      %v1936 = vunpack.c.l.b16 %v1641
      %v1937 = vunpack.c.l.b16 %v1642
      %v1938 = vunpack.c.l.b16 %v1643
      %v1939 = vunpack.c.l.b16 %v1644
      %v1940 = vunpack.c.l.b16 %v1645
      %v1941 = vunpack.c.l.b16 %v1646
      %v1942 = vunpack.c.l.b16 %v1647
      %v1943 = vunpack.c.l.b16 %v1648
      %v1944 = vunpack.c.l.b16 %v1649
      %v1945 = vunpack.c.l.b16 %v1650
      %v1946 = vunpack.c.l.b16 %v1651
      %v1947 = vunpack.c.l.b16 %v1652
      %v1948 = vunpack.c.l.b16 %v1653
      %v1949 = vunpack.c.l.b16 %v1654
      %v1950 = vunpack.c.l.b16 %v1655
      %v1951 = vunpack.c.l.b16 %v1656
      %v1952 = vunpack.c.l.b16 %v1657
      %v1953 = vunpack.c.l.b16 %v1658
      %v1954 = vunpack.c.l.b16 %v1659
      %v1955 = vunpack.c.l.b16 %v1660
      %v1956 = vunpack.c.l.b16 %v1661
      %v1957 = vunpack.c.l.b16 %v1662
      %v1958 = vunpack.c.l.b16 %v1663
      %v1959 = vunpack.c.l.b16 %v1664
      %v1960 = vunpack.c.l.b16 %v1665
      %v1961 = vunpack.c.l.b16 %v1666
      %v1962 = vunpack.c.l.b16 %v1667
      %v1963 = vunpack.c.l.b16 %v1668
      %v1964 = vunpack.c.l.b16 %v1669
      %v1965 = vunpack.c.l.b16 %v1670
      %v1966 = vunpack.c.l.b16 %v1671
      %v1967 = vunpack.c.l.b16 %v1672
      %v1968 = vunpack.c.l.b16 %v1673
      %v1969 = vunpack.c.l.b16 %v1674
      %v1970 = vunpack.c.l.b16 %v1675
      %v1971 = vunpack.c.l.b16 %v1676
      %v1972 = vunpack.c.l.b16 %v1677
      %v1973 = vunpack.c.l.b16 %v1678
      %v1974 = vunpack.c.l.b16 %v1679
      %v1975 = vunpack.c.l.b16 %v1680
      %v1976 = vunpack.c.l.b16 %v1681
      %v1977 = vunpack.c.l.b16 %v1682
      %v1978 = vunpack.c.l.b16 %v1683
      %v1979 = vunpack.c.l.b16 %v1684
      %v1980 = vunpack.c.l.b16 %v1685
      %v1981 = vunpack.c.l.b16 %v1686
      %v1982 = vunpack.c.l.b16 %v1687
      %v1983 = vunpack.c.l.b16 %v1688
      %v1984 = vunpack.c.l.b16 %v1689
      %v1985 = vunpack.c.l.b16 %v1690
      %v1986 = vunpack.c.l.b16 %v1691
      %v1987 = vunpack.c.l.b16 %v1692
      %v1988 = vunpack.c.l.b16 %v1693
      %v1989 = vunpack.c.l.b16 %v1694
      %v1990 = vunpack.c.l.b16 %v1695
      %v1991 = vunpack.c.l.b16 %v1696
      %v1992 = vunpack.c.l.b16 %v1697
      %v1993 = vunpack.c.l.b16 %v1698
      %v1994 = vunpack.c.l.b16 %v1699
      %v1995 = vunpack.c.l.b16 %v1700
      %v1996 = vunpack.c.l.b16 %v1701
      %v1997 = vunpack.c.l.b16 %v1702
      %v1998 = vpack.c.b16 %v1855, %v1854
      %v1999 = vpack.c.b16 %v1857, %v1856
      %v2000 = vpack.c.b16 %v1859, %v1858
      %v2001 = vpack.c.b16 %v1861, %v1860
      %v2002 = vpack.c.b16 %v1863, %v1862
      %v2003 = vpack.c.b16 %v1865, %v1864
      %v2004 = vpack.c.b16 %v1867, %v1866
      %v2005 = vpack.c.b16 %v1869, %v1868
      %v2006 = vpack.c.b16 %v1871, %v1870
      %v2007 = vpack.c.b16 %v1873, %v1872
      %v2008 = vpack.c.b16 %v1875, %v1874
      %v2009 = vpack.c.b16 %v1877, %v1876
      %v2010 = vpack.c.b16 %v1879, %v1878
      %v2011 = vpack.c.b16 %v1881, %v1880
      %v2012 = vpack.c.b16 %v1883, %v1882
      %v2013 = vpack.c.b16 %v1885, %v1884
      %v2014 = vpack.c.b16 %v1887, %v1886
      %v2015 = vpack.c.b16 %v1889, %v1888
      %v2016 = vpack.c.b16 %v1891, %v1890
      %v2017 = vpack.c.b16 %v1893, %v1892
      %v2018 = vpack.c.b16 %v1895, %v1894
      %v2019 = vpack.c.b16 %v1897, %v1896
      %v2020 = vpack.c.b16 %v1899, %v1898
      %v2021 = vpack.c.b16 %v1901, %v1900
      %v2022 = vpack.c.b16 %v1903, %v1902
      %v2023 = vpack.c.b16 %v1905, %v1904
      %v2024 = vpack.c.b16 %v1907, %v1906
      %v2025 = vpack.c.b16 %v1909, %v1908
      %v2026 = vpack.c.b16 %v1911, %v1910
      %v2027 = vpack.c.b16 %v1913, %v1912
      %v2028 = vpack.c.b16 %v1915, %v1914
      %v2029 = vpack.c.b16 %v1917, %v1916
      %v2030 = vpack.c.b16 %v1919, %v1918
      %v2031 = vpack.c.b16 %v1921, %v1920
      %v2032 = vpack.c.b16 %v1923, %v1922
      %v2033 = vpack.c.b16 %v1925, %v1924
      %v2034 = vpack.c.b16 %v1927, %v1926
      %v2035 = vpack.c.b16 %v1929, %v1928
      %v2036 = vpack.c.b16 %v1931, %v1930
      %v2037 = vpack.c.b16 %v1933, %v1932
      %v2038 = vpack.c.b16 %v1935, %v1934
      %v2039 = vpack.c.b16 %v1937, %v1936
      %v2040 = vpack.c.b16 %v1939, %v1938
      %v2041 = vpack.c.b16 %v1941, %v1940
      %v2042 = vpack.c.b16 %v1943, %v1942
      %v2043 = vpack.c.b16 %v1945, %v1944
      %v2044 = vpack.c.b16 %v1947, %v1946
      %v2045 = vpack.c.b16 %v1949, %v1948
      %v2046 = vpack.c.b16 %v1951, %v1950
      %v2047 = vpack.c.b16 %v1953, %v1952
      %v2048 = vpack.c.b16 %v1955, %v1954
      %v2049 = vpack.c.b16 %v1957, %v1956
      %v2050 = vpack.c.b16 %v1959, %v1958
      %v2051 = vpack.c.b16 %v1961, %v1960
      %v2052 = vpack.c.b16 %v1963, %v1962
      %v2053 = vpack.c.b16 %v1965, %v1964
      %v2054 = vpack.c.b16 %v1967, %v1966
      %v2055 = vpack.c.b16 %v1969, %v1968
      %v2056 = vpack.c.b16 %v1971, %v1970
      %v2057 = vpack.c.b16 %v1973, %v1972
      %v2058 = vpack.c.b16 %v1975, %v1974
      %v2059 = vpack.c.b16 %v1977, %v1976
      %v2060 = vpack.c.b16 %v1979, %v1978
      %v2061 = vpack.c.b16 %v1981, %v1980
      %v2062 = vpack.c.b16 %v1983, %v1982
      %v2063 = vpack.c.b16 %v1985, %v1984
      %v2064 = vpack.c.b16 %v1987, %v1986
      %v2065 = vpack.c.b16 %v1989, %v1988
      %v2066 = vpack.c.b16 %v1991, %v1990
      %v2067 = vpack.c.b16 %v1993, %v1992
      %v2068 = vpack.c.b16 %v1995, %v1994
      %v2069 = vpack.c.b16 %v1997, %v1996
      %2142 = vmatprep.subr.bf16.mxu0 0
      %2143 = vmatpush1.bf16.msra.mxu0 %v2005
      %2144 = vmatprep.subr.bf16.mxu0 0
      %2145 = vmatpush1.bf16.msra.mxu0 %v2004
      %2146 = vmatprep.subr.bf16.mxu0 0
      %2147 = vmatpush1.bf16.msra.mxu0 %v2003
      %2148 = vmatprep.subr.bf16.mxu0 0
      %2149 = vmatpush1.bf16.msra.mxu0 %v2002
      %2150 = vmatprep.subr.bf16.mxu0 0
      %2151 = vmatpush1.bf16.msra.mxu0 %v2001
      %2152 = vmatprep.subr.bf16.mxu0 0
      %2153 = vmatpush1.bf16.msra.mxu0 %v2000
      %2154 = vmatprep.subr.bf16.mxu0 0
      %2155 = vmatpush1.bf16.msra.mxu0 %v1999
      %2156 = vmatprep.subr.bf16.mxu0 0
      %2157 = vmatpush1.bf16.msra.mxu0 %v1998
      %2158 = vmatprep.subr.bf16.mxu0 0
      %2159 = vmatpush2.bf16.msra.mxu0 %v2013
      %2160 = vmatprep.subr.bf16.mxu0 0
      %2161 = vmatpush2.bf16.msra.mxu0 %v2012
      %2162 = vmatprep.subr.bf16.mxu0 0
      %2163 = vmatpush2.bf16.msra.mxu0 %v2011
      %2164 = vmatprep.subr.bf16.mxu0 0
      %2165 = vmatpush2.bf16.msra.mxu0 %v2010
      %2166 = vmatprep.subr.bf16.mxu0 0
      %2167 = vmatpush2.bf16.msra.mxu0 %v2009
      %2168 = vmatprep.subr.bf16.mxu0 0
      %2169 = vmatpush2.bf16.msra.mxu0 %v2008
      %2170 = vmatprep.subr.bf16.mxu0 0
      %2171 = vmatpush2.bf16.msra.mxu0 %v2007
      %2172 = vmatprep.subr.bf16.mxu0 0
      %2173 = vmatpush2.bf16.msra.mxu0 %v2006
      %2174 = vmatprep.mubr.bf16.mxu0 %v1206
      %2175 = vmatmul.mubr.bf16.gmra.mxu0 %v1158
      %v2176 = vpop.f32.mrf.mxu0
      %v2177 = vadd.f32 %v1708, %v2176
      %v2178 = vpop.f32.mrf.mxu0
      %v2179 = vpop.f32.mrf.mxu0
      %v2180 = vadd.f32 %v1708, %v2179
      %v2181 = vpop.f32.mrf.mxu0
      %2182 = vmatprep.mubr.bf16.mxu0 %v1207
      %2183 = vmatmul.mubr.bf16.gmra.mxu0 %v1159
      %v2184 = vpop.f32.mrf.mxu0
      %v2185 = vadd.f32 %v1708, %v2184
      %v2186 = vpop.f32.mrf.mxu0
      %v2187 = vpop.f32.mrf.mxu0
      %v2188 = vadd.f32 %v1708, %v2187
      %v2189 = vpop.f32.mrf.mxu0
      %2190 = vmatprep.mubr.bf16.mxu0 %v1208
      %2191 = vmatmul.mubr.bf16.gmra.mxu0 %v1160
      %v2192 = vpop.f32.mrf.mxu0
      %v2193 = vadd.f32 %v1708, %v2192
      %v2194 = vpop.f32.mrf.mxu0
      %v2195 = vpop.f32.mrf.mxu0
      %v2196 = vadd.f32 %v1708, %v2195
      %v2197 = vpop.f32.mrf.mxu0
      %2198 = vmatprep.mubr.bf16.mxu0 %v1209
      %2199 = vmatmul.mubr.bf16.gmra.mxu0 %v1161
      %v2200 = vpop.f32.mrf.mxu0
      %v2201 = vadd.f32 %v1708, %v2200
      %v2202 = vpop.f32.mrf.mxu0
      %v2203 = vpop.f32.mrf.mxu0
      %v2204 = vadd.f32 %v1708, %v2203
      %v2205 = vpop.f32.mrf.mxu0
      %2206 = vmatprep.mubr.bf16.mxu0 %v1210
      %2207 = vmatmul.mubr.bf16.gmra.mxu0 %v1162
      %v2208 = vpop.f32.mrf.mxu0
      %v2209 = vadd.f32 %v1708, %v2208
      %v2210 = vpop.f32.mrf.mxu0
      %v2211 = vpop.f32.mrf.mxu0
      %v2212 = vadd.f32 %v1708, %v2211
      %v2213 = vpop.f32.mrf.mxu0
      %2214 = vmatprep.mubr.bf16.mxu0 %v1211
      %2215 = vmatmul.mubr.bf16.gmra.mxu0 %v1163
      %v2216 = vpop.f32.mrf.mxu0
      %v2217 = vadd.f32 %v1708, %v2216
      %v2218 = vpop.f32.mrf.mxu0
      %v2219 = vpop.f32.mrf.mxu0
      %v2220 = vadd.f32 %v1708, %v2219
      %v2221 = vpop.f32.mrf.mxu0
      %2222 = vmatprep.mubr.bf16.mxu0 %v1212
      %2223 = vmatmul.mubr.bf16.gmra.mxu0 %v1164
      %v2224 = vpop.f32.mrf.mxu0
      %v2225 = vadd.f32 %v1708, %v2224
      %v2226 = vpop.f32.mrf.mxu0
      %v2227 = vpop.f32.mrf.mxu0
      %v2228 = vadd.f32 %v1708, %v2227
      %v2229 = vpop.f32.mrf.mxu0
      %2230 = vmatprep.mubr.bf16.mxu0 %v1213
      %2231 = vmatmul.mubr.bf16.gmra.mxu0 %v1165
      %v2232 = vpop.f32.mrf.mxu0
      %v2233 = vadd.f32 %v1708, %v2232
      %v2234 = vpop.f32.mrf.mxu0
      %v2235 = vpop.f32.mrf.mxu0
      %v2236 = vadd.f32 %v1708, %v2235
      %v2237 = vpop.f32.mrf.mxu0
      %2238 = vmatprep.mubr.bf16.mxu0 %v1214
      %2239 = vmatmul.mubr.bf16.gmra.mxu0 %v1166
      %v2240 = vpop.f32.mrf.mxu0
      %v2241 = vadd.f32 %v1708, %v2240
      %v2242 = vpop.f32.mrf.mxu0
      %v2243 = vpop.f32.mrf.mxu0
      %v2244 = vadd.f32 %v1708, %v2243
      %v2245 = vpop.f32.mrf.mxu0
      %2246 = vmatprep.mubr.bf16.mxu0 %v1215
      %2247 = vmatmul.mubr.bf16.gmra.mxu0 %v1167
      %v2248 = vpop.f32.mrf.mxu0
      %v2249 = vadd.f32 %v1708, %v2248
      %v2250 = vpop.f32.mrf.mxu0
      %v2251 = vpop.f32.mrf.mxu0
      %v2252 = vadd.f32 %v1708, %v2251
      %v2253 = vpop.f32.mrf.mxu0
      %2254 = vmatprep.mubr.bf16.mxu0 %v1216
      %2255 = vmatmul.mubr.bf16.gmra.mxu0 %v1168
      %v2256 = vpop.f32.mrf.mxu0
      %v2257 = vadd.f32 %v1708, %v2256
      %v2258 = vpop.f32.mrf.mxu0
      %v2259 = vpop.f32.mrf.mxu0
      %v2260 = vadd.f32 %v1708, %v2259
      %v2261 = vpop.f32.mrf.mxu0
      %2262 = vmatprep.mubr.bf16.mxu0 %v1217
      %2263 = vmatmul.mubr.bf16.gmra.mxu0 %v1169
      %v2264 = vpop.f32.mrf.mxu0
      %v2265 = vadd.f32 %v1708, %v2264
      %v2266 = vpop.f32.mrf.mxu0
      %v2267 = vpop.f32.mrf.mxu0
      %v2268 = vadd.f32 %v1708, %v2267
      %v2269 = vpop.f32.mrf.mxu0
      %2270 = vmatprep.mubr.bf16.mxu0 %v1218
      %2271 = vmatmul.mubr.bf16.gmra.mxu0 %v1170
      %v2272 = vpop.f32.mrf.mxu0
      %v2273 = vadd.f32 %v1708, %v2272
      %v2274 = vpop.f32.mrf.mxu0
      %v2275 = vpop.f32.mrf.mxu0
      %v2276 = vadd.f32 %v1708, %v2275
      %v2277 = vpop.f32.mrf.mxu0
      %2278 = vmatprep.mubr.bf16.mxu0 %v1219
      %2279 = vmatmul.mubr.bf16.gmra.mxu0 %v1171
      %v2280 = vpop.f32.mrf.mxu0
      %v2281 = vadd.f32 %v1708, %v2280
      %v2282 = vpop.f32.mrf.mxu0
      %v2283 = vpop.f32.mrf.mxu0
      %v2284 = vadd.f32 %v1708, %v2283
      %v2285 = vpop.f32.mrf.mxu0
      %2286 = vmatprep.mubr.bf16.mxu0 %v1220
      %2287 = vmatmul.mubr.bf16.gmra.mxu0 %v1172
      %v2288 = vpop.f32.mrf.mxu0
      %v2289 = vadd.f32 %v1708, %v2288
      %v2290 = vpop.f32.mrf.mxu0
      %v2291 = vpop.f32.mrf.mxu0
      %v2292 = vadd.f32 %v1708, %v2291
      %v2293 = vpop.f32.mrf.mxu0
      %2294 = vmatprep.mubr.bf16.mxu0 %v1221
      %2295 = vmatmul.mubr.bf16.gmra.mxu0 %v1173
      %v2296 = vpop.f32.mrf.mxu0
      %v2297 = vadd.f32 %v1708, %v2296
      %v2298 = vpop.f32.mrf.mxu0
      %v2299 = vpop.f32.mrf.mxu0
      %v2300 = vadd.f32 %v1708, %v2299
      %v2301 = vpop.f32.mrf.mxu0
      %2302 = vdwg.mxu0
      %2303 = vmatprep.subr.bf16.mxu0 0
      %2304 = vmatpush1.bf16.msra.mxu0 %v2021
      %2305 = vmatprep.subr.bf16.mxu0 0
      %2306 = vmatpush1.bf16.msra.mxu0 %v2020
      %2307 = vmatprep.subr.bf16.mxu0 0
      %2308 = vmatpush1.bf16.msra.mxu0 %v2019
      %2309 = vmatprep.subr.bf16.mxu0 0
      %2310 = vmatpush1.bf16.msra.mxu0 %v2018
      %2311 = vmatprep.subr.bf16.mxu0 0
      %2312 = vmatpush1.bf16.msra.mxu0 %v2017
      %2313 = vmatprep.subr.bf16.mxu0 0
      %2314 = vmatpush1.bf16.msra.mxu0 %v2016
      %2315 = vmatprep.subr.bf16.mxu0 0
      %2316 = vmatpush1.bf16.msra.mxu0 %v2015
      %2317 = vmatprep.subr.bf16.mxu0 0
      %2318 = vmatpush1.bf16.msra.mxu0 %v2014
      %2319 = vmatprep.subr.bf16.mxu0 0
      %2320 = vmatpush2.bf16.msra.mxu0 %v2029
      %2321 = vmatprep.subr.bf16.mxu0 0
      %2322 = vmatpush2.bf16.msra.mxu0 %v2028
      %2323 = vmatprep.subr.bf16.mxu0 0
      %2324 = vmatpush2.bf16.msra.mxu0 %v2027
      %2325 = vmatprep.subr.bf16.mxu0 0
      %2326 = vmatpush2.bf16.msra.mxu0 %v2026
      %2327 = vmatprep.subr.bf16.mxu0 0
      %2328 = vmatpush2.bf16.msra.mxu0 %v2025
      %2329 = vmatprep.subr.bf16.mxu0 0
      %2330 = vmatpush2.bf16.msra.mxu0 %v2024
      %2331 = vmatprep.subr.bf16.mxu0 0
      %2332 = vmatpush2.bf16.msra.mxu0 %v2023
      %2333 = vmatprep.subr.bf16.mxu0 0
      %2334 = vmatpush2.bf16.msra.mxu0 %v2022
      %2335 = vmatprep.mubr.bf16.mxu0 %v1302
      %2336 = vmatmul.mubr.bf16.gmra.mxu0 %v1254
      %v2337 = vpop.f32.mrf.mxu0
      %v2338 = vadd.f32 %v2177, %v2337
      %v2339 = vpop.f32.mrf.mxu0
      %v2340 = vpop.f32.mrf.mxu0
      %v2341 = vadd.f32 %v2180, %v2340
      %v2342 = vpop.f32.mrf.mxu0
      %2343 = vmatprep.mubr.bf16.mxu0 %v1303
      %2344 = vmatmul.mubr.bf16.gmra.mxu0 %v1255
      %v2345 = vpop.f32.mrf.mxu0
      %v2346 = vadd.f32 %v2185, %v2345
      %v2347 = vpop.f32.mrf.mxu0
      %v2348 = vpop.f32.mrf.mxu0
      %v2349 = vadd.f32 %v2188, %v2348
      %v2350 = vpop.f32.mrf.mxu0
      %2351 = vmatprep.mubr.bf16.mxu0 %v1304
      %2352 = vmatmul.mubr.bf16.gmra.mxu0 %v1256
      %v2353 = vpop.f32.mrf.mxu0
      %v2354 = vadd.f32 %v2193, %v2353
      %v2355 = vpop.f32.mrf.mxu0
      %v2356 = vpop.f32.mrf.mxu0
      %v2357 = vadd.f32 %v2196, %v2356
      %v2358 = vpop.f32.mrf.mxu0
      %2359 = vmatprep.mubr.bf16.mxu0 %v1305
      %2360 = vmatmul.mubr.bf16.gmra.mxu0 %v1257
      %v2361 = vpop.f32.mrf.mxu0
      %v2362 = vadd.f32 %v2201, %v2361
      %v2363 = vpop.f32.mrf.mxu0
      %v2364 = vpop.f32.mrf.mxu0
      %v2365 = vadd.f32 %v2204, %v2364
      %v2366 = vpop.f32.mrf.mxu0
      %2367 = vmatprep.mubr.bf16.mxu0 %v1306
      %2368 = vmatmul.mubr.bf16.gmra.mxu0 %v1258
      %v2369 = vpop.f32.mrf.mxu0
      %v2370 = vadd.f32 %v2209, %v2369
      %v2371 = vpop.f32.mrf.mxu0
      %v2372 = vpop.f32.mrf.mxu0
      %v2373 = vadd.f32 %v2212, %v2372
      %v2374 = vpop.f32.mrf.mxu0
      %2375 = vmatprep.mubr.bf16.mxu0 %v1307
      %2376 = vmatmul.mubr.bf16.gmra.mxu0 %v1259
      %v2377 = vpop.f32.mrf.mxu0
      %v2378 = vadd.f32 %v2217, %v2377
      %v2379 = vpop.f32.mrf.mxu0
      %v2380 = vpop.f32.mrf.mxu0
      %v2381 = vadd.f32 %v2220, %v2380
      %v2382 = vpop.f32.mrf.mxu0
      %2383 = vmatprep.mubr.bf16.mxu0 %v1308
      %2384 = vmatmul.mubr.bf16.gmra.mxu0 %v1260
      %v2385 = vpop.f32.mrf.mxu0
      %v2386 = vadd.f32 %v2225, %v2385
      %v2387 = vpop.f32.mrf.mxu0
      %v2388 = vpop.f32.mrf.mxu0
      %v2389 = vadd.f32 %v2228, %v2388
      %v2390 = vpop.f32.mrf.mxu0
      %2391 = vmatprep.mubr.bf16.mxu0 %v1309
      %2392 = vmatmul.mubr.bf16.gmra.mxu0 %v1261
      %v2393 = vpop.f32.mrf.mxu0
      %v2394 = vadd.f32 %v2233, %v2393
      %v2395 = vpop.f32.mrf.mxu0
      %v2396 = vpop.f32.mrf.mxu0
      %v2397 = vadd.f32 %v2236, %v2396
      %v2398 = vpop.f32.mrf.mxu0
      %2399 = vmatprep.mubr.bf16.mxu0 %v1310
      %2400 = vmatmul.mubr.bf16.gmra.mxu0 %v1262
      %v2401 = vpop.f32.mrf.mxu0
      %v2402 = vadd.f32 %v2241, %v2401
      %v2403 = vpop.f32.mrf.mxu0
      %v2404 = vpop.f32.mrf.mxu0
      %v2405 = vadd.f32 %v2244, %v2404
      %v2406 = vpop.f32.mrf.mxu0
      %2407 = vmatprep.mubr.bf16.mxu0 %v1311
      %2408 = vmatmul.mubr.bf16.gmra.mxu0 %v1263
      %v2409 = vpop.f32.mrf.mxu0
      %v2410 = vadd.f32 %v2249, %v2409
      %v2411 = vpop.f32.mrf.mxu0
      %v2412 = vpop.f32.mrf.mxu0
      %v2413 = vadd.f32 %v2252, %v2412
      %v2414 = vpop.f32.mrf.mxu0
      %2415 = vmatprep.mubr.bf16.mxu0 %v1312
      %2416 = vmatmul.mubr.bf16.gmra.mxu0 %v1264
      %v2417 = vpop.f32.mrf.mxu0
      %v2418 = vadd.f32 %v2257, %v2417
      %v2419 = vpop.f32.mrf.mxu0
      %v2420 = vpop.f32.mrf.mxu0
      %v2421 = vadd.f32 %v2260, %v2420
      %v2422 = vpop.f32.mrf.mxu0
      %2423 = vmatprep.mubr.bf16.mxu0 %v1313
      %2424 = vmatmul.mubr.bf16.gmra.mxu0 %v1265
      %v2425 = vpop.f32.mrf.mxu0
      %v2426 = vadd.f32 %v2265, %v2425
      %v2427 = vpop.f32.mrf.mxu0
      %v2428 = vpop.f32.mrf.mxu0
      %v2429 = vadd.f32 %v2268, %v2428
      %v2430 = vpop.f32.mrf.mxu0
      %2431 = vmatprep.mubr.bf16.mxu0 %v1314
      %2432 = vmatmul.mubr.bf16.gmra.mxu0 %v1266
      %v2433 = vpop.f32.mrf.mxu0
      %v2434 = vadd.f32 %v2273, %v2433
      %v2435 = vpop.f32.mrf.mxu0
      %v2436 = vpop.f32.mrf.mxu0
      %v2437 = vadd.f32 %v2276, %v2436
      %v2438 = vpop.f32.mrf.mxu0
      %2439 = vmatprep.mubr.bf16.mxu0 %v1315
      %2440 = vmatmul.mubr.bf16.gmra.mxu0 %v1267
      %v2441 = vpop.f32.mrf.mxu0
      %v2442 = vadd.f32 %v2281, %v2441
      %v2443 = vpop.f32.mrf.mxu0
      %v2444 = vpop.f32.mrf.mxu0
      %v2445 = vadd.f32 %v2284, %v2444
      %v2446 = vpop.f32.mrf.mxu0
      %2447 = vmatprep.mubr.bf16.mxu0 %v1316
      %2448 = vmatmul.mubr.bf16.gmra.mxu0 %v1268
      %v2449 = vpop.f32.mrf.mxu0
      %v2450 = vadd.f32 %v2289, %v2449
      %v2451 = vpop.f32.mrf.mxu0
      %v2452 = vpop.f32.mrf.mxu0
      %v2453 = vadd.f32 %v2292, %v2452
      %v2454 = vpop.f32.mrf.mxu0
      %2455 = vmatprep.mubr.bf16.mxu0 %v1317
      %2456 = vmatmul.mubr.bf16.gmra.mxu0 %v1269
      %v2457 = vpop.f32.mrf.mxu0
      %v2458 = vadd.f32 %v2297, %v2457
      %v2459 = vpop.f32.mrf.mxu0
      %v2460 = vpop.f32.mrf.mxu0
      %v2461 = vadd.f32 %v2300, %v2460
      %v2462 = vpop.f32.mrf.mxu0
      %2463 = vdwg.mxu0
      %2464 = vmatprep.subr.bf16.mxu0 0
      %2465 = vmatpush1.bf16.msra.mxu0 %v2037
      %2466 = vmatprep.subr.bf16.mxu0 0
      %2467 = vmatpush1.bf16.msra.mxu0 %v2036
      %2468 = vmatprep.subr.bf16.mxu0 0
      %2469 = vmatpush1.bf16.msra.mxu0 %v2035
      %2470 = vmatprep.subr.bf16.mxu0 0
      %2471 = vmatpush1.bf16.msra.mxu0 %v2034
      %2472 = vmatprep.subr.bf16.mxu0 0
      %2473 = vmatpush1.bf16.msra.mxu0 %v2033
      %2474 = vmatprep.subr.bf16.mxu0 0
      %2475 = vmatpush1.bf16.msra.mxu0 %v2032
      %2476 = vmatprep.subr.bf16.mxu0 0
      %2477 = vmatpush1.bf16.msra.mxu0 %v2031
      %2478 = vmatprep.subr.bf16.mxu0 0
      %2479 = vmatpush1.bf16.msra.mxu0 %v2030
      %2480 = vmatprep.subr.bf16.mxu0 0
      %2481 = vmatpush2.bf16.msra.mxu0 %v2045
      %2482 = vmatprep.subr.bf16.mxu0 0
      %2483 = vmatpush2.bf16.msra.mxu0 %v2044
      %2484 = vmatprep.subr.bf16.mxu0 0
      %2485 = vmatpush2.bf16.msra.mxu0 %v2043
      %2486 = vmatprep.subr.bf16.mxu0 0
      %2487 = vmatpush2.bf16.msra.mxu0 %v2042
      %2488 = vmatprep.subr.bf16.mxu0 0
      %2489 = vmatpush2.bf16.msra.mxu0 %v2041
      %2490 = vmatprep.subr.bf16.mxu0 0
      %2491 = vmatpush2.bf16.msra.mxu0 %v2040
      %2492 = vmatprep.subr.bf16.mxu0 0
      %2493 = vmatpush2.bf16.msra.mxu0 %v2039
      %2494 = vmatprep.subr.bf16.mxu0 0
      %2495 = vmatpush2.bf16.msra.mxu0 %v2038
      %2496 = vmatprep.mubr.bf16.mxu0 %v1398
      %2497 = vmatmul.mubr.bf16.gmra.mxu0 %v1350
      %v2498 = vpop.f32.mrf.mxu0
      %v2499 = vadd.f32 %v2338, %v2498
      %v2500 = vpop.f32.mrf.mxu0
      %v2501 = vpop.f32.mrf.mxu0
      %v2502 = vadd.f32 %v2341, %v2501
      %v2503 = vpop.f32.mrf.mxu0
      %2504 = vmatprep.mubr.bf16.mxu0 %v1399
      %2505 = vmatmul.mubr.bf16.gmra.mxu0 %v1351
      %v2506 = vpop.f32.mrf.mxu0
      %v2507 = vadd.f32 %v2346, %v2506
      %v2508 = vpop.f32.mrf.mxu0
      %v2509 = vpop.f32.mrf.mxu0
      %v2510 = vadd.f32 %v2349, %v2509
      %v2511 = vpop.f32.mrf.mxu0
      %2512 = vmatprep.mubr.bf16.mxu0 %v1400
      %2513 = vmatmul.mubr.bf16.gmra.mxu0 %v1352
      %v2514 = vpop.f32.mrf.mxu0
      %v2515 = vadd.f32 %v2354, %v2514
      %v2516 = vpop.f32.mrf.mxu0
      %v2517 = vpop.f32.mrf.mxu0
      %v2518 = vadd.f32 %v2357, %v2517
      %v2519 = vpop.f32.mrf.mxu0
      %2520 = vmatprep.mubr.bf16.mxu0 %v1401
      %2521 = vmatmul.mubr.bf16.gmra.mxu0 %v1353
      %v2522 = vpop.f32.mrf.mxu0
      %v2523 = vadd.f32 %v2362, %v2522
      %v2524 = vpop.f32.mrf.mxu0
      %v2525 = vpop.f32.mrf.mxu0
      %v2526 = vadd.f32 %v2365, %v2525
      %v2527 = vpop.f32.mrf.mxu0
      %2528 = vmatprep.mubr.bf16.mxu0 %v1402
      %2529 = vmatmul.mubr.bf16.gmra.mxu0 %v1354
      %v2530 = vpop.f32.mrf.mxu0
      %v2531 = vadd.f32 %v2370, %v2530
      %v2532 = vpop.f32.mrf.mxu0
      %v2533 = vpop.f32.mrf.mxu0
      %v2534 = vadd.f32 %v2373, %v2533
      %v2535 = vpop.f32.mrf.mxu0
      %2536 = vmatprep.mubr.bf16.mxu0 %v1403
      %2537 = vmatmul.mubr.bf16.gmra.mxu0 %v1355
      %v2538 = vpop.f32.mrf.mxu0
      %v2539 = vadd.f32 %v2378, %v2538
      %v2540 = vpop.f32.mrf.mxu0
      %v2541 = vpop.f32.mrf.mxu0
      %v2542 = vadd.f32 %v2381, %v2541
      %v2543 = vpop.f32.mrf.mxu0
      %2544 = vmatprep.mubr.bf16.mxu0 %v1404
      %2545 = vmatmul.mubr.bf16.gmra.mxu0 %v1356
      %v2546 = vpop.f32.mrf.mxu0
      %v2547 = vadd.f32 %v2386, %v2546
      %v2548 = vpop.f32.mrf.mxu0
      %v2549 = vpop.f32.mrf.mxu0
      %v2550 = vadd.f32 %v2389, %v2549
      %v2551 = vpop.f32.mrf.mxu0
      %2552 = vmatprep.mubr.bf16.mxu0 %v1405
      %2553 = vmatmul.mubr.bf16.gmra.mxu0 %v1357
      %v2554 = vpop.f32.mrf.mxu0
      %v2555 = vadd.f32 %v2394, %v2554
      %v2556 = vpop.f32.mrf.mxu0
      %v2557 = vpop.f32.mrf.mxu0
      %v2558 = vadd.f32 %v2397, %v2557
      %v2559 = vpop.f32.mrf.mxu0
      %2560 = vmatprep.mubr.bf16.mxu0 %v1406
      %2561 = vmatmul.mubr.bf16.gmra.mxu0 %v1358
      %v2562 = vpop.f32.mrf.mxu0
      %v2563 = vadd.f32 %v2402, %v2562
      %v2564 = vpop.f32.mrf.mxu0
      %v2565 = vpop.f32.mrf.mxu0
      %v2566 = vadd.f32 %v2405, %v2565
      %v2567 = vpop.f32.mrf.mxu0
      %2568 = vmatprep.mubr.bf16.mxu0 %v1407
      %2569 = vmatmul.mubr.bf16.gmra.mxu0 %v1359
      %v2570 = vpop.f32.mrf.mxu0
      %v2571 = vadd.f32 %v2410, %v2570
      %v2572 = vpop.f32.mrf.mxu0
      %v2573 = vpop.f32.mrf.mxu0
      %v2574 = vadd.f32 %v2413, %v2573
      %v2575 = vpop.f32.mrf.mxu0
      %2576 = vmatprep.mubr.bf16.mxu0 %v1408
      %2577 = vmatmul.mubr.bf16.gmra.mxu0 %v1360
      %v2578 = vpop.f32.mrf.mxu0
      %v2579 = vadd.f32 %v2418, %v2578
      %v2580 = vpop.f32.mrf.mxu0
      %v2581 = vpop.f32.mrf.mxu0
      %v2582 = vadd.f32 %v2421, %v2581
      %v2583 = vpop.f32.mrf.mxu0
      %2584 = vmatprep.mubr.bf16.mxu0 %v1409
      %2585 = vmatmul.mubr.bf16.gmra.mxu0 %v1361
      %v2586 = vpop.f32.mrf.mxu0
      %v2587 = vadd.f32 %v2426, %v2586
      %v2588 = vpop.f32.mrf.mxu0
      %v2589 = vpop.f32.mrf.mxu0
      %v2590 = vadd.f32 %v2429, %v2589
      %v2591 = vpop.f32.mrf.mxu0
      %2592 = vmatprep.mubr.bf16.mxu0 %v1410
      %2593 = vmatmul.mubr.bf16.gmra.mxu0 %v1362
      %v2594 = vpop.f32.mrf.mxu0
      %v2595 = vadd.f32 %v2434, %v2594
      %v2596 = vpop.f32.mrf.mxu0
      %v2597 = vpop.f32.mrf.mxu0
      %v2598 = vadd.f32 %v2437, %v2597
      %v2599 = vpop.f32.mrf.mxu0
      %2600 = vmatprep.mubr.bf16.mxu0 %v1411
      %2601 = vmatmul.mubr.bf16.gmra.mxu0 %v1363
      %v2602 = vpop.f32.mrf.mxu0
      %v2603 = vadd.f32 %v2442, %v2602
      %v2604 = vpop.f32.mrf.mxu0
      %v2605 = vpop.f32.mrf.mxu0
      %v2606 = vadd.f32 %v2445, %v2605
      %v2607 = vpop.f32.mrf.mxu0
      %2608 = vmatprep.mubr.bf16.mxu0 %v1412
      %2609 = vmatmul.mubr.bf16.gmra.mxu0 %v1364
      %v2610 = vpop.f32.mrf.mxu0
      %v2611 = vadd.f32 %v2450, %v2610
      %v2612 = vpop.f32.mrf.mxu0
      %v2613 = vpop.f32.mrf.mxu0
      %v2614 = vadd.f32 %v2453, %v2613
      %v2615 = vpop.f32.mrf.mxu0
      %2616 = vmatprep.mubr.bf16.mxu0 %v1413
      %2617 = vmatmul.mubr.bf16.gmra.mxu0 %v1365
      %v2618 = vpop.f32.mrf.mxu0
      %v2619 = vadd.f32 %v2458, %v2618
      %v2620 = vpop.f32.mrf.mxu0
      %v2621 = vpop.f32.mrf.mxu0
      %v2622 = vadd.f32 %v2461, %v2621
      %v2623 = vpop.f32.mrf.mxu0
      %2624 = vdwg.mxu0
      %2625 = vmatprep.subr.bf16.mxu0 0
      %2626 = vmatpush1.bf16.msra.mxu0 %v2053
      %2627 = vmatprep.subr.bf16.mxu0 0
      %2628 = vmatpush1.bf16.msra.mxu0 %v2052
      %2629 = vmatprep.subr.bf16.mxu0 0
      %2630 = vmatpush1.bf16.msra.mxu0 %v2051
      %2631 = vmatprep.subr.bf16.mxu0 0
      %2632 = vmatpush1.bf16.msra.mxu0 %v2050
      %2633 = vmatprep.subr.bf16.mxu0 0
      %2634 = vmatpush1.bf16.msra.mxu0 %v2049
      %2635 = vmatprep.subr.bf16.mxu0 0
      %2636 = vmatpush1.bf16.msra.mxu0 %v2048
      %2637 = vmatprep.subr.bf16.mxu0 0
      %2638 = vmatpush1.bf16.msra.mxu0 %v2047
      %2639 = vmatprep.subr.bf16.mxu0 0
      %2640 = vmatpush1.bf16.msra.mxu0 %v2046
      %2641 = vmatprep.subr.bf16.mxu0 0
      %2642 = vmatpush2.bf16.msra.mxu0 %v2061
      %2643 = vmatprep.subr.bf16.mxu0 0
      %2644 = vmatpush2.bf16.msra.mxu0 %v2060
      %2645 = vmatprep.subr.bf16.mxu0 0
      %2646 = vmatpush2.bf16.msra.mxu0 %v2059
      %2647 = vmatprep.subr.bf16.mxu0 0
      %2648 = vmatpush2.bf16.msra.mxu0 %v2058
      %2649 = vmatprep.subr.bf16.mxu0 0
      %2650 = vmatpush2.bf16.msra.mxu0 %v2057
      %2651 = vmatprep.subr.bf16.mxu0 0
      %2652 = vmatpush2.bf16.msra.mxu0 %v2056
      %2653 = vmatprep.subr.bf16.mxu0 0
      %2654 = vmatpush2.bf16.msra.mxu0 %v2055
      %2655 = vmatprep.subr.bf16.mxu0 0
      %2656 = vmatpush2.bf16.msra.mxu0 %v2054
      %2657 = vmatprep.mubr.bf16.mxu0 %v1495
      %2658 = vmatmul.mubr.bf16.gmra.mxu0 %v1447
      %v2659 = vpop.f32.mrf.mxu0
      %v2660 = vadd.f32 %v2499, %v2659
      %v2661 = vpop.f32.mrf.mxu0
      %v2662 = vpop.f32.mrf.mxu0
      %v2663 = vadd.f32 %v2502, %v2662
      %v2664 = vpop.f32.mrf.mxu0
      %2665 = vmatprep.mubr.bf16.mxu0 %v1496
      %2666 = vmatmul.mubr.bf16.gmra.mxu0 %v1448
      %v2667 = vpop.f32.mrf.mxu0
      %v2668 = vadd.f32 %v2507, %v2667
      %v2669 = vpop.f32.mrf.mxu0
      %v2670 = vpop.f32.mrf.mxu0
      %v2671 = vadd.f32 %v2510, %v2670
      %v2672 = vpop.f32.mrf.mxu0
      %2673 = vmatprep.mubr.bf16.mxu0 %v1497
      %2674 = vmatmul.mubr.bf16.gmra.mxu0 %v1449
      %v2675 = vpop.f32.mrf.mxu0
      %v2676 = vadd.f32 %v2515, %v2675
      %v2677 = vpop.f32.mrf.mxu0
      %v2678 = vpop.f32.mrf.mxu0
      %v2679 = vadd.f32 %v2518, %v2678
      %v2680 = vpop.f32.mrf.mxu0
      %2681 = vmatprep.mubr.bf16.mxu0 %v1498
      %2682 = vmatmul.mubr.bf16.gmra.mxu0 %v1450
      %v2683 = vpop.f32.mrf.mxu0
      %v2684 = vadd.f32 %v2523, %v2683
      %v2685 = vpop.f32.mrf.mxu0
      %v2686 = vpop.f32.mrf.mxu0
      %v2687 = vadd.f32 %v2526, %v2686
      %v2688 = vpop.f32.mrf.mxu0
      %2689 = vmatprep.mubr.bf16.mxu0 %v1499
      %2690 = vmatmul.mubr.bf16.gmra.mxu0 %v1451
      %v2691 = vpop.f32.mrf.mxu0
      %v2692 = vadd.f32 %v2531, %v2691
      %v2693 = vpop.f32.mrf.mxu0
      %v2694 = vpop.f32.mrf.mxu0
      %v2695 = vadd.f32 %v2534, %v2694
      %v2696 = vpop.f32.mrf.mxu0
      %2697 = vmatprep.mubr.bf16.mxu0 %v1500
      %2698 = vmatmul.mubr.bf16.gmra.mxu0 %v1452
      %v2699 = vpop.f32.mrf.mxu0
      %v2700 = vadd.f32 %v2539, %v2699
      %v2701 = vpop.f32.mrf.mxu0
      %v2702 = vpop.f32.mrf.mxu0
      %v2703 = vadd.f32 %v2542, %v2702
      %v2704 = vpop.f32.mrf.mxu0
      %2705 = vmatprep.mubr.bf16.mxu0 %v1501
      %2706 = vmatmul.mubr.bf16.gmra.mxu0 %v1453
      %v2707 = vpop.f32.mrf.mxu0
      %v2708 = vadd.f32 %v2547, %v2707
      %v2709 = vpop.f32.mrf.mxu0
      %v2710 = vpop.f32.mrf.mxu0
      %v2711 = vadd.f32 %v2550, %v2710
      %v2712 = vpop.f32.mrf.mxu0
      %2713 = vmatprep.mubr.bf16.mxu0 %v1502
      %2714 = vmatmul.mubr.bf16.gmra.mxu0 %v1454
      %v2715 = vpop.f32.mrf.mxu0
      %v2716 = vadd.f32 %v2555, %v2715
      %v2717 = vpop.f32.mrf.mxu0
      %v2718 = vpop.f32.mrf.mxu0
      %v2719 = vadd.f32 %v2558, %v2718
      %v2720 = vpop.f32.mrf.mxu0
      %2721 = vmatprep.mubr.bf16.mxu0 %v1503
      %2722 = vmatmul.mubr.bf16.gmra.mxu0 %v1455
      %v2723 = vpop.f32.mrf.mxu0
      %v2724 = vadd.f32 %v2563, %v2723
      %v2725 = vpop.f32.mrf.mxu0
      %v2726 = vpop.f32.mrf.mxu0
      %v2727 = vadd.f32 %v2566, %v2726
      %v2728 = vpop.f32.mrf.mxu0
      %2729 = vmatprep.mubr.bf16.mxu0 %v1504
      %2730 = vmatmul.mubr.bf16.gmra.mxu0 %v1456
      %v2731 = vpop.f32.mrf.mxu0
      %v2732 = vadd.f32 %v2571, %v2731
      %v2733 = vpop.f32.mrf.mxu0
      %v2734 = vpop.f32.mrf.mxu0
      %v2735 = vadd.f32 %v2574, %v2734
      %v2736 = vpop.f32.mrf.mxu0
      %2737 = vmatprep.mubr.bf16.mxu0 %v1505
      %2738 = vmatmul.mubr.bf16.gmra.mxu0 %v1457
      %v2739 = vpop.f32.mrf.mxu0
      %v2740 = vadd.f32 %v2579, %v2739
      %v2741 = vpop.f32.mrf.mxu0
      %v2742 = vpop.f32.mrf.mxu0
      %v2743 = vadd.f32 %v2582, %v2742
      %v2744 = vpop.f32.mrf.mxu0
      %2745 = vmatprep.mubr.bf16.mxu0 %v1506
      %2746 = vmatmul.mubr.bf16.gmra.mxu0 %v1458
      %v2747 = vpop.f32.mrf.mxu0
      %v2748 = vadd.f32 %v2587, %v2747
      %v2749 = vpop.f32.mrf.mxu0
      %v2750 = vpop.f32.mrf.mxu0
      %v2751 = vadd.f32 %v2590, %v2750
      %v2752 = vpop.f32.mrf.mxu0
      %2753 = vmatprep.mubr.bf16.mxu0 %v1507
      %2754 = vmatmul.mubr.bf16.gmra.mxu0 %v1459
      %v2755 = vpop.f32.mrf.mxu0
      %v2756 = vadd.f32 %v2595, %v2755
      %v2757 = vpop.f32.mrf.mxu0
      %v2758 = vpop.f32.mrf.mxu0
      %v2759 = vadd.f32 %v2598, %v2758
      %v2760 = vpop.f32.mrf.mxu0
      %2761 = vmatprep.mubr.bf16.mxu0 %v1508
      %2762 = vmatmul.mubr.bf16.gmra.mxu0 %v1460
      %v2763 = vpop.f32.mrf.mxu0
      %v2764 = vadd.f32 %v2603, %v2763
      %v2765 = vpop.f32.mrf.mxu0
      %v2766 = vpop.f32.mrf.mxu0
      %v2767 = vadd.f32 %v2606, %v2766
      %v2768 = vpop.f32.mrf.mxu0
      %2769 = vmatprep.mubr.bf16.mxu0 %v1509
      %2770 = vmatmul.mubr.bf16.gmra.mxu0 %v1461
      %v2771 = vpop.f32.mrf.mxu0
      %v2772 = vadd.f32 %v2611, %v2771
      %v2773 = vpop.f32.mrf.mxu0
      %v2774 = vpop.f32.mrf.mxu0
      %v2775 = vadd.f32 %v2614, %v2774
      %v2776 = vpop.f32.mrf.mxu0
      %2777 = vmatprep.mubr.bf16.mxu0 %v1510
      %2778 = vmatmul.mubr.bf16.gmra.mxu0 %v1462
      %v2779 = vpop.f32.mrf.mxu0
      %v2780 = vadd.f32 %v2619, %v2779
      %v2781 = vpop.f32.mrf.mxu0
      %v2782 = vpop.f32.mrf.mxu0
      %v2783 = vadd.f32 %v2622, %v2782
      %v2784 = vpop.f32.mrf.mxu0
      %2785 = vdwg.mxu0
      %2786 = vmatprep.subr.bf16.mxu0 0
      %2787 = vmatpush1.bf16.msra.mxu0 %v2069
      %2788 = vmatprep.subr.bf16.mxu0 0
      %2789 = vmatpush1.bf16.msra.mxu0 %v2068
      %2790 = vmatprep.subr.bf16.mxu0 0
      %2791 = vmatpush1.bf16.msra.mxu0 %v2067
      %2792 = vmatprep.subr.bf16.mxu0 0
      %2793 = vmatpush1.bf16.msra.mxu0 %v2066
      %2794 = vmatprep.subr.bf16.mxu0 0
      %2795 = vmatpush1.bf16.msra.mxu0 %v2065
      %2796 = vmatprep.subr.bf16.mxu0 0
      %2797 = vmatpush1.bf16.msra.mxu0 %v2064
      %2798 = vmatprep.subr.bf16.mxu0 0
      %2799 = vmatpush1.bf16.msra.mxu0 %v2063
      %2800 = vmatprep.subr.bf16.mxu0 0
      %2801 = vmatpush1.bf16.msra.mxu0 %v2062
      %2802 = vmatprep.subr.bf16.mxu0 0
      %2803 = vmatpush2.bf16.msra.mxu0 0
      %2804 = vmatprep.subr.bf16.mxu0 0
      %2805 = vmatpush2.bf16.msra.mxu0 0
      %2806 = vmatprep.subr.bf16.mxu0 0
      %2807 = vmatpush2.bf16.msra.mxu0 0
      %2808 = vmatprep.subr.bf16.mxu0 0
      %2809 = vmatpush2.bf16.msra.mxu0 0
      %2810 = vmatprep.subr.bf16.mxu0 0
      %2811 = vmatpush2.bf16.msra.mxu0 0
      %2812 = vmatprep.subr.bf16.mxu0 0
      %2813 = vmatpush2.bf16.msra.mxu0 0
      %2814 = vmatprep.subr.bf16.mxu0 0
      %2815 = vmatpush2.bf16.msra.mxu0 0
      %2816 = vmatprep.subr.bf16.mxu0 0
      %2817 = vmatpush2.bf16.msra.mxu0 0
      %2818 = vmatprep.mubr.bf16.mxu0 0
      %2819 = vmatmul.mubr.bf16.gmra.mxu0 %v1543
      %v2820 = vpop.f32.mrf.mxu0
      %v2821 = vadd.f32 %v2660, %v2820
      %v2822 = vpop.f32.mrf.mxu0
      %v2823 = vpop.f32.mrf.mxu0
      %v2824 = vadd.f32 %v2663, %v2823
      %v2825 = vpop.f32.mrf.mxu0
      %2826 = vmatprep.mubr.bf16.mxu0 0
      %2827 = vmatmul.mubr.bf16.gmra.mxu0 %v1544
      %v2828 = vpop.f32.mrf.mxu0
      %v2829 = vadd.f32 %v2668, %v2828
      %v2830 = vpop.f32.mrf.mxu0
      %v2831 = vpop.f32.mrf.mxu0
      %v2832 = vadd.f32 %v2671, %v2831
      %v2833 = vpop.f32.mrf.mxu0
      %2834 = vmatprep.mubr.bf16.mxu0 0
      %2835 = vmatmul.mubr.bf16.gmra.mxu0 %v1545
      %v2836 = vpop.f32.mrf.mxu0
      %v2837 = vadd.f32 %v2676, %v2836
      %v2838 = vpop.f32.mrf.mxu0
      %v2839 = vpop.f32.mrf.mxu0
      %v2840 = vadd.f32 %v2679, %v2839
      %v2841 = vpop.f32.mrf.mxu0
      %2842 = vmatprep.mubr.bf16.mxu0 0
      %2843 = vmatmul.mubr.bf16.gmra.mxu0 %v1546
      %v2844 = vpop.f32.mrf.mxu0
      %v2845 = vadd.f32 %v2684, %v2844
      %v2846 = vpop.f32.mrf.mxu0
      %v2847 = vpop.f32.mrf.mxu0
      %v2848 = vadd.f32 %v2687, %v2847
      %v2849 = vpop.f32.mrf.mxu0
      %2850 = vmatprep.mubr.bf16.mxu0 0
      %2851 = vmatmul.mubr.bf16.gmra.mxu0 %v1547
      %v2852 = vpop.f32.mrf.mxu0
      %v2853 = vadd.f32 %v2692, %v2852
      %v2854 = vpop.f32.mrf.mxu0
      %v2855 = vpop.f32.mrf.mxu0
      %v2856 = vadd.f32 %v2695, %v2855
      %v2857 = vpop.f32.mrf.mxu0
      %2858 = vmatprep.mubr.bf16.mxu0 0
      %2859 = vmatmul.mubr.bf16.gmra.mxu0 %v1548
      %v2860 = vpop.f32.mrf.mxu0
      %v2861 = vadd.f32 %v2700, %v2860
      %v2862 = vpop.f32.mrf.mxu0
      %v2863 = vpop.f32.mrf.mxu0
      %v2864 = vadd.f32 %v2703, %v2863
      %v2865 = vpop.f32.mrf.mxu0
      %2866 = vmatprep.mubr.bf16.mxu0 0
      %2867 = vmatmul.mubr.bf16.gmra.mxu0 %v1549
      %v2868 = vpop.f32.mrf.mxu0
      %v2869 = vadd.f32 %v2708, %v2868
      %v2870 = vpop.f32.mrf.mxu0
      %v2871 = vpop.f32.mrf.mxu0
      %v2872 = vadd.f32 %v2711, %v2871
      %v2873 = vpop.f32.mrf.mxu0
      %2874 = vmatprep.mubr.bf16.mxu0 0
      %2875 = vmatmul.mubr.bf16.gmra.mxu0 %v1550
      %v2876 = vpop.f32.mrf.mxu0
      %v2877 = vadd.f32 %v2716, %v2876
      %v2878 = vpop.f32.mrf.mxu0
      %v2879 = vpop.f32.mrf.mxu0
      %v2880 = vadd.f32 %v2719, %v2879
      %v2881 = vpop.f32.mrf.mxu0
      %2882 = vmatprep.mubr.bf16.mxu0 0
      %2883 = vmatmul.mubr.bf16.gmra.mxu0 %v1551
      %v2884 = vpop.f32.mrf.mxu0
      %v2885 = vadd.f32 %v2724, %v2884
      %v2886 = vpop.f32.mrf.mxu0
      %v2887 = vpop.f32.mrf.mxu0
      %v2888 = vadd.f32 %v2727, %v2887
      %v2889 = vpop.f32.mrf.mxu0
      %2890 = vmatprep.mubr.bf16.mxu0 0
      %2891 = vmatmul.mubr.bf16.gmra.mxu0 %v1552
      %v2892 = vpop.f32.mrf.mxu0
      %v2893 = vadd.f32 %v2732, %v2892
      %v2894 = vpop.f32.mrf.mxu0
      %v2895 = vpop.f32.mrf.mxu0
      %v2896 = vadd.f32 %v2735, %v2895
      %v2897 = vpop.f32.mrf.mxu0
      %2898 = vmatprep.mubr.bf16.mxu0 0
      %2899 = vmatmul.mubr.bf16.gmra.mxu0 %v1553
      %v2900 = vpop.f32.mrf.mxu0
      %v2901 = vadd.f32 %v2740, %v2900
      %v2902 = vpop.f32.mrf.mxu0
      %v2903 = vpop.f32.mrf.mxu0
      %v2904 = vadd.f32 %v2743, %v2903
      %v2905 = vpop.f32.mrf.mxu0
      %2906 = vmatprep.mubr.bf16.mxu0 0
      %2907 = vmatmul.mubr.bf16.gmra.mxu0 %v1554
      %v2908 = vpop.f32.mrf.mxu0
      %v2909 = vadd.f32 %v2748, %v2908
      %v2910 = vpop.f32.mrf.mxu0
      %v2911 = vpop.f32.mrf.mxu0
      %v2912 = vadd.f32 %v2751, %v2911
      %v2913 = vpop.f32.mrf.mxu0
      %2914 = vmatprep.mubr.bf16.mxu0 0
      %2915 = vmatmul.mubr.bf16.gmra.mxu0 %v1555
      %v2916 = vpop.f32.mrf.mxu0
      %v2917 = vadd.f32 %v2756, %v2916
      %v2918 = vpop.f32.mrf.mxu0
      %v2919 = vpop.f32.mrf.mxu0
      %v2920 = vadd.f32 %v2759, %v2919
      %v2921 = vpop.f32.mrf.mxu0
      %2922 = vmatprep.mubr.bf16.mxu0 0
      %2923 = vmatmul.mubr.bf16.gmra.mxu0 %v1556
      %v2924 = vpop.f32.mrf.mxu0
      %v2925 = vadd.f32 %v2764, %v2924
      %v2926 = vpop.f32.mrf.mxu0
      %v2927 = vpop.f32.mrf.mxu0
      %v2928 = vadd.f32 %v2767, %v2927
      %v2929 = vpop.f32.mrf.mxu0
      %2930 = vmatprep.mubr.bf16.mxu0 0
      %2931 = vmatmul.mubr.bf16.gmra.mxu0 %v1557
      %v2932 = vpop.f32.mrf.mxu0
      %v2933 = vadd.f32 %v2772, %v2932
      %v2934 = vpop.f32.mrf.mxu0
      %v2935 = vpop.f32.mrf.mxu0
      %v2936 = vadd.f32 %v2775, %v2935
      %v2937 = vpop.f32.mrf.mxu0
      %2938 = vmatprep.mubr.bf16.mxu0 0
      %2939 = vmatmul.mubr.bf16.gmra.mxu0 %v1558
      %v2940 = vpop.f32.mrf.mxu0
      %v2941 = vadd.f32 %v2780, %v2940
      %v2942 = vpop.f32.mrf.mxu0
      %v2943 = vpop.f32.mrf.mxu0
      %v2944 = vadd.f32 %v2783, %v2943
      %v2945 = vpop.f32.mrf.mxu0
      %2946 = vdwg.mxu0
      %v2947 = vsub.f32 0.0, %v2821
      %v2948 = vsub.f32 0.0, %v2824
      %v2949 = vsub.f32 0.0, %v2829
      %v2950 = vsub.f32 0.0, %v2832
      %v2951 = vsub.f32 0.0, %v2837
      %v2952 = vsub.f32 0.0, %v2840
      %v2953 = vsub.f32 0.0, %v2845
      %v2954 = vsub.f32 0.0, %v2848
      %v2955 = vsub.f32 0.0, %v2853
      %v2956 = vsub.f32 0.0, %v2856
      %v2957 = vsub.f32 0.0, %v2861
      %v2958 = vsub.f32 0.0, %v2864
      %v2959 = vsub.f32 0.0, %v2869
      %v2960 = vsub.f32 0.0, %v2872
      %v2961 = vsub.f32 0.0, %v2877
      %v2962 = vsub.f32 0.0, %v2880
      %v2963 = vsub.f32 0.0, %v2885
      %v2964 = vsub.f32 0.0, %v2888
      %v2965 = vsub.f32 0.0, %v2893
      %v2966 = vsub.f32 0.0, %v2896
      %v2967 = vsub.f32 0.0, %v2901
      %v2968 = vsub.f32 0.0, %v2904
      %v2969 = vsub.f32 0.0, %v2909
      %v2970 = vsub.f32 0.0, %v2912
      %v2971 = vsub.f32 0.0, %v2917
      %v2972 = vsub.f32 0.0, %v2920
      %v2973 = vsub.f32 0.0, %v2925
      %v2974 = vsub.f32 0.0, %v2928
      %v2975 = vsub.f32 0.0, %v2933
      %v2976 = vsub.f32 0.0, %v2936
      %v2977 = vsub.f32 0.0, %v2941
      %v2978 = vsub.f32 0.0, %v2944
      %v2979 = vmul.f32 %v2947, 1.442695
      %v2980 = vpow.pop %v2979
      %v2981 = vmul.f32 %v2948, 1.442695
      %v2982 = vpow.pop %v2981
      %v2983 = vmul.f32 %v2949, 1.442695
      %v2984 = vpow.pop %v2983
      %v2985 = vmul.f32 %v2950, 1.442695
      %v2986 = vpow.pop %v2985
      %v2987 = vmul.f32 %v2951, 1.442695
      %v2988 = vpow.pop %v2987
      %v2989 = vmul.f32 %v2952, 1.442695
      %v2990 = vpow.pop %v2989
      %v2991 = vmul.f32 %v2953, 1.442695
      %v2992 = vpow.pop %v2991
      %v2993 = vmul.f32 %v2954, 1.442695
      %v2994 = vpow.pop %v2993
      %v2995 = vmul.f32 %v2955, 1.442695
      %v2996 = vpow.pop %v2995
      %v2997 = vmul.f32 %v2956, 1.442695
      %v2998 = vpow.pop %v2997
      %v2999 = vmul.f32 %v2957, 1.442695
      %v3000 = vpow.pop %v2999
      %v3001 = vmul.f32 %v2958, 1.442695
      %v3002 = vpow.pop %v3001
      %v3003 = vmul.f32 %v2959, 1.442695
      %v3004 = vpow.pop %v3003
      %v3005 = vmul.f32 %v2960, 1.442695
      %v3006 = vpow.pop %v3005
      %v3007 = vmul.f32 %v2961, 1.442695
      %v3008 = vpow.pop %v3007
      %v3009 = vmul.f32 %v2962, 1.442695
      %v3010 = vpow.pop %v3009
      %v3011 = vmul.f32 %v2963, 1.442695
      %v3012 = vpow.pop %v3011
      %v3013 = vmul.f32 %v2964, 1.442695
      %v3014 = vpow.pop %v3013
      %v3015 = vmul.f32 %v2965, 1.442695
      %v3016 = vpow.pop %v3015
      %v3017 = vmul.f32 %v2966, 1.442695
      %v3018 = vpow.pop %v3017
      %v3019 = vmul.f32 %v2967, 1.442695
      %v3020 = vpow.pop %v3019
      %v3021 = vmul.f32 %v2968, 1.442695
      %v3022 = vpow.pop %v3021
      %v3023 = vmul.f32 %v2969, 1.442695
      %v3024 = vpow.pop %v3023
      %v3025 = vmul.f32 %v2970, 1.442695
      %v3026 = vpow.pop %v3025
      %v3027 = vmul.f32 %v2971, 1.442695
      %v3028 = vpow.pop %v3027
      %v3029 = vmul.f32 %v2972, 1.442695
      %v3030 = vpow.pop %v3029
      %v3031 = vmul.f32 %v2973, 1.442695
      %v3032 = vpow.pop %v3031
      %v3033 = vmul.f32 %v2974, 1.442695
      %v3034 = vpow.pop %v3033
      %v3035 = vmul.f32 %v2975, 1.442695
      %v3036 = vpow.pop %v3035
      %v3037 = vmul.f32 %v2976, 1.442695
      %v3038 = vpow.pop %v3037
      %v3039 = vmul.f32 %v2977, 1.442695
      %v3040 = vpow.pop %v3039
      %v3041 = vmul.f32 %v2978, 1.442695
      %v3042 = vpow.pop %v3041
      %v3043 = vadd.f32 %v2980, 1.0
      %v3044 = vadd.f32 %v2982, 1.0
      %v3045 = vadd.f32 %v2984, 1.0
      %v3046 = vadd.f32 %v2986, 1.0
      %v3047 = vadd.f32 %v2988, 1.0
      %v3048 = vadd.f32 %v2990, 1.0
      %v3049 = vadd.f32 %v2992, 1.0
      %v3050 = vadd.f32 %v2994, 1.0
      %v3051 = vadd.f32 %v2996, 1.0
      %v3052 = vadd.f32 %v2998, 1.0
      %v3053 = vadd.f32 %v3000, 1.0
      %v3054 = vadd.f32 %v3002, 1.0
      %v3055 = vadd.f32 %v3004, 1.0
      %v3056 = vadd.f32 %v3006, 1.0
      %v3057 = vadd.f32 %v3008, 1.0
      %v3058 = vadd.f32 %v3010, 1.0
      %v3059 = vadd.f32 %v3012, 1.0
      %v3060 = vadd.f32 %v3014, 1.0
      %v3061 = vadd.f32 %v3016, 1.0
      %v3062 = vadd.f32 %v3018, 1.0
      %v3063 = vadd.f32 %v3020, 1.0
      %v3064 = vadd.f32 %v3022, 1.0
      %v3065 = vadd.f32 %v3024, 1.0
      %v3066 = vadd.f32 %v3026, 1.0
      %v3067 = vadd.f32 %v3028, 1.0
      %v3068 = vadd.f32 %v3030, 1.0
      %v3069 = vadd.f32 %v3032, 1.0
      %v3070 = vadd.f32 %v3034, 1.0
      %v3071 = vadd.f32 %v3036, 1.0
      %v3072 = vadd.f32 %v3038, 1.0
      %v3073 = vadd.f32 %v3040, 1.0
      %v3074 = vadd.f32 %v3042, 1.0
      %v3075 = vrcp.pop %v3043
      %v3076 = vrcp.pop %v3044
      %v3077 = vrcp.pop %v3045
      %v3078 = vrcp.pop %v3046
      %v3079 = vrcp.pop %v3047
      %v3080 = vrcp.pop %v3048
      %v3081 = vrcp.pop %v3049
      %v3082 = vrcp.pop %v3050
      %v3083 = vrcp.pop %v3051
      %v3084 = vrcp.pop %v3052
      %v3085 = vrcp.pop %v3053
      %v3086 = vrcp.pop %v3054
      %v3087 = vrcp.pop %v3055
      %v3088 = vrcp.pop %v3056
      %v3089 = vrcp.pop %v3057
      %v3090 = vrcp.pop %v3058
      %v3091 = vrcp.pop %v3059
      %v3092 = vrcp.pop %v3060
      %v3093 = vrcp.pop %v3061
      %v3094 = vrcp.pop %v3062
      %v3095 = vrcp.pop %v3063
      %v3096 = vrcp.pop %v3064
      %v3097 = vrcp.pop %v3065
      %v3098 = vrcp.pop %v3066
      %v3099 = vrcp.pop %v3067
      %v3100 = vrcp.pop %v3068
      %v3101 = vrcp.pop %v3069
      %v3102 = vrcp.pop %v3070
      %v3103 = vrcp.pop %v3071
      %v3104 = vrcp.pop %v3072
      %v3105 = vrcp.pop %v3073
      %v3106 = vrcp.pop %v3074
      %v3107 = vmul.f32 %v2821, %v3075
      %v3108 = vmul.f32 %v2824, %v3076
      %v3109 = vmul.f32 %v2829, %v3077
      %v3110 = vmul.f32 %v2832, %v3078
      %v3111 = vmul.f32 %v2837, %v3079
      %v3112 = vmul.f32 %v2840, %v3080
      %v3113 = vmul.f32 %v2845, %v3081
      %v3114 = vmul.f32 %v2848, %v3082
      %v3115 = vmul.f32 %v2853, %v3083
      %v3116 = vmul.f32 %v2856, %v3084
      %v3117 = vmul.f32 %v2861, %v3085
      %v3118 = vmul.f32 %v2864, %v3086
      %v3119 = vmul.f32 %v2869, %v3087
      %v3120 = vmul.f32 %v2872, %v3088
      %v3121 = vmul.f32 %v2877, %v3089
      %v3122 = vmul.f32 %v2880, %v3090
      %v3123 = vmul.f32 %v2885, %v3091
      %v3124 = vmul.f32 %v2888, %v3092
      %v3125 = vmul.f32 %v2893, %v3093
      %v3126 = vmul.f32 %v2896, %v3094
      %v3127 = vmul.f32 %v2901, %v3095
      %v3128 = vmul.f32 %v2904, %v3096
      %v3129 = vmul.f32 %v2909, %v3097
      %v3130 = vmul.f32 %v2912, %v3098
      %v3131 = vmul.f32 %v2917, %v3099
      %v3132 = vmul.f32 %v2920, %v3100
      %v3133 = vmul.f32 %v2925, %v3101
      %v3134 = vmul.f32 %v2928, %v3102
      %v3135 = vmul.f32 %v2933, %v3103
      %v3136 = vmul.f32 %v2936, %v3104
      %v3137 = vmul.f32 %v2941, %v3105
      %v3138 = vmul.f32 %v2944, %v3106
      %3139 = vst [vmem:[%s1093 + $0x1] sm:$0xff] %v3107
      %3140 = vst [vmem:[%s1093 + $0x9] sm:$0xff] %v3108
      %3141 = vst [vmem:[%s1093 + $0x19] sm:$0xff] %v3109
      %3142 = vst [vmem:[%s1093 + $0x21] sm:$0xff] %v3110
      %3143 = vst [vmem:[%s1093 + $0x31] sm:$0xff] %v3111
      %3144 = vst [vmem:[%s1093 + $0x39] sm:$0xff] %v3112
      %3145 = vst [vmem:[%s1093 + $0x49] sm:$0xff] %v3113
      %3146 = vst [vmem:[%s1093 + $0x51] sm:$0xff] %v3114
      %3147 = vst [vmem:[%s1093 + $0x61] sm:$0xff] %v3115
      %3148 = vst [vmem:[%s1093 + $0x69] sm:$0xff] %v3116
      %3149 = vst [vmem:[%s1093 + $0x79] sm:$0xff] %v3117
      %3150 = vst [vmem:[%s1093 + $0x81] sm:$0xff] %v3118
      %3151 = vst [vmem:[%s1093 + $0x91] sm:$0xff] %v3119
      %3152 = vst [vmem:[%s1093 + $0x99] sm:$0xff] %v3120
      %3153 = vst [vmem:[%s1093 + $0xa9] sm:$0xff] %v3121
      %3154 = vst [vmem:[%s1093 + $0xb1] sm:$0xff] %v3122
      %3155 = vst [vmem:[%s1093 + $0xc1] sm:$0xff] %v3123
      %3156 = vst [vmem:[%s1093 + $0xc9] sm:$0xff] %v3124
      %3157 = vst [vmem:[%s1093 + $0xd9] sm:$0xff] %v3125
      %3158 = vst [vmem:[%s1093 + $0xe1] sm:$0xff] %v3126
      %3159 = vst [vmem:[%s1093 + $0xf1] sm:$0xff] %v3127
      %3160 = vst [vmem:[%s1093 + $0xf9] sm:$0xff] %v3128
      %3161 = vst [vmem:[%s1093 + $0x109] sm:$0xff] %v3129
      %3162 = vst [vmem:[%s1093 + $0x111] sm:$0xff] %v3130
      %3163 = vst [vmem:[%s1093 + $0x121] sm:$0xff] %v3131
      %3164 = vst [vmem:[%s1093 + $0x129] sm:$0xff] %v3132
      %3165 = vst [vmem:[%s1093 + $0x139] sm:$0xff] %v3133
      %3166 = vst [vmem:[%s1093 + $0x141] sm:$0xff] %v3134
      %3167 = vst [vmem:[%s1093 + $0x151] sm:$0xff] %v3135
      %3168 = vst [vmem:[%s1093 + $0x159] sm:$0xff] %v3136
      %3169 = vst [vmem:[%s1093 + $0x169] sm:$0xff] %v3137
      %3170 = vst [vmem:[%s1093 + $0x171] sm:$0xff] %v3138
      %v3171 = vld [vmem:[#allocation2] sm:$0xff]
      %v3172 = vld [vmem:[#allocation2 + $0x8] sm:$0xff]
      %v3173 = vld [vmem:[#allocation2 + $0x18] sm:$0xff]
      %v3174 = vld [vmem:[#allocation2 + $0x20] sm:$0xff]
      %v3175 = vld [vmem:[#allocation2 + $0x30] sm:$0xff]
      %v3176 = vld [vmem:[#allocation2 + $0x38] sm:$0xff]
      %v3177 = vld [vmem:[#allocation2 + $0x48] sm:$0xff]
      %v3178 = vld [vmem:[#allocation2 + $0x50] sm:$0xff]
      %v3179 = vld [vmem:[#allocation2 + $0x60] sm:$0xff]
      %v3180 = vld [vmem:[#allocation2 + $0x68] sm:$0xff]
      %v3181 = vld [vmem:[#allocation2 + $0x78] sm:$0xff]
      %v3182 = vld [vmem:[#allocation2 + $0x80] sm:$0xff]
      %v3183 = vld [vmem:[#allocation2 + $0x90] sm:$0xff]
      %v3184 = vld [vmem:[#allocation2 + $0x98] sm:$0xff]
      %v3185 = vld [vmem:[#allocation2 + $0xa8] sm:$0xff]
      %v3186 = vld [vmem:[#allocation2 + $0xb0] sm:$0xff]
      %v3187 = vld [vmem:[#allocation2 + $0xc0] sm:$0xff]
      %v3188 = vld [vmem:[#allocation2 + $0xc8] sm:$0xff]
      %v3189 = vld [vmem:[#allocation2 + $0xd8] sm:$0xff]
      %v3190 = vld [vmem:[#allocation2 + $0xe0] sm:$0xff]
      %v3191 = vld [vmem:[#allocation2 + $0xf0] sm:$0xff]
      %v3192 = vld [vmem:[#allocation2 + $0xf8] sm:$0xff]
      %v3193 = vld [vmem:[#allocation2 + $0x108] sm:$0xff]
      %v3194 = vld [vmem:[#allocation2 + $0x110] sm:$0xff]
      %v3195 = vld [vmem:[#allocation2 + $0x120] sm:$0xff]
      %v3196 = vld [vmem:[#allocation2 + $0x128] sm:$0xff]
      %v3197 = vld [vmem:[#allocation2 + $0x138] sm:$0xff]
      %v3198 = vld [vmem:[#allocation2 + $0x140] sm:$0xff]
      %v3199 = vld [vmem:[#allocation2 + $0x150] sm:$0xff]
      %v3200 = vld [vmem:[#allocation2 + $0x158] sm:$0xff]
      %v3201 = vld [vmem:[#allocation2 + $0x168] sm:$0xff]
      %v3202 = vld [vmem:[#allocation2 + $0x170] sm:$0xff]
      %v3203 = vpack.c.bf16 %v3172, %v3171
      %v3204 = vpack.c.bf16 %v3174, %v3173
      %v3205 = vpack.c.bf16 %v3176, %v3175
      %v3206 = vpack.c.bf16 %v3178, %v3177
      %v3207 = vpack.c.bf16 %v3180, %v3179
      %v3208 = vpack.c.bf16 %v3182, %v3181
      %v3209 = vpack.c.bf16 %v3184, %v3183
      %v3210 = vpack.c.bf16 %v3186, %v3185
      %v3211 = vpack.c.bf16 %v3188, %v3187
      %v3212 = vpack.c.bf16 %v3190, %v3189
      %v3213 = vpack.c.bf16 %v3192, %v3191
      %v3214 = vpack.c.bf16 %v3194, %v3193
      %v3215 = vpack.c.bf16 %v3196, %v3195
      %v3216 = vpack.c.bf16 %v3198, %v3197
      %v3217 = vpack.c.bf16 %v3200, %v3199
      %v3218 = vpack.c.bf16 %v3202, %v3201
      %v3219 = vld [vmem:[#allocation2 + $0x1] sm:$0xff]
      %v3220 = vld [vmem:[#allocation2 + $0x9] sm:$0xff]
      %v3221 = vld [vmem:[#allocation2 + $0x19] sm:$0xff]
      %v3222 = vld [vmem:[#allocation2 + $0x21] sm:$0xff]
      %v3223 = vld [vmem:[#allocation2 + $0x31] sm:$0xff]
      %v3224 = vld [vmem:[#allocation2 + $0x39] sm:$0xff]
      %v3225 = vld [vmem:[#allocation2 + $0x49] sm:$0xff]
      %v3226 = vld [vmem:[#allocation2 + $0x51] sm:$0xff]
      %v3227 = vld [vmem:[#allocation2 + $0x61] sm:$0xff]
      %v3228 = vld [vmem:[#allocation2 + $0x69] sm:$0xff]
      %v3229 = vld [vmem:[#allocation2 + $0x79] sm:$0xff]
      %v3230 = vld [vmem:[#allocation2 + $0x81] sm:$0xff]
      %v3231 = vld [vmem:[#allocation2 + $0x91] sm:$0xff]
      %v3232 = vld [vmem:[#allocation2 + $0x99] sm:$0xff]
      %v3233 = vld [vmem:[#allocation2 + $0xa9] sm:$0xff]
      %v3234 = vld [vmem:[#allocation2 + $0xb1] sm:$0xff]
      %v3235 = vld [vmem:[#allocation2 + $0xc1] sm:$0xff]
      %v3236 = vld [vmem:[#allocation2 + $0xc9] sm:$0xff]
      %v3237 = vld [vmem:[#allocation2 + $0xd9] sm:$0xff]
      %v3238 = vld [vmem:[#allocation2 + $0xe1] sm:$0xff]
      %v3239 = vld [vmem:[#allocation2 + $0xf1] sm:$0xff]
      %v3240 = vld [vmem:[#allocation2 + $0xf9] sm:$0xff]
      %v3241 = vld [vmem:[#allocation2 + $0x109] sm:$0xff]
      %v3242 = vld [vmem:[#allocation2 + $0x111] sm:$0xff]
      %v3243 = vld [vmem:[#allocation2 + $0x121] sm:$0xff]
      %v3244 = vld [vmem:[#allocation2 + $0x129] sm:$0xff]
      %v3245 = vld [vmem:[#allocation2 + $0x139] sm:$0xff]
      %v3246 = vld [vmem:[#allocation2 + $0x141] sm:$0xff]
      %v3247 = vld [vmem:[#allocation2 + $0x151] sm:$0xff]
      %v3248 = vld [vmem:[#allocation2 + $0x159] sm:$0xff]
      %v3249 = vld [vmem:[#allocation2 + $0x169] sm:$0xff]
      %v3250 = vld [vmem:[#allocation2 + $0x171] sm:$0xff]
      %v3251 = vpack.c.bf16 %v3220, %v3219
      %v3252 = vpack.c.bf16 %v3222, %v3221
      %v3253 = vpack.c.bf16 %v3224, %v3223
      %v3254 = vpack.c.bf16 %v3226, %v3225
      %v3255 = vpack.c.bf16 %v3228, %v3227
      %v3256 = vpack.c.bf16 %v3230, %v3229
      %v3257 = vpack.c.bf16 %v3232, %v3231
      %v3258 = vpack.c.bf16 %v3234, %v3233
      %v3259 = vpack.c.bf16 %v3236, %v3235
      %v3260 = vpack.c.bf16 %v3238, %v3237
      %v3261 = vpack.c.bf16 %v3240, %v3239
      %v3262 = vpack.c.bf16 %v3242, %v3241
      %v3263 = vpack.c.bf16 %v3244, %v3243
      %v3264 = vpack.c.bf16 %v3246, %v3245
      %v3265 = vpack.c.bf16 %v3248, %v3247
      %v3266 = vpack.c.bf16 %v3250, %v3249
      %v3267 = vld [vmem:[#allocation2 + $0x2] sm:$0xff]
      %v3268 = vld [vmem:[#allocation2 + $0xa] sm:$0xff]
      %v3269 = vld [vmem:[#allocation2 + $0x1a] sm:$0xff]
      %v3270 = vld [vmem:[#allocation2 + $0x22] sm:$0xff]
      %v3271 = vld [vmem:[#allocation2 + $0x32] sm:$0xff]
      %v3272 = vld [vmem:[#allocation2 + $0x3a] sm:$0xff]
      %v3273 = vld [vmem:[#allocation2 + $0x4a] sm:$0xff]
      %v3274 = vld [vmem:[#allocation2 + $0x52] sm:$0xff]
      %v3275 = vld [vmem:[#allocation2 + $0x62] sm:$0xff]
      %v3276 = vld [vmem:[#allocation2 + $0x6a] sm:$0xff]
      %v3277 = vld [vmem:[#allocation2 + $0x7a] sm:$0xff]
      %v3278 = vld [vmem:[#allocation2 + $0x82] sm:$0xff]
      %v3279 = vld [vmem:[#allocation2 + $0x92] sm:$0xff]
      %v3280 = vld [vmem:[#allocation2 + $0x9a] sm:$0xff]
      %v3281 = vld [vmem:[#allocation2 + $0xaa] sm:$0xff]
      %v3282 = vld [vmem:[#allocation2 + $0xb2] sm:$0xff]
      %v3283 = vld [vmem:[#allocation2 + $0xc2] sm:$0xff]
      %v3284 = vld [vmem:[#allocation2 + $0xca] sm:$0xff]
      %v3285 = vld [vmem:[#allocation2 + $0xda] sm:$0xff]
      %v3286 = vld [vmem:[#allocation2 + $0xe2] sm:$0xff]
      %v3287 = vld [vmem:[#allocation2 + $0xf2] sm:$0xff]
      %v3288 = vld [vmem:[#allocation2 + $0xfa] sm:$0xff]
      %v3289 = vld [vmem:[#allocation2 + $0x10a] sm:$0xff]
      %v3290 = vld [vmem:[#allocation2 + $0x112] sm:$0xff]
      %v3291 = vld [vmem:[#allocation2 + $0x122] sm:$0xff]
      %v3292 = vld [vmem:[#allocation2 + $0x12a] sm:$0xff]
      %v3293 = vld [vmem:[#allocation2 + $0x13a] sm:$0xff]
      %v3294 = vld [vmem:[#allocation2 + $0x142] sm:$0xff]
      %v3295 = vld [vmem:[#allocation2 + $0x152] sm:$0xff]
      %v3296 = vld [vmem:[#allocation2 + $0x15a] sm:$0xff]
      %v3297 = vld [vmem:[#allocation2 + $0x16a] sm:$0xff]
      %v3298 = vld [vmem:[#allocation2 + $0x172] sm:$0xff]
      %v3299 = vpack.c.bf16 %v3268, %v3267
      %v3300 = vpack.c.bf16 %v3270, %v3269
      %v3301 = vpack.c.bf16 %v3272, %v3271
      %v3302 = vpack.c.bf16 %v3274, %v3273
      %v3303 = vpack.c.bf16 %v3276, %v3275
      %v3304 = vpack.c.bf16 %v3278, %v3277
      %v3305 = vpack.c.bf16 %v3280, %v3279
      %v3306 = vpack.c.bf16 %v3282, %v3281
      %v3307 = vpack.c.bf16 %v3284, %v3283
      %v3308 = vpack.c.bf16 %v3286, %v3285
      %v3309 = vpack.c.bf16 %v3288, %v3287
      %v3310 = vpack.c.bf16 %v3290, %v3289
      %v3311 = vpack.c.bf16 %v3292, %v3291
      %v3312 = vpack.c.bf16 %v3294, %v3293
      %v3313 = vpack.c.bf16 %v3296, %v3295
      %v3314 = vpack.c.bf16 %v3298, %v3297
      %v3315 = vld [vmem:[%s1093] sm:$0xff]
      %v3316 = vld [vmem:[%s1093 + $0x8] sm:$0xff]
      %v3317 = vld [vmem:[%s1093 + $0x18] sm:$0xff]
      %v3318 = vld [vmem:[%s1093 + $0x20] sm:$0xff]
      %v3319 = vld [vmem:[%s1093 + $0x30] sm:$0xff]
      %v3320 = vld [vmem:[%s1093 + $0x38] sm:$0xff]
      %v3321 = vld [vmem:[%s1093 + $0x48] sm:$0xff]
      %v3322 = vld [vmem:[%s1093 + $0x50] sm:$0xff]
      %v3323 = vld [vmem:[%s1093 + $0x60] sm:$0xff]
      %v3324 = vld [vmem:[%s1093 + $0x68] sm:$0xff]
      %v3325 = vld [vmem:[%s1093 + $0x78] sm:$0xff]
      %v3326 = vld [vmem:[%s1093 + $0x80] sm:$0xff]
      %v3327 = vld [vmem:[%s1093 + $0x90] sm:$0xff]
      %v3328 = vld [vmem:[%s1093 + $0x98] sm:$0xff]
      %v3329 = vld [vmem:[%s1093 + $0xa8] sm:$0xff]
      %v3330 = vld [vmem:[%s1093 + $0xb0] sm:$0xff]
      %v3331 = vld [vmem:[%s1093 + $0xc0] sm:$0xff]
      %v3332 = vld [vmem:[%s1093 + $0xc8] sm:$0xff]
      %v3333 = vld [vmem:[%s1093 + $0xd8] sm:$0xff]
      %v3334 = vld [vmem:[%s1093 + $0xe0] sm:$0xff]
      %v3335 = vld [vmem:[%s1093 + $0xf0] sm:$0xff]
      %v3336 = vld [vmem:[%s1093 + $0xf8] sm:$0xff]
      %v3337 = vld [vmem:[%s1093 + $0x108] sm:$0xff]
      %v3338 = vld [vmem:[%s1093 + $0x110] sm:$0xff]
      %v3339 = vld [vmem:[%s1093 + $0x120] sm:$0xff]
      %v3340 = vld [vmem:[%s1093 + $0x128] sm:$0xff]
      %v3341 = vld [vmem:[%s1093 + $0x138] sm:$0xff]
      %v3342 = vld [vmem:[%s1093 + $0x140] sm:$0xff]
      %v3343 = vld [vmem:[%s1093 + $0x150] sm:$0xff]
      %v3344 = vld [vmem:[%s1093 + $0x158] sm:$0xff]
      %v3345 = vld [vmem:[%s1093 + $0x168] sm:$0xff]
      %v3346 = vld [vmem:[%s1093 + $0x170] sm:$0xff]
      %v3347 = vpack.c.bf16 %v3316, %v3315
      %v3348 = vpack.c.bf16 %v3318, %v3317
      %v3349 = vpack.c.bf16 %v3320, %v3319
      %v3350 = vpack.c.bf16 %v3322, %v3321
      %v3351 = vpack.c.bf16 %v3324, %v3323
      %v3352 = vpack.c.bf16 %v3326, %v3325
      %v3353 = vpack.c.bf16 %v3328, %v3327
      %v3354 = vpack.c.bf16 %v3330, %v3329
      %v3355 = vpack.c.bf16 %v3332, %v3331
      %v3356 = vpack.c.bf16 %v3334, %v3333
      %v3357 = vpack.c.bf16 %v3336, %v3335
      %v3358 = vpack.c.bf16 %v3338, %v3337
      %v3359 = vpack.c.bf16 %v3340, %v3339
      %v3360 = vpack.c.bf16 %v3342, %v3341
      %v3361 = vpack.c.bf16 %v3344, %v3343
      %v3362 = vpack.c.bf16 %v3346, %v3345
      %v3363 = vld [vmem:[%s1093 + $0x1] sm:$0xff]
      %v3364 = vld [vmem:[%s1093 + $0x9] sm:$0xff]
      %v3365 = vld [vmem:[%s1093 + $0x19] sm:$0xff]
      %v3366 = vld [vmem:[%s1093 + $0x21] sm:$0xff]
      %v3367 = vld [vmem:[%s1093 + $0x31] sm:$0xff]
      %v3368 = vld [vmem:[%s1093 + $0x39] sm:$0xff]
      %v3369 = vld [vmem:[%s1093 + $0x49] sm:$0xff]
      %v3370 = vld [vmem:[%s1093 + $0x51] sm:$0xff]
      %v3371 = vld [vmem:[%s1093 + $0x61] sm:$0xff]
      %v3372 = vld [vmem:[%s1093 + $0x69] sm:$0xff]
      %v3373 = vld [vmem:[%s1093 + $0x79] sm:$0xff]
      %v3374 = vld [vmem:[%s1093 + $0x81] sm:$0xff]
      %v3375 = vld [vmem:[%s1093 + $0x91] sm:$0xff]
      %v3376 = vld [vmem:[%s1093 + $0x99] sm:$0xff]
      %v3377 = vld [vmem:[%s1093 + $0xa9] sm:$0xff]
      %v3378 = vld [vmem:[%s1093 + $0xb1] sm:$0xff]
      %v3379 = vld [vmem:[%s1093 + $0xc1] sm:$0xff]
      %v3380 = vld [vmem:[%s1093 + $0xc9] sm:$0xff]
      %v3381 = vld [vmem:[%s1093 + $0xd9] sm:$0xff]
      %v3382 = vld [vmem:[%s1093 + $0xe1] sm:$0xff]
      %v3383 = vld [vmem:[%s1093 + $0xf1] sm:$0xff]
      %v3384 = vld [vmem:[%s1093 + $0xf9] sm:$0xff]
      %v3385 = vld [vmem:[%s1093 + $0x109] sm:$0xff]
      %v3386 = vld [vmem:[%s1093 + $0x111] sm:$0xff]
      %v3387 = vld [vmem:[%s1093 + $0x121] sm:$0xff]
      %v3388 = vld [vmem:[%s1093 + $0x129] sm:$0xff]
      %v3389 = vld [vmem:[%s1093 + $0x139] sm:$0xff]
      %v3390 = vld [vmem:[%s1093 + $0x141] sm:$0xff]
      %v3391 = vld [vmem:[%s1093 + $0x151] sm:$0xff]
      %v3392 = vld [vmem:[%s1093 + $0x159] sm:$0xff]
      %v3393 = vld [vmem:[%s1093 + $0x169] sm:$0xff]
      %v3394 = vld [vmem:[%s1093 + $0x171] sm:$0xff]
      %v3395 = vpack.c.bf16 %v3364, %v3363
      %v3396 = vpack.c.bf16 %v3366, %v3365
      %v3397 = vpack.c.bf16 %v3368, %v3367
      %v3398 = vpack.c.bf16 %v3370, %v3369
      %v3399 = vpack.c.bf16 %v3372, %v3371
      %v3400 = vpack.c.bf16 %v3374, %v3373
      %v3401 = vpack.c.bf16 %v3376, %v3375
      %v3402 = vpack.c.bf16 %v3378, %v3377
      %v3403 = vpack.c.bf16 %v3380, %v3379
      %v3404 = vpack.c.bf16 %v3382, %v3381
      %v3405 = vpack.c.bf16 %v3384, %v3383
      %v3406 = vpack.c.bf16 %v3386, %v3385
      %v3407 = vpack.c.bf16 %v3388, %v3387
      %v3408 = vpack.c.bf16 %v3390, %v3389
      %v3409 = vpack.c.bf16 %v3392, %v3391
      %v3410 = vpack.c.bf16 %v3394, %v3393
      %v3411 = vld [vmem:[%s1093 + $0x2] sm:$0xff]
      %v3412 = vld [vmem:[%s1093 + $0xa] sm:$0xff]
      %v3413 = vld [vmem:[%s1093 + $0x1a] sm:$0xff]
      %v3414 = vld [vmem:[%s1093 + $0x22] sm:$0xff]
      %v3415 = vld [vmem:[%s1093 + $0x32] sm:$0xff]
      %v3416 = vld [vmem:[%s1093 + $0x3a] sm:$0xff]
      %v3417 = vld [vmem:[%s1093 + $0x4a] sm:$0xff]
      %v3418 = vld [vmem:[%s1093 + $0x52] sm:$0xff]
      %v3419 = vld [vmem:[%s1093 + $0x62] sm:$0xff]
      %v3420 = vld [vmem:[%s1093 + $0x6a] sm:$0xff]
      %v3421 = vld [vmem:[%s1093 + $0x7a] sm:$0xff]
      %v3422 = vld [vmem:[%s1093 + $0x82] sm:$0xff]
      %v3423 = vld [vmem:[%s1093 + $0x92] sm:$0xff]
      %v3424 = vld [vmem:[%s1093 + $0x9a] sm:$0xff]
      %v3425 = vld [vmem:[%s1093 + $0xaa] sm:$0xff]
      %v3426 = vld [vmem:[%s1093 + $0xb2] sm:$0xff]
      %v3427 = vld [vmem:[%s1093 + $0xc2] sm:$0xff]
      %v3428 = vld [vmem:[%s1093 + $0xca] sm:$0xff]
      %v3429 = vld [vmem:[%s1093 + $0xda] sm:$0xff]
      %v3430 = vld [vmem:[%s1093 + $0xe2] sm:$0xff]
      %v3431 = vld [vmem:[%s1093 + $0xf2] sm:$0xff]
      %v3432 = vld [vmem:[%s1093 + $0xfa] sm:$0xff]
      %v3433 = vld [vmem:[%s1093 + $0x10a] sm:$0xff]
      %v3434 = vld [vmem:[%s1093 + $0x112] sm:$0xff]
      %v3435 = vld [vmem:[%s1093 + $0x122] sm:$0xff]
      %v3436 = vld [vmem:[%s1093 + $0x12a] sm:$0xff]
      %v3437 = vld [vmem:[%s1093 + $0x13a] sm:$0xff]
      %v3438 = vld [vmem:[%s1093 + $0x142] sm:$0xff]
      %v3439 = vld [vmem:[%s1093 + $0x152] sm:$0xff]
      %v3440 = vld [vmem:[%s1093 + $0x15a] sm:$0xff]
      %v3441 = vld [vmem:[%s1093 + $0x16a] sm:$0xff]
      %v3442 = vld [vmem:[%s1093 + $0x172] sm:$0xff]
      %v3443 = vpack.c.bf16 %v3412, %v3411
      %v3444 = vpack.c.bf16 %v3414, %v3413
      %v3445 = vpack.c.bf16 %v3416, %v3415
      %v3446 = vpack.c.bf16 %v3418, %v3417
      %v3447 = vpack.c.bf16 %v3420, %v3419
      %v3448 = vpack.c.bf16 %v3422, %v3421
      %v3449 = vpack.c.bf16 %v3424, %v3423
      %v3450 = vpack.c.bf16 %v3426, %v3425
      %v3451 = vpack.c.bf16 %v3428, %v3427
      %v3452 = vpack.c.bf16 %v3430, %v3429
      %v3453 = vpack.c.bf16 %v3432, %v3431
      %v3454 = vpack.c.bf16 %v3434, %v3433
      %v3455 = vpack.c.bf16 %v3436, %v3435
      %v3456 = vpack.c.bf16 %v3438, %v3437
      %v3457 = vpack.c.bf16 %v3440, %v3439
      %v3458 = vpack.c.bf16 %v3442, %v3441
      %v3459 = vld [vmem:[%s1414] sm:$0xff]
      %v3460 = vld [vmem:[%s1414 + $0x8] sm:$0xff]
      %v3461 = vld [vmem:[%s1414 + $0x18] sm:$0xff]
      %v3462 = vld [vmem:[%s1414 + $0x20] sm:$0xff]
      %v3463 = vld [vmem:[%s1414 + $0x30] sm:$0xff]
      %v3464 = vld [vmem:[%s1414 + $0x38] sm:$0xff]
      %v3465 = vld [vmem:[%s1414 + $0x48] sm:$0xff]
      %v3466 = vld [vmem:[%s1414 + $0x50] sm:$0xff]
      %v3467 = vld [vmem:[%s1414 + $0x60] sm:$0xff]
      %v3468 = vld [vmem:[%s1414 + $0x68] sm:$0xff]
      %v3469 = vld [vmem:[%s1414 + $0x78] sm:$0xff]
      %v3470 = vld [vmem:[%s1414 + $0x80] sm:$0xff]
      %v3471 = vld [vmem:[%s1414 + $0x90] sm:$0xff]
      %v3472 = vld [vmem:[%s1414 + $0x98] sm:$0xff]
      %v3473 = vld [vmem:[%s1414 + $0xa8] sm:$0xff]
      %v3474 = vld [vmem:[%s1414 + $0xb0] sm:$0xff]
      %v3475 = vld [vmem:[%s1414 + $0xc0] sm:$0xff]
      %v3476 = vld [vmem:[%s1414 + $0xc8] sm:$0xff]
      %v3477 = vld [vmem:[%s1414 + $0xd8] sm:$0xff]
      %v3478 = vld [vmem:[%s1414 + $0xe0] sm:$0xff]
      %v3479 = vld [vmem:[%s1414 + $0xf0] sm:$0xff]
      %v3480 = vld [vmem:[%s1414 + $0xf8] sm:$0xff]
      %v3481 = vld [vmem:[%s1414 + $0x108] sm:$0xff]
      %v3482 = vld [vmem:[%s1414 + $0x110] sm:$0xff]
      %v3483 = vld [vmem:[%s1414 + $0x120] sm:$0xff]
      %v3484 = vld [vmem:[%s1414 + $0x128] sm:$0xff]
      %v3485 = vld [vmem:[%s1414 + $0x138] sm:$0xff]
      %v3486 = vld [vmem:[%s1414 + $0x140] sm:$0xff]
      %v3487 = vld [vmem:[%s1414 + $0x150] sm:$0xff]
      %v3488 = vld [vmem:[%s1414 + $0x158] sm:$0xff]
      %v3489 = vld [vmem:[%s1414 + $0x168] sm:$0xff]
      %v3490 = vld [vmem:[%s1414 + $0x170] sm:$0xff]
      %v3491 = vpack.c.bf16 %v3460, %v3459
      %v3492 = vpack.c.bf16 %v3462, %v3461
      %v3493 = vpack.c.bf16 %v3464, %v3463
      %v3494 = vpack.c.bf16 %v3466, %v3465
      %v3495 = vpack.c.bf16 %v3468, %v3467
      %v3496 = vpack.c.bf16 %v3470, %v3469
      %v3497 = vpack.c.bf16 %v3472, %v3471
      %v3498 = vpack.c.bf16 %v3474, %v3473
      %v3499 = vpack.c.bf16 %v3476, %v3475
      %v3500 = vpack.c.bf16 %v3478, %v3477
      %v3501 = vpack.c.bf16 %v3480, %v3479
      %v3502 = vpack.c.bf16 %v3482, %v3481
      %v3503 = vpack.c.bf16 %v3484, %v3483
      %v3504 = vpack.c.bf16 %v3486, %v3485
      %v3505 = vpack.c.bf16 %v3488, %v3487
      %v3506 = vpack.c.bf16 %v3490, %v3489
      %v3507 = vld [vmem:[%s1414 + $0x1] sm:$0xff]
      %v3508 = vld [vmem:[%s1414 + $0x9] sm:$0xff]
      %v3509 = vld [vmem:[%s1414 + $0x19] sm:$0xff]
      %v3510 = vld [vmem:[%s1414 + $0x21] sm:$0xff]
      %v3511 = vld [vmem:[%s1414 + $0x31] sm:$0xff]
      %v3512 = vld [vmem:[%s1414 + $0x39] sm:$0xff]
      %v3513 = vld [vmem:[%s1414 + $0x49] sm:$0xff]
      %v3514 = vld [vmem:[%s1414 + $0x51] sm:$0xff]
      %v3515 = vld [vmem:[%s1414 + $0x61] sm:$0xff]
      %v3516 = vld [vmem:[%s1414 + $0x69] sm:$0xff]
      %v3517 = vld [vmem:[%s1414 + $0x79] sm:$0xff]
      %v3518 = vld [vmem:[%s1414 + $0x81] sm:$0xff]
      %v3519 = vld [vmem:[%s1414 + $0x91] sm:$0xff]
      %v3520 = vld [vmem:[%s1414 + $0x99] sm:$0xff]
      %v3521 = vld [vmem:[%s1414 + $0xa9] sm:$0xff]
      %v3522 = vld [vmem:[%s1414 + $0xb1] sm:$0xff]
      %v3523 = vld [vmem:[%s1414 + $0xc1] sm:$0xff]
      %v3524 = vld [vmem:[%s1414 + $0xc9] sm:$0xff]
      %v3525 = vld [vmem:[%s1414 + $0xd9] sm:$0xff]
      %v3526 = vld [vmem:[%s1414 + $0xe1] sm:$0xff]
      %v3527 = vld [vmem:[%s1414 + $0xf1] sm:$0xff]
      %v3528 = vld [vmem:[%s1414 + $0xf9] sm:$0xff]
      %v3529 = vld [vmem:[%s1414 + $0x109] sm:$0xff]
      %v3530 = vld [vmem:[%s1414 + $0x111] sm:$0xff]
      %v3531 = vld [vmem:[%s1414 + $0x121] sm:$0xff]
      %v3532 = vld [vmem:[%s1414 + $0x129] sm:$0xff]
      %v3533 = vld [vmem:[%s1414 + $0x139] sm:$0xff]
      %v3534 = vld [vmem:[%s1414 + $0x141] sm:$0xff]
      %v3535 = vld [vmem:[%s1414 + $0x151] sm:$0xff]
      %v3536 = vld [vmem:[%s1414 + $0x159] sm:$0xff]
      %v3537 = vld [vmem:[%s1414 + $0x169] sm:$0xff]
      %v3538 = vld [vmem:[%s1414 + $0x171] sm:$0xff]
      %v3539 = vpack.c.bf16 %v3508, %v3507
      %v3540 = vpack.c.bf16 %v3510, %v3509
      %v3541 = vpack.c.bf16 %v3512, %v3511
      %v3542 = vpack.c.bf16 %v3514, %v3513
      %v3543 = vpack.c.bf16 %v3516, %v3515
      %v3544 = vpack.c.bf16 %v3518, %v3517
      %v3545 = vpack.c.bf16 %v3520, %v3519
      %v3546 = vpack.c.bf16 %v3522, %v3521
      %v3547 = vpack.c.bf16 %v3524, %v3523
      %v3548 = vpack.c.bf16 %v3526, %v3525
      %v3549 = vpack.c.bf16 %v3528, %v3527
      %v3550 = vpack.c.bf16 %v3530, %v3529
      %v3551 = vpack.c.bf16 %v3532, %v3531
      %v3552 = vpack.c.bf16 %v3534, %v3533
      %v3553 = vpack.c.bf16 %v3536, %v3535
      %v3554 = vpack.c.bf16 %v3538, %v3537
      %v3555 = vld [vmem:[%s1414 + $0x2] sm:$0xff]
      %v3556 = vld [vmem:[%s1414 + $0xa] sm:$0xff]
      %v3557 = vld [vmem:[%s1414 + $0x1a] sm:$0xff]
      %v3558 = vld [vmem:[%s1414 + $0x22] sm:$0xff]
      %v3559 = vld [vmem:[%s1414 + $0x32] sm:$0xff]
      %v3560 = vld [vmem:[%s1414 + $0x3a] sm:$0xff]
      %v3561 = vld [vmem:[%s1414 + $0x4a] sm:$0xff]
      %v3562 = vld [vmem:[%s1414 + $0x52] sm:$0xff]
      %v3563 = vld [vmem:[%s1414 + $0x62] sm:$0xff]
      %v3564 = vld [vmem:[%s1414 + $0x6a] sm:$0xff]
      %v3565 = vld [vmem:[%s1414 + $0x7a] sm:$0xff]
      %v3566 = vld [vmem:[%s1414 + $0x82] sm:$0xff]
      %v3567 = vld [vmem:[%s1414 + $0x92] sm:$0xff]
      %v3568 = vld [vmem:[%s1414 + $0x9a] sm:$0xff]
      %v3569 = vld [vmem:[%s1414 + $0xaa] sm:$0xff]
      %v3570 = vld [vmem:[%s1414 + $0xb2] sm:$0xff]
      %v3571 = vld [vmem:[%s1414 + $0xc2] sm:$0xff]
      %v3572 = vld [vmem:[%s1414 + $0xca] sm:$0xff]
      %v3573 = vld [vmem:[%s1414 + $0xda] sm:$0xff]
      %v3574 = vld [vmem:[%s1414 + $0xe2] sm:$0xff]
      %v3575 = vld [vmem:[%s1414 + $0xf2] sm:$0xff]
      %v3576 = vld [vmem:[%s1414 + $0xfa] sm:$0xff]
      %v3577 = vld [vmem:[%s1414 + $0x10a] sm:$0xff]
      %v3578 = vld [vmem:[%s1414 + $0x112] sm:$0xff]
      %v3579 = vld [vmem:[%s1414 + $0x122] sm:$0xff]
      %v3580 = vld [vmem:[%s1414 + $0x12a] sm:$0xff]
      %v3581 = vld [vmem:[%s1414 + $0x13a] sm:$0xff]
      %v3582 = vld [vmem:[%s1414 + $0x142] sm:$0xff]
      %v3583 = vld [vmem:[%s1414 + $0x152] sm:$0xff]
      %v3584 = vld [vmem:[%s1414 + $0x15a] sm:$0xff]
      %v3585 = vld [vmem:[%s1414 + $0x16a] sm:$0xff]
      %v3586 = vld [vmem:[%s1414 + $0x172] sm:$0xff]
      %v3587 = vpack.c.bf16 %v3556, %v3555
      %v3588 = vpack.c.bf16 %v3558, %v3557
      %v3589 = vpack.c.bf16 %v3560, %v3559
      %v3590 = vpack.c.bf16 %v3562, %v3561
      %v3591 = vpack.c.bf16 %v3564, %v3563
      %v3592 = vpack.c.bf16 %v3566, %v3565
      %v3593 = vpack.c.bf16 %v3568, %v3567
      %v3594 = vpack.c.bf16 %v3570, %v3569
      %v3595 = vpack.c.bf16 %v3572, %v3571
      %v3596 = vpack.c.bf16 %v3574, %v3573
      %v3597 = vpack.c.bf16 %v3576, %v3575
      %v3598 = vpack.c.bf16 %v3578, %v3577
      %v3599 = vpack.c.bf16 %v3580, %v3579
      %v3600 = vpack.c.bf16 %v3582, %v3581
      %v3601 = vpack.c.bf16 %v3584, %v3583
      %v3602 = vpack.c.bf16 %v3586, %v3585
      %s3603 = scalar_lea.vmem %s3, 576
      %v3604 = vld [vmem:[%s3603] sm:$0xf]
      %v3605 = vld [vmem:[%s3603 + $0x4] sm:$0xf]
      %v3606 = vld [vmem:[%s3603 + $0x8] sm:$0xf]
      %v3607 = vld [vmem:[%s3603 + $0xc] sm:$0xf]
      %v3608 = vld [vmem:[%s3603 + $0x10] sm:$0xf]
      %v3609 = vld [vmem:[%s3603 + $0x14] sm:$0xf]
      %v3610 = vld [vmem:[%s3603 + $0x18] sm:$0xf]
      %v3611 = vld [vmem:[%s3603 + $0x1c] sm:$0xf]
      %v3612 = vld [vmem:[%s3603 + $0x20] sm:$0xf]
      %v3613 = vld [vmem:[%s3603 + $0x24] sm:$0xf]
      %v3614 = vld [vmem:[%s3603 + $0x28] sm:$0xf]
      %v3615 = vld [vmem:[%s3603 + $0x2c] sm:$0xf]
      %v3616 = vld [vmem:[%s3603 + $0x30] sm:$0xf]
      %v3617 = vld [vmem:[%s3603 + $0x34] sm:$0xf]
      %v3618 = vld [vmem:[%s3603 + $0x38] sm:$0xf]
      %v3619 = vld [vmem:[%s3603 + $0x3c] sm:$0xf]
      %v3620 = vld [vmem:[%s3603 + $0x40] sm:$0xf]
      %v3621 = vld [vmem:[%s3603 + $0x44] sm:$0xf]
      %v3622 = vld [vmem:[%s3603 + $0x48] sm:$0xf]
      %v3623 = vld [vmem:[%s3603 + $0x4c] sm:$0xf]
      %v3624 = vld [vmem:[%s3603 + $0x50] sm:$0xf]
      %v3625 = vld [vmem:[%s3603 + $0x54] sm:$0xf]
      %v3626 = vld [vmem:[%s3603 + $0x58] sm:$0xf]
      %v3627 = vld [vmem:[%s3603 + $0x5c] sm:$0xf]
      %v3628 = vld [vmem:[%s3603 + $0x60] sm:$0xf]
      %v3629 = vld [vmem:[%s3603 + $0x64] sm:$0xf]
      %v3630 = vld [vmem:[%s3603 + $0x68] sm:$0xf]
      %v3631 = vld [vmem:[%s3603 + $0x6c] sm:$0xf]
      %v3632 = vld [vmem:[%s3603 + $0x70] sm:$0xf]
      %v3633 = vld [vmem:[%s3603 + $0x74] sm:$0xf]
      %v3634 = vld [vmem:[%s3603 + $0x78] sm:$0xf]
      %v3635 = vld [vmem:[%s3603 + $0x7c] sm:$0xf]
      %v3636 = vld [vmem:[%s3603 + $0x80] sm:$0xf]
      %v3637 = vld [vmem:[%s3603 + $0x84] sm:$0xf]
      %v3638 = vld [vmem:[%s3603 + $0x88] sm:$0xf]
      %v3639 = vld [vmem:[%s3603 + $0x8c] sm:$0xf]
      %v3640 = vld [vmem:[%s3603 + $0x90] sm:$0xf]
      %v3641 = vld [vmem:[%s3603 + $0x94] sm:$0xf]
      %v3642 = vld [vmem:[%s3603 + $0x98] sm:$0xf]
      %v3643 = vld [vmem:[%s3603 + $0x9c] sm:$0xf]
      %v3644 = vld [vmem:[%s3603 + $0xa0] sm:$0xf]
      %v3645 = vld [vmem:[%s3603 + $0xa4] sm:$0xf]
      %v3646 = vld [vmem:[%s3603 + $0xa8] sm:$0xf]
      %v3647 = vld [vmem:[%s3603 + $0xac] sm:$0xf]
      %v3648 = vld [vmem:[%s3603 + $0xb0] sm:$0xf]
      %v3649 = vld [vmem:[%s3603 + $0xb4] sm:$0xf]
      %v3650 = vld [vmem:[%s3603 + $0xb8] sm:$0xf]
      %v3651 = vld [vmem:[%s3603 + $0xbc] sm:$0xf]
      %v3652 = vld [vmem:[%s3603 + $0xc0] sm:$0xf]
      %v3653 = vld [vmem:[%s3603 + $0xc4] sm:$0xf]
      %v3654 = vld [vmem:[%s3603 + $0xc8] sm:$0xf]
      %v3655 = vld [vmem:[%s3603 + $0xcc] sm:$0xf]
      %v3656 = vld [vmem:[%s3603 + $0xd0] sm:$0xf]
      %v3657 = vld [vmem:[%s3603 + $0xd4] sm:$0xf]
      %v3658 = vld [vmem:[%s3603 + $0xd8] sm:$0xf]
      %v3659 = vld [vmem:[%s3603 + $0xdc] sm:$0xf]
      %v3660 = vld [vmem:[%s3603 + $0xe0] sm:$0xf]
      %v3661 = vld [vmem:[%s3603 + $0xe4] sm:$0xf]
      %v3662 = vld [vmem:[%s3603 + $0xe8] sm:$0xf]
      %v3663 = vld [vmem:[%s3603 + $0xec] sm:$0xf]
      %v3664 = vld [vmem:[%s3603 + $0xf0] sm:$0xf]
      %v3665 = vld [vmem:[%s3603 + $0xf4] sm:$0xf]
      %v3666 = vld [vmem:[%s3603 + $0xf8] sm:$0xf]
      %v3667 = vld [vmem:[%s3603 + $0xfc] sm:$0xf]
      %v3668 = vld [vmem:[%s3603 + $0x100] sm:$0xf]
      %v3669 = vld [vmem:[%s3603 + $0x104] sm:$0xf]
      %v3670 = vld [vmem:[%s3603 + $0x108] sm:$0xf]
      %v3671 = vld [vmem:[%s3603 + $0x10c] sm:$0xf]
      %v3672 = vld [vmem:[%s3603 + $0x110] sm:$0xf]
      %v3673 = vld [vmem:[%s3603 + $0x114] sm:$0xf]
      %v3674 = vld [vmem:[%s3603 + $0x118] sm:$0xf]
      %v3675 = vld [vmem:[%s3603 + $0x11c] sm:$0xf]
      %v3676 = vld [vmem:[%s3603 + $0x120] sm:$0xf]
      %v3677 = vld [vmem:[%s3603 + $0x124] sm:$0xf]
      %v3678 = vld [vmem:[%s3603 + $0x128] sm:$0xf]
      %v3679 = vld [vmem:[%s3603 + $0x12c] sm:$0xf]
      %v3680 = vld [vmem:[%s3603 + $0x130] sm:$0xf]
      %v3681 = vld [vmem:[%s3603 + $0x134] sm:$0xf]
      %v3682 = vld [vmem:[%s3603 + $0x138] sm:$0xf]
      %v3683 = vld [vmem:[%s3603 + $0x13c] sm:$0xf]
      %v3684 = vld [vmem:[%s3603 + $0x140] sm:$0xf]
      %v3685 = vld [vmem:[%s3603 + $0x144] sm:$0xf]
      %v3686 = vld [vmem:[%s3603 + $0x148] sm:$0xf]
      %v3687 = vld [vmem:[%s3603 + $0x14c] sm:$0xf]
      %v3688 = vld [vmem:[%s3603 + $0x150] sm:$0xf]
      %v3689 = vld [vmem:[%s3603 + $0x154] sm:$0xf]
      %v3690 = vld [vmem:[%s3603 + $0x158] sm:$0xf]
      %v3691 = vld [vmem:[%s3603 + $0x15c] sm:$0xf]
      %v3692 = vld [vmem:[%s3603 + $0x160] sm:$0xf]
      %v3693 = vld [vmem:[%s3603 + $0x164] sm:$0xf]
      %v3694 = vld [vmem:[%s3603 + $0x168] sm:$0xf]
      %v3695 = vld [vmem:[%s3603 + $0x16c] sm:$0xf]
      %v3696 = vld [vmem:[%s3603 + $0x170] sm:$0xf]
      %v3697 = vld [vmem:[%s3603 + $0x174] sm:$0xf]
      %v3698 = vld [vmem:[%s3603 + $0x178] sm:$0xf]
      %v3699 = vld [vmem:[%s3603 + $0x17c] sm:$0xf]
      %v3700 = vld [vmem:[%s3603 + $0x180] sm:$0xf]
      %v3701 = vld [vmem:[%s3603 + $0x184] sm:$0xf]
      %v3702 = vld [vmem:[%s3603 + $0x188] sm:$0xf]
      %v3703 = vld [vmem:[%s3603 + $0x18c] sm:$0xf]
      %v3704 = vld [vmem:[%s3603 + $0x190] sm:$0xf]
      %v3705 = vld [vmem:[%s3603 + $0x194] sm:$0xf]
      %v3706 = vld [vmem:[%s3603 + $0x198] sm:$0xf]
      %v3707 = vld [vmem:[%s3603 + $0x19c] sm:$0xf]
      %v3708 = vld [vmem:[%s3603 + $0x1a0] sm:$0xf]
      %v3709 = vld [vmem:[%s3603 + $0x1a4] sm:$0xf]
      %v3710 = vld [vmem:[%s3603 + $0x1a8] sm:$0xf]
      %v3711 = vld [vmem:[%s3603 + $0x1ac] sm:$0xf]
      %v3712 = vld [vmem:[%s3603 + $0x1b0] sm:$0xf]
      %v3713 = vld [vmem:[%s3603 + $0x1b4] sm:$0xf]
      %v3714 = vld [vmem:[%s3603 + $0x1b8] sm:$0xf]
      %v3715 = vld [vmem:[%s3603 + $0x1bc] sm:$0xf]
      %v3716 = vld [vmem:[%s3603 + $0x1c0] sm:$0xf]
      %v3717 = vld [vmem:[%s3603 + $0x1c4] sm:$0xf]
      %v3718 = vld [vmem:[%s3603 + $0x1c8] sm:$0xf]
      %v3719 = vld [vmem:[%s3603 + $0x1cc] sm:$0xf]
      %v3720 = vld [vmem:[%s3603 + $0x1d0] sm:$0xf]
      %v3721 = vld [vmem:[%s3603 + $0x1d4] sm:$0xf]
      %v3722 = vld [vmem:[%s3603 + $0x1d8] sm:$0xf]
      %v3723 = vld [vmem:[%s3603 + $0x1dc] sm:$0xf]
      %v3724 = vld [vmem:[%s3603 + $0x1e0] sm:$0xf]
      %v3725 = vld [vmem:[%s3603 + $0x1e4] sm:$0xf]
      %v3726 = vld [vmem:[%s3603 + $0x1e8] sm:$0xf]
      %v3727 = vld [vmem:[%s3603 + $0x1ec] sm:$0xf]
      %v3728 = vld [vmem:[%s3603 + $0x1f0] sm:$0xf]
      %v3729 = vld [vmem:[%s3603 + $0x1f4] sm:$0xf]
      %v3730 = vld [vmem:[%s3603 + $0x1f8] sm:$0xf]
      %v3731 = vld [vmem:[%s3603 + $0x1fc] sm:$0xf]
      %v3732 = vld [vmem:[%s3603 + $0x200] sm:$0xf]
      %v3733 = vld [vmem:[%s3603 + $0x204] sm:$0xf]
      %v3734 = vld [vmem:[%s3603 + $0x208] sm:$0xf]
      %v3735 = vld [vmem:[%s3603 + $0x20c] sm:$0xf]
      %v3736 = vld [vmem:[%s3603 + $0x210] sm:$0xf]
      %v3737 = vld [vmem:[%s3603 + $0x214] sm:$0xf]
      %v3738 = vld [vmem:[%s3603 + $0x218] sm:$0xf]
      %v3739 = vld [vmem:[%s3603 + $0x21c] sm:$0xf]
      %v3740 = vld [vmem:[%s3603 + $0x220] sm:$0xf]
      %v3741 = vld [vmem:[%s3603 + $0x224] sm:$0xf]
      %v3742 = vld [vmem:[%s3603 + $0x228] sm:$0xf]
      %v3743 = vld [vmem:[%s3603 + $0x22c] sm:$0xf]
      %v3744 = vld [vmem:[%s3603 + $0x230] sm:$0xf]
      %v3745 = vld [vmem:[%s3603 + $0x234] sm:$0xf]
      %v3746 = vld [vmem:[%s3603 + $0x238] sm:$0xf]
      %v3747 = vld [vmem:[%s3603 + $0x23c] sm:$0xf]
      %s3748 = scalar_lea.vmem %s4, 1
      %v3749 = vld [vmem:[%s3748] sm:$0x1]
      %v3751 = vlaneseq
      %v3752 = vshrl.u32 %v3751, 7
      %v3753 = vsub.s32 0, %v3752
      %v3754 = vrot.slane %v3749, %v3753
      %v3900 = vunpack.c.l.b16 %v3604
      %v3901 = vunpack.c.l.b16 %v3605
      %v3902 = vunpack.c.l.b16 %v3606
      %v3903 = vunpack.c.l.b16 %v3607
      %v3904 = vunpack.c.l.b16 %v3608
      %v3905 = vunpack.c.l.b16 %v3609
      %v3906 = vunpack.c.l.b16 %v3610
      %v3907 = vunpack.c.l.b16 %v3611
      %v3908 = vunpack.c.l.b16 %v3612
      %v3909 = vunpack.c.l.b16 %v3613
      %v3910 = vunpack.c.l.b16 %v3614
      %v3911 = vunpack.c.l.b16 %v3615
      %v3912 = vunpack.c.l.b16 %v3616
      %v3913 = vunpack.c.l.b16 %v3617
      %v3914 = vunpack.c.l.b16 %v3618
      %v3915 = vunpack.c.l.b16 %v3619
      %v3916 = vunpack.c.l.b16 %v3620
      %v3917 = vunpack.c.l.b16 %v3621
      %v3918 = vunpack.c.l.b16 %v3622
      %v3919 = vunpack.c.l.b16 %v3623
      %v3920 = vunpack.c.l.b16 %v3624
      %v3921 = vunpack.c.l.b16 %v3625
      %v3922 = vunpack.c.l.b16 %v3626
      %v3923 = vunpack.c.l.b16 %v3627
      %v3924 = vunpack.c.l.b16 %v3628
      %v3925 = vunpack.c.l.b16 %v3629
      %v3926 = vunpack.c.l.b16 %v3630
      %v3927 = vunpack.c.l.b16 %v3631
      %v3928 = vunpack.c.l.b16 %v3632
      %v3929 = vunpack.c.l.b16 %v3633
      %v3930 = vunpack.c.l.b16 %v3634
      %v3931 = vunpack.c.l.b16 %v3635
      %v3932 = vunpack.c.l.b16 %v3636
      %v3933 = vunpack.c.l.b16 %v3637
      %v3934 = vunpack.c.l.b16 %v3638
      %v3935 = vunpack.c.l.b16 %v3639
      %v3936 = vunpack.c.l.b16 %v3640
      %v3937 = vunpack.c.l.b16 %v3641
      %v3938 = vunpack.c.l.b16 %v3642
      %v3939 = vunpack.c.l.b16 %v3643
      %v3940 = vunpack.c.l.b16 %v3644
      %v3941 = vunpack.c.l.b16 %v3645
      %v3942 = vunpack.c.l.b16 %v3646
      %v3943 = vunpack.c.l.b16 %v3647
      %v3944 = vunpack.c.l.b16 %v3648
      %v3945 = vunpack.c.l.b16 %v3649
      %v3946 = vunpack.c.l.b16 %v3650
      %v3947 = vunpack.c.l.b16 %v3651
      %v3948 = vunpack.c.l.b16 %v3652
      %v3949 = vunpack.c.l.b16 %v3653
      %v3950 = vunpack.c.l.b16 %v3654
      %v3951 = vunpack.c.l.b16 %v3655
      %v3952 = vunpack.c.l.b16 %v3656
      %v3953 = vunpack.c.l.b16 %v3657
      %v3954 = vunpack.c.l.b16 %v3658
      %v3955 = vunpack.c.l.b16 %v3659
      %v3956 = vunpack.c.l.b16 %v3660
      %v3957 = vunpack.c.l.b16 %v3661
      %v3958 = vunpack.c.l.b16 %v3662
      %v3959 = vunpack.c.l.b16 %v3663
      %v3960 = vunpack.c.l.b16 %v3664
      %v3961 = vunpack.c.l.b16 %v3665
      %v3962 = vunpack.c.l.b16 %v3666
      %v3963 = vunpack.c.l.b16 %v3667
      %v3964 = vunpack.c.l.b16 %v3668
      %v3965 = vunpack.c.l.b16 %v3669
      %v3966 = vunpack.c.l.b16 %v3670
      %v3967 = vunpack.c.l.b16 %v3671
      %v3968 = vunpack.c.l.b16 %v3672
      %v3969 = vunpack.c.l.b16 %v3673
      %v3970 = vunpack.c.l.b16 %v3674
      %v3971 = vunpack.c.l.b16 %v3675
      %v3972 = vunpack.c.l.b16 %v3676
      %v3973 = vunpack.c.l.b16 %v3677
      %v3974 = vunpack.c.l.b16 %v3678
      %v3975 = vunpack.c.l.b16 %v3679
      %v3976 = vunpack.c.l.b16 %v3680
      %v3977 = vunpack.c.l.b16 %v3681
      %v3978 = vunpack.c.l.b16 %v3682
      %v3979 = vunpack.c.l.b16 %v3683
      %v3980 = vunpack.c.l.b16 %v3684
      %v3981 = vunpack.c.l.b16 %v3685
      %v3982 = vunpack.c.l.b16 %v3686
      %v3983 = vunpack.c.l.b16 %v3687
      %v3984 = vunpack.c.l.b16 %v3688
      %v3985 = vunpack.c.l.b16 %v3689
      %v3986 = vunpack.c.l.b16 %v3690
      %v3987 = vunpack.c.l.b16 %v3691
      %v3988 = vunpack.c.l.b16 %v3692
      %v3989 = vunpack.c.l.b16 %v3693
      %v3990 = vunpack.c.l.b16 %v3694
      %v3991 = vunpack.c.l.b16 %v3695
      %v3992 = vunpack.c.l.b16 %v3696
      %v3993 = vunpack.c.l.b16 %v3697
      %v3994 = vunpack.c.l.b16 %v3698
      %v3995 = vunpack.c.l.b16 %v3699
      %v3996 = vunpack.c.l.b16 %v3700
      %v3997 = vunpack.c.l.b16 %v3701
      %v3998 = vunpack.c.l.b16 %v3702
      %v3999 = vunpack.c.l.b16 %v3703
      %v4000 = vunpack.c.l.b16 %v3704
      %v4001 = vunpack.c.l.b16 %v3705
      %v4002 = vunpack.c.l.b16 %v3706
      %v4003 = vunpack.c.l.b16 %v3707
      %v4004 = vunpack.c.l.b16 %v3708
      %v4005 = vunpack.c.l.b16 %v3709
      %v4006 = vunpack.c.l.b16 %v3710
      %v4007 = vunpack.c.l.b16 %v3711
      %v4008 = vunpack.c.l.b16 %v3712
      %v4009 = vunpack.c.l.b16 %v3713
      %v4010 = vunpack.c.l.b16 %v3714
      %v4011 = vunpack.c.l.b16 %v3715
      %v4012 = vunpack.c.l.b16 %v3716
      %v4013 = vunpack.c.l.b16 %v3717
      %v4014 = vunpack.c.l.b16 %v3718
      %v4015 = vunpack.c.l.b16 %v3719
      %v4016 = vunpack.c.l.b16 %v3720
      %v4017 = vunpack.c.l.b16 %v3721
      %v4018 = vunpack.c.l.b16 %v3722
      %v4019 = vunpack.c.l.b16 %v3723
      %v4020 = vunpack.c.l.b16 %v3724
      %v4021 = vunpack.c.l.b16 %v3725
      %v4022 = vunpack.c.l.b16 %v3726
      %v4023 = vunpack.c.l.b16 %v3727
      %v4024 = vunpack.c.l.b16 %v3728
      %v4025 = vunpack.c.l.b16 %v3729
      %v4026 = vunpack.c.l.b16 %v3730
      %v4027 = vunpack.c.l.b16 %v3731
      %v4028 = vunpack.c.l.b16 %v3732
      %v4029 = vunpack.c.l.b16 %v3733
      %v4030 = vunpack.c.l.b16 %v3734
      %v4031 = vunpack.c.l.b16 %v3735
      %v4032 = vunpack.c.l.b16 %v3736
      %v4033 = vunpack.c.l.b16 %v3737
      %v4034 = vunpack.c.l.b16 %v3738
      %v4035 = vunpack.c.l.b16 %v3739
      %v4036 = vunpack.c.l.b16 %v3740
      %v4037 = vunpack.c.l.b16 %v3741
      %v4038 = vunpack.c.l.b16 %v3742
      %v4039 = vunpack.c.l.b16 %v3743
      %v4040 = vunpack.c.l.b16 %v3744
      %v4041 = vunpack.c.l.b16 %v3745
      %v4042 = vunpack.c.l.b16 %v3746
      %v4043 = vunpack.c.l.b16 %v3747
      %v4044 = vpack.c.b16 %v3901, %v3900
      %v4045 = vpack.c.b16 %v3903, %v3902
      %v4046 = vpack.c.b16 %v3905, %v3904
      %v4047 = vpack.c.b16 %v3907, %v3906
      %v4048 = vpack.c.b16 %v3909, %v3908
      %v4049 = vpack.c.b16 %v3911, %v3910
      %v4050 = vpack.c.b16 %v3913, %v3912
      %v4051 = vpack.c.b16 %v3915, %v3914
      %v4052 = vpack.c.b16 %v3917, %v3916
      %v4053 = vpack.c.b16 %v3919, %v3918
      %v4054 = vpack.c.b16 %v3921, %v3920
      %v4055 = vpack.c.b16 %v3923, %v3922
      %v4056 = vpack.c.b16 %v3925, %v3924
      %v4057 = vpack.c.b16 %v3927, %v3926
      %v4058 = vpack.c.b16 %v3929, %v3928
      %v4059 = vpack.c.b16 %v3931, %v3930
      %v4060 = vpack.c.b16 %v3933, %v3932
      %v4061 = vpack.c.b16 %v3935, %v3934
      %v4062 = vpack.c.b16 %v3937, %v3936
      %v4063 = vpack.c.b16 %v3939, %v3938
      %v4064 = vpack.c.b16 %v3941, %v3940
      %v4065 = vpack.c.b16 %v3943, %v3942
      %v4066 = vpack.c.b16 %v3945, %v3944
      %v4067 = vpack.c.b16 %v3947, %v3946
      %v4068 = vpack.c.b16 %v3949, %v3948
      %v4069 = vpack.c.b16 %v3951, %v3950
      %v4070 = vpack.c.b16 %v3953, %v3952
      %v4071 = vpack.c.b16 %v3955, %v3954
      %v4072 = vpack.c.b16 %v3957, %v3956
      %v4073 = vpack.c.b16 %v3959, %v3958
      %v4074 = vpack.c.b16 %v3961, %v3960
      %v4075 = vpack.c.b16 %v3963, %v3962
      %v4076 = vpack.c.b16 %v3965, %v3964
      %v4077 = vpack.c.b16 %v3967, %v3966
      %v4078 = vpack.c.b16 %v3969, %v3968
      %v4079 = vpack.c.b16 %v3971, %v3970
      %v4080 = vpack.c.b16 %v3973, %v3972
      %v4081 = vpack.c.b16 %v3975, %v3974
      %v4082 = vpack.c.b16 %v3977, %v3976
      %v4083 = vpack.c.b16 %v3979, %v3978
      %v4084 = vpack.c.b16 %v3981, %v3980
      %v4085 = vpack.c.b16 %v3983, %v3982
      %v4086 = vpack.c.b16 %v3985, %v3984
      %v4087 = vpack.c.b16 %v3987, %v3986
      %v4088 = vpack.c.b16 %v3989, %v3988
      %v4089 = vpack.c.b16 %v3991, %v3990
      %v4090 = vpack.c.b16 %v3993, %v3992
      %v4091 = vpack.c.b16 %v3995, %v3994
      %v4092 = vpack.c.b16 %v3997, %v3996
      %v4093 = vpack.c.b16 %v3999, %v3998
      %v4094 = vpack.c.b16 %v4001, %v4000
      %v4095 = vpack.c.b16 %v4003, %v4002
      %v4096 = vpack.c.b16 %v4005, %v4004
      %v4097 = vpack.c.b16 %v4007, %v4006
      %v4098 = vpack.c.b16 %v4009, %v4008
      %v4099 = vpack.c.b16 %v4011, %v4010
      %v4100 = vpack.c.b16 %v4013, %v4012
      %v4101 = vpack.c.b16 %v4015, %v4014
      %v4102 = vpack.c.b16 %v4017, %v4016
      %v4103 = vpack.c.b16 %v4019, %v4018
      %v4104 = vpack.c.b16 %v4021, %v4020
      %v4105 = vpack.c.b16 %v4023, %v4022
      %v4106 = vpack.c.b16 %v4025, %v4024
      %v4107 = vpack.c.b16 %v4027, %v4026
      %v4108 = vpack.c.b16 %v4029, %v4028
      %v4109 = vpack.c.b16 %v4031, %v4030
      %v4110 = vpack.c.b16 %v4033, %v4032
      %v4111 = vpack.c.b16 %v4035, %v4034
      %v4112 = vpack.c.b16 %v4037, %v4036
      %v4113 = vpack.c.b16 %v4039, %v4038
      %v4114 = vpack.c.b16 %v4041, %v4040
      %v4115 = vpack.c.b16 %v4043, %v4042
      %4188 = vmatprep.subr.bf16.mxu0 0
      %4189 = vmatpush1.bf16.msra.mxu0 %v4051
      %4190 = vmatprep.subr.bf16.mxu0 0
      %4191 = vmatpush1.bf16.msra.mxu0 %v4050
      %4192 = vmatprep.subr.bf16.mxu0 0
      %4193 = vmatpush1.bf16.msra.mxu0 %v4049
      %4194 = vmatprep.subr.bf16.mxu0 0
      %4195 = vmatpush1.bf16.msra.mxu0 %v4048
      %4196 = vmatprep.subr.bf16.mxu0 0
      %4197 = vmatpush1.bf16.msra.mxu0 %v4047
      %4198 = vmatprep.subr.bf16.mxu0 0
      %4199 = vmatpush1.bf16.msra.mxu0 %v4046
      %4200 = vmatprep.subr.bf16.mxu0 0
      %4201 = vmatpush1.bf16.msra.mxu0 %v4045
      %4202 = vmatprep.subr.bf16.mxu0 0
      %4203 = vmatpush1.bf16.msra.mxu0 %v4044
      %4204 = vmatprep.subr.bf16.mxu0 0
      %4205 = vmatpush2.bf16.msra.mxu0 %v4059
      %4206 = vmatprep.subr.bf16.mxu0 0
      %4207 = vmatpush2.bf16.msra.mxu0 %v4058
      %4208 = vmatprep.subr.bf16.mxu0 0
      %4209 = vmatpush2.bf16.msra.mxu0 %v4057
      %4210 = vmatprep.subr.bf16.mxu0 0
      %4211 = vmatpush2.bf16.msra.mxu0 %v4056
      %4212 = vmatprep.subr.bf16.mxu0 0
      %4213 = vmatpush2.bf16.msra.mxu0 %v4055
      %4214 = vmatprep.subr.bf16.mxu0 0
      %4215 = vmatpush2.bf16.msra.mxu0 %v4054
      %4216 = vmatprep.subr.bf16.mxu0 0
      %4217 = vmatpush2.bf16.msra.mxu0 %v4053
      %4218 = vmatprep.subr.bf16.mxu0 0
      %4219 = vmatpush2.bf16.msra.mxu0 %v4052
      %4220 = vmatprep.mubr.bf16.mxu0 %v3251
      %4221 = vmatmul.mubr.bf16.gmra.mxu0 %v3203
      %v4222 = vpop.f32.mrf.mxu0
      %v4223 = vadd.f32 %v3754, %v4222
      %v4224 = vpop.f32.mrf.mxu0
      %v4225 = vpop.f32.mrf.mxu0
      %v4226 = vadd.f32 %v3754, %v4225
      %v4227 = vpop.f32.mrf.mxu0
      %4228 = vmatprep.mubr.bf16.mxu0 %v3252
      %4229 = vmatmul.mubr.bf16.gmra.mxu0 %v3204
      %v4230 = vpop.f32.mrf.mxu0
      %v4231 = vadd.f32 %v3754, %v4230
      %v4232 = vpop.f32.mrf.mxu0
      %v4233 = vpop.f32.mrf.mxu0
      %v4234 = vadd.f32 %v3754, %v4233
      %v4235 = vpop.f32.mrf.mxu0
      %4236 = vmatprep.mubr.bf16.mxu0 %v3253
      %4237 = vmatmul.mubr.bf16.gmra.mxu0 %v3205
      %v4238 = vpop.f32.mrf.mxu0
      %v4239 = vadd.f32 %v3754, %v4238
      %v4240 = vpop.f32.mrf.mxu0
      %v4241 = vpop.f32.mrf.mxu0
      %v4242 = vadd.f32 %v3754, %v4241
      %v4243 = vpop.f32.mrf.mxu0
      %4244 = vmatprep.mubr.bf16.mxu0 %v3254
      %4245 = vmatmul.mubr.bf16.gmra.mxu0 %v3206
      %v4246 = vpop.f32.mrf.mxu0
      %v4247 = vadd.f32 %v3754, %v4246
      %v4248 = vpop.f32.mrf.mxu0
      %v4249 = vpop.f32.mrf.mxu0
      %v4250 = vadd.f32 %v3754, %v4249
      %v4251 = vpop.f32.mrf.mxu0
      %4252 = vmatprep.mubr.bf16.mxu0 %v3255
      %4253 = vmatmul.mubr.bf16.gmra.mxu0 %v3207
      %v4254 = vpop.f32.mrf.mxu0
      %v4255 = vadd.f32 %v3754, %v4254
      %v4256 = vpop.f32.mrf.mxu0
      %v4257 = vpop.f32.mrf.mxu0
      %v4258 = vadd.f32 %v3754, %v4257
      %v4259 = vpop.f32.mrf.mxu0
      %4260 = vmatprep.mubr.bf16.mxu0 %v3256
      %4261 = vmatmul.mubr.bf16.gmra.mxu0 %v3208
      %v4262 = vpop.f32.mrf.mxu0
      %v4263 = vadd.f32 %v3754, %v4262
      %v4264 = vpop.f32.mrf.mxu0
      %v4265 = vpop.f32.mrf.mxu0
      %v4266 = vadd.f32 %v3754, %v4265
      %v4267 = vpop.f32.mrf.mxu0
      %4268 = vmatprep.mubr.bf16.mxu0 %v3257
      %4269 = vmatmul.mubr.bf16.gmra.mxu0 %v3209
      %v4270 = vpop.f32.mrf.mxu0
      %v4271 = vadd.f32 %v3754, %v4270
      %v4272 = vpop.f32.mrf.mxu0
      %v4273 = vpop.f32.mrf.mxu0
      %v4274 = vadd.f32 %v3754, %v4273
      %v4275 = vpop.f32.mrf.mxu0
      %4276 = vmatprep.mubr.bf16.mxu0 %v3258
      %4277 = vmatmul.mubr.bf16.gmra.mxu0 %v3210
      %v4278 = vpop.f32.mrf.mxu0
      %v4279 = vadd.f32 %v3754, %v4278
      %v4280 = vpop.f32.mrf.mxu0
      %v4281 = vpop.f32.mrf.mxu0
      %v4282 = vadd.f32 %v3754, %v4281
      %v4283 = vpop.f32.mrf.mxu0
      %4284 = vmatprep.mubr.bf16.mxu0 %v3259
      %4285 = vmatmul.mubr.bf16.gmra.mxu0 %v3211
      %v4286 = vpop.f32.mrf.mxu0
      %v4287 = vadd.f32 %v3754, %v4286
      %v4288 = vpop.f32.mrf.mxu0
      %v4289 = vpop.f32.mrf.mxu0
      %v4290 = vadd.f32 %v3754, %v4289
      %v4291 = vpop.f32.mrf.mxu0
      %4292 = vmatprep.mubr.bf16.mxu0 %v3260
      %4293 = vmatmul.mubr.bf16.gmra.mxu0 %v3212
      %v4294 = vpop.f32.mrf.mxu0
      %v4295 = vadd.f32 %v3754, %v4294
      %v4296 = vpop.f32.mrf.mxu0
      %v4297 = vpop.f32.mrf.mxu0
      %v4298 = vadd.f32 %v3754, %v4297
      %v4299 = vpop.f32.mrf.mxu0
      %4300 = vmatprep.mubr.bf16.mxu0 %v3261
      %4301 = vmatmul.mubr.bf16.gmra.mxu0 %v3213
      %v4302 = vpop.f32.mrf.mxu0
      %v4303 = vadd.f32 %v3754, %v4302
      %v4304 = vpop.f32.mrf.mxu0
      %v4305 = vpop.f32.mrf.mxu0
      %v4306 = vadd.f32 %v3754, %v4305
      %v4307 = vpop.f32.mrf.mxu0
      %4308 = vmatprep.mubr.bf16.mxu0 %v3262
      %4309 = vmatmul.mubr.bf16.gmra.mxu0 %v3214
      %v4310 = vpop.f32.mrf.mxu0
      %v4311 = vadd.f32 %v3754, %v4310
      %v4312 = vpop.f32.mrf.mxu0
      %v4313 = vpop.f32.mrf.mxu0
      %v4314 = vadd.f32 %v3754, %v4313
      %v4315 = vpop.f32.mrf.mxu0
      %4316 = vmatprep.mubr.bf16.mxu0 %v3263
      %4317 = vmatmul.mubr.bf16.gmra.mxu0 %v3215
      %v4318 = vpop.f32.mrf.mxu0
      %v4319 = vadd.f32 %v3754, %v4318
      %v4320 = vpop.f32.mrf.mxu0
      %v4321 = vpop.f32.mrf.mxu0
      %v4322 = vadd.f32 %v3754, %v4321
      %v4323 = vpop.f32.mrf.mxu0
      %4324 = vmatprep.mubr.bf16.mxu0 %v3264
      %4325 = vmatmul.mubr.bf16.gmra.mxu0 %v3216
      %v4326 = vpop.f32.mrf.mxu0
      %v4327 = vadd.f32 %v3754, %v4326
      %v4328 = vpop.f32.mrf.mxu0
      %v4329 = vpop.f32.mrf.mxu0
      %v4330 = vadd.f32 %v3754, %v4329
      %v4331 = vpop.f32.mrf.mxu0
      %4332 = vmatprep.mubr.bf16.mxu0 %v3265
      %4333 = vmatmul.mubr.bf16.gmra.mxu0 %v3217
      %v4334 = vpop.f32.mrf.mxu0
      %v4335 = vadd.f32 %v3754, %v4334
      %v4336 = vpop.f32.mrf.mxu0
      %v4337 = vpop.f32.mrf.mxu0
      %v4338 = vadd.f32 %v3754, %v4337
      %v4339 = vpop.f32.mrf.mxu0
      %4340 = vmatprep.mubr.bf16.mxu0 %v3266
      %4341 = vmatmul.mubr.bf16.gmra.mxu0 %v3218
      %v4342 = vpop.f32.mrf.mxu0
      %v4343 = vadd.f32 %v3754, %v4342
      %v4344 = vpop.f32.mrf.mxu0
      %v4345 = vpop.f32.mrf.mxu0
      %v4346 = vadd.f32 %v3754, %v4345
      %v4347 = vpop.f32.mrf.mxu0
      %4348 = vdwg.mxu0
      %4349 = vmatprep.subr.bf16.mxu0 0
      %4350 = vmatpush1.bf16.msra.mxu0 %v4067
      %4351 = vmatprep.subr.bf16.mxu0 0
      %4352 = vmatpush1.bf16.msra.mxu0 %v4066
      %4353 = vmatprep.subr.bf16.mxu0 0
      %4354 = vmatpush1.bf16.msra.mxu0 %v4065
      %4355 = vmatprep.subr.bf16.mxu0 0
      %4356 = vmatpush1.bf16.msra.mxu0 %v4064
      %4357 = vmatprep.subr.bf16.mxu0 0
      %4358 = vmatpush1.bf16.msra.mxu0 %v4063
      %4359 = vmatprep.subr.bf16.mxu0 0
      %4360 = vmatpush1.bf16.msra.mxu0 %v4062
      %4361 = vmatprep.subr.bf16.mxu0 0
      %4362 = vmatpush1.bf16.msra.mxu0 %v4061
      %4363 = vmatprep.subr.bf16.mxu0 0
      %4364 = vmatpush1.bf16.msra.mxu0 %v4060
      %4365 = vmatprep.subr.bf16.mxu0 0
      %4366 = vmatpush2.bf16.msra.mxu0 %v4075
      %4367 = vmatprep.subr.bf16.mxu0 0
      %4368 = vmatpush2.bf16.msra.mxu0 %v4074
      %4369 = vmatprep.subr.bf16.mxu0 0
      %4370 = vmatpush2.bf16.msra.mxu0 %v4073
      %4371 = vmatprep.subr.bf16.mxu0 0
      %4372 = vmatpush2.bf16.msra.mxu0 %v4072
      %4373 = vmatprep.subr.bf16.mxu0 0
      %4374 = vmatpush2.bf16.msra.mxu0 %v4071
      %4375 = vmatprep.subr.bf16.mxu0 0
      %4376 = vmatpush2.bf16.msra.mxu0 %v4070
      %4377 = vmatprep.subr.bf16.mxu0 0
      %4378 = vmatpush2.bf16.msra.mxu0 %v4069
      %4379 = vmatprep.subr.bf16.mxu0 0
      %4380 = vmatpush2.bf16.msra.mxu0 %v4068
      %4381 = vmatprep.mubr.bf16.mxu0 %v3347
      %4382 = vmatmul.mubr.bf16.gmra.mxu0 %v3299
      %v4383 = vpop.f32.mrf.mxu0
      %v4384 = vadd.f32 %v4223, %v4383
      %v4385 = vpop.f32.mrf.mxu0
      %v4386 = vpop.f32.mrf.mxu0
      %v4387 = vadd.f32 %v4226, %v4386
      %v4388 = vpop.f32.mrf.mxu0
      %4389 = vmatprep.mubr.bf16.mxu0 %v3348
      %4390 = vmatmul.mubr.bf16.gmra.mxu0 %v3300
      %v4391 = vpop.f32.mrf.mxu0
      %v4392 = vadd.f32 %v4231, %v4391
      %v4393 = vpop.f32.mrf.mxu0
      %v4394 = vpop.f32.mrf.mxu0
      %v4395 = vadd.f32 %v4234, %v4394
      %v4396 = vpop.f32.mrf.mxu0
      %4397 = vmatprep.mubr.bf16.mxu0 %v3349
      %4398 = vmatmul.mubr.bf16.gmra.mxu0 %v3301
      %v4399 = vpop.f32.mrf.mxu0
      %v4400 = vadd.f32 %v4239, %v4399
      %v4401 = vpop.f32.mrf.mxu0
      %v4402 = vpop.f32.mrf.mxu0
      %v4403 = vadd.f32 %v4242, %v4402
      %v4404 = vpop.f32.mrf.mxu0
      %4405 = vmatprep.mubr.bf16.mxu0 %v3350
      %4406 = vmatmul.mubr.bf16.gmra.mxu0 %v3302
      %v4407 = vpop.f32.mrf.mxu0
      %v4408 = vadd.f32 %v4247, %v4407
      %v4409 = vpop.f32.mrf.mxu0
      %v4410 = vpop.f32.mrf.mxu0
      %v4411 = vadd.f32 %v4250, %v4410
      %v4412 = vpop.f32.mrf.mxu0
      %4413 = vmatprep.mubr.bf16.mxu0 %v3351
      %4414 = vmatmul.mubr.bf16.gmra.mxu0 %v3303
      %v4415 = vpop.f32.mrf.mxu0
      %v4416 = vadd.f32 %v4255, %v4415
      %v4417 = vpop.f32.mrf.mxu0
      %v4418 = vpop.f32.mrf.mxu0
      %v4419 = vadd.f32 %v4258, %v4418
      %v4420 = vpop.f32.mrf.mxu0
      %4421 = vmatprep.mubr.bf16.mxu0 %v3352
      %4422 = vmatmul.mubr.bf16.gmra.mxu0 %v3304
      %v4423 = vpop.f32.mrf.mxu0
      %v4424 = vadd.f32 %v4263, %v4423
      %v4425 = vpop.f32.mrf.mxu0
      %v4426 = vpop.f32.mrf.mxu0
      %v4427 = vadd.f32 %v4266, %v4426
      %v4428 = vpop.f32.mrf.mxu0
      %4429 = vmatprep.mubr.bf16.mxu0 %v3353
      %4430 = vmatmul.mubr.bf16.gmra.mxu0 %v3305
      %v4431 = vpop.f32.mrf.mxu0
      %v4432 = vadd.f32 %v4271, %v4431
      %v4433 = vpop.f32.mrf.mxu0
      %v4434 = vpop.f32.mrf.mxu0
      %v4435 = vadd.f32 %v4274, %v4434
      %v4436 = vpop.f32.mrf.mxu0
      %4437 = vmatprep.mubr.bf16.mxu0 %v3354
      %4438 = vmatmul.mubr.bf16.gmra.mxu0 %v3306
      %v4439 = vpop.f32.mrf.mxu0
      %v4440 = vadd.f32 %v4279, %v4439
      %v4441 = vpop.f32.mrf.mxu0
      %v4442 = vpop.f32.mrf.mxu0
      %v4443 = vadd.f32 %v4282, %v4442
      %v4444 = vpop.f32.mrf.mxu0
      %4445 = vmatprep.mubr.bf16.mxu0 %v3355
      %4446 = vmatmul.mubr.bf16.gmra.mxu0 %v3307
      %v4447 = vpop.f32.mrf.mxu0
      %v4448 = vadd.f32 %v4287, %v4447
      %v4449 = vpop.f32.mrf.mxu0
      %v4450 = vpop.f32.mrf.mxu0
      %v4451 = vadd.f32 %v4290, %v4450
      %v4452 = vpop.f32.mrf.mxu0
      %4453 = vmatprep.mubr.bf16.mxu0 %v3356
      %4454 = vmatmul.mubr.bf16.gmra.mxu0 %v3308
      %v4455 = vpop.f32.mrf.mxu0
      %v4456 = vadd.f32 %v4295, %v4455
      %v4457 = vpop.f32.mrf.mxu0
      %v4458 = vpop.f32.mrf.mxu0
      %v4459 = vadd.f32 %v4298, %v4458
      %v4460 = vpop.f32.mrf.mxu0
      %4461 = vmatprep.mubr.bf16.mxu0 %v3357
      %4462 = vmatmul.mubr.bf16.gmra.mxu0 %v3309
      %v4463 = vpop.f32.mrf.mxu0
      %v4464 = vadd.f32 %v4303, %v4463
      %v4465 = vpop.f32.mrf.mxu0
      %v4466 = vpop.f32.mrf.mxu0
      %v4467 = vadd.f32 %v4306, %v4466
      %v4468 = vpop.f32.mrf.mxu0
      %4469 = vmatprep.mubr.bf16.mxu0 %v3358
      %4470 = vmatmul.mubr.bf16.gmra.mxu0 %v3310
      %v4471 = vpop.f32.mrf.mxu0
      %v4472 = vadd.f32 %v4311, %v4471
      %v4473 = vpop.f32.mrf.mxu0
      %v4474 = vpop.f32.mrf.mxu0
      %v4475 = vadd.f32 %v4314, %v4474
      %v4476 = vpop.f32.mrf.mxu0
      %4477 = vmatprep.mubr.bf16.mxu0 %v3359
      %4478 = vmatmul.mubr.bf16.gmra.mxu0 %v3311
      %v4479 = vpop.f32.mrf.mxu0
      %v4480 = vadd.f32 %v4319, %v4479
      %v4481 = vpop.f32.mrf.mxu0
      %v4482 = vpop.f32.mrf.mxu0
      %v4483 = vadd.f32 %v4322, %v4482
      %v4484 = vpop.f32.mrf.mxu0
      %4485 = vmatprep.mubr.bf16.mxu0 %v3360
      %4486 = vmatmul.mubr.bf16.gmra.mxu0 %v3312
      %v4487 = vpop.f32.mrf.mxu0
      %v4488 = vadd.f32 %v4327, %v4487
      %v4489 = vpop.f32.mrf.mxu0
      %v4490 = vpop.f32.mrf.mxu0
      %v4491 = vadd.f32 %v4330, %v4490
      %v4492 = vpop.f32.mrf.mxu0
      %4493 = vmatprep.mubr.bf16.mxu0 %v3361
      %4494 = vmatmul.mubr.bf16.gmra.mxu0 %v3313
      %v4495 = vpop.f32.mrf.mxu0
      %v4496 = vadd.f32 %v4335, %v4495
      %v4497 = vpop.f32.mrf.mxu0
      %v4498 = vpop.f32.mrf.mxu0
      %v4499 = vadd.f32 %v4338, %v4498
      %v4500 = vpop.f32.mrf.mxu0
      %4501 = vmatprep.mubr.bf16.mxu0 %v3362
      %4502 = vmatmul.mubr.bf16.gmra.mxu0 %v3314
      %v4503 = vpop.f32.mrf.mxu0
      %v4504 = vadd.f32 %v4343, %v4503
      %v4505 = vpop.f32.mrf.mxu0
      %v4506 = vpop.f32.mrf.mxu0
      %v4507 = vadd.f32 %v4346, %v4506
      %v4508 = vpop.f32.mrf.mxu0
      %4509 = vdwg.mxu0
      %4510 = vmatprep.subr.bf16.mxu0 0
      %4511 = vmatpush1.bf16.msra.mxu0 %v4083
      %4512 = vmatprep.subr.bf16.mxu0 0
      %4513 = vmatpush1.bf16.msra.mxu0 %v4082
      %4514 = vmatprep.subr.bf16.mxu0 0
      %4515 = vmatpush1.bf16.msra.mxu0 %v4081
      %4516 = vmatprep.subr.bf16.mxu0 0
      %4517 = vmatpush1.bf16.msra.mxu0 %v4080
      %4518 = vmatprep.subr.bf16.mxu0 0
      %4519 = vmatpush1.bf16.msra.mxu0 %v4079
      %4520 = vmatprep.subr.bf16.mxu0 0
      %4521 = vmatpush1.bf16.msra.mxu0 %v4078
      %4522 = vmatprep.subr.bf16.mxu0 0
      %4523 = vmatpush1.bf16.msra.mxu0 %v4077
      %4524 = vmatprep.subr.bf16.mxu0 0
      %4525 = vmatpush1.bf16.msra.mxu0 %v4076
      %4526 = vmatprep.subr.bf16.mxu0 0
      %4527 = vmatpush2.bf16.msra.mxu0 %v4091
      %4528 = vmatprep.subr.bf16.mxu0 0
      %4529 = vmatpush2.bf16.msra.mxu0 %v4090
      %4530 = vmatprep.subr.bf16.mxu0 0
      %4531 = vmatpush2.bf16.msra.mxu0 %v4089
      %4532 = vmatprep.subr.bf16.mxu0 0
      %4533 = vmatpush2.bf16.msra.mxu0 %v4088
      %4534 = vmatprep.subr.bf16.mxu0 0
      %4535 = vmatpush2.bf16.msra.mxu0 %v4087
      %4536 = vmatprep.subr.bf16.mxu0 0
      %4537 = vmatpush2.bf16.msra.mxu0 %v4086
      %4538 = vmatprep.subr.bf16.mxu0 0
      %4539 = vmatpush2.bf16.msra.mxu0 %v4085
      %4540 = vmatprep.subr.bf16.mxu0 0
      %4541 = vmatpush2.bf16.msra.mxu0 %v4084
      %4542 = vmatprep.mubr.bf16.mxu0 %v3443
      %4543 = vmatmul.mubr.bf16.gmra.mxu0 %v3395
      %v4544 = vpop.f32.mrf.mxu0
      %v4545 = vadd.f32 %v4384, %v4544
      %v4546 = vpop.f32.mrf.mxu0
      %v4547 = vpop.f32.mrf.mxu0
      %v4548 = vadd.f32 %v4387, %v4547
      %v4549 = vpop.f32.mrf.mxu0
      %4550 = vmatprep.mubr.bf16.mxu0 %v3444
      %4551 = vmatmul.mubr.bf16.gmra.mxu0 %v3396
      %v4552 = vpop.f32.mrf.mxu0
      %v4553 = vadd.f32 %v4392, %v4552
      %v4554 = vpop.f32.mrf.mxu0
      %v4555 = vpop.f32.mrf.mxu0
      %v4556 = vadd.f32 %v4395, %v4555
      %v4557 = vpop.f32.mrf.mxu0
      %4558 = vmatprep.mubr.bf16.mxu0 %v3445
      %4559 = vmatmul.mubr.bf16.gmra.mxu0 %v3397
      %v4560 = vpop.f32.mrf.mxu0
      %v4561 = vadd.f32 %v4400, %v4560
      %v4562 = vpop.f32.mrf.mxu0
      %v4563 = vpop.f32.mrf.mxu0
      %v4564 = vadd.f32 %v4403, %v4563
      %v4565 = vpop.f32.mrf.mxu0
      %4566 = vmatprep.mubr.bf16.mxu0 %v3446
      %4567 = vmatmul.mubr.bf16.gmra.mxu0 %v3398
      %v4568 = vpop.f32.mrf.mxu0
      %v4569 = vadd.f32 %v4408, %v4568
      %v4570 = vpop.f32.mrf.mxu0
      %v4571 = vpop.f32.mrf.mxu0
      %v4572 = vadd.f32 %v4411, %v4571
      %v4573 = vpop.f32.mrf.mxu0
      %4574 = vmatprep.mubr.bf16.mxu0 %v3447
      %4575 = vmatmul.mubr.bf16.gmra.mxu0 %v3399
      %v4576 = vpop.f32.mrf.mxu0
      %v4577 = vadd.f32 %v4416, %v4576
      %v4578 = vpop.f32.mrf.mxu0
      %v4579 = vpop.f32.mrf.mxu0
      %v4580 = vadd.f32 %v4419, %v4579
      %v4581 = vpop.f32.mrf.mxu0
      %4582 = vmatprep.mubr.bf16.mxu0 %v3448
      %4583 = vmatmul.mubr.bf16.gmra.mxu0 %v3400
      %v4584 = vpop.f32.mrf.mxu0
      %v4585 = vadd.f32 %v4424, %v4584
      %v4586 = vpop.f32.mrf.mxu0
      %v4587 = vpop.f32.mrf.mxu0
      %v4588 = vadd.f32 %v4427, %v4587
      %v4589 = vpop.f32.mrf.mxu0
      %4590 = vmatprep.mubr.bf16.mxu0 %v3449
      %4591 = vmatmul.mubr.bf16.gmra.mxu0 %v3401
      %v4592 = vpop.f32.mrf.mxu0
      %v4593 = vadd.f32 %v4432, %v4592
      %v4594 = vpop.f32.mrf.mxu0
      %v4595 = vpop.f32.mrf.mxu0
      %v4596 = vadd.f32 %v4435, %v4595
      %v4597 = vpop.f32.mrf.mxu0
      %4598 = vmatprep.mubr.bf16.mxu0 %v3450
      %4599 = vmatmul.mubr.bf16.gmra.mxu0 %v3402
      %v4600 = vpop.f32.mrf.mxu0
      %v4601 = vadd.f32 %v4440, %v4600
      %v4602 = vpop.f32.mrf.mxu0
      %v4603 = vpop.f32.mrf.mxu0
      %v4604 = vadd.f32 %v4443, %v4603
      %v4605 = vpop.f32.mrf.mxu0
      %4606 = vmatprep.mubr.bf16.mxu0 %v3451
      %4607 = vmatmul.mubr.bf16.gmra.mxu0 %v3403
      %v4608 = vpop.f32.mrf.mxu0
      %v4609 = vadd.f32 %v4448, %v4608
      %v4610 = vpop.f32.mrf.mxu0
      %v4611 = vpop.f32.mrf.mxu0
      %v4612 = vadd.f32 %v4451, %v4611
      %v4613 = vpop.f32.mrf.mxu0
      %4614 = vmatprep.mubr.bf16.mxu0 %v3452
      %4615 = vmatmul.mubr.bf16.gmra.mxu0 %v3404
      %v4616 = vpop.f32.mrf.mxu0
      %v4617 = vadd.f32 %v4456, %v4616
      %v4618 = vpop.f32.mrf.mxu0
      %v4619 = vpop.f32.mrf.mxu0
      %v4620 = vadd.f32 %v4459, %v4619
      %v4621 = vpop.f32.mrf.mxu0
      %4622 = vmatprep.mubr.bf16.mxu0 %v3453
      %4623 = vmatmul.mubr.bf16.gmra.mxu0 %v3405
      %v4624 = vpop.f32.mrf.mxu0
      %v4625 = vadd.f32 %v4464, %v4624
      %v4626 = vpop.f32.mrf.mxu0
      %v4627 = vpop.f32.mrf.mxu0
      %v4628 = vadd.f32 %v4467, %v4627
      %v4629 = vpop.f32.mrf.mxu0
      %4630 = vmatprep.mubr.bf16.mxu0 %v3454
      %4631 = vmatmul.mubr.bf16.gmra.mxu0 %v3406
      %v4632 = vpop.f32.mrf.mxu0
      %v4633 = vadd.f32 %v4472, %v4632
      %v4634 = vpop.f32.mrf.mxu0
      %v4635 = vpop.f32.mrf.mxu0
      %v4636 = vadd.f32 %v4475, %v4635
      %v4637 = vpop.f32.mrf.mxu0
      %4638 = vmatprep.mubr.bf16.mxu0 %v3455
      %4639 = vmatmul.mubr.bf16.gmra.mxu0 %v3407
      %v4640 = vpop.f32.mrf.mxu0
      %v4641 = vadd.f32 %v4480, %v4640
      %v4642 = vpop.f32.mrf.mxu0
      %v4643 = vpop.f32.mrf.mxu0
      %v4644 = vadd.f32 %v4483, %v4643
      %v4645 = vpop.f32.mrf.mxu0
      %4646 = vmatprep.mubr.bf16.mxu0 %v3456
      %4647 = vmatmul.mubr.bf16.gmra.mxu0 %v3408
      %v4648 = vpop.f32.mrf.mxu0
      %v4649 = vadd.f32 %v4488, %v4648
      %v4650 = vpop.f32.mrf.mxu0
      %v4651 = vpop.f32.mrf.mxu0
      %v4652 = vadd.f32 %v4491, %v4651
      %v4653 = vpop.f32.mrf.mxu0
      %4654 = vmatprep.mubr.bf16.mxu0 %v3457
      %4655 = vmatmul.mubr.bf16.gmra.mxu0 %v3409
      %v4656 = vpop.f32.mrf.mxu0
      %v4657 = vadd.f32 %v4496, %v4656
      %v4658 = vpop.f32.mrf.mxu0
      %v4659 = vpop.f32.mrf.mxu0
      %v4660 = vadd.f32 %v4499, %v4659
      %v4661 = vpop.f32.mrf.mxu0
      %4662 = vmatprep.mubr.bf16.mxu0 %v3458
      %4663 = vmatmul.mubr.bf16.gmra.mxu0 %v3410
      %v4664 = vpop.f32.mrf.mxu0
      %v4665 = vadd.f32 %v4504, %v4664
      %v4666 = vpop.f32.mrf.mxu0
      %v4667 = vpop.f32.mrf.mxu0
      %v4668 = vadd.f32 %v4507, %v4667
      %v4669 = vpop.f32.mrf.mxu0
      %4670 = vdwg.mxu0
      %4671 = vmatprep.subr.bf16.mxu0 0
      %4672 = vmatpush1.bf16.msra.mxu0 %v4099
      %4673 = vmatprep.subr.bf16.mxu0 0
      %4674 = vmatpush1.bf16.msra.mxu0 %v4098
      %4675 = vmatprep.subr.bf16.mxu0 0
      %4676 = vmatpush1.bf16.msra.mxu0 %v4097
      %4677 = vmatprep.subr.bf16.mxu0 0
      %4678 = vmatpush1.bf16.msra.mxu0 %v4096
      %4679 = vmatprep.subr.bf16.mxu0 0
      %4680 = vmatpush1.bf16.msra.mxu0 %v4095
      %4681 = vmatprep.subr.bf16.mxu0 0
      %4682 = vmatpush1.bf16.msra.mxu0 %v4094
      %4683 = vmatprep.subr.bf16.mxu0 0
      %4684 = vmatpush1.bf16.msra.mxu0 %v4093
      %4685 = vmatprep.subr.bf16.mxu0 0
      %4686 = vmatpush1.bf16.msra.mxu0 %v4092
      %4687 = vmatprep.subr.bf16.mxu0 0
      %4688 = vmatpush2.bf16.msra.mxu0 %v4107
      %4689 = vmatprep.subr.bf16.mxu0 0
      %4690 = vmatpush2.bf16.msra.mxu0 %v4106
      %4691 = vmatprep.subr.bf16.mxu0 0
      %4692 = vmatpush2.bf16.msra.mxu0 %v4105
      %4693 = vmatprep.subr.bf16.mxu0 0
      %4694 = vmatpush2.bf16.msra.mxu0 %v4104
      %4695 = vmatprep.subr.bf16.mxu0 0
      %4696 = vmatpush2.bf16.msra.mxu0 %v4103
      %4697 = vmatprep.subr.bf16.mxu0 0
      %4698 = vmatpush2.bf16.msra.mxu0 %v4102
      %4699 = vmatprep.subr.bf16.mxu0 0
      %4700 = vmatpush2.bf16.msra.mxu0 %v4101
      %4701 = vmatprep.subr.bf16.mxu0 0
      %4702 = vmatpush2.bf16.msra.mxu0 %v4100
      %4703 = vmatprep.mubr.bf16.mxu0 %v3539
      %4704 = vmatmul.mubr.bf16.gmra.mxu0 %v3491
      %v4705 = vpop.f32.mrf.mxu0
      %v4706 = vadd.f32 %v4545, %v4705
      %v4707 = vpop.f32.mrf.mxu0
      %v4708 = vpop.f32.mrf.mxu0
      %v4709 = vadd.f32 %v4548, %v4708
      %v4710 = vpop.f32.mrf.mxu0
      %4711 = vmatprep.mubr.bf16.mxu0 %v3540
      %4712 = vmatmul.mubr.bf16.gmra.mxu0 %v3492
      %v4713 = vpop.f32.mrf.mxu0
      %v4714 = vadd.f32 %v4553, %v4713
      %v4715 = vpop.f32.mrf.mxu0
      %v4716 = vpop.f32.mrf.mxu0
      %v4717 = vadd.f32 %v4556, %v4716
      %v4718 = vpop.f32.mrf.mxu0
      %4719 = vmatprep.mubr.bf16.mxu0 %v3541
      %4720 = vmatmul.mubr.bf16.gmra.mxu0 %v3493
      %v4721 = vpop.f32.mrf.mxu0
      %v4722 = vadd.f32 %v4561, %v4721
      %v4723 = vpop.f32.mrf.mxu0
      %v4724 = vpop.f32.mrf.mxu0
      %v4725 = vadd.f32 %v4564, %v4724
      %v4726 = vpop.f32.mrf.mxu0
      %4727 = vmatprep.mubr.bf16.mxu0 %v3542
      %4728 = vmatmul.mubr.bf16.gmra.mxu0 %v3494
      %v4729 = vpop.f32.mrf.mxu0
      %v4730 = vadd.f32 %v4569, %v4729
      %v4731 = vpop.f32.mrf.mxu0
      %v4732 = vpop.f32.mrf.mxu0
      %v4733 = vadd.f32 %v4572, %v4732
      %v4734 = vpop.f32.mrf.mxu0
      %4735 = vmatprep.mubr.bf16.mxu0 %v3543
      %4736 = vmatmul.mubr.bf16.gmra.mxu0 %v3495
      %v4737 = vpop.f32.mrf.mxu0
      %v4738 = vadd.f32 %v4577, %v4737
      %v4739 = vpop.f32.mrf.mxu0
      %v4740 = vpop.f32.mrf.mxu0
      %v4741 = vadd.f32 %v4580, %v4740
      %v4742 = vpop.f32.mrf.mxu0
      %4743 = vmatprep.mubr.bf16.mxu0 %v3544
      %4744 = vmatmul.mubr.bf16.gmra.mxu0 %v3496
      %v4745 = vpop.f32.mrf.mxu0
      %v4746 = vadd.f32 %v4585, %v4745
      %v4747 = vpop.f32.mrf.mxu0
      %v4748 = vpop.f32.mrf.mxu0
      %v4749 = vadd.f32 %v4588, %v4748
      %v4750 = vpop.f32.mrf.mxu0
      %4751 = vmatprep.mubr.bf16.mxu0 %v3545
      %4752 = vmatmul.mubr.bf16.gmra.mxu0 %v3497
      %v4753 = vpop.f32.mrf.mxu0
      %v4754 = vadd.f32 %v4593, %v4753
      %v4755 = vpop.f32.mrf.mxu0
      %v4756 = vpop.f32.mrf.mxu0
      %v4757 = vadd.f32 %v4596, %v4756
      %v4758 = vpop.f32.mrf.mxu0
      %4759 = vmatprep.mubr.bf16.mxu0 %v3546
      %4760 = vmatmul.mubr.bf16.gmra.mxu0 %v3498
      %v4761 = vpop.f32.mrf.mxu0
      %v4762 = vadd.f32 %v4601, %v4761
      %v4763 = vpop.f32.mrf.mxu0
      %v4764 = vpop.f32.mrf.mxu0
      %v4765 = vadd.f32 %v4604, %v4764
      %v4766 = vpop.f32.mrf.mxu0
      %4767 = vmatprep.mubr.bf16.mxu0 %v3547
      %4768 = vmatmul.mubr.bf16.gmra.mxu0 %v3499
      %v4769 = vpop.f32.mrf.mxu0
      %v4770 = vadd.f32 %v4609, %v4769
      %v4771 = vpop.f32.mrf.mxu0
      %v4772 = vpop.f32.mrf.mxu0
      %v4773 = vadd.f32 %v4612, %v4772
      %v4774 = vpop.f32.mrf.mxu0
      %4775 = vmatprep.mubr.bf16.mxu0 %v3548
      %4776 = vmatmul.mubr.bf16.gmra.mxu0 %v3500
      %v4777 = vpop.f32.mrf.mxu0
      %v4778 = vadd.f32 %v4617, %v4777
      %v4779 = vpop.f32.mrf.mxu0
      %v4780 = vpop.f32.mrf.mxu0
      %v4781 = vadd.f32 %v4620, %v4780
      %v4782 = vpop.f32.mrf.mxu0
      %4783 = vmatprep.mubr.bf16.mxu0 %v3549
      %4784 = vmatmul.mubr.bf16.gmra.mxu0 %v3501
      %v4785 = vpop.f32.mrf.mxu0
      %v4786 = vadd.f32 %v4625, %v4785
      %v4787 = vpop.f32.mrf.mxu0
      %v4788 = vpop.f32.mrf.mxu0
      %v4789 = vadd.f32 %v4628, %v4788
      %v4790 = vpop.f32.mrf.mxu0
      %4791 = vmatprep.mubr.bf16.mxu0 %v3550
      %4792 = vmatmul.mubr.bf16.gmra.mxu0 %v3502
      %v4793 = vpop.f32.mrf.mxu0
      %v4794 = vadd.f32 %v4633, %v4793
      %v4795 = vpop.f32.mrf.mxu0
      %v4796 = vpop.f32.mrf.mxu0
      %v4797 = vadd.f32 %v4636, %v4796
      %v4798 = vpop.f32.mrf.mxu0
      %4799 = vmatprep.mubr.bf16.mxu0 %v3551
      %4800 = vmatmul.mubr.bf16.gmra.mxu0 %v3503
      %v4801 = vpop.f32.mrf.mxu0
      %v4802 = vadd.f32 %v4641, %v4801
      %v4803 = vpop.f32.mrf.mxu0
      %v4804 = vpop.f32.mrf.mxu0
      %v4805 = vadd.f32 %v4644, %v4804
      %v4806 = vpop.f32.mrf.mxu0
      %4807 = vmatprep.mubr.bf16.mxu0 %v3552
      %4808 = vmatmul.mubr.bf16.gmra.mxu0 %v3504
      %v4809 = vpop.f32.mrf.mxu0
      %v4810 = vadd.f32 %v4649, %v4809
      %v4811 = vpop.f32.mrf.mxu0
      %v4812 = vpop.f32.mrf.mxu0
      %v4813 = vadd.f32 %v4652, %v4812
      %v4814 = vpop.f32.mrf.mxu0
      %4815 = vmatprep.mubr.bf16.mxu0 %v3553
      %4816 = vmatmul.mubr.bf16.gmra.mxu0 %v3505
      %v4817 = vpop.f32.mrf.mxu0
      %v4818 = vadd.f32 %v4657, %v4817
      %v4819 = vpop.f32.mrf.mxu0
      %v4820 = vpop.f32.mrf.mxu0
      %v4821 = vadd.f32 %v4660, %v4820
      %v4822 = vpop.f32.mrf.mxu0
      %4823 = vmatprep.mubr.bf16.mxu0 %v3554
      %4824 = vmatmul.mubr.bf16.gmra.mxu0 %v3506
      %v4825 = vpop.f32.mrf.mxu0
      %v4826 = vadd.f32 %v4665, %v4825
      %v4827 = vpop.f32.mrf.mxu0
      %v4828 = vpop.f32.mrf.mxu0
      %v4829 = vadd.f32 %v4668, %v4828
      %v4830 = vpop.f32.mrf.mxu0
      %4831 = vdwg.mxu0
      %4832 = vmatprep.subr.bf16.mxu0 0
      %4833 = vmatpush1.bf16.msra.mxu0 %v4115
      %4834 = vmatprep.subr.bf16.mxu0 0
      %4835 = vmatpush1.bf16.msra.mxu0 %v4114
      %4836 = vmatprep.subr.bf16.mxu0 0
      %4837 = vmatpush1.bf16.msra.mxu0 %v4113
      %4838 = vmatprep.subr.bf16.mxu0 0
      %4839 = vmatpush1.bf16.msra.mxu0 %v4112
      %4840 = vmatprep.subr.bf16.mxu0 0
      %4841 = vmatpush1.bf16.msra.mxu0 %v4111
      %4842 = vmatprep.subr.bf16.mxu0 0
      %4843 = vmatpush1.bf16.msra.mxu0 %v4110
      %4844 = vmatprep.subr.bf16.mxu0 0
      %4845 = vmatpush1.bf16.msra.mxu0 %v4109
      %4846 = vmatprep.subr.bf16.mxu0 0
      %4847 = vmatpush1.bf16.msra.mxu0 %v4108
      %4848 = vmatprep.subr.bf16.mxu0 0
      %4849 = vmatpush2.bf16.msra.mxu0 0
      %4850 = vmatprep.subr.bf16.mxu0 0
      %4851 = vmatpush2.bf16.msra.mxu0 0
      %4852 = vmatprep.subr.bf16.mxu0 0
      %4853 = vmatpush2.bf16.msra.mxu0 0
      %4854 = vmatprep.subr.bf16.mxu0 0
      %4855 = vmatpush2.bf16.msra.mxu0 0
      %4856 = vmatprep.subr.bf16.mxu0 0
      %4857 = vmatpush2.bf16.msra.mxu0 0
      %4858 = vmatprep.subr.bf16.mxu0 0
      %4859 = vmatpush2.bf16.msra.mxu0 0
      %4860 = vmatprep.subr.bf16.mxu0 0
      %4861 = vmatpush2.bf16.msra.mxu0 0
      %4862 = vmatprep.subr.bf16.mxu0 0
      %4863 = vmatpush2.bf16.msra.mxu0 0
      %4864 = vmatprep.mubr.bf16.mxu0 0
      %4865 = vmatmul.mubr.bf16.gmra.mxu0 %v3587
      %v4866 = vpop.f32.mrf.mxu0
      %v4867 = vadd.f32 %v4706, %v4866
      %v4868 = vpop.f32.mrf.mxu0
      %v4869 = vpop.f32.mrf.mxu0
      %v4870 = vadd.f32 %v4709, %v4869
      %v4871 = vpop.f32.mrf.mxu0
      %4872 = vmatprep.mubr.bf16.mxu0 0
      %4873 = vmatmul.mubr.bf16.gmra.mxu0 %v3588
      %v4874 = vpop.f32.mrf.mxu0
      %v4875 = vadd.f32 %v4714, %v4874
      %v4876 = vpop.f32.mrf.mxu0
      %v4877 = vpop.f32.mrf.mxu0
      %v4878 = vadd.f32 %v4717, %v4877
      %v4879 = vpop.f32.mrf.mxu0
      %4880 = vmatprep.mubr.bf16.mxu0 0
      %4881 = vmatmul.mubr.bf16.gmra.mxu0 %v3589
      %v4882 = vpop.f32.mrf.mxu0
      %v4883 = vadd.f32 %v4722, %v4882
      %v4884 = vpop.f32.mrf.mxu0
      %v4885 = vpop.f32.mrf.mxu0
      %v4886 = vadd.f32 %v4725, %v4885
      %v4887 = vpop.f32.mrf.mxu0
      %4888 = vmatprep.mubr.bf16.mxu0 0
      %4889 = vmatmul.mubr.bf16.gmra.mxu0 %v3590
      %v4890 = vpop.f32.mrf.mxu0
      %v4891 = vadd.f32 %v4730, %v4890
      %v4892 = vpop.f32.mrf.mxu0
      %v4893 = vpop.f32.mrf.mxu0
      %v4894 = vadd.f32 %v4733, %v4893
      %v4895 = vpop.f32.mrf.mxu0
      %4896 = vmatprep.mubr.bf16.mxu0 0
      %4897 = vmatmul.mubr.bf16.gmra.mxu0 %v3591
      %v4898 = vpop.f32.mrf.mxu0
      %v4899 = vadd.f32 %v4738, %v4898
      %v4900 = vpop.f32.mrf.mxu0
      %v4901 = vpop.f32.mrf.mxu0
      %v4902 = vadd.f32 %v4741, %v4901
      %v4903 = vpop.f32.mrf.mxu0
      %4904 = vmatprep.mubr.bf16.mxu0 0
      %4905 = vmatmul.mubr.bf16.gmra.mxu0 %v3592
      %v4906 = vpop.f32.mrf.mxu0
      %v4907 = vadd.f32 %v4746, %v4906
      %v4908 = vpop.f32.mrf.mxu0
      %v4909 = vpop.f32.mrf.mxu0
      %v4910 = vadd.f32 %v4749, %v4909
      %v4911 = vpop.f32.mrf.mxu0
      %4912 = vmatprep.mubr.bf16.mxu0 0
      %4913 = vmatmul.mubr.bf16.gmra.mxu0 %v3593
      %v4914 = vpop.f32.mrf.mxu0
      %v4915 = vadd.f32 %v4754, %v4914
      %v4916 = vpop.f32.mrf.mxu0
      %v4917 = vpop.f32.mrf.mxu0
      %v4918 = vadd.f32 %v4757, %v4917
      %v4919 = vpop.f32.mrf.mxu0
      %4920 = vmatprep.mubr.bf16.mxu0 0
      %4921 = vmatmul.mubr.bf16.gmra.mxu0 %v3594
      %v4922 = vpop.f32.mrf.mxu0
      %v4923 = vadd.f32 %v4762, %v4922
      %v4924 = vpop.f32.mrf.mxu0
      %v4925 = vpop.f32.mrf.mxu0
      %v4926 = vadd.f32 %v4765, %v4925
      %v4927 = vpop.f32.mrf.mxu0
      %4928 = vmatprep.mubr.bf16.mxu0 0
      %4929 = vmatmul.mubr.bf16.gmra.mxu0 %v3595
      %v4930 = vpop.f32.mrf.mxu0
      %v4931 = vadd.f32 %v4770, %v4930
      %v4932 = vpop.f32.mrf.mxu0
      %v4933 = vpop.f32.mrf.mxu0
      %v4934 = vadd.f32 %v4773, %v4933
      %v4935 = vpop.f32.mrf.mxu0
      %4936 = vmatprep.mubr.bf16.mxu0 0
      %4937 = vmatmul.mubr.bf16.gmra.mxu0 %v3596
      %v4938 = vpop.f32.mrf.mxu0
      %v4939 = vadd.f32 %v4778, %v4938
      %v4940 = vpop.f32.mrf.mxu0
      %v4941 = vpop.f32.mrf.mxu0
      %v4942 = vadd.f32 %v4781, %v4941
      %v4943 = vpop.f32.mrf.mxu0
      %4944 = vmatprep.mubr.bf16.mxu0 0
      %4945 = vmatmul.mubr.bf16.gmra.mxu0 %v3597
      %v4946 = vpop.f32.mrf.mxu0
      %v4947 = vadd.f32 %v4786, %v4946
      %v4948 = vpop.f32.mrf.mxu0
      %v4949 = vpop.f32.mrf.mxu0
      %v4950 = vadd.f32 %v4789, %v4949
      %v4951 = vpop.f32.mrf.mxu0
      %4952 = vmatprep.mubr.bf16.mxu0 0
      %4953 = vmatmul.mubr.bf16.gmra.mxu0 %v3598
      %v4954 = vpop.f32.mrf.mxu0
      %v4955 = vadd.f32 %v4794, %v4954
      %v4956 = vpop.f32.mrf.mxu0
      %v4957 = vpop.f32.mrf.mxu0
      %v4958 = vadd.f32 %v4797, %v4957
      %v4959 = vpop.f32.mrf.mxu0
      %4960 = vmatprep.mubr.bf16.mxu0 0
      %4961 = vmatmul.mubr.bf16.gmra.mxu0 %v3599
      %v4962 = vpop.f32.mrf.mxu0
      %v4963 = vadd.f32 %v4802, %v4962
      %v4964 = vpop.f32.mrf.mxu0
      %v4965 = vpop.f32.mrf.mxu0
      %v4966 = vadd.f32 %v4805, %v4965
      %v4967 = vpop.f32.mrf.mxu0
      %4968 = vmatprep.mubr.bf16.mxu0 0
      %4969 = vmatmul.mubr.bf16.gmra.mxu0 %v3600
      %v4970 = vpop.f32.mrf.mxu0
      %v4971 = vadd.f32 %v4810, %v4970
      %v4972 = vpop.f32.mrf.mxu0
      %v4973 = vpop.f32.mrf.mxu0
      %v4974 = vadd.f32 %v4813, %v4973
      %v4975 = vpop.f32.mrf.mxu0
      %4976 = vmatprep.mubr.bf16.mxu0 0
      %4977 = vmatmul.mubr.bf16.gmra.mxu0 %v3601
      %v4978 = vpop.f32.mrf.mxu0
      %v4979 = vadd.f32 %v4818, %v4978
      %v4980 = vpop.f32.mrf.mxu0
      %v4981 = vpop.f32.mrf.mxu0
      %v4982 = vadd.f32 %v4821, %v4981
      %v4983 = vpop.f32.mrf.mxu0
      %4984 = vmatprep.mubr.bf16.mxu0 0
      %4985 = vmatmul.mubr.bf16.gmra.mxu0 %v3602
      %v4986 = vpop.f32.mrf.mxu0
      %v4987 = vadd.f32 %v4826, %v4986
      %v4988 = vpop.f32.mrf.mxu0
      %v4989 = vpop.f32.mrf.mxu0
      %v4990 = vadd.f32 %v4829, %v4989
      %v4991 = vpop.f32.mrf.mxu0
      %4992 = vdwg.mxu0
      %v4993 = vsub.f32 0.0, %v4867
      %v4994 = vsub.f32 0.0, %v4870
      %v4995 = vsub.f32 0.0, %v4875
      %v4996 = vsub.f32 0.0, %v4878
      %v4997 = vsub.f32 0.0, %v4883
      %v4998 = vsub.f32 0.0, %v4886
      %v4999 = vsub.f32 0.0, %v4891
      %v5000 = vsub.f32 0.0, %v4894
      %v5001 = vsub.f32 0.0, %v4899
      %v5002 = vsub.f32 0.0, %v4902
      %v5003 = vsub.f32 0.0, %v4907
      %v5004 = vsub.f32 0.0, %v4910
      %v5005 = vsub.f32 0.0, %v4915
      %v5006 = vsub.f32 0.0, %v4918
      %v5007 = vsub.f32 0.0, %v4923
      %v5008 = vsub.f32 0.0, %v4926
      %v5009 = vsub.f32 0.0, %v4931
      %v5010 = vsub.f32 0.0, %v4934
      %v5011 = vsub.f32 0.0, %v4939
      %v5012 = vsub.f32 0.0, %v4942
      %v5013 = vsub.f32 0.0, %v4947
      %v5014 = vsub.f32 0.0, %v4950
      %v5015 = vsub.f32 0.0, %v4955
      %v5016 = vsub.f32 0.0, %v4958
      %v5017 = vsub.f32 0.0, %v4963
      %v5018 = vsub.f32 0.0, %v4966
      %v5019 = vsub.f32 0.0, %v4971
      %v5020 = vsub.f32 0.0, %v4974
      %v5021 = vsub.f32 0.0, %v4979
      %v5022 = vsub.f32 0.0, %v4982
      %v5023 = vsub.f32 0.0, %v4987
      %v5024 = vsub.f32 0.0, %v4990
      %v5025 = vmul.f32 %v4993, 1.442695
      %v5026 = vpow.pop %v5025
      %v5027 = vmul.f32 %v4994, 1.442695
      %v5028 = vpow.pop %v5027
      %v5029 = vmul.f32 %v4995, 1.442695
      %v5030 = vpow.pop %v5029
      %v5031 = vmul.f32 %v4996, 1.442695
      %v5032 = vpow.pop %v5031
      %v5033 = vmul.f32 %v4997, 1.442695
      %v5034 = vpow.pop %v5033
      %v5035 = vmul.f32 %v4998, 1.442695
      %v5036 = vpow.pop %v5035
      %v5037 = vmul.f32 %v4999, 1.442695
      %v5038 = vpow.pop %v5037
      %v5039 = vmul.f32 %v5000, 1.442695
      %v5040 = vpow.pop %v5039
      %v5041 = vmul.f32 %v5001, 1.442695
      %v5042 = vpow.pop %v5041
      %v5043 = vmul.f32 %v5002, 1.442695
      %v5044 = vpow.pop %v5043
      %v5045 = vmul.f32 %v5003, 1.442695
      %v5046 = vpow.pop %v5045
      %v5047 = vmul.f32 %v5004, 1.442695
      %v5048 = vpow.pop %v5047
      %v5049 = vmul.f32 %v5005, 1.442695
      %v5050 = vpow.pop %v5049
      %v5051 = vmul.f32 %v5006, 1.442695
      %v5052 = vpow.pop %v5051
      %v5053 = vmul.f32 %v5007, 1.442695
      %v5054 = vpow.pop %v5053
      %v5055 = vmul.f32 %v5008, 1.442695
      %v5056 = vpow.pop %v5055
      %v5057 = vmul.f32 %v5009, 1.442695
      %v5058 = vpow.pop %v5057
      %v5059 = vmul.f32 %v5010, 1.442695
      %v5060 = vpow.pop %v5059
      %v5061 = vmul.f32 %v5011, 1.442695
      %v5062 = vpow.pop %v5061
      %v5063 = vmul.f32 %v5012, 1.442695
      %v5064 = vpow.pop %v5063
      %v5065 = vmul.f32 %v5013, 1.442695
      %v5066 = vpow.pop %v5065
      %v5067 = vmul.f32 %v5014, 1.442695
      %v5068 = vpow.pop %v5067
      %v5069 = vmul.f32 %v5015, 1.442695
      %v5070 = vpow.pop %v5069
      %v5071 = vmul.f32 %v5016, 1.442695
      %v5072 = vpow.pop %v5071
      %v5073 = vmul.f32 %v5017, 1.442695
      %v5074 = vpow.pop %v5073
      %v5075 = vmul.f32 %v5018, 1.442695
      %v5076 = vpow.pop %v5075
      %v5077 = vmul.f32 %v5019, 1.442695
      %v5078 = vpow.pop %v5077
      %v5079 = vmul.f32 %v5020, 1.442695
      %v5080 = vpow.pop %v5079
      %v5081 = vmul.f32 %v5021, 1.442695
      %v5082 = vpow.pop %v5081
      %v5083 = vmul.f32 %v5022, 1.442695
      %v5084 = vpow.pop %v5083
      %v5085 = vmul.f32 %v5023, 1.442695
      %v5086 = vpow.pop %v5085
      %v5087 = vmul.f32 %v5024, 1.442695
      %v5088 = vpow.pop %v5087
      %v5089 = vadd.f32 %v5026, 1.0
      %v5090 = vadd.f32 %v5028, 1.0
      %v5091 = vadd.f32 %v5030, 1.0
      %v5092 = vadd.f32 %v5032, 1.0
      %v5093 = vadd.f32 %v5034, 1.0
      %v5094 = vadd.f32 %v5036, 1.0
      %v5095 = vadd.f32 %v5038, 1.0
      %v5096 = vadd.f32 %v5040, 1.0
      %v5097 = vadd.f32 %v5042, 1.0
      %v5098 = vadd.f32 %v5044, 1.0
      %v5099 = vadd.f32 %v5046, 1.0
      %v5100 = vadd.f32 %v5048, 1.0
      %v5101 = vadd.f32 %v5050, 1.0
      %v5102 = vadd.f32 %v5052, 1.0
      %v5103 = vadd.f32 %v5054, 1.0
      %v5104 = vadd.f32 %v5056, 1.0
      %v5105 = vadd.f32 %v5058, 1.0
      %v5106 = vadd.f32 %v5060, 1.0
      %v5107 = vadd.f32 %v5062, 1.0
      %v5108 = vadd.f32 %v5064, 1.0
      %v5109 = vadd.f32 %v5066, 1.0
      %v5110 = vadd.f32 %v5068, 1.0
      %v5111 = vadd.f32 %v5070, 1.0
      %v5112 = vadd.f32 %v5072, 1.0
      %v5113 = vadd.f32 %v5074, 1.0
      %v5114 = vadd.f32 %v5076, 1.0
      %v5115 = vadd.f32 %v5078, 1.0
      %v5116 = vadd.f32 %v5080, 1.0
      %v5117 = vadd.f32 %v5082, 1.0
      %v5118 = vadd.f32 %v5084, 1.0
      %v5119 = vadd.f32 %v5086, 1.0
      %v5120 = vadd.f32 %v5088, 1.0
      %v5121 = vrcp.pop %v5089
      %v5122 = vrcp.pop %v5090
      %v5123 = vrcp.pop %v5091
      %v5124 = vrcp.pop %v5092
      %v5125 = vrcp.pop %v5093
      %v5126 = vrcp.pop %v5094
      %v5127 = vrcp.pop %v5095
      %v5128 = vrcp.pop %v5096
      %v5129 = vrcp.pop %v5097
      %v5130 = vrcp.pop %v5098
      %v5131 = vrcp.pop %v5099
      %v5132 = vrcp.pop %v5100
      %v5133 = vrcp.pop %v5101
      %v5134 = vrcp.pop %v5102
      %v5135 = vrcp.pop %v5103
      %v5136 = vrcp.pop %v5104
      %v5137 = vrcp.pop %v5105
      %v5138 = vrcp.pop %v5106
      %v5139 = vrcp.pop %v5107
      %v5140 = vrcp.pop %v5108
      %v5141 = vrcp.pop %v5109
      %v5142 = vrcp.pop %v5110
      %v5143 = vrcp.pop %v5111
      %v5144 = vrcp.pop %v5112
      %v5145 = vrcp.pop %v5113
      %v5146 = vrcp.pop %v5114
      %v5147 = vrcp.pop %v5115
      %v5148 = vrcp.pop %v5116
      %v5149 = vrcp.pop %v5117
      %v5150 = vrcp.pop %v5118
      %v5151 = vrcp.pop %v5119
      %v5152 = vrcp.pop %v5120
      %v5153 = vmul.f32 %v4867, %v5121
      %v5154 = vmul.f32 %v4870, %v5122
      %v5155 = vmul.f32 %v4875, %v5123
      %v5156 = vmul.f32 %v4878, %v5124
      %v5157 = vmul.f32 %v4883, %v5125
      %v5158 = vmul.f32 %v4886, %v5126
      %v5159 = vmul.f32 %v4891, %v5127
      %v5160 = vmul.f32 %v4894, %v5128
      %v5161 = vmul.f32 %v4899, %v5129
      %v5162 = vmul.f32 %v4902, %v5130
      %v5163 = vmul.f32 %v4907, %v5131
      %v5164 = vmul.f32 %v4910, %v5132
      %v5165 = vmul.f32 %v4915, %v5133
      %v5166 = vmul.f32 %v4918, %v5134
      %v5167 = vmul.f32 %v4923, %v5135
      %v5168 = vmul.f32 %v4926, %v5136
      %v5169 = vmul.f32 %v4931, %v5137
      %v5170 = vmul.f32 %v4934, %v5138
      %v5171 = vmul.f32 %v4939, %v5139
      %v5172 = vmul.f32 %v4942, %v5140
      %v5173 = vmul.f32 %v4947, %v5141
      %v5174 = vmul.f32 %v4950, %v5142
      %v5175 = vmul.f32 %v4955, %v5143
      %v5176 = vmul.f32 %v4958, %v5144
      %v5177 = vmul.f32 %v4963, %v5145
      %v5178 = vmul.f32 %v4966, %v5146
      %v5179 = vmul.f32 %v4971, %v5147
      %v5180 = vmul.f32 %v4974, %v5148
      %v5181 = vmul.f32 %v4979, %v5149
      %v5182 = vmul.f32 %v4982, %v5150
      %v5183 = vmul.f32 %v4987, %v5151
      %v5184 = vmul.f32 %v4990, %v5152
      %5185 = vst [vmem:[%s1093 + $0x1] sm:$0xff] %v5153
      %5186 = vst [vmem:[%s1093 + $0x9] sm:$0xff] %v5154
      %5187 = vst [vmem:[%s1093 + $0x19] sm:$0xff] %v5155
      %5188 = vst [vmem:[%s1093 + $0x21] sm:$0xff] %v5156
      %5189 = vst [vmem:[%s1093 + $0x31] sm:$0xff] %v5157
      %5190 = vst [vmem:[%s1093 + $0x39] sm:$0xff] %v5158
      %5191 = vst [vmem:[%s1093 + $0x49] sm:$0xff] %v5159
      %5192 = vst [vmem:[%s1093 + $0x51] sm:$0xff] %v5160
      %5193 = vst [vmem:[%s1093 + $0x61] sm:$0xff] %v5161
      %5194 = vst [vmem:[%s1093 + $0x69] sm:$0xff] %v5162
      %5195 = vst [vmem:[%s1093 + $0x79] sm:$0xff] %v5163
      %5196 = vst [vmem:[%s1093 + $0x81] sm:$0xff] %v5164
      %5197 = vst [vmem:[%s1093 + $0x91] sm:$0xff] %v5165
      %5198 = vst [vmem:[%s1093 + $0x99] sm:$0xff] %v5166
      %5199 = vst [vmem:[%s1093 + $0xa9] sm:$0xff] %v5167
      %5200 = vst [vmem:[%s1093 + $0xb1] sm:$0xff] %v5168
      %5201 = vst [vmem:[%s1093 + $0xc1] sm:$0xff] %v5169
      %5202 = vst [vmem:[%s1093 + $0xc9] sm:$0xff] %v5170
      %5203 = vst [vmem:[%s1093 + $0xd9] sm:$0xff] %v5171
      %5204 = vst [vmem:[%s1093 + $0xe1] sm:$0xff] %v5172
      %5205 = vst [vmem:[%s1093 + $0xf1] sm:$0xff] %v5173
      %5206 = vst [vmem:[%s1093 + $0xf9] sm:$0xff] %v5174
      %5207 = vst [vmem:[%s1093 + $0x109] sm:$0xff] %v5175
      %5208 = vst [vmem:[%s1093 + $0x111] sm:$0xff] %v5176
      %5209 = vst [vmem:[%s1093 + $0x121] sm:$0xff] %v5177
      %5210 = vst [vmem:[%s1093 + $0x129] sm:$0xff] %v5178
      %5211 = vst [vmem:[%s1093 + $0x139] sm:$0xff] %v5179
      %5212 = vst [vmem:[%s1093 + $0x141] sm:$0xff] %v5180
      %5213 = vst [vmem:[%s1093 + $0x151] sm:$0xff] %v5181
      %5214 = vst [vmem:[%s1093 + $0x159] sm:$0xff] %v5182
      %5215 = vst [vmem:[%s1093 + $0x169] sm:$0xff] %v5183
      %5216 = vst [vmem:[%s1093 + $0x171] sm:$0xff] %v5184
      %v5217 = vld [vmem:[#allocation2] sm:$0xff]
      %v5218 = vld [vmem:[#allocation2 + $0x8] sm:$0xff]
      %v5219 = vld [vmem:[#allocation2 + $0x18] sm:$0xff]
      %v5220 = vld [vmem:[#allocation2 + $0x20] sm:$0xff]
      %v5221 = vld [vmem:[#allocation2 + $0x30] sm:$0xff]
      %v5222 = vld [vmem:[#allocation2 + $0x38] sm:$0xff]
      %v5223 = vld [vmem:[#allocation2 + $0x48] sm:$0xff]
      %v5224 = vld [vmem:[#allocation2 + $0x50] sm:$0xff]
      %v5225 = vld [vmem:[#allocation2 + $0x60] sm:$0xff]
      %v5226 = vld [vmem:[#allocation2 + $0x68] sm:$0xff]
      %v5227 = vld [vmem:[#allocation2 + $0x78] sm:$0xff]
      %v5228 = vld [vmem:[#allocation2 + $0x80] sm:$0xff]
      %v5229 = vld [vmem:[#allocation2 + $0x90] sm:$0xff]
      %v5230 = vld [vmem:[#allocation2 + $0x98] sm:$0xff]
      %v5231 = vld [vmem:[#allocation2 + $0xa8] sm:$0xff]
      %v5232 = vld [vmem:[#allocation2 + $0xb0] sm:$0xff]
      %v5233 = vld [vmem:[#allocation2 + $0xc0] sm:$0xff]
      %v5234 = vld [vmem:[#allocation2 + $0xc8] sm:$0xff]
      %v5235 = vld [vmem:[#allocation2 + $0xd8] sm:$0xff]
      %v5236 = vld [vmem:[#allocation2 + $0xe0] sm:$0xff]
      %v5237 = vld [vmem:[#allocation2 + $0xf0] sm:$0xff]
      %v5238 = vld [vmem:[#allocation2 + $0xf8] sm:$0xff]
      %v5239 = vld [vmem:[#allocation2 + $0x108] sm:$0xff]
      %v5240 = vld [vmem:[#allocation2 + $0x110] sm:$0xff]
      %v5241 = vld [vmem:[#allocation2 + $0x120] sm:$0xff]
      %v5242 = vld [vmem:[#allocation2 + $0x128] sm:$0xff]
      %v5243 = vld [vmem:[#allocation2 + $0x138] sm:$0xff]
      %v5244 = vld [vmem:[#allocation2 + $0x140] sm:$0xff]
      %v5245 = vld [vmem:[#allocation2 + $0x150] sm:$0xff]
      %v5246 = vld [vmem:[#allocation2 + $0x158] sm:$0xff]
      %v5247 = vld [vmem:[#allocation2 + $0x168] sm:$0xff]
      %v5248 = vld [vmem:[#allocation2 + $0x170] sm:$0xff]
      %v5249 = vpack.c.bf16 %v5218, %v5217
      %v5250 = vpack.c.bf16 %v5220, %v5219
      %v5251 = vpack.c.bf16 %v5222, %v5221
      %v5252 = vpack.c.bf16 %v5224, %v5223
      %v5253 = vpack.c.bf16 %v5226, %v5225
      %v5254 = vpack.c.bf16 %v5228, %v5227
      %v5255 = vpack.c.bf16 %v5230, %v5229
      %v5256 = vpack.c.bf16 %v5232, %v5231
      %v5257 = vpack.c.bf16 %v5234, %v5233
      %v5258 = vpack.c.bf16 %v5236, %v5235
      %v5259 = vpack.c.bf16 %v5238, %v5237
      %v5260 = vpack.c.bf16 %v5240, %v5239
      %v5261 = vpack.c.bf16 %v5242, %v5241
      %v5262 = vpack.c.bf16 %v5244, %v5243
      %v5263 = vpack.c.bf16 %v5246, %v5245
      %v5264 = vpack.c.bf16 %v5248, %v5247
      %v5265 = vld [vmem:[#allocation2 + $0x1] sm:$0xff]
      %v5266 = vld [vmem:[#allocation2 + $0x9] sm:$0xff]
      %v5267 = vld [vmem:[#allocation2 + $0x19] sm:$0xff]
      %v5268 = vld [vmem:[#allocation2 + $0x21] sm:$0xff]
      %v5269 = vld [vmem:[#allocation2 + $0x31] sm:$0xff]
      %v5270 = vld [vmem:[#allocation2 + $0x39] sm:$0xff]
      %v5271 = vld [vmem:[#allocation2 + $0x49] sm:$0xff]
      %v5272 = vld [vmem:[#allocation2 + $0x51] sm:$0xff]
      %v5273 = vld [vmem:[#allocation2 + $0x61] sm:$0xff]
      %v5274 = vld [vmem:[#allocation2 + $0x69] sm:$0xff]
      %v5275 = vld [vmem:[#allocation2 + $0x79] sm:$0xff]
      %v5276 = vld [vmem:[#allocation2 + $0x81] sm:$0xff]
      %v5277 = vld [vmem:[#allocation2 + $0x91] sm:$0xff]
      %v5278 = vld [vmem:[#allocation2 + $0x99] sm:$0xff]
      %v5279 = vld [vmem:[#allocation2 + $0xa9] sm:$0xff]
      %v5280 = vld [vmem:[#allocation2 + $0xb1] sm:$0xff]
      %v5281 = vld [vmem:[#allocation2 + $0xc1] sm:$0xff]
      %v5282 = vld [vmem:[#allocation2 + $0xc9] sm:$0xff]
      %v5283 = vld [vmem:[#allocation2 + $0xd9] sm:$0xff]
      %v5284 = vld [vmem:[#allocation2 + $0xe1] sm:$0xff]
      %v5285 = vld [vmem:[#allocation2 + $0xf1] sm:$0xff]
      %v5286 = vld [vmem:[#allocation2 + $0xf9] sm:$0xff]
      %v5287 = vld [vmem:[#allocation2 + $0x109] sm:$0xff]
      %v5288 = vld [vmem:[#allocation2 + $0x111] sm:$0xff]
      %v5289 = vld [vmem:[#allocation2 + $0x121] sm:$0xff]
      %v5290 = vld [vmem:[#allocation2 + $0x129] sm:$0xff]
      %v5291 = vld [vmem:[#allocation2 + $0x139] sm:$0xff]
      %v5292 = vld [vmem:[#allocation2 + $0x141] sm:$0xff]
      %v5293 = vld [vmem:[#allocation2 + $0x151] sm:$0xff]
      %v5294 = vld [vmem:[#allocation2 + $0x159] sm:$0xff]
      %v5295 = vld [vmem:[#allocation2 + $0x169] sm:$0xff]
      %v5296 = vld [vmem:[#allocation2 + $0x171] sm:$0xff]
      %v5297 = vpack.c.bf16 %v5266, %v5265
      %v5298 = vpack.c.bf16 %v5268, %v5267
      %v5299 = vpack.c.bf16 %v5270, %v5269
      %v5300 = vpack.c.bf16 %v5272, %v5271
      %v5301 = vpack.c.bf16 %v5274, %v5273
      %v5302 = vpack.c.bf16 %v5276, %v5275
      %v5303 = vpack.c.bf16 %v5278, %v5277
      %v5304 = vpack.c.bf16 %v5280, %v5279
      %v5305 = vpack.c.bf16 %v5282, %v5281
      %v5306 = vpack.c.bf16 %v5284, %v5283
      %v5307 = vpack.c.bf16 %v5286, %v5285
      %v5308 = vpack.c.bf16 %v5288, %v5287
      %v5309 = vpack.c.bf16 %v5290, %v5289
      %v5310 = vpack.c.bf16 %v5292, %v5291
      %v5311 = vpack.c.bf16 %v5294, %v5293
      %v5312 = vpack.c.bf16 %v5296, %v5295
      %v5313 = vld [vmem:[#allocation2 + $0x2] sm:$0xff]
      %v5314 = vld [vmem:[#allocation2 + $0xa] sm:$0xff]
      %v5315 = vld [vmem:[#allocation2 + $0x1a] sm:$0xff]
      %v5316 = vld [vmem:[#allocation2 + $0x22] sm:$0xff]
      %v5317 = vld [vmem:[#allocation2 + $0x32] sm:$0xff]
      %v5318 = vld [vmem:[#allocation2 + $0x3a] sm:$0xff]
      %v5319 = vld [vmem:[#allocation2 + $0x4a] sm:$0xff]
      %v5320 = vld [vmem:[#allocation2 + $0x52] sm:$0xff]
      %v5321 = vld [vmem:[#allocation2 + $0x62] sm:$0xff]
      %v5322 = vld [vmem:[#allocation2 + $0x6a] sm:$0xff]
      %v5323 = vld [vmem:[#allocation2 + $0x7a] sm:$0xff]
      %v5324 = vld [vmem:[#allocation2 + $0x82] sm:$0xff]
      %v5325 = vld [vmem:[#allocation2 + $0x92] sm:$0xff]
      %v5326 = vld [vmem:[#allocation2 + $0x9a] sm:$0xff]
      %v5327 = vld [vmem:[#allocation2 + $0xaa] sm:$0xff]
      %v5328 = vld [vmem:[#allocation2 + $0xb2] sm:$0xff]
      %v5329 = vld [vmem:[#allocation2 + $0xc2] sm:$0xff]
      %v5330 = vld [vmem:[#allocation2 + $0xca] sm:$0xff]
      %v5331 = vld [vmem:[#allocation2 + $0xda] sm:$0xff]
      %v5332 = vld [vmem:[#allocation2 + $0xe2] sm:$0xff]
      %v5333 = vld [vmem:[#allocation2 + $0xf2] sm:$0xff]
      %v5334 = vld [vmem:[#allocation2 + $0xfa] sm:$0xff]
      %v5335 = vld [vmem:[#allocation2 + $0x10a] sm:$0xff]
      %v5336 = vld [vmem:[#allocation2 + $0x112] sm:$0xff]
      %v5337 = vld [vmem:[#allocation2 + $0x122] sm:$0xff]
      %v5338 = vld [vmem:[#allocation2 + $0x12a] sm:$0xff]
      %v5339 = vld [vmem:[#allocation2 + $0x13a] sm:$0xff]
      %v5340 = vld [vmem:[#allocation2 + $0x142] sm:$0xff]
      %v5341 = vld [vmem:[#allocation2 + $0x152] sm:$0xff]
      %v5342 = vld [vmem:[#allocation2 + $0x15a] sm:$0xff]
      %v5343 = vld [vmem:[#allocation2 + $0x16a] sm:$0xff]
      %v5344 = vld [vmem:[#allocation2 + $0x172] sm:$0xff]
      %v5345 = vpack.c.bf16 %v5314, %v5313
      %v5346 = vpack.c.bf16 %v5316, %v5315
      %v5347 = vpack.c.bf16 %v5318, %v5317
      %v5348 = vpack.c.bf16 %v5320, %v5319
      %v5349 = vpack.c.bf16 %v5322, %v5321
      %v5350 = vpack.c.bf16 %v5324, %v5323
      %v5351 = vpack.c.bf16 %v5326, %v5325
      %v5352 = vpack.c.bf16 %v5328, %v5327
      %v5353 = vpack.c.bf16 %v5330, %v5329
      %v5354 = vpack.c.bf16 %v5332, %v5331
      %v5355 = vpack.c.bf16 %v5334, %v5333
      %v5356 = vpack.c.bf16 %v5336, %v5335
      %v5357 = vpack.c.bf16 %v5338, %v5337
      %v5358 = vpack.c.bf16 %v5340, %v5339
      %v5359 = vpack.c.bf16 %v5342, %v5341
      %v5360 = vpack.c.bf16 %v5344, %v5343
      %v5361 = vld [vmem:[%s1093] sm:$0xff]
      %v5362 = vld [vmem:[%s1093 + $0x8] sm:$0xff]
      %v5363 = vld [vmem:[%s1093 + $0x18] sm:$0xff]
      %v5364 = vld [vmem:[%s1093 + $0x20] sm:$0xff]
      %v5365 = vld [vmem:[%s1093 + $0x30] sm:$0xff]
      %v5366 = vld [vmem:[%s1093 + $0x38] sm:$0xff]
      %v5367 = vld [vmem:[%s1093 + $0x48] sm:$0xff]
      %v5368 = vld [vmem:[%s1093 + $0x50] sm:$0xff]
      %v5369 = vld [vmem:[%s1093 + $0x60] sm:$0xff]
      %v5370 = vld [vmem:[%s1093 + $0x68] sm:$0xff]
      %v5371 = vld [vmem:[%s1093 + $0x78] sm:$0xff]
      %v5372 = vld [vmem:[%s1093 + $0x80] sm:$0xff]
      %v5373 = vld [vmem:[%s1093 + $0x90] sm:$0xff]
      %v5374 = vld [vmem:[%s1093 + $0x98] sm:$0xff]
      %v5375 = vld [vmem:[%s1093 + $0xa8] sm:$0xff]
      %v5376 = vld [vmem:[%s1093 + $0xb0] sm:$0xff]
      %v5377 = vld [vmem:[%s1093 + $0xc0] sm:$0xff]
      %v5378 = vld [vmem:[%s1093 + $0xc8] sm:$0xff]
      %v5379 = vld [vmem:[%s1093 + $0xd8] sm:$0xff]
      %v5380 = vld [vmem:[%s1093 + $0xe0] sm:$0xff]
      %v5381 = vld [vmem:[%s1093 + $0xf0] sm:$0xff]
      %v5382 = vld [vmem:[%s1093 + $0xf8] sm:$0xff]
      %v5383 = vld [vmem:[%s1093 + $0x108] sm:$0xff]
      %v5384 = vld [vmem:[%s1093 + $0x110] sm:$0xff]
      %v5385 = vld [vmem:[%s1093 + $0x120] sm:$0xff]
      %v5386 = vld [vmem:[%s1093 + $0x128] sm:$0xff]
      %v5387 = vld [vmem:[%s1093 + $0x138] sm:$0xff]
      %v5388 = vld [vmem:[%s1093 + $0x140] sm:$0xff]
      %v5389 = vld [vmem:[%s1093 + $0x150] sm:$0xff]
      %v5390 = vld [vmem:[%s1093 + $0x158] sm:$0xff]
      %v5391 = vld [vmem:[%s1093 + $0x168] sm:$0xff]
      %v5392 = vld [vmem:[%s1093 + $0x170] sm:$0xff]
      %v5393 = vpack.c.bf16 %v5362, %v5361
      %v5394 = vpack.c.bf16 %v5364, %v5363
      %v5395 = vpack.c.bf16 %v5366, %v5365
      %v5396 = vpack.c.bf16 %v5368, %v5367
      %v5397 = vpack.c.bf16 %v5370, %v5369
      %v5398 = vpack.c.bf16 %v5372, %v5371
      %v5399 = vpack.c.bf16 %v5374, %v5373
      %v5400 = vpack.c.bf16 %v5376, %v5375
      %v5401 = vpack.c.bf16 %v5378, %v5377
      %v5402 = vpack.c.bf16 %v5380, %v5379
      %v5403 = vpack.c.bf16 %v5382, %v5381
      %v5404 = vpack.c.bf16 %v5384, %v5383
      %v5405 = vpack.c.bf16 %v5386, %v5385
      %v5406 = vpack.c.bf16 %v5388, %v5387
      %v5407 = vpack.c.bf16 %v5390, %v5389
      %v5408 = vpack.c.bf16 %v5392, %v5391
      %v5409 = vld [vmem:[%s1093 + $0x1] sm:$0xff]
      %v5410 = vld [vmem:[%s1093 + $0x9] sm:$0xff]
      %v5411 = vld [vmem:[%s1093 + $0x19] sm:$0xff]
      %v5412 = vld [vmem:[%s1093 + $0x21] sm:$0xff]
      %v5413 = vld [vmem:[%s1093 + $0x31] sm:$0xff]
      %v5414 = vld [vmem:[%s1093 + $0x39] sm:$0xff]
      %v5415 = vld [vmem:[%s1093 + $0x49] sm:$0xff]
      %v5416 = vld [vmem:[%s1093 + $0x51] sm:$0xff]
      %v5417 = vld [vmem:[%s1093 + $0x61] sm:$0xff]
      %v5418 = vld [vmem:[%s1093 + $0x69] sm:$0xff]
      %v5419 = vld [vmem:[%s1093 + $0x79] sm:$0xff]
      %v5420 = vld [vmem:[%s1093 + $0x81] sm:$0xff]
      %v5421 = vld [vmem:[%s1093 + $0x91] sm:$0xff]
      %v5422 = vld [vmem:[%s1093 + $0x99] sm:$0xff]
      %v5423 = vld [vmem:[%s1093 + $0xa9] sm:$0xff]
      %v5424 = vld [vmem:[%s1093 + $0xb1] sm:$0xff]
      %v5425 = vld [vmem:[%s1093 + $0xc1] sm:$0xff]
      %v5426 = vld [vmem:[%s1093 + $0xc9] sm:$0xff]
      %v5427 = vld [vmem:[%s1093 + $0xd9] sm:$0xff]
      %v5428 = vld [vmem:[%s1093 + $0xe1] sm:$0xff]
      %v5429 = vld [vmem:[%s1093 + $0xf1] sm:$0xff]
      %v5430 = vld [vmem:[%s1093 + $0xf9] sm:$0xff]
      %v5431 = vld [vmem:[%s1093 + $0x109] sm:$0xff]
      %v5432 = vld [vmem:[%s1093 + $0x111] sm:$0xff]
      %v5433 = vld [vmem:[%s1093 + $0x121] sm:$0xff]
      %v5434 = vld [vmem:[%s1093 + $0x129] sm:$0xff]
      %v5435 = vld [vmem:[%s1093 + $0x139] sm:$0xff]
      %v5436 = vld [vmem:[%s1093 + $0x141] sm:$0xff]
      %v5437 = vld [vmem:[%s1093 + $0x151] sm:$0xff]
      %v5438 = vld [vmem:[%s1093 + $0x159] sm:$0xff]
      %v5439 = vld [vmem:[%s1093 + $0x169] sm:$0xff]
      %v5440 = vld [vmem:[%s1093 + $0x171] sm:$0xff]
      %v5441 = vpack.c.bf16 %v5410, %v5409
      %v5442 = vpack.c.bf16 %v5412, %v5411
      %v5443 = vpack.c.bf16 %v5414, %v5413
      %v5444 = vpack.c.bf16 %v5416, %v5415
      %v5445 = vpack.c.bf16 %v5418, %v5417
      %v5446 = vpack.c.bf16 %v5420, %v5419
      %v5447 = vpack.c.bf16 %v5422, %v5421
      %v5448 = vpack.c.bf16 %v5424, %v5423
      %v5449 = vpack.c.bf16 %v5426, %v5425
      %v5450 = vpack.c.bf16 %v5428, %v5427
      %v5451 = vpack.c.bf16 %v5430, %v5429
      %v5452 = vpack.c.bf16 %v5432, %v5431
      %v5453 = vpack.c.bf16 %v5434, %v5433
      %v5454 = vpack.c.bf16 %v5436, %v5435
      %v5455 = vpack.c.bf16 %v5438, %v5437
      %v5456 = vpack.c.bf16 %v5440, %v5439
      %v5457 = vld [vmem:[%s1093 + $0x2] sm:$0xff]
      %v5458 = vld [vmem:[%s1093 + $0xa] sm:$0xff]
      %v5459 = vld [vmem:[%s1093 + $0x1a] sm:$0xff]
      %v5460 = vld [vmem:[%s1093 + $0x22] sm:$0xff]
      %v5461 = vld [vmem:[%s1093 + $0x32] sm:$0xff]
      %v5462 = vld [vmem:[%s1093 + $0x3a] sm:$0xff]
      %v5463 = vld [vmem:[%s1093 + $0x4a] sm:$0xff]
      %v5464 = vld [vmem:[%s1093 + $0x52] sm:$0xff]
      %v5465 = vld [vmem:[%s1093 + $0x62] sm:$0xff]
      %v5466 = vld [vmem:[%s1093 + $0x6a] sm:$0xff]
      %v5467 = vld [vmem:[%s1093 + $0x7a] sm:$0xff]
      %v5468 = vld [vmem:[%s1093 + $0x82] sm:$0xff]
      %v5469 = vld [vmem:[%s1093 + $0x92] sm:$0xff]
      %v5470 = vld [vmem:[%s1093 + $0x9a] sm:$0xff]
      %v5471 = vld [vmem:[%s1093 + $0xaa] sm:$0xff]
      %v5472 = vld [vmem:[%s1093 + $0xb2] sm:$0xff]
      %v5473 = vld [vmem:[%s1093 + $0xc2] sm:$0xff]
      %v5474 = vld [vmem:[%s1093 + $0xca] sm:$0xff]
      %v5475 = vld [vmem:[%s1093 + $0xda] sm:$0xff]
      %v5476 = vld [vmem:[%s1093 + $0xe2] sm:$0xff]
      %v5477 = vld [vmem:[%s1093 + $0xf2] sm:$0xff]
      %v5478 = vld [vmem:[%s1093 + $0xfa] sm:$0xff]
      %v5479 = vld [vmem:[%s1093 + $0x10a] sm:$0xff]
      %v5480 = vld [vmem:[%s1093 + $0x112] sm:$0xff]
      %v5481 = vld [vmem:[%s1093 + $0x122] sm:$0xff]
      %v5482 = vld [vmem:[%s1093 + $0x12a] sm:$0xff]
      %v5483 = vld [vmem:[%s1093 + $0x13a] sm:$0xff]
      %v5484 = vld [vmem:[%s1093 + $0x142] sm:$0xff]
      %v5485 = vld [vmem:[%s1093 + $0x152] sm:$0xff]
      %v5486 = vld [vmem:[%s1093 + $0x15a] sm:$0xff]
      %v5487 = vld [vmem:[%s1093 + $0x16a] sm:$0xff]
      %v5488 = vld [vmem:[%s1093 + $0x172] sm:$0xff]
      %v5489 = vpack.c.bf16 %v5458, %v5457
      %v5490 = vpack.c.bf16 %v5460, %v5459
      %v5491 = vpack.c.bf16 %v5462, %v5461
      %v5492 = vpack.c.bf16 %v5464, %v5463
      %v5493 = vpack.c.bf16 %v5466, %v5465
      %v5494 = vpack.c.bf16 %v5468, %v5467
      %v5495 = vpack.c.bf16 %v5470, %v5469
      %v5496 = vpack.c.bf16 %v5472, %v5471
      %v5497 = vpack.c.bf16 %v5474, %v5473
      %v5498 = vpack.c.bf16 %v5476, %v5475
      %v5499 = vpack.c.bf16 %v5478, %v5477
      %v5500 = vpack.c.bf16 %v5480, %v5479
      %v5501 = vpack.c.bf16 %v5482, %v5481
      %v5502 = vpack.c.bf16 %v5484, %v5483
      %v5503 = vpack.c.bf16 %v5486, %v5485
      %v5504 = vpack.c.bf16 %v5488, %v5487
      %v5505 = vld [vmem:[%s1414] sm:$0xff]
      %v5506 = vld [vmem:[%s1414 + $0x8] sm:$0xff]
      %v5507 = vld [vmem:[%s1414 + $0x18] sm:$0xff]
      %v5508 = vld [vmem:[%s1414 + $0x20] sm:$0xff]
      %v5509 = vld [vmem:[%s1414 + $0x30] sm:$0xff]
      %v5510 = vld [vmem:[%s1414 + $0x38] sm:$0xff]
      %v5511 = vld [vmem:[%s1414 + $0x48] sm:$0xff]
      %v5512 = vld [vmem:[%s1414 + $0x50] sm:$0xff]
      %v5513 = vld [vmem:[%s1414 + $0x60] sm:$0xff]
      %v5514 = vld [vmem:[%s1414 + $0x68] sm:$0xff]
      %v5515 = vld [vmem:[%s1414 + $0x78] sm:$0xff]
      %v5516 = vld [vmem:[%s1414 + $0x80] sm:$0xff]
      %v5517 = vld [vmem:[%s1414 + $0x90] sm:$0xff]
      %v5518 = vld [vmem:[%s1414 + $0x98] sm:$0xff]
      %v5519 = vld [vmem:[%s1414 + $0xa8] sm:$0xff]
      %v5520 = vld [vmem:[%s1414 + $0xb0] sm:$0xff]
      %v5521 = vld [vmem:[%s1414 + $0xc0] sm:$0xff]
      %v5522 = vld [vmem:[%s1414 + $0xc8] sm:$0xff]
      %v5523 = vld [vmem:[%s1414 + $0xd8] sm:$0xff]
      %v5524 = vld [vmem:[%s1414 + $0xe0] sm:$0xff]
      %v5525 = vld [vmem:[%s1414 + $0xf0] sm:$0xff]
      %v5526 = vld [vmem:[%s1414 + $0xf8] sm:$0xff]
      %v5527 = vld [vmem:[%s1414 + $0x108] sm:$0xff]
      %v5528 = vld [vmem:[%s1414 + $0x110] sm:$0xff]
      %v5529 = vld [vmem:[%s1414 + $0x120] sm:$0xff]
      %v5530 = vld [vmem:[%s1414 + $0x128] sm:$0xff]
      %v5531 = vld [vmem:[%s1414 + $0x138] sm:$0xff]
      %v5532 = vld [vmem:[%s1414 + $0x140] sm:$0xff]
      %v5533 = vld [vmem:[%s1414 + $0x150] sm:$0xff]
      %v5534 = vld [vmem:[%s1414 + $0x158] sm:$0xff]
      %v5535 = vld [vmem:[%s1414 + $0x168] sm:$0xff]
      %v5536 = vld [vmem:[%s1414 + $0x170] sm:$0xff]
      %v5537 = vpack.c.bf16 %v5506, %v5505
      %v5538 = vpack.c.bf16 %v5508, %v5507
      %v5539 = vpack.c.bf16 %v5510, %v5509
      %v5540 = vpack.c.bf16 %v5512, %v5511
      %v5541 = vpack.c.bf16 %v5514, %v5513
      %v5542 = vpack.c.bf16 %v5516, %v5515
      %v5543 = vpack.c.bf16 %v5518, %v5517
      %v5544 = vpack.c.bf16 %v5520, %v5519
      %v5545 = vpack.c.bf16 %v5522, %v5521
      %v5546 = vpack.c.bf16 %v5524, %v5523
      %v5547 = vpack.c.bf16 %v5526, %v5525
      %v5548 = vpack.c.bf16 %v5528, %v5527
      %v5549 = vpack.c.bf16 %v5530, %v5529
      %v5550 = vpack.c.bf16 %v5532, %v5531
      %v5551 = vpack.c.bf16 %v5534, %v5533
      %v5552 = vpack.c.bf16 %v5536, %v5535
      %v5553 = vld [vmem:[%s1414 + $0x1] sm:$0xff]
      %v5554 = vld [vmem:[%s1414 + $0x9] sm:$0xff]
      %v5555 = vld [vmem:[%s1414 + $0x19] sm:$0xff]
      %v5556 = vld [vmem:[%s1414 + $0x21] sm:$0xff]
      %v5557 = vld [vmem:[%s1414 + $0x31] sm:$0xff]
      %v5558 = vld [vmem:[%s1414 + $0x39] sm:$0xff]
      %v5559 = vld [vmem:[%s1414 + $0x49] sm:$0xff]
      %v5560 = vld [vmem:[%s1414 + $0x51] sm:$0xff]
      %v5561 = vld [vmem:[%s1414 + $0x61] sm:$0xff]
      %v5562 = vld [vmem:[%s1414 + $0x69] sm:$0xff]
      %v5563 = vld [vmem:[%s1414 + $0x79] sm:$0xff]
      %v5564 = vld [vmem:[%s1414 + $0x81] sm:$0xff]
      %v5565 = vld [vmem:[%s1414 + $0x91] sm:$0xff]
      %v5566 = vld [vmem:[%s1414 + $0x99] sm:$0xff]
      %v5567 = vld [vmem:[%s1414 + $0xa9] sm:$0xff]
      %v5568 = vld [vmem:[%s1414 + $0xb1] sm:$0xff]
      %v5569 = vld [vmem:[%s1414 + $0xc1] sm:$0xff]
      %v5570 = vld [vmem:[%s1414 + $0xc9] sm:$0xff]
      %v5571 = vld [vmem:[%s1414 + $0xd9] sm:$0xff]
      %v5572 = vld [vmem:[%s1414 + $0xe1] sm:$0xff]
      %v5573 = vld [vmem:[%s1414 + $0xf1] sm:$0xff]
      %v5574 = vld [vmem:[%s1414 + $0xf9] sm:$0xff]
      %v5575 = vld [vmem:[%s1414 + $0x109] sm:$0xff]
      %v5576 = vld [vmem:[%s1414 + $0x111] sm:$0xff]
      %v5577 = vld [vmem:[%s1414 + $0x121] sm:$0xff]
      %v5578 = vld [vmem:[%s1414 + $0x129] sm:$0xff]
      %v5579 = vld [vmem:[%s1414 + $0x139] sm:$0xff]
      %v5580 = vld [vmem:[%s1414 + $0x141] sm:$0xff]
      %v5581 = vld [vmem:[%s1414 + $0x151] sm:$0xff]
      %v5582 = vld [vmem:[%s1414 + $0x159] sm:$0xff]
      %v5583 = vld [vmem:[%s1414 + $0x169] sm:$0xff]
      %v5584 = vld [vmem:[%s1414 + $0x171] sm:$0xff]
      %v5585 = vpack.c.bf16 %v5554, %v5553
      %v5586 = vpack.c.bf16 %v5556, %v5555
      %v5587 = vpack.c.bf16 %v5558, %v5557
      %v5588 = vpack.c.bf16 %v5560, %v5559
      %v5589 = vpack.c.bf16 %v5562, %v5561
      %v5590 = vpack.c.bf16 %v5564, %v5563
      %v5591 = vpack.c.bf16 %v5566, %v5565
      %v5592 = vpack.c.bf16 %v5568, %v5567
      %v5593 = vpack.c.bf16 %v5570, %v5569
      %v5594 = vpack.c.bf16 %v5572, %v5571
      %v5595 = vpack.c.bf16 %v5574, %v5573
      %v5596 = vpack.c.bf16 %v5576, %v5575
      %v5597 = vpack.c.bf16 %v5578, %v5577
      %v5598 = vpack.c.bf16 %v5580, %v5579
      %v5599 = vpack.c.bf16 %v5582, %v5581
      %v5600 = vpack.c.bf16 %v5584, %v5583
      %v5601 = vld [vmem:[%s1414 + $0x2] sm:$0xff]
      %v5602 = vld [vmem:[%s1414 + $0xa] sm:$0xff]
      %v5603 = vld [vmem:[%s1414 + $0x1a] sm:$0xff]
      %v5604 = vld [vmem:[%s1414 + $0x22] sm:$0xff]
      %v5605 = vld [vmem:[%s1414 + $0x32] sm:$0xff]
      %v5606 = vld [vmem:[%s1414 + $0x3a] sm:$0xff]
      %v5607 = vld [vmem:[%s1414 + $0x4a] sm:$0xff]
      %v5608 = vld [vmem:[%s1414 + $0x52] sm:$0xff]
      %v5609 = vld [vmem:[%s1414 + $0x62] sm:$0xff]
      %v5610 = vld [vmem:[%s1414 + $0x6a] sm:$0xff]
      %v5611 = vld [vmem:[%s1414 + $0x7a] sm:$0xff]
      %v5612 = vld [vmem:[%s1414 + $0x82] sm:$0xff]
      %v5613 = vld [vmem:[%s1414 + $0x92] sm:$0xff]
      %v5614 = vld [vmem:[%s1414 + $0x9a] sm:$0xff]
      %v5615 = vld [vmem:[%s1414 + $0xaa] sm:$0xff]
      %v5616 = vld [vmem:[%s1414 + $0xb2] sm:$0xff]
      %v5617 = vld [vmem:[%s1414 + $0xc2] sm:$0xff]
      %v5618 = vld [vmem:[%s1414 + $0xca] sm:$0xff]
      %v5619 = vld [vmem:[%s1414 + $0xda] sm:$0xff]
      %v5620 = vld [vmem:[%s1414 + $0xe2] sm:$0xff]
      %v5621 = vld [vmem:[%s1414 + $0xf2] sm:$0xff]
      %v5622 = vld [vmem:[%s1414 + $0xfa] sm:$0xff]
      %v5623 = vld [vmem:[%s1414 + $0x10a] sm:$0xff]
      %v5624 = vld [vmem:[%s1414 + $0x112] sm:$0xff]
      %v5625 = vld [vmem:[%s1414 + $0x122] sm:$0xff]
      %v5626 = vld [vmem:[%s1414 + $0x12a] sm:$0xff]
      %v5627 = vld [vmem:[%s1414 + $0x13a] sm:$0xff]
      %v5628 = vld [vmem:[%s1414 + $0x142] sm:$0xff]
      %v5629 = vld [vmem:[%s1414 + $0x152] sm:$0xff]
      %v5630 = vld [vmem:[%s1414 + $0x15a] sm:$0xff]
      %v5631 = vld [vmem:[%s1414 + $0x16a] sm:$0xff]
      %v5632 = vld [vmem:[%s1414 + $0x172] sm:$0xff]
      %v5633 = vpack.c.bf16 %v5602, %v5601
      %v5634 = vpack.c.bf16 %v5604, %v5603
      %v5635 = vpack.c.bf16 %v5606, %v5605
      %v5636 = vpack.c.bf16 %v5608, %v5607
      %v5637 = vpack.c.bf16 %v5610, %v5609
      %v5638 = vpack.c.bf16 %v5612, %v5611
      %v5639 = vpack.c.bf16 %v5614, %v5613
      %v5640 = vpack.c.bf16 %v5616, %v5615
      %v5641 = vpack.c.bf16 %v5618, %v5617
      %v5642 = vpack.c.bf16 %v5620, %v5619
      %v5643 = vpack.c.bf16 %v5622, %v5621
      %v5644 = vpack.c.bf16 %v5624, %v5623
      %v5645 = vpack.c.bf16 %v5626, %v5625
      %v5646 = vpack.c.bf16 %v5628, %v5627
      %v5647 = vpack.c.bf16 %v5630, %v5629
      %v5648 = vpack.c.bf16 %v5632, %v5631
      %s5649 = scalar_lea.vmem %s3, 1152
      %v5650 = vld [vmem:[%s5649] sm:$0xf]
      %v5651 = vld [vmem:[%s5649 + $0x4] sm:$0xf]
      %v5652 = vld [vmem:[%s5649 + $0x8] sm:$0xf]
      %v5653 = vld [vmem:[%s5649 + $0xc] sm:$0xf]
      %v5654 = vld [vmem:[%s5649 + $0x10] sm:$0xf]
      %v5655 = vld [vmem:[%s5649 + $0x14] sm:$0xf]
      %v5656 = vld [vmem:[%s5649 + $0x18] sm:$0xf]
      %v5657 = vld [vmem:[%s5649 + $0x1c] sm:$0xf]
      %v5658 = vld [vmem:[%s5649 + $0x20] sm:$0xf]
      %v5659 = vld [vmem:[%s5649 + $0x24] sm:$0xf]
      %v5660 = vld [vmem:[%s5649 + $0x28] sm:$0xf]
      %v5661 = vld [vmem:[%s5649 + $0x2c] sm:$0xf]
      %v5662 = vld [vmem:[%s5649 + $0x30] sm:$0xf]
      %v5663 = vld [vmem:[%s5649 + $0x34] sm:$0xf]
      %v5664 = vld [vmem:[%s5649 + $0x38] sm:$0xf]
      %v5665 = vld [vmem:[%s5649 + $0x3c] sm:$0xf]
      %v5666 = vld [vmem:[%s5649 + $0x40] sm:$0xf]
      %v5667 = vld [vmem:[%s5649 + $0x44] sm:$0xf]
      %v5668 = vld [vmem:[%s5649 + $0x48] sm:$0xf]
      %v5669 = vld [vmem:[%s5649 + $0x4c] sm:$0xf]
      %v5670 = vld [vmem:[%s5649 + $0x50] sm:$0xf]
      %v5671 = vld [vmem:[%s5649 + $0x54] sm:$0xf]
      %v5672 = vld [vmem:[%s5649 + $0x58] sm:$0xf]
      %v5673 = vld [vmem:[%s5649 + $0x5c] sm:$0xf]
      %v5674 = vld [vmem:[%s5649 + $0x60] sm:$0xf]
      %v5675 = vld [vmem:[%s5649 + $0x64] sm:$0xf]
      %v5676 = vld [vmem:[%s5649 + $0x68] sm:$0xf]
      %v5677 = vld [vmem:[%s5649 + $0x6c] sm:$0xf]
      %v5678 = vld [vmem:[%s5649 + $0x70] sm:$0xf]
      %v5679 = vld [vmem:[%s5649 + $0x74] sm:$0xf]
      %v5680 = vld [vmem:[%s5649 + $0x78] sm:$0xf]
      %v5681 = vld [vmem:[%s5649 + $0x7c] sm:$0xf]
      %v5682 = vld [vmem:[%s5649 + $0x80] sm:$0xf]
      %v5683 = vld [vmem:[%s5649 + $0x84] sm:$0xf]
      %v5684 = vld [vmem:[%s5649 + $0x88] sm:$0xf]
      %v5685 = vld [vmem:[%s5649 + $0x8c] sm:$0xf]
      %v5686 = vld [vmem:[%s5649 + $0x90] sm:$0xf]
      %v5687 = vld [vmem:[%s5649 + $0x94] sm:$0xf]
      %v5688 = vld [vmem:[%s5649 + $0x98] sm:$0xf]
      %v5689 = vld [vmem:[%s5649 + $0x9c] sm:$0xf]
      %v5690 = vld [vmem:[%s5649 + $0xa0] sm:$0xf]
      %v5691 = vld [vmem:[%s5649 + $0xa4] sm:$0xf]
      %v5692 = vld [vmem:[%s5649 + $0xa8] sm:$0xf]
      %v5693 = vld [vmem:[%s5649 + $0xac] sm:$0xf]
      %v5694 = vld [vmem:[%s5649 + $0xb0] sm:$0xf]
      %v5695 = vld [vmem:[%s5649 + $0xb4] sm:$0xf]
      %v5696 = vld [vmem:[%s5649 + $0xb8] sm:$0xf]
      %v5697 = vld [vmem:[%s5649 + $0xbc] sm:$0xf]
      %v5698 = vld [vmem:[%s5649 + $0xc0] sm:$0xf]
      %v5699 = vld [vmem:[%s5649 + $0xc4] sm:$0xf]
      %v5700 = vld [vmem:[%s5649 + $0xc8] sm:$0xf]
      %v5701 = vld [vmem:[%s5649 + $0xcc] sm:$0xf]
      %v5702 = vld [vmem:[%s5649 + $0xd0] sm:$0xf]
      %v5703 = vld [vmem:[%s5649 + $0xd4] sm:$0xf]
      %v5704 = vld [vmem:[%s5649 + $0xd8] sm:$0xf]
      %v5705 = vld [vmem:[%s5649 + $0xdc] sm:$0xf]
      %v5706 = vld [vmem:[%s5649 + $0xe0] sm:$0xf]
      %v5707 = vld [vmem:[%s5649 + $0xe4] sm:$0xf]
      %v5708 = vld [vmem:[%s5649 + $0xe8] sm:$0xf]
      %v5709 = vld [vmem:[%s5649 + $0xec] sm:$0xf]
      %v5710 = vld [vmem:[%s5649 + $0xf0] sm:$0xf]
      %v5711 = vld [vmem:[%s5649 + $0xf4] sm:$0xf]
      %v5712 = vld [vmem:[%s5649 + $0xf8] sm:$0xf]
      %v5713 = vld [vmem:[%s5649 + $0xfc] sm:$0xf]
      %v5714 = vld [vmem:[%s5649 + $0x100] sm:$0xf]
      %v5715 = vld [vmem:[%s5649 + $0x104] sm:$0xf]
      %v5716 = vld [vmem:[%s5649 + $0x108] sm:$0xf]
      %v5717 = vld [vmem:[%s5649 + $0x10c] sm:$0xf]
      %v5718 = vld [vmem:[%s5649 + $0x110] sm:$0xf]
      %v5719 = vld [vmem:[%s5649 + $0x114] sm:$0xf]
      %v5720 = vld [vmem:[%s5649 + $0x118] sm:$0xf]
      %v5721 = vld [vmem:[%s5649 + $0x11c] sm:$0xf]
      %v5722 = vld [vmem:[%s5649 + $0x120] sm:$0xf]
      %v5723 = vld [vmem:[%s5649 + $0x124] sm:$0xf]
      %v5724 = vld [vmem:[%s5649 + $0x128] sm:$0xf]
      %v5725 = vld [vmem:[%s5649 + $0x12c] sm:$0xf]
      %v5726 = vld [vmem:[%s5649 + $0x130] sm:$0xf]
      %v5727 = vld [vmem:[%s5649 + $0x134] sm:$0xf]
      %v5728 = vld [vmem:[%s5649 + $0x138] sm:$0xf]
      %v5729 = vld [vmem:[%s5649 + $0x13c] sm:$0xf]
      %v5730 = vld [vmem:[%s5649 + $0x140] sm:$0xf]
      %v5731 = vld [vmem:[%s5649 + $0x144] sm:$0xf]
      %v5732 = vld [vmem:[%s5649 + $0x148] sm:$0xf]
      %v5733 = vld [vmem:[%s5649 + $0x14c] sm:$0xf]
      %v5734 = vld [vmem:[%s5649 + $0x150] sm:$0xf]
      %v5735 = vld [vmem:[%s5649 + $0x154] sm:$0xf]
      %v5736 = vld [vmem:[%s5649 + $0x158] sm:$0xf]
      %v5737 = vld [vmem:[%s5649 + $0x15c] sm:$0xf]
      %v5738 = vld [vmem:[%s5649 + $0x160] sm:$0xf]
      %v5739 = vld [vmem:[%s5649 + $0x164] sm:$0xf]
      %v5740 = vld [vmem:[%s5649 + $0x168] sm:$0xf]
      %v5741 = vld [vmem:[%s5649 + $0x16c] sm:$0xf]
      %v5742 = vld [vmem:[%s5649 + $0x170] sm:$0xf]
      %v5743 = vld [vmem:[%s5649 + $0x174] sm:$0xf]
      %v5744 = vld [vmem:[%s5649 + $0x178] sm:$0xf]
      %v5745 = vld [vmem:[%s5649 + $0x17c] sm:$0xf]
      %v5746 = vld [vmem:[%s5649 + $0x180] sm:$0xf]
      %v5747 = vld [vmem:[%s5649 + $0x184] sm:$0xf]
      %v5748 = vld [vmem:[%s5649 + $0x188] sm:$0xf]
      %v5749 = vld [vmem:[%s5649 + $0x18c] sm:$0xf]
      %v5750 = vld [vmem:[%s5649 + $0x190] sm:$0xf]
      %v5751 = vld [vmem:[%s5649 + $0x194] sm:$0xf]
      %v5752 = vld [vmem:[%s5649 + $0x198] sm:$0xf]
      %v5753 = vld [vmem:[%s5649 + $0x19c] sm:$0xf]
      %v5754 = vld [vmem:[%s5649 + $0x1a0] sm:$0xf]
      %v5755 = vld [vmem:[%s5649 + $0x1a4] sm:$0xf]
      %v5756 = vld [vmem:[%s5649 + $0x1a8] sm:$0xf]
      %v5757 = vld [vmem:[%s5649 + $0x1ac] sm:$0xf]
      %v5758 = vld [vmem:[%s5649 + $0x1b0] sm:$0xf]
      %v5759 = vld [vmem:[%s5649 + $0x1b4] sm:$0xf]
      %v5760 = vld [vmem:[%s5649 + $0x1b8] sm:$0xf]
      %v5761 = vld [vmem:[%s5649 + $0x1bc] sm:$0xf]
      %v5762 = vld [vmem:[%s5649 + $0x1c0] sm:$0xf]
      %v5763 = vld [vmem:[%s5649 + $0x1c4] sm:$0xf]
      %v5764 = vld [vmem:[%s5649 + $0x1c8] sm:$0xf]
      %v5765 = vld [vmem:[%s5649 + $0x1cc] sm:$0xf]
      %v5766 = vld [vmem:[%s5649 + $0x1d0] sm:$0xf]
      %v5767 = vld [vmem:[%s5649 + $0x1d4] sm:$0xf]
      %v5768 = vld [vmem:[%s5649 + $0x1d8] sm:$0xf]
      %v5769 = vld [vmem:[%s5649 + $0x1dc] sm:$0xf]
      %v5770 = vld [vmem:[%s5649 + $0x1e0] sm:$0xf]
      %v5771 = vld [vmem:[%s5649 + $0x1e4] sm:$0xf]
      %v5772 = vld [vmem:[%s5649 + $0x1e8] sm:$0xf]
      %v5773 = vld [vmem:[%s5649 + $0x1ec] sm:$0xf]
      %v5774 = vld [vmem:[%s5649 + $0x1f0] sm:$0xf]
      %v5775 = vld [vmem:[%s5649 + $0x1f4] sm:$0xf]
      %v5776 = vld [vmem:[%s5649 + $0x1f8] sm:$0xf]
      %v5777 = vld [vmem:[%s5649 + $0x1fc] sm:$0xf]
      %v5778 = vld [vmem:[%s5649 + $0x200] sm:$0xf]
      %v5779 = vld [vmem:[%s5649 + $0x204] sm:$0xf]
      %v5780 = vld [vmem:[%s5649 + $0x208] sm:$0xf]
      %v5781 = vld [vmem:[%s5649 + $0x20c] sm:$0xf]
      %v5782 = vld [vmem:[%s5649 + $0x210] sm:$0xf]
      %v5783 = vld [vmem:[%s5649 + $0x214] sm:$0xf]
      %v5784 = vld [vmem:[%s5649 + $0x218] sm:$0xf]
      %v5785 = vld [vmem:[%s5649 + $0x21c] sm:$0xf]
      %v5786 = vld [vmem:[%s5649 + $0x220] sm:$0xf]
      %v5787 = vld [vmem:[%s5649 + $0x224] sm:$0xf]
      %v5788 = vld [vmem:[%s5649 + $0x228] sm:$0xf]
      %v5789 = vld [vmem:[%s5649 + $0x22c] sm:$0xf]
      %v5790 = vld [vmem:[%s5649 + $0x230] sm:$0xf]
      %v5791 = vld [vmem:[%s5649 + $0x234] sm:$0xf]
      %v5792 = vld [vmem:[%s5649 + $0x238] sm:$0xf]
      %v5793 = vld [vmem:[%s5649 + $0x23c] sm:$0xf]
      %s5794 = scalar_lea.vmem %s4, 2
      %v5795 = vld [vmem:[%s5794] sm:$0x1]
      %v5797 = vlaneseq
      %v5798 = vshrl.u32 %v5797, 7
      %v5799 = vsub.s32 0, %v5798
      %v5800 = vrot.slane %v5795, %v5799
      %v5946 = vunpack.c.l.b16 %v5650
      %v5947 = vunpack.c.l.b16 %v5651
      %v5948 = vunpack.c.l.b16 %v5652
      %v5949 = vunpack.c.l.b16 %v5653
      %v5950 = vunpack.c.l.b16 %v5654
      %v5951 = vunpack.c.l.b16 %v5655
      %v5952 = vunpack.c.l.b16 %v5656
      %v5953 = vunpack.c.l.b16 %v5657
      %v5954 = vunpack.c.l.b16 %v5658
      %v5955 = vunpack.c.l.b16 %v5659
      %v5956 = vunpack.c.l.b16 %v5660
      %v5957 = vunpack.c.l.b16 %v5661
      %v5958 = vunpack.c.l.b16 %v5662
      %v5959 = vunpack.c.l.b16 %v5663
      %v5960 = vunpack.c.l.b16 %v5664
      %v5961 = vunpack.c.l.b16 %v5665
      %v5962 = vunpack.c.l.b16 %v5666
      %v5963 = vunpack.c.l.b16 %v5667
      %v5964 = vunpack.c.l.b16 %v5668
      %v5965 = vunpack.c.l.b16 %v5669
      %v5966 = vunpack.c.l.b16 %v5670
      %v5967 = vunpack.c.l.b16 %v5671
      %v5968 = vunpack.c.l.b16 %v5672
      %v5969 = vunpack.c.l.b16 %v5673
      %v5970 = vunpack.c.l.b16 %v5674
      %v5971 = vunpack.c.l.b16 %v5675
      %v5972 = vunpack.c.l.b16 %v5676
      %v5973 = vunpack.c.l.b16 %v5677
      %v5974 = vunpack.c.l.b16 %v5678
      %v5975 = vunpack.c.l.b16 %v5679
      %v5976 = vunpack.c.l.b16 %v5680
      %v5977 = vunpack.c.l.b16 %v5681
      %v5978 = vunpack.c.l.b16 %v5682
      %v5979 = vunpack.c.l.b16 %v5683
      %v5980 = vunpack.c.l.b16 %v5684
      %v5981 = vunpack.c.l.b16 %v5685
      %v5982 = vunpack.c.l.b16 %v5686
      %v5983 = vunpack.c.l.b16 %v5687
      %v5984 = vunpack.c.l.b16 %v5688
      %v5985 = vunpack.c.l.b16 %v5689
      %v5986 = vunpack.c.l.b16 %v5690
      %v5987 = vunpack.c.l.b16 %v5691
      %v5988 = vunpack.c.l.b16 %v5692
      %v5989 = vunpack.c.l.b16 %v5693
      %v5990 = vunpack.c.l.b16 %v5694
      %v5991 = vunpack.c.l.b16 %v5695
      %v5992 = vunpack.c.l.b16 %v5696
      %v5993 = vunpack.c.l.b16 %v5697
      %v5994 = vunpack.c.l.b16 %v5698
      %v5995 = vunpack.c.l.b16 %v5699
      %v5996 = vunpack.c.l.b16 %v5700
      %v5997 = vunpack.c.l.b16 %v5701
      %v5998 = vunpack.c.l.b16 %v5702
      %v5999 = vunpack.c.l.b16 %v5703
      %v6000 = vunpack.c.l.b16 %v5704
      %v6001 = vunpack.c.l.b16 %v5705
      %v6002 = vunpack.c.l.b16 %v5706
      %v6003 = vunpack.c.l.b16 %v5707
      %v6004 = vunpack.c.l.b16 %v5708
      %v6005 = vunpack.c.l.b16 %v5709
      %v6006 = vunpack.c.l.b16 %v5710
      %v6007 = vunpack.c.l.b16 %v5711
      %v6008 = vunpack.c.l.b16 %v5712
      %v6009 = vunpack.c.l.b16 %v5713
      %v6010 = vunpack.c.l.b16 %v5714
      %v6011 = vunpack.c.l.b16 %v5715
      %v6012 = vunpack.c.l.b16 %v5716
      %v6013 = vunpack.c.l.b16 %v5717
      %v6014 = vunpack.c.l.b16 %v5718
      %v6015 = vunpack.c.l.b16 %v5719
      %v6016 = vunpack.c.l.b16 %v5720
      %v6017 = vunpack.c.l.b16 %v5721
      %v6018 = vunpack.c.l.b16 %v5722
      %v6019 = vunpack.c.l.b16 %v5723
      %v6020 = vunpack.c.l.b16 %v5724
      %v6021 = vunpack.c.l.b16 %v5725
      %v6022 = vunpack.c.l.b16 %v5726
      %v6023 = vunpack.c.l.b16 %v5727
      %v6024 = vunpack.c.l.b16 %v5728
      %v6025 = vunpack.c.l.b16 %v5729
      %v6026 = vunpack.c.l.b16 %v5730
      %v6027 = vunpack.c.l.b16 %v5731
      %v6028 = vunpack.c.l.b16 %v5732
      %v6029 = vunpack.c.l.b16 %v5733
      %v6030 = vunpack.c.l.b16 %v5734
      %v6031 = vunpack.c.l.b16 %v5735
      %v6032 = vunpack.c.l.b16 %v5736
      %v6033 = vunpack.c.l.b16 %v5737
      %v6034 = vunpack.c.l.b16 %v5738
      %v6035 = vunpack.c.l.b16 %v5739
      %v6036 = vunpack.c.l.b16 %v5740
      %v6037 = vunpack.c.l.b16 %v5741
      %v6038 = vunpack.c.l.b16 %v5742
      %v6039 = vunpack.c.l.b16 %v5743
      %v6040 = vunpack.c.l.b16 %v5744
      %v6041 = vunpack.c.l.b16 %v5745
      %v6042 = vunpack.c.l.b16 %v5746
      %v6043 = vunpack.c.l.b16 %v5747
      %v6044 = vunpack.c.l.b16 %v5748
      %v6045 = vunpack.c.l.b16 %v5749
      %v6046 = vunpack.c.l.b16 %v5750
      %v6047 = vunpack.c.l.b16 %v5751
      %v6048 = vunpack.c.l.b16 %v5752
      %v6049 = vunpack.c.l.b16 %v5753
      %v6050 = vunpack.c.l.b16 %v5754
      %v6051 = vunpack.c.l.b16 %v5755
      %v6052 = vunpack.c.l.b16 %v5756
      %v6053 = vunpack.c.l.b16 %v5757
      %v6054 = vunpack.c.l.b16 %v5758
      %v6055 = vunpack.c.l.b16 %v5759
      %v6056 = vunpack.c.l.b16 %v5760
      %v6057 = vunpack.c.l.b16 %v5761
      %v6058 = vunpack.c.l.b16 %v5762
      %v6059 = vunpack.c.l.b16 %v5763
      %v6060 = vunpack.c.l.b16 %v5764
      %v6061 = vunpack.c.l.b16 %v5765
      %v6062 = vunpack.c.l.b16 %v5766
      %v6063 = vunpack.c.l.b16 %v5767
      %v6064 = vunpack.c.l.b16 %v5768
      %v6065 = vunpack.c.l.b16 %v5769
      %v6066 = vunpack.c.l.b16 %v5770
      %v6067 = vunpack.c.l.b16 %v5771
      %v6068 = vunpack.c.l.b16 %v5772
      %v6069 = vunpack.c.l.b16 %v5773
      %v6070 = vunpack.c.l.b16 %v5774
      %v6071 = vunpack.c.l.b16 %v5775
      %v6072 = vunpack.c.l.b16 %v5776
      %v6073 = vunpack.c.l.b16 %v5777
      %v6074 = vunpack.c.l.b16 %v5778
      %v6075 = vunpack.c.l.b16 %v5779
      %v6076 = vunpack.c.l.b16 %v5780
      %v6077 = vunpack.c.l.b16 %v5781
      %v6078 = vunpack.c.l.b16 %v5782
      %v6079 = vunpack.c.l.b16 %v5783
      %v6080 = vunpack.c.l.b16 %v5784
      %v6081 = vunpack.c.l.b16 %v5785
      %v6082 = vunpack.c.l.b16 %v5786
      %v6083 = vunpack.c.l.b16 %v5787
      %v6084 = vunpack.c.l.b16 %v5788
      %v6085 = vunpack.c.l.b16 %v5789
      %v6086 = vunpack.c.l.b16 %v5790
      %v6087 = vunpack.c.l.b16 %v5791
      %v6088 = vunpack.c.l.b16 %v5792
      %v6089 = vunpack.c.l.b16 %v5793
      %v6090 = vpack.c.b16 %v5947, %v5946
      %v6091 = vpack.c.b16 %v5949, %v5948
      %v6092 = vpack.c.b16 %v5951, %v5950
      %v6093 = vpack.c.b16 %v5953, %v5952
      %v6094 = vpack.c.b16 %v5955, %v5954
      %v6095 = vpack.c.b16 %v5957, %v5956
      %v6096 = vpack.c.b16 %v5959, %v5958
      %v6097 = vpack.c.b16 %v5961, %v5960
      %v6098 = vpack.c.b16 %v5963, %v5962
      %v6099 = vpack.c.b16 %v5965, %v5964
      %v6100 = vpack.c.b16 %v5967, %v5966
      %v6101 = vpack.c.b16 %v5969, %v5968
      %v6102 = vpack.c.b16 %v5971, %v5970
      %v6103 = vpack.c.b16 %v5973, %v5972
      %v6104 = vpack.c.b16 %v5975, %v5974
      %v6105 = vpack.c.b16 %v5977, %v5976
      %v6106 = vpack.c.b16 %v5979, %v5978
      %v6107 = vpack.c.b16 %v5981, %v5980
      %v6108 = vpack.c.b16 %v5983, %v5982
      %v6109 = vpack.c.b16 %v5985, %v5984
      %v6110 = vpack.c.b16 %v5987, %v5986
      %v6111 = vpack.c.b16 %v5989, %v5988
      %v6112 = vpack.c.b16 %v5991, %v5990
      %v6113 = vpack.c.b16 %v5993, %v5992
      %v6114 = vpack.c.b16 %v5995, %v5994
      %v6115 = vpack.c.b16 %v5997, %v5996
      %v6116 = vpack.c.b16 %v5999, %v5998
      %v6117 = vpack.c.b16 %v6001, %v6000
      %v6118 = vpack.c.b16 %v6003, %v6002
      %v6119 = vpack.c.b16 %v6005, %v6004
      %v6120 = vpack.c.b16 %v6007, %v6006
      %v6121 = vpack.c.b16 %v6009, %v6008
      %v6122 = vpack.c.b16 %v6011, %v6010
      %v6123 = vpack.c.b16 %v6013, %v6012
      %v6124 = vpack.c.b16 %v6015, %v6014
      %v6125 = vpack.c.b16 %v6017, %v6016
      %v6126 = vpack.c.b16 %v6019, %v6018
      %v6127 = vpack.c.b16 %v6021, %v6020
      %v6128 = vpack.c.b16 %v6023, %v6022
      %v6129 = vpack.c.b16 %v6025, %v6024
      %v6130 = vpack.c.b16 %v6027, %v6026
      %v6131 = vpack.c.b16 %v6029, %v6028
      %v6132 = vpack.c.b16 %v6031, %v6030
      %v6133 = vpack.c.b16 %v6033, %v6032
      %v6134 = vpack.c.b16 %v6035, %v6034
      %v6135 = vpack.c.b16 %v6037, %v6036
      %v6136 = vpack.c.b16 %v6039, %v6038
      %v6137 = vpack.c.b16 %v6041, %v6040
      %v6138 = vpack.c.b16 %v6043, %v6042
      %v6139 = vpack.c.b16 %v6045, %v6044
      %v6140 = vpack.c.b16 %v6047, %v6046
      %v6141 = vpack.c.b16 %v6049, %v6048
      %v6142 = vpack.c.b16 %v6051, %v6050
      %v6143 = vpack.c.b16 %v6053, %v6052
      %v6144 = vpack.c.b16 %v6055, %v6054
      %v6145 = vpack.c.b16 %v6057, %v6056
      %v6146 = vpack.c.b16 %v6059, %v6058
      %v6147 = vpack.c.b16 %v6061, %v6060
      %v6148 = vpack.c.b16 %v6063, %v6062
      %v6149 = vpack.c.b16 %v6065, %v6064
      %v6150 = vpack.c.b16 %v6067, %v6066
      %v6151 = vpack.c.b16 %v6069, %v6068
      %v6152 = vpack.c.b16 %v6071, %v6070
      %v6153 = vpack.c.b16 %v6073, %v6072
      %v6154 = vpack.c.b16 %v6075, %v6074
      %v6155 = vpack.c.b16 %v6077, %v6076
      %v6156 = vpack.c.b16 %v6079, %v6078
      %v6157 = vpack.c.b16 %v6081, %v6080
      %v6158 = vpack.c.b16 %v6083, %v6082
      %v6159 = vpack.c.b16 %v6085, %v6084
      %v6160 = vpack.c.b16 %v6087, %v6086
      %v6161 = vpack.c.b16 %v6089, %v6088
      %6234 = vmatprep.subr.bf16.mxu0 0
      %6235 = vmatpush1.bf16.msra.mxu0 %v6097
      %6236 = vmatprep.subr.bf16.mxu0 0
      %6237 = vmatpush1.bf16.msra.mxu0 %v6096
      %6238 = vmatprep.subr.bf16.mxu0 0
      %6239 = vmatpush1.bf16.msra.mxu0 %v6095
      %6240 = vmatprep.subr.bf16.mxu0 0
      %6241 = vmatpush1.bf16.msra.mxu0 %v6094
      %6242 = vmatprep.subr.bf16.mxu0 0
      %6243 = vmatpush1.bf16.msra.mxu0 %v6093
      %6244 = vmatprep.subr.bf16.mxu0 0
      %6245 = vmatpush1.bf16.msra.mxu0 %v6092
      %6246 = vmatprep.subr.bf16.mxu0 0
      %6247 = vmatpush1.bf16.msra.mxu0 %v6091
      %6248 = vmatprep.subr.bf16.mxu0 0
      %6249 = vmatpush1.bf16.msra.mxu0 %v6090
      %6250 = vmatprep.subr.bf16.mxu0 0
      %6251 = vmatpush2.bf16.msra.mxu0 %v6105
      %6252 = vmatprep.subr.bf16.mxu0 0
      %6253 = vmatpush2.bf16.msra.mxu0 %v6104
      %6254 = vmatprep.subr.bf16.mxu0 0
      %6255 = vmatpush2.bf16.msra.mxu0 %v6103
      %6256 = vmatprep.subr.bf16.mxu0 0
      %6257 = vmatpush2.bf16.msra.mxu0 %v6102
      %6258 = vmatprep.subr.bf16.mxu0 0
      %6259 = vmatpush2.bf16.msra.mxu0 %v6101
      %6260 = vmatprep.subr.bf16.mxu0 0
      %6261 = vmatpush2.bf16.msra.mxu0 %v6100
      %6262 = vmatprep.subr.bf16.mxu0 0
      %6263 = vmatpush2.bf16.msra.mxu0 %v6099
      %6264 = vmatprep.subr.bf16.mxu0 0
      %6265 = vmatpush2.bf16.msra.mxu0 %v6098
      %6266 = vmatprep.mubr.bf16.mxu0 %v5297
      %6267 = vmatmul.mubr.bf16.gmra.mxu0 %v5249
      %v6268 = vpop.f32.mrf.mxu0
      %v6269 = vadd.f32 %v5800, %v6268
      %v6270 = vpop.f32.mrf.mxu0
      %v6271 = vpop.f32.mrf.mxu0
      %v6272 = vadd.f32 %v5800, %v6271
      %v6273 = vpop.f32.mrf.mxu0
      %6274 = vmatprep.mubr.bf16.mxu0 %v5298
      %6275 = vmatmul.mubr.bf16.gmra.mxu0 %v5250
      %v6276 = vpop.f32.mrf.mxu0
      %v6277 = vadd.f32 %v5800, %v6276
      %v6278 = vpop.f32.mrf.mxu0
      %v6279 = vpop.f32.mrf.mxu0
      %v6280 = vadd.f32 %v5800, %v6279
      %v6281 = vpop.f32.mrf.mxu0
      %6282 = vmatprep.mubr.bf16.mxu0 %v5299
      %6283 = vmatmul.mubr.bf16.gmra.mxu0 %v5251
      %v6284 = vpop.f32.mrf.mxu0
      %v6285 = vadd.f32 %v5800, %v6284
      %v6286 = vpop.f32.mrf.mxu0
      %v6287 = vpop.f32.mrf.mxu0
      %v6288 = vadd.f32 %v5800, %v6287
      %v6289 = vpop.f32.mrf.mxu0
      %6290 = vmatprep.mubr.bf16.mxu0 %v5300
      %6291 = vmatmul.mubr.bf16.gmra.mxu0 %v5252
      %v6292 = vpop.f32.mrf.mxu0
      %v6293 = vadd.f32 %v5800, %v6292
      %v6294 = vpop.f32.mrf.mxu0
      %v6295 = vpop.f32.mrf.mxu0
      %v6296 = vadd.f32 %v5800, %v6295
      %v6297 = vpop.f32.mrf.mxu0
      %6298 = vmatprep.mubr.bf16.mxu0 %v5301
      %6299 = vmatmul.mubr.bf16.gmra.mxu0 %v5253
      %v6300 = vpop.f32.mrf.mxu0
      %v6301 = vadd.f32 %v5800, %v6300
      %v6302 = vpop.f32.mrf.mxu0
      %v6303 = vpop.f32.mrf.mxu0
      %v6304 = vadd.f32 %v5800, %v6303
      %v6305 = vpop.f32.mrf.mxu0
      %6306 = vmatprep.mubr.bf16.mxu0 %v5302
      %6307 = vmatmul.mubr.bf16.gmra.mxu0 %v5254
      %v6308 = vpop.f32.mrf.mxu0
      %v6309 = vadd.f32 %v5800, %v6308
      %v6310 = vpop.f32.mrf.mxu0
      %v6311 = vpop.f32.mrf.mxu0
      %v6312 = vadd.f32 %v5800, %v6311
      %v6313 = vpop.f32.mrf.mxu0
      %6314 = vmatprep.mubr.bf16.mxu0 %v5303
      %6315 = vmatmul.mubr.bf16.gmra.mxu0 %v5255
      %v6316 = vpop.f32.mrf.mxu0
      %v6317 = vadd.f32 %v5800, %v6316
      %v6318 = vpop.f32.mrf.mxu0
      %v6319 = vpop.f32.mrf.mxu0
      %v6320 = vadd.f32 %v5800, %v6319
      %v6321 = vpop.f32.mrf.mxu0
      %6322 = vmatprep.mubr.bf16.mxu0 %v5304
      %6323 = vmatmul.mubr.bf16.gmra.mxu0 %v5256
      %v6324 = vpop.f32.mrf.mxu0
      %v6325 = vadd.f32 %v5800, %v6324
      %v6326 = vpop.f32.mrf.mxu0
      %v6327 = vpop.f32.mrf.mxu0
      %v6328 = vadd.f32 %v5800, %v6327
      %v6329 = vpop.f32.mrf.mxu0
      %6330 = vmatprep.mubr.bf16.mxu0 %v5305
      %6331 = vmatmul.mubr.bf16.gmra.mxu0 %v5257
      %v6332 = vpop.f32.mrf.mxu0
      %v6333 = vadd.f32 %v5800, %v6332
      %v6334 = vpop.f32.mrf.mxu0
      %v6335 = vpop.f32.mrf.mxu0
      %v6336 = vadd.f32 %v5800, %v6335
      %v6337 = vpop.f32.mrf.mxu0
      %6338 = vmatprep.mubr.bf16.mxu0 %v5306
      %6339 = vmatmul.mubr.bf16.gmra.mxu0 %v5258
      %v6340 = vpop.f32.mrf.mxu0
      %v6341 = vadd.f32 %v5800, %v6340
      %v6342 = vpop.f32.mrf.mxu0
      %v6343 = vpop.f32.mrf.mxu0
      %v6344 = vadd.f32 %v5800, %v6343
      %v6345 = vpop.f32.mrf.mxu0
      %6346 = vmatprep.mubr.bf16.mxu0 %v5307
      %6347 = vmatmul.mubr.bf16.gmra.mxu0 %v5259
      %v6348 = vpop.f32.mrf.mxu0
      %v6349 = vadd.f32 %v5800, %v6348
      %v6350 = vpop.f32.mrf.mxu0
      %v6351 = vpop.f32.mrf.mxu0
      %v6352 = vadd.f32 %v5800, %v6351
      %v6353 = vpop.f32.mrf.mxu0
      %6354 = vmatprep.mubr.bf16.mxu0 %v5308
      %6355 = vmatmul.mubr.bf16.gmra.mxu0 %v5260
      %v6356 = vpop.f32.mrf.mxu0
      %v6357 = vadd.f32 %v5800, %v6356
      %v6358 = vpop.f32.mrf.mxu0
      %v6359 = vpop.f32.mrf.mxu0
      %v6360 = vadd.f32 %v5800, %v6359
      %v6361 = vpop.f32.mrf.mxu0
      %6362 = vmatprep.mubr.bf16.mxu0 %v5309
      %6363 = vmatmul.mubr.bf16.gmra.mxu0 %v5261
      %v6364 = vpop.f32.mrf.mxu0
      %v6365 = vadd.f32 %v5800, %v6364
      %v6366 = vpop.f32.mrf.mxu0
      %v6367 = vpop.f32.mrf.mxu0
      %v6368 = vadd.f32 %v5800, %v6367
      %v6369 = vpop.f32.mrf.mxu0
      %6370 = vmatprep.mubr.bf16.mxu0 %v5310
      %6371 = vmatmul.mubr.bf16.gmra.mxu0 %v5262
      %v6372 = vpop.f32.mrf.mxu0
      %v6373 = vadd.f32 %v5800, %v6372
      %v6374 = vpop.f32.mrf.mxu0
      %v6375 = vpop.f32.mrf.mxu0
      %v6376 = vadd.f32 %v5800, %v6375
      %v6377 = vpop.f32.mrf.mxu0
      %6378 = vmatprep.mubr.bf16.mxu0 %v5311
      %6379 = vmatmul.mubr.bf16.gmra.mxu0 %v5263
      %v6380 = vpop.f32.mrf.mxu0
      %v6381 = vadd.f32 %v5800, %v6380
      %v6382 = vpop.f32.mrf.mxu0
      %v6383 = vpop.f32.mrf.mxu0
      %v6384 = vadd.f32 %v5800, %v6383
      %v6385 = vpop.f32.mrf.mxu0
      %6386 = vmatprep.mubr.bf16.mxu0 %v5312
      %6387 = vmatmul.mubr.bf16.gmra.mxu0 %v5264
      %v6388 = vpop.f32.mrf.mxu0
      %v6389 = vadd.f32 %v5800, %v6388
      %v6390 = vpop.f32.mrf.mxu0
      %v6391 = vpop.f32.mrf.mxu0
      %v6392 = vadd.f32 %v5800, %v6391
      %v6393 = vpop.f32.mrf.mxu0
      %6394 = vdwg.mxu0
      %6395 = vmatprep.subr.bf16.mxu0 0
      %6396 = vmatpush1.bf16.msra.mxu0 %v6113
      %6397 = vmatprep.subr.bf16.mxu0 0
      %6398 = vmatpush1.bf16.msra.mxu0 %v6112
      %6399 = vmatprep.subr.bf16.mxu0 0
      %6400 = vmatpush1.bf16.msra.mxu0 %v6111
      %6401 = vmatprep.subr.bf16.mxu0 0
      %6402 = vmatpush1.bf16.msra.mxu0 %v6110
      %6403 = vmatprep.subr.bf16.mxu0 0
      %6404 = vmatpush1.bf16.msra.mxu0 %v6109
      %6405 = vmatprep.subr.bf16.mxu0 0
      %6406 = vmatpush1.bf16.msra.mxu0 %v6108
      %6407 = vmatprep.subr.bf16.mxu0 0
      %6408 = vmatpush1.bf16.msra.mxu0 %v6107
      %6409 = vmatprep.subr.bf16.mxu0 0
      %6410 = vmatpush1.bf16.msra.mxu0 %v6106
      %6411 = vmatprep.subr.bf16.mxu0 0
      %6412 = vmatpush2.bf16.msra.mxu0 %v6121
      %6413 = vmatprep.subr.bf16.mxu0 0
      %6414 = vmatpush2.bf16.msra.mxu0 %v6120
      %6415 = vmatprep.subr.bf16.mxu0 0
      %6416 = vmatpush2.bf16.msra.mxu0 %v6119
      %6417 = vmatprep.subr.bf16.mxu0 0
      %6418 = vmatpush2.bf16.msra.mxu0 %v6118
      %6419 = vmatprep.subr.bf16.mxu0 0
      %6420 = vmatpush2.bf16.msra.mxu0 %v6117
      %6421 = vmatprep.subr.bf16.mxu0 0
      %6422 = vmatpush2.bf16.msra.mxu0 %v6116
      %6423 = vmatprep.subr.bf16.mxu0 0
      %6424 = vmatpush2.bf16.msra.mxu0 %v6115
      %6425 = vmatprep.subr.bf16.mxu0 0
      %6426 = vmatpush2.bf16.msra.mxu0 %v6114
      %6427 = vmatprep.mubr.bf16.mxu0 %v5393
      %6428 = vmatmul.mubr.bf16.gmra.mxu0 %v5345
      %v6429 = vpop.f32.mrf.mxu0
      %v6430 = vadd.f32 %v6269, %v6429
      %v6431 = vpop.f32.mrf.mxu0
      %v6432 = vpop.f32.mrf.mxu0
      %v6433 = vadd.f32 %v6272, %v6432
      %v6434 = vpop.f32.mrf.mxu0
      %6435 = vmatprep.mubr.bf16.mxu0 %v5394
      %6436 = vmatmul.mubr.bf16.gmra.mxu0 %v5346
      %v6437 = vpop.f32.mrf.mxu0
      %v6438 = vadd.f32 %v6277, %v6437
      %v6439 = vpop.f32.mrf.mxu0
      %v6440 = vpop.f32.mrf.mxu0
      %v6441 = vadd.f32 %v6280, %v6440
      %v6442 = vpop.f32.mrf.mxu0
      %6443 = vmatprep.mubr.bf16.mxu0 %v5395
      %6444 = vmatmul.mubr.bf16.gmra.mxu0 %v5347
      %v6445 = vpop.f32.mrf.mxu0
      %v6446 = vadd.f32 %v6285, %v6445
      %v6447 = vpop.f32.mrf.mxu0
      %v6448 = vpop.f32.mrf.mxu0
      %v6449 = vadd.f32 %v6288, %v6448
      %v6450 = vpop.f32.mrf.mxu0
      %6451 = vmatprep.mubr.bf16.mxu0 %v5396
      %6452 = vmatmul.mubr.bf16.gmra.mxu0 %v5348
      %v6453 = vpop.f32.mrf.mxu0
      %v6454 = vadd.f32 %v6293, %v6453
      %v6455 = vpop.f32.mrf.mxu0
      %v6456 = vpop.f32.mrf.mxu0
      %v6457 = vadd.f32 %v6296, %v6456
      %v6458 = vpop.f32.mrf.mxu0
      %6459 = vmatprep.mubr.bf16.mxu0 %v5397
      %6460 = vmatmul.mubr.bf16.gmra.mxu0 %v5349
      %v6461 = vpop.f32.mrf.mxu0
      %v6462 = vadd.f32 %v6301, %v6461
      %v6463 = vpop.f32.mrf.mxu0
      %v6464 = vpop.f32.mrf.mxu0
      %v6465 = vadd.f32 %v6304, %v6464
      %v6466 = vpop.f32.mrf.mxu0
      %6467 = vmatprep.mubr.bf16.mxu0 %v5398
      %6468 = vmatmul.mubr.bf16.gmra.mxu0 %v5350
      %v6469 = vpop.f32.mrf.mxu0
      %v6470 = vadd.f32 %v6309, %v6469
      %v6471 = vpop.f32.mrf.mxu0
      %v6472 = vpop.f32.mrf.mxu0
      %v6473 = vadd.f32 %v6312, %v6472
      %v6474 = vpop.f32.mrf.mxu0
      %6475 = vmatprep.mubr.bf16.mxu0 %v5399
      %6476 = vmatmul.mubr.bf16.gmra.mxu0 %v5351
      %v6477 = vpop.f32.mrf.mxu0
      %v6478 = vadd.f32 %v6317, %v6477
      %v6479 = vpop.f32.mrf.mxu0
      %v6480 = vpop.f32.mrf.mxu0
      %v6481 = vadd.f32 %v6320, %v6480
      %v6482 = vpop.f32.mrf.mxu0
      %6483 = vmatprep.mubr.bf16.mxu0 %v5400
      %6484 = vmatmul.mubr.bf16.gmra.mxu0 %v5352
      %v6485 = vpop.f32.mrf.mxu0
      %v6486 = vadd.f32 %v6325, %v6485
      %v6487 = vpop.f32.mrf.mxu0
      %v6488 = vpop.f32.mrf.mxu0
      %v6489 = vadd.f32 %v6328, %v6488
      %v6490 = vpop.f32.mrf.mxu0
      %6491 = vmatprep.mubr.bf16.mxu0 %v5401
      %6492 = vmatmul.mubr.bf16.gmra.mxu0 %v5353
      %v6493 = vpop.f32.mrf.mxu0
      %v6494 = vadd.f32 %v6333, %v6493
      %v6495 = vpop.f32.mrf.mxu0
      %v6496 = vpop.f32.mrf.mxu0
      %v6497 = vadd.f32 %v6336, %v6496
      %v6498 = vpop.f32.mrf.mxu0
      %6499 = vmatprep.mubr.bf16.mxu0 %v5402
      %6500 = vmatmul.mubr.bf16.gmra.mxu0 %v5354
      %v6501 = vpop.f32.mrf.mxu0
      %v6502 = vadd.f32 %v6341, %v6501
      %v6503 = vpop.f32.mrf.mxu0
      %v6504 = vpop.f32.mrf.mxu0
      %v6505 = vadd.f32 %v6344, %v6504
      %v6506 = vpop.f32.mrf.mxu0
      %6507 = vmatprep.mubr.bf16.mxu0 %v5403
      %6508 = vmatmul.mubr.bf16.gmra.mxu0 %v5355
      %v6509 = vpop.f32.mrf.mxu0
      %v6510 = vadd.f32 %v6349, %v6509
      %v6511 = vpop.f32.mrf.mxu0
      %v6512 = vpop.f32.mrf.mxu0
      %v6513 = vadd.f32 %v6352, %v6512
      %v6514 = vpop.f32.mrf.mxu0
      %6515 = vmatprep.mubr.bf16.mxu0 %v5404
      %6516 = vmatmul.mubr.bf16.gmra.mxu0 %v5356
      %v6517 = vpop.f32.mrf.mxu0
      %v6518 = vadd.f32 %v6357, %v6517
      %v6519 = vpop.f32.mrf.mxu0
      %v6520 = vpop.f32.mrf.mxu0
      %v6521 = vadd.f32 %v6360, %v6520
      %v6522 = vpop.f32.mrf.mxu0
      %6523 = vmatprep.mubr.bf16.mxu0 %v5405
      %6524 = vmatmul.mubr.bf16.gmra.mxu0 %v5357
      %v6525 = vpop.f32.mrf.mxu0
      %v6526 = vadd.f32 %v6365, %v6525
      %v6527 = vpop.f32.mrf.mxu0
      %v6528 = vpop.f32.mrf.mxu0
      %v6529 = vadd.f32 %v6368, %v6528
      %v6530 = vpop.f32.mrf.mxu0
      %6531 = vmatprep.mubr.bf16.mxu0 %v5406
      %6532 = vmatmul.mubr.bf16.gmra.mxu0 %v5358
      %v6533 = vpop.f32.mrf.mxu0
      %v6534 = vadd.f32 %v6373, %v6533
      %v6535 = vpop.f32.mrf.mxu0
      %v6536 = vpop.f32.mrf.mxu0
      %v6537 = vadd.f32 %v6376, %v6536
      %v6538 = vpop.f32.mrf.mxu0
      %6539 = vmatprep.mubr.bf16.mxu0 %v5407
      %6540 = vmatmul.mubr.bf16.gmra.mxu0 %v5359
      %v6541 = vpop.f32.mrf.mxu0
      %v6542 = vadd.f32 %v6381, %v6541
      %v6543 = vpop.f32.mrf.mxu0
      %v6544 = vpop.f32.mrf.mxu0
      %v6545 = vadd.f32 %v6384, %v6544
      %v6546 = vpop.f32.mrf.mxu0
      %6547 = vmatprep.mubr.bf16.mxu0 %v5408
      %6548 = vmatmul.mubr.bf16.gmra.mxu0 %v5360
      %v6549 = vpop.f32.mrf.mxu0
      %v6550 = vadd.f32 %v6389, %v6549
      %v6551 = vpop.f32.mrf.mxu0
      %v6552 = vpop.f32.mrf.mxu0
      %v6553 = vadd.f32 %v6392, %v6552
      %v6554 = vpop.f32.mrf.mxu0
      %6555 = vdwg.mxu0
      %6556 = vmatprep.subr.bf16.mxu0 0
      %6557 = vmatpush1.bf16.msra.mxu0 %v6129
      %6558 = vmatprep.subr.bf16.mxu0 0
      %6559 = vmatpush1.bf16.msra.mxu0 %v6128
      %6560 = vmatprep.subr.bf16.mxu0 0
      %6561 = vmatpush1.bf16.msra.mxu0 %v6127
      %6562 = vmatprep.subr.bf16.mxu0 0
      %6563 = vmatpush1.bf16.msra.mxu0 %v6126
      %6564 = vmatprep.subr.bf16.mxu0 0
      %6565 = vmatpush1.bf16.msra.mxu0 %v6125
      %6566 = vmatprep.subr.bf16.mxu0 0
      %6567 = vmatpush1.bf16.msra.mxu0 %v6124
      %6568 = vmatprep.subr.bf16.mxu0 0
      %6569 = vmatpush1.bf16.msra.mxu0 %v6123
      %6570 = vmatprep.subr.bf16.mxu0 0
      %6571 = vmatpush1.bf16.msra.mxu0 %v6122
      %6572 = vmatprep.subr.bf16.mxu0 0
      %6573 = vmatpush2.bf16.msra.mxu0 %v6137
      %6574 = vmatprep.subr.bf16.mxu0 0
      %6575 = vmatpush2.bf16.msra.mxu0 %v6136
      %6576 = vmatprep.subr.bf16.mxu0 0
      %6577 = vmatpush2.bf16.msra.mxu0 %v6135
      %6578 = vmatprep.subr.bf16.mxu0 0
      %6579 = vmatpush2.bf16.msra.mxu0 %v6134
      %6580 = vmatprep.subr.bf16.mxu0 0
      %6581 = vmatpush2.bf16.msra.mxu0 %v6133
      %6582 = vmatprep.subr.bf16.mxu0 0
      %6583 = vmatpush2.bf16.msra.mxu0 %v6132
      %6584 = vmatprep.subr.bf16.mxu0 0
      %6585 = vmatpush2.bf16.msra.mxu0 %v6131
      %6586 = vmatprep.subr.bf16.mxu0 0
      %6587 = vmatpush2.bf16.msra.mxu0 %v6130
      %6588 = vmatprep.mubr.bf16.mxu0 %v5489
      %6589 = vmatmul.mubr.bf16.gmra.mxu0 %v5441
      %v6590 = vpop.f32.mrf.mxu0
      %v6591 = vadd.f32 %v6430, %v6590
      %v6592 = vpop.f32.mrf.mxu0
      %v6593 = vpop.f32.mrf.mxu0
      %v6594 = vadd.f32 %v6433, %v6593
      %v6595 = vpop.f32.mrf.mxu0
      %6596 = vmatprep.mubr.bf16.mxu0 %v5490
      %6597 = vmatmul.mubr.bf16.gmra.mxu0 %v5442
      %v6598 = vpop.f32.mrf.mxu0
      %v6599 = vadd.f32 %v6438, %v6598
      %v6600 = vpop.f32.mrf.mxu0
      %v6601 = vpop.f32.mrf.mxu0
      %v6602 = vadd.f32 %v6441, %v6601
      %v6603 = vpop.f32.mrf.mxu0
      %6604 = vmatprep.mubr.bf16.mxu0 %v5491
      %6605 = vmatmul.mubr.bf16.gmra.mxu0 %v5443
      %v6606 = vpop.f32.mrf.mxu0
      %v6607 = vadd.f32 %v6446, %v6606
      %v6608 = vpop.f32.mrf.mxu0
      %v6609 = vpop.f32.mrf.mxu0
      %v6610 = vadd.f32 %v6449, %v6609
      %v6611 = vpop.f32.mrf.mxu0
      %6612 = vmatprep.mubr.bf16.mxu0 %v5492
      %6613 = vmatmul.mubr.bf16.gmra.mxu0 %v5444
      %v6614 = vpop.f32.mrf.mxu0
      %v6615 = vadd.f32 %v6454, %v6614
      %v6616 = vpop.f32.mrf.mxu0
      %v6617 = vpop.f32.mrf.mxu0
      %v6618 = vadd.f32 %v6457, %v6617
      %v6619 = vpop.f32.mrf.mxu0
      %6620 = vmatprep.mubr.bf16.mxu0 %v5493
      %6621 = vmatmul.mubr.bf16.gmra.mxu0 %v5445
      %v6622 = vpop.f32.mrf.mxu0
      %v6623 = vadd.f32 %v6462, %v6622
      %v6624 = vpop.f32.mrf.mxu0
      %v6625 = vpop.f32.mrf.mxu0
      %v6626 = vadd.f32 %v6465, %v6625
      %v6627 = vpop.f32.mrf.mxu0
      %6628 = vmatprep.mubr.bf16.mxu0 %v5494
      %6629 = vmatmul.mubr.bf16.gmra.mxu0 %v5446
      %v6630 = vpop.f32.mrf.mxu0
      %v6631 = vadd.f32 %v6470, %v6630
      %v6632 = vpop.f32.mrf.mxu0
      %v6633 = vpop.f32.mrf.mxu0
      %v6634 = vadd.f32 %v6473, %v6633
      %v6635 = vpop.f32.mrf.mxu0
      %6636 = vmatprep.mubr.bf16.mxu0 %v5495
      %6637 = vmatmul.mubr.bf16.gmra.mxu0 %v5447
      %v6638 = vpop.f32.mrf.mxu0
      %v6639 = vadd.f32 %v6478, %v6638
      %v6640 = vpop.f32.mrf.mxu0
      %v6641 = vpop.f32.mrf.mxu0
      %v6642 = vadd.f32 %v6481, %v6641
      %v6643 = vpop.f32.mrf.mxu0
      %6644 = vmatprep.mubr.bf16.mxu0 %v5496
      %6645 = vmatmul.mubr.bf16.gmra.mxu0 %v5448
      %v6646 = vpop.f32.mrf.mxu0
      %v6647 = vadd.f32 %v6486, %v6646
      %v6648 = vpop.f32.mrf.mxu0
      %v6649 = vpop.f32.mrf.mxu0
      %v6650 = vadd.f32 %v6489, %v6649
      %v6651 = vpop.f32.mrf.mxu0
      %6652 = vmatprep.mubr.bf16.mxu0 %v5497
      %6653 = vmatmul.mubr.bf16.gmra.mxu0 %v5449
      %v6654 = vpop.f32.mrf.mxu0
      %v6655 = vadd.f32 %v6494, %v6654
      %v6656 = vpop.f32.mrf.mxu0
      %v6657 = vpop.f32.mrf.mxu0
      %v6658 = vadd.f32 %v6497, %v6657
      %v6659 = vpop.f32.mrf.mxu0
      %6660 = vmatprep.mubr.bf16.mxu0 %v5498
      %6661 = vmatmul.mubr.bf16.gmra.mxu0 %v5450
      %v6662 = vpop.f32.mrf.mxu0
      %v6663 = vadd.f32 %v6502, %v6662
      %v6664 = vpop.f32.mrf.mxu0
      %v6665 = vpop.f32.mrf.mxu0
      %v6666 = vadd.f32 %v6505, %v6665
      %v6667 = vpop.f32.mrf.mxu0
      %6668 = vmatprep.mubr.bf16.mxu0 %v5499
      %6669 = vmatmul.mubr.bf16.gmra.mxu0 %v5451
      %v6670 = vpop.f32.mrf.mxu0
      %v6671 = vadd.f32 %v6510, %v6670
      %v6672 = vpop.f32.mrf.mxu0
      %v6673 = vpop.f32.mrf.mxu0
      %v6674 = vadd.f32 %v6513, %v6673
      %v6675 = vpop.f32.mrf.mxu0
      %6676 = vmatprep.mubr.bf16.mxu0 %v5500
      %6677 = vmatmul.mubr.bf16.gmra.mxu0 %v5452
      %v6678 = vpop.f32.mrf.mxu0
      %v6679 = vadd.f32 %v6518, %v6678
      %v6680 = vpop.f32.mrf.mxu0
      %v6681 = vpop.f32.mrf.mxu0
      %v6682 = vadd.f32 %v6521, %v6681
      %v6683 = vpop.f32.mrf.mxu0
      %6684 = vmatprep.mubr.bf16.mxu0 %v5501
      %6685 = vmatmul.mubr.bf16.gmra.mxu0 %v5453
      %v6686 = vpop.f32.mrf.mxu0
      %v6687 = vadd.f32 %v6526, %v6686
      %v6688 = vpop.f32.mrf.mxu0
      %v6689 = vpop.f32.mrf.mxu0
      %v6690 = vadd.f32 %v6529, %v6689
      %v6691 = vpop.f32.mrf.mxu0
      %6692 = vmatprep.mubr.bf16.mxu0 %v5502
      %6693 = vmatmul.mubr.bf16.gmra.mxu0 %v5454
      %v6694 = vpop.f32.mrf.mxu0
      %v6695 = vadd.f32 %v6534, %v6694
      %v6696 = vpop.f32.mrf.mxu0
      %v6697 = vpop.f32.mrf.mxu0
      %v6698 = vadd.f32 %v6537, %v6697
      %v6699 = vpop.f32.mrf.mxu0
      %6700 = vmatprep.mubr.bf16.mxu0 %v5503
      %6701 = vmatmul.mubr.bf16.gmra.mxu0 %v5455
      %v6702 = vpop.f32.mrf.mxu0
      %v6703 = vadd.f32 %v6542, %v6702
      %v6704 = vpop.f32.mrf.mxu0
      %v6705 = vpop.f32.mrf.mxu0
      %v6706 = vadd.f32 %v6545, %v6705
      %v6707 = vpop.f32.mrf.mxu0
      %6708 = vmatprep.mubr.bf16.mxu0 %v5504
      %6709 = vmatmul.mubr.bf16.gmra.mxu0 %v5456
      %v6710 = vpop.f32.mrf.mxu0
      %v6711 = vadd.f32 %v6550, %v6710
      %v6712 = vpop.f32.mrf.mxu0
      %v6713 = vpop.f32.mrf.mxu0
      %v6714 = vadd.f32 %v6553, %v6713
      %v6715 = vpop.f32.mrf.mxu0
      %6716 = vdwg.mxu0
      %6717 = vmatprep.subr.bf16.mxu0 0
      %6718 = vmatpush1.bf16.msra.mxu0 %v6145
      %6719 = vmatprep.subr.bf16.mxu0 0
      %6720 = vmatpush1.bf16.msra.mxu0 %v6144
      %6721 = vmatprep.subr.bf16.mxu0 0
      %6722 = vmatpush1.bf16.msra.mxu0 %v6143
      %6723 = vmatprep.subr.bf16.mxu0 0
      %6724 = vmatpush1.bf16.msra.mxu0 %v6142
      %6725 = vmatprep.subr.bf16.mxu0 0
      %6726 = vmatpush1.bf16.msra.mxu0 %v6141
      %6727 = vmatprep.subr.bf16.mxu0 0
      %6728 = vmatpush1.bf16.msra.mxu0 %v6140
      %6729 = vmatprep.subr.bf16.mxu0 0
      %6730 = vmatpush1.bf16.msra.mxu0 %v6139
      %6731 = vmatprep.subr.bf16.mxu0 0
      %6732 = vmatpush1.bf16.msra.mxu0 %v6138
      %6733 = vmatprep.subr.bf16.mxu0 0
      %6734 = vmatpush2.bf16.msra.mxu0 %v6153
      %6735 = vmatprep.subr.bf16.mxu0 0
      %6736 = vmatpush2.bf16.msra.mxu0 %v6152
      %6737 = vmatprep.subr.bf16.mxu0 0
      %6738 = vmatpush2.bf16.msra.mxu0 %v6151
      %6739 = vmatprep.subr.bf16.mxu0 0
      %6740 = vmatpush2.bf16.msra.mxu0 %v6150
      %6741 = vmatprep.subr.bf16.mxu0 0
      %6742 = vmatpush2.bf16.msra.mxu0 %v6149
      %6743 = vmatprep.subr.bf16.mxu0 0
      %6744 = vmatpush2.bf16.msra.mxu0 %v6148
      %6745 = vmatprep.subr.bf16.mxu0 0
      %6746 = vmatpush2.bf16.msra.mxu0 %v6147
      %6747 = vmatprep.subr.bf16.mxu0 0
      %6748 = vmatpush2.bf16.msra.mxu0 %v6146
      %6749 = vmatprep.mubr.bf16.mxu0 %v5585
      %6750 = vmatmul.mubr.bf16.gmra.mxu0 %v5537
      %v6751 = vpop.f32.mrf.mxu0
      %v6752 = vadd.f32 %v6591, %v6751
      %v6753 = vpop.f32.mrf.mxu0
      %v6754 = vpop.f32.mrf.mxu0
      %v6755 = vadd.f32 %v6594, %v6754
      %v6756 = vpop.f32.mrf.mxu0
      %6757 = vmatprep.mubr.bf16.mxu0 %v5586
      %6758 = vmatmul.mubr.bf16.gmra.mxu0 %v5538
      %v6759 = vpop.f32.mrf.mxu0
      %v6760 = vadd.f32 %v6599, %v6759
      %v6761 = vpop.f32.mrf.mxu0
      %v6762 = vpop.f32.mrf.mxu0
      %v6763 = vadd.f32 %v6602, %v6762
      %v6764 = vpop.f32.mrf.mxu0
      %6765 = vmatprep.mubr.bf16.mxu0 %v5587
      %6766 = vmatmul.mubr.bf16.gmra.mxu0 %v5539
      %v6767 = vpop.f32.mrf.mxu0
      %v6768 = vadd.f32 %v6607, %v6767
      %v6769 = vpop.f32.mrf.mxu0
      %v6770 = vpop.f32.mrf.mxu0
      %v6771 = vadd.f32 %v6610, %v6770
      %v6772 = vpop.f32.mrf.mxu0
      %6773 = vmatprep.mubr.bf16.mxu0 %v5588
      %6774 = vmatmul.mubr.bf16.gmra.mxu0 %v5540
      %v6775 = vpop.f32.mrf.mxu0
      %v6776 = vadd.f32 %v6615, %v6775
      %v6777 = vpop.f32.mrf.mxu0
      %v6778 = vpop.f32.mrf.mxu0
      %v6779 = vadd.f32 %v6618, %v6778
      %v6780 = vpop.f32.mrf.mxu0
      %6781 = vmatprep.mubr.bf16.mxu0 %v5589
      %6782 = vmatmul.mubr.bf16.gmra.mxu0 %v5541
      %v6783 = vpop.f32.mrf.mxu0
      %v6784 = vadd.f32 %v6623, %v6783
      %v6785 = vpop.f32.mrf.mxu0
      %v6786 = vpop.f32.mrf.mxu0
      %v6787 = vadd.f32 %v6626, %v6786
      %v6788 = vpop.f32.mrf.mxu0
      %6789 = vmatprep.mubr.bf16.mxu0 %v5590
      %6790 = vmatmul.mubr.bf16.gmra.mxu0 %v5542
      %v6791 = vpop.f32.mrf.mxu0
      %v6792 = vadd.f32 %v6631, %v6791
      %v6793 = vpop.f32.mrf.mxu0
      %v6794 = vpop.f32.mrf.mxu0
      %v6795 = vadd.f32 %v6634, %v6794
      %v6796 = vpop.f32.mrf.mxu0
      %6797 = vmatprep.mubr.bf16.mxu0 %v5591
      %6798 = vmatmul.mubr.bf16.gmra.mxu0 %v5543
      %v6799 = vpop.f32.mrf.mxu0
      %v6800 = vadd.f32 %v6639, %v6799
      %v6801 = vpop.f32.mrf.mxu0
      %v6802 = vpop.f32.mrf.mxu0
      %v6803 = vadd.f32 %v6642, %v6802
      %v6804 = vpop.f32.mrf.mxu0
      %6805 = vmatprep.mubr.bf16.mxu0 %v5592
      %6806 = vmatmul.mubr.bf16.gmra.mxu0 %v5544
      %v6807 = vpop.f32.mrf.mxu0
      %v6808 = vadd.f32 %v6647, %v6807
      %v6809 = vpop.f32.mrf.mxu0
      %v6810 = vpop.f32.mrf.mxu0
      %v6811 = vadd.f32 %v6650, %v6810
      %v6812 = vpop.f32.mrf.mxu0
      %6813 = vmatprep.mubr.bf16.mxu0 %v5593
      %6814 = vmatmul.mubr.bf16.gmra.mxu0 %v5545
      %v6815 = vpop.f32.mrf.mxu0
      %v6816 = vadd.f32 %v6655, %v6815
      %v6817 = vpop.f32.mrf.mxu0
      %v6818 = vpop.f32.mrf.mxu0
      %v6819 = vadd.f32 %v6658, %v6818
      %v6820 = vpop.f32.mrf.mxu0
      %6821 = vmatprep.mubr.bf16.mxu0 %v5594
      %6822 = vmatmul.mubr.bf16.gmra.mxu0 %v5546
      %v6823 = vpop.f32.mrf.mxu0
      %v6824 = vadd.f32 %v6663, %v6823
      %v6825 = vpop.f32.mrf.mxu0
      %v6826 = vpop.f32.mrf.mxu0
      %v6827 = vadd.f32 %v6666, %v6826
      %v6828 = vpop.f32.mrf.mxu0
      %6829 = vmatprep.mubr.bf16.mxu0 %v5595
      %6830 = vmatmul.mubr.bf16.gmra.mxu0 %v5547
      %v6831 = vpop.f32.mrf.mxu0
      %v6832 = vadd.f32 %v6671, %v6831
      %v6833 = vpop.f32.mrf.mxu0
      %v6834 = vpop.f32.mrf.mxu0
      %v6835 = vadd.f32 %v6674, %v6834
      %v6836 = vpop.f32.mrf.mxu0
      %6837 = vmatprep.mubr.bf16.mxu0 %v5596
      %6838 = vmatmul.mubr.bf16.gmra.mxu0 %v5548
      %v6839 = vpop.f32.mrf.mxu0
      %v6840 = vadd.f32 %v6679, %v6839
      %v6841 = vpop.f32.mrf.mxu0
      %v6842 = vpop.f32.mrf.mxu0
      %v6843 = vadd.f32 %v6682, %v6842
      %v6844 = vpop.f32.mrf.mxu0
      %6845 = vmatprep.mubr.bf16.mxu0 %v5597
      %6846 = vmatmul.mubr.bf16.gmra.mxu0 %v5549
      %v6847 = vpop.f32.mrf.mxu0
      %v6848 = vadd.f32 %v6687, %v6847
      %v6849 = vpop.f32.mrf.mxu0
      %v6850 = vpop.f32.mrf.mxu0
      %v6851 = vadd.f32 %v6690, %v6850
      %v6852 = vpop.f32.mrf.mxu0
      %6853 = vmatprep.mubr.bf16.mxu0 %v5598
      %6854 = vmatmul.mubr.bf16.gmra.mxu0 %v5550
      %v6855 = vpop.f32.mrf.mxu0
      %v6856 = vadd.f32 %v6695, %v6855
      %v6857 = vpop.f32.mrf.mxu0
      %v6858 = vpop.f32.mrf.mxu0
      %v6859 = vadd.f32 %v6698, %v6858
      %v6860 = vpop.f32.mrf.mxu0
      %6861 = vmatprep.mubr.bf16.mxu0 %v5599
      %6862 = vmatmul.mubr.bf16.gmra.mxu0 %v5551
      %v6863 = vpop.f32.mrf.mxu0
      %v6864 = vadd.f32 %v6703, %v6863
      %v6865 = vpop.f32.mrf.mxu0
      %v6866 = vpop.f32.mrf.mxu0
      %v6867 = vadd.f32 %v6706, %v6866
      %v6868 = vpop.f32.mrf.mxu0
      %6869 = vmatprep.mubr.bf16.mxu0 %v5600
      %6870 = vmatmul.mubr.bf16.gmra.mxu0 %v5552
      %v6871 = vpop.f32.mrf.mxu0
      %v6872 = vadd.f32 %v6711, %v6871
      %v6873 = vpop.f32.mrf.mxu0
      %v6874 = vpop.f32.mrf.mxu0
      %v6875 = vadd.f32 %v6714, %v6874
      %v6876 = vpop.f32.mrf.mxu0
      %6877 = vdwg.mxu0
      %6878 = vmatprep.subr.bf16.mxu0 0
      %6879 = vmatpush1.bf16.msra.mxu0 %v6161
      %6880 = vmatprep.subr.bf16.mxu0 0
      %6881 = vmatpush1.bf16.msra.mxu0 %v6160
      %6882 = vmatprep.subr.bf16.mxu0 0
      %6883 = vmatpush1.bf16.msra.mxu0 %v6159
      %6884 = vmatprep.subr.bf16.mxu0 0
      %6885 = vmatpush1.bf16.msra.mxu0 %v6158
      %6886 = vmatprep.subr.bf16.mxu0 0
      %6887 = vmatpush1.bf16.msra.mxu0 %v6157
      %6888 = vmatprep.subr.bf16.mxu0 0
      %6889 = vmatpush1.bf16.msra.mxu0 %v6156
      %6890 = vmatprep.subr.bf16.mxu0 0
      %6891 = vmatpush1.bf16.msra.mxu0 %v6155
      %6892 = vmatprep.subr.bf16.mxu0 0
      %6893 = vmatpush1.bf16.msra.mxu0 %v6154
      %6894 = vmatprep.subr.bf16.mxu0 0
      %6895 = vmatpush2.bf16.msra.mxu0 0
      %6896 = vmatprep.subr.bf16.mxu0 0
      %6897 = vmatpush2.bf16.msra.mxu0 0
      %6898 = vmatprep.subr.bf16.mxu0 0
      %6899 = vmatpush2.bf16.msra.mxu0 0
      %6900 = vmatprep.subr.bf16.mxu0 0
      %6901 = vmatpush2.bf16.msra.mxu0 0
      %6902 = vmatprep.subr.bf16.mxu0 0
      %6903 = vmatpush2.bf16.msra.mxu0 0
      %6904 = vmatprep.subr.bf16.mxu0 0
      %6905 = vmatpush2.bf16.msra.mxu0 0
      %6906 = vmatprep.subr.bf16.mxu0 0
      %6907 = vmatpush2.bf16.msra.mxu0 0
      %6908 = vmatprep.subr.bf16.mxu0 0
      %6909 = vmatpush2.bf16.msra.mxu0 0
      %6910 = vmatprep.mubr.bf16.mxu0 0
      %6911 = vmatmul.mubr.bf16.gmra.mxu0 %v5633
      %v6912 = vpop.f32.mrf.mxu0
      %v6913 = vadd.f32 %v6752, %v6912
      %v6914 = vpop.f32.mrf.mxu0
      %v6915 = vpop.f32.mrf.mxu0
      %v6916 = vadd.f32 %v6755, %v6915
      %v6917 = vpop.f32.mrf.mxu0
      %6918 = vmatprep.mubr.bf16.mxu0 0
      %6919 = vmatmul.mubr.bf16.gmra.mxu0 %v5634
      %v6920 = vpop.f32.mrf.mxu0
      %v6921 = vadd.f32 %v6760, %v6920
      %v6922 = vpop.f32.mrf.mxu0
      %v6923 = vpop.f32.mrf.mxu0
      %v6924 = vadd.f32 %v6763, %v6923
      %v6925 = vpop.f32.mrf.mxu0
      %6926 = vmatprep.mubr.bf16.mxu0 0
      %6927 = vmatmul.mubr.bf16.gmra.mxu0 %v5635
      %v6928 = vpop.f32.mrf.mxu0
      %v6929 = vadd.f32 %v6768, %v6928
      %v6930 = vpop.f32.mrf.mxu0
      %v6931 = vpop.f32.mrf.mxu0
      %v6932 = vadd.f32 %v6771, %v6931
      %v6933 = vpop.f32.mrf.mxu0
      %6934 = vmatprep.mubr.bf16.mxu0 0
      %6935 = vmatmul.mubr.bf16.gmra.mxu0 %v5636
      %v6936 = vpop.f32.mrf.mxu0
      %v6937 = vadd.f32 %v6776, %v6936
      %v6938 = vpop.f32.mrf.mxu0
      %v6939 = vpop.f32.mrf.mxu0
      %v6940 = vadd.f32 %v6779, %v6939
      %v6941 = vpop.f32.mrf.mxu0
      %6942 = vmatprep.mubr.bf16.mxu0 0
      %6943 = vmatmul.mubr.bf16.gmra.mxu0 %v5637
      %v6944 = vpop.f32.mrf.mxu0
      %v6945 = vadd.f32 %v6784, %v6944
      %v6946 = vpop.f32.mrf.mxu0
      %v6947 = vpop.f32.mrf.mxu0
      %v6948 = vadd.f32 %v6787, %v6947
      %v6949 = vpop.f32.mrf.mxu0
      %6950 = vmatprep.mubr.bf16.mxu0 0
      %6951 = vmatmul.mubr.bf16.gmra.mxu0 %v5638
      %v6952 = vpop.f32.mrf.mxu0
      %v6953 = vadd.f32 %v6792, %v6952
      %v6954 = vpop.f32.mrf.mxu0
      %v6955 = vpop.f32.mrf.mxu0
      %v6956 = vadd.f32 %v6795, %v6955
      %v6957 = vpop.f32.mrf.mxu0
      %6958 = vmatprep.mubr.bf16.mxu0 0
      %6959 = vmatmul.mubr.bf16.gmra.mxu0 %v5639
      %v6960 = vpop.f32.mrf.mxu0
      %v6961 = vadd.f32 %v6800, %v6960
      %v6962 = vpop.f32.mrf.mxu0
      %v6963 = vpop.f32.mrf.mxu0
      %v6964 = vadd.f32 %v6803, %v6963
      %v6965 = vpop.f32.mrf.mxu0
      %6966 = vmatprep.mubr.bf16.mxu0 0
      %6967 = vmatmul.mubr.bf16.gmra.mxu0 %v5640
      %v6968 = vpop.f32.mrf.mxu0
      %v6969 = vadd.f32 %v6808, %v6968
      %v6970 = vpop.f32.mrf.mxu0
      %v6971 = vpop.f32.mrf.mxu0
      %v6972 = vadd.f32 %v6811, %v6971
      %v6973 = vpop.f32.mrf.mxu0
      %6974 = vmatprep.mubr.bf16.mxu0 0
      %6975 = vmatmul.mubr.bf16.gmra.mxu0 %v5641
      %v6976 = vpop.f32.mrf.mxu0
      %v6977 = vadd.f32 %v6816, %v6976
      %v6978 = vpop.f32.mrf.mxu0
      %v6979 = vpop.f32.mrf.mxu0
      %v6980 = vadd.f32 %v6819, %v6979
      %v6981 = vpop.f32.mrf.mxu0
      %6982 = vmatprep.mubr.bf16.mxu0 0
      %6983 = vmatmul.mubr.bf16.gmra.mxu0 %v5642
      %v6984 = vpop.f32.mrf.mxu0
      %v6985 = vadd.f32 %v6824, %v6984
      %v6986 = vpop.f32.mrf.mxu0
      %v6987 = vpop.f32.mrf.mxu0
      %v6988 = vadd.f32 %v6827, %v6987
      %v6989 = vpop.f32.mrf.mxu0
      %6990 = vmatprep.mubr.bf16.mxu0 0
      %6991 = vmatmul.mubr.bf16.gmra.mxu0 %v5643
      %v6992 = vpop.f32.mrf.mxu0
      %v6993 = vadd.f32 %v6832, %v6992
      %v6994 = vpop.f32.mrf.mxu0
      %v6995 = vpop.f32.mrf.mxu0
      %v6996 = vadd.f32 %v6835, %v6995
      %v6997 = vpop.f32.mrf.mxu0
      %6998 = vmatprep.mubr.bf16.mxu0 0
      %6999 = vmatmul.mubr.bf16.gmra.mxu0 %v5644
      %v7000 = vpop.f32.mrf.mxu0
      %v7001 = vadd.f32 %v6840, %v7000
      %v7002 = vpop.f32.mrf.mxu0
      %v7003 = vpop.f32.mrf.mxu0
      %v7004 = vadd.f32 %v6843, %v7003
      %v7005 = vpop.f32.mrf.mxu0
      %7006 = vmatprep.mubr.bf16.mxu0 0
      %7007 = vmatmul.mubr.bf16.gmra.mxu0 %v5645
      %v7008 = vpop.f32.mrf.mxu0
      %v7009 = vadd.f32 %v6848, %v7008
      %v7010 = vpop.f32.mrf.mxu0
      %v7011 = vpop.f32.mrf.mxu0
      %v7012 = vadd.f32 %v6851, %v7011
      %v7013 = vpop.f32.mrf.mxu0
      %7014 = vmatprep.mubr.bf16.mxu0 0
      %7015 = vmatmul.mubr.bf16.gmra.mxu0 %v5646
      %v7016 = vpop.f32.mrf.mxu0
      %v7017 = vadd.f32 %v6856, %v7016
      %v7018 = vpop.f32.mrf.mxu0
      %v7019 = vpop.f32.mrf.mxu0
      %v7020 = vadd.f32 %v6859, %v7019
      %v7021 = vpop.f32.mrf.mxu0
      %7022 = vmatprep.mubr.bf16.mxu0 0
      %7023 = vmatmul.mubr.bf16.gmra.mxu0 %v5647
      %v7024 = vpop.f32.mrf.mxu0
      %v7025 = vadd.f32 %v6864, %v7024
      %v7026 = vpop.f32.mrf.mxu0
      %v7027 = vpop.f32.mrf.mxu0
      %v7028 = vadd.f32 %v6867, %v7027
      %v7029 = vpop.f32.mrf.mxu0
      %7030 = vmatprep.mubr.bf16.mxu0 0
      %7031 = vmatmul.mubr.bf16.gmra.mxu0 %v5648
      %v7032 = vpop.f32.mrf.mxu0
      %v7033 = vadd.f32 %v6872, %v7032
      %v7034 = vpop.f32.mrf.mxu0
      %v7035 = vpop.f32.mrf.mxu0
      %v7036 = vadd.f32 %v6875, %v7035
      %v7037 = vpop.f32.mrf.mxu0
      %7038 = vdwg.mxu0
      %v7039 = vsub.f32 0.0, %v6913
      %v7040 = vsub.f32 0.0, %v6916
      %v7041 = vsub.f32 0.0, %v6921
      %v7042 = vsub.f32 0.0, %v6924
      %v7043 = vsub.f32 0.0, %v6929
      %v7044 = vsub.f32 0.0, %v6932
      %v7045 = vsub.f32 0.0, %v6937
      %v7046 = vsub.f32 0.0, %v6940
      %v7047 = vsub.f32 0.0, %v6945
      %v7048 = vsub.f32 0.0, %v6948
      %v7049 = vsub.f32 0.0, %v6953
      %v7050 = vsub.f32 0.0, %v6956
      %v7051 = vsub.f32 0.0, %v6961
      %v7052 = vsub.f32 0.0, %v6964
      %v7053 = vsub.f32 0.0, %v6969
      %v7054 = vsub.f32 0.0, %v6972
      %v7055 = vsub.f32 0.0, %v6977
      %v7056 = vsub.f32 0.0, %v6980
      %v7057 = vsub.f32 0.0, %v6985
      %v7058 = vsub.f32 0.0, %v6988
      %v7059 = vsub.f32 0.0, %v6993
      %v7060 = vsub.f32 0.0, %v6996
      %v7061 = vsub.f32 0.0, %v7001
      %v7062 = vsub.f32 0.0, %v7004
      %v7063 = vsub.f32 0.0, %v7009
      %v7064 = vsub.f32 0.0, %v7012
      %v7065 = vsub.f32 0.0, %v7017
      %v7066 = vsub.f32 0.0, %v7020
      %v7067 = vsub.f32 0.0, %v7025
      %v7068 = vsub.f32 0.0, %v7028
      %v7069 = vsub.f32 0.0, %v7033
      %v7070 = vsub.f32 0.0, %v7036
      %v7071 = vmul.f32 %v7039, 1.442695
      %v7072 = vpow.pop %v7071
      %v7073 = vmul.f32 %v7040, 1.442695
      %v7074 = vpow.pop %v7073
      %v7075 = vmul.f32 %v7041, 1.442695
      %v7076 = vpow.pop %v7075
      %v7077 = vmul.f32 %v7042, 1.442695
      %v7078 = vpow.pop %v7077
      %v7079 = vmul.f32 %v7043, 1.442695
      %v7080 = vpow.pop %v7079
      %v7081 = vmul.f32 %v7044, 1.442695
      %v7082 = vpow.pop %v7081
      %v7083 = vmul.f32 %v7045, 1.442695
      %v7084 = vpow.pop %v7083
      %v7085 = vmul.f32 %v7046, 1.442695
      %v7086 = vpow.pop %v7085
      %v7087 = vmul.f32 %v7047, 1.442695
      %v7088 = vpow.pop %v7087
      %v7089 = vmul.f32 %v7048, 1.442695
      %v7090 = vpow.pop %v7089
      %v7091 = vmul.f32 %v7049, 1.442695
      %v7092 = vpow.pop %v7091
      %v7093 = vmul.f32 %v7050, 1.442695
      %v7094 = vpow.pop %v7093
      %v7095 = vmul.f32 %v7051, 1.442695
      %v7096 = vpow.pop %v7095
      %v7097 = vmul.f32 %v7052, 1.442695
      %v7098 = vpow.pop %v7097
      %v7099 = vmul.f32 %v7053, 1.442695
      %v7100 = vpow.pop %v7099
      %v7101 = vmul.f32 %v7054, 1.442695
      %v7102 = vpow.pop %v7101
      %v7103 = vmul.f32 %v7055, 1.442695
      %v7104 = vpow.pop %v7103
      %v7105 = vmul.f32 %v7056, 1.442695
      %v7106 = vpow.pop %v7105
      %v7107 = vmul.f32 %v7057, 1.442695
      %v7108 = vpow.pop %v7107
      %v7109 = vmul.f32 %v7058, 1.442695
      %v7110 = vpow.pop %v7109
      %v7111 = vmul.f32 %v7059, 1.442695
      %v7112 = vpow.pop %v7111
      %v7113 = vmul.f32 %v7060, 1.442695
      %v7114 = vpow.pop %v7113
      %v7115 = vmul.f32 %v7061, 1.442695
      %v7116 = vpow.pop %v7115
      %v7117 = vmul.f32 %v7062, 1.442695
      %v7118 = vpow.pop %v7117
      %v7119 = vmul.f32 %v7063, 1.442695
      %v7120 = vpow.pop %v7119
      %v7121 = vmul.f32 %v7064, 1.442695
      %v7122 = vpow.pop %v7121
      %v7123 = vmul.f32 %v7065, 1.442695
      %v7124 = vpow.pop %v7123
      %v7125 = vmul.f32 %v7066, 1.442695
      %v7126 = vpow.pop %v7125
      %v7127 = vmul.f32 %v7067, 1.442695
      %v7128 = vpow.pop %v7127
      %v7129 = vmul.f32 %v7068, 1.442695
      %v7130 = vpow.pop %v7129
      %v7131 = vmul.f32 %v7069, 1.442695
      %v7132 = vpow.pop %v7131
      %v7133 = vmul.f32 %v7070, 1.442695
      %v7134 = vpow.pop %v7133
      %v7135 = vadd.f32 %v7072, 1.0
      %v7136 = vadd.f32 %v7074, 1.0
      %v7137 = vadd.f32 %v7076, 1.0
      %v7138 = vadd.f32 %v7078, 1.0
      %v7139 = vadd.f32 %v7080, 1.0
      %v7140 = vadd.f32 %v7082, 1.0
      %v7141 = vadd.f32 %v7084, 1.0
      %v7142 = vadd.f32 %v7086, 1.0
      %v7143 = vadd.f32 %v7088, 1.0
      %v7144 = vadd.f32 %v7090, 1.0
      %v7145 = vadd.f32 %v7092, 1.0
      %v7146 = vadd.f32 %v7094, 1.0
      %v7147 = vadd.f32 %v7096, 1.0
      %v7148 = vadd.f32 %v7098, 1.0
      %v7149 = vadd.f32 %v7100, 1.0
      %v7150 = vadd.f32 %v7102, 1.0
      %v7151 = vadd.f32 %v7104, 1.0
      %v7152 = vadd.f32 %v7106, 1.0
      %v7153 = vadd.f32 %v7108, 1.0
      %v7154 = vadd.f32 %v7110, 1.0
      %v7155 = vadd.f32 %v7112, 1.0
      %v7156 = vadd.f32 %v7114, 1.0
      %v7157 = vadd.f32 %v7116, 1.0
      %v7158 = vadd.f32 %v7118, 1.0
      %v7159 = vadd.f32 %v7120, 1.0
      %v7160 = vadd.f32 %v7122, 1.0
      %v7161 = vadd.f32 %v7124, 1.0
      %v7162 = vadd.f32 %v7126, 1.0
      %v7163 = vadd.f32 %v7128, 1.0
      %v7164 = vadd.f32 %v7130, 1.0
      %v7165 = vadd.f32 %v7132, 1.0
      %v7166 = vadd.f32 %v7134, 1.0
      %v7167 = vrcp.pop %v7135
      %v7168 = vrcp.pop %v7136
      %v7169 = vrcp.pop %v7137
      %v7170 = vrcp.pop %v7138
      %v7171 = vrcp.pop %v7139
      %v7172 = vrcp.pop %v7140
      %v7173 = vrcp.pop %v7141
      %v7174 = vrcp.pop %v7142
      %v7175 = vrcp.pop %v7143
      %v7176 = vrcp.pop %v7144
      %v7177 = vrcp.pop %v7145
      %v7178 = vrcp.pop %v7146
      %v7179 = vrcp.pop %v7147
      %v7180 = vrcp.pop %v7148
      %v7181 = vrcp.pop %v7149
      %v7182 = vrcp.pop %v7150
      %v7183 = vrcp.pop %v7151
      %v7184 = vrcp.pop %v7152
      %v7185 = vrcp.pop %v7153
      %v7186 = vrcp.pop %v7154
      %v7187 = vrcp.pop %v7155
      %v7188 = vrcp.pop %v7156
      %v7189 = vrcp.pop %v7157
      %v7190 = vrcp.pop %v7158
      %v7191 = vrcp.pop %v7159
      %v7192 = vrcp.pop %v7160
      %v7193 = vrcp.pop %v7161
      %v7194 = vrcp.pop %v7162
      %v7195 = vrcp.pop %v7163
      %v7196 = vrcp.pop %v7164
      %v7197 = vrcp.pop %v7165
      %v7198 = vrcp.pop %v7166
      %v7199 = vmul.f32 %v6913, %v7167
      %v7200 = vmul.f32 %v6916, %v7168
      %v7201 = vmul.f32 %v6921, %v7169
      %v7202 = vmul.f32 %v6924, %v7170
      %v7203 = vmul.f32 %v6929, %v7171
      %v7204 = vmul.f32 %v6932, %v7172
      %v7205 = vmul.f32 %v6937, %v7173
      %v7206 = vmul.f32 %v6940, %v7174
      %v7207 = vmul.f32 %v6945, %v7175
      %v7208 = vmul.f32 %v6948, %v7176
      %v7209 = vmul.f32 %v6953, %v7177
      %v7210 = vmul.f32 %v6956, %v7178
      %v7211 = vmul.f32 %v6961, %v7179
      %v7212 = vmul.f32 %v6964, %v7180
      %v7213 = vmul.f32 %v6969, %v7181
      %v7214 = vmul.f32 %v6972, %v7182
      %v7215 = vmul.f32 %v6977, %v7183
      %v7216 = vmul.f32 %v6980, %v7184
      %v7217 = vmul.f32 %v6985, %v7185
      %v7218 = vmul.f32 %v6988, %v7186
      %v7219 = vmul.f32 %v6993, %v7187
      %v7220 = vmul.f32 %v6996, %v7188
      %v7221 = vmul.f32 %v7001, %v7189
      %v7222 = vmul.f32 %v7004, %v7190
      %v7223 = vmul.f32 %v7009, %v7191
      %v7224 = vmul.f32 %v7012, %v7192
      %v7225 = vmul.f32 %v7017, %v7193
      %v7226 = vmul.f32 %v7020, %v7194
      %v7227 = vmul.f32 %v7025, %v7195
      %v7228 = vmul.f32 %v7028, %v7196
      %v7229 = vmul.f32 %v7033, %v7197
      %v7230 = vmul.f32 %v7036, %v7198
      %v7231 = vadd.f32 %v7199, %v976
      %v7232 = vadd.f32 %v7200, %v978
      %v7233 = vadd.f32 %v7201, %v980
      %v7234 = vadd.f32 %v7202, %v982
      %v7235 = vadd.f32 %v7203, %v984
      %v7236 = vadd.f32 %v7204, %v986
      %v7237 = vadd.f32 %v7205, %v988
      %v7238 = vadd.f32 %v7206, %v990
      %v7239 = vadd.f32 %v7207, %v992
      %v7240 = vadd.f32 %v7208, %v994
      %v7241 = vadd.f32 %v7209, %v996
      %v7242 = vadd.f32 %v7210, %v998
      %v7243 = vadd.f32 %v7211, %v1000
      %v7244 = vadd.f32 %v7212, %v1002
      %v7245 = vadd.f32 %v7213, %v1004
      %v7246 = vadd.f32 %v7214, %v1006
      %v7247 = vadd.f32 %v7215, %v1008
      %v7248 = vadd.f32 %v7216, %v1010
      %v7249 = vadd.f32 %v7217, %v1012
      %v7250 = vadd.f32 %v7218, %v1014
      %v7251 = vadd.f32 %v7219, %v1016
      %v7252 = vadd.f32 %v7220, %v1018
      %v7253 = vadd.f32 %v7221, %v1020
      %v7254 = vadd.f32 %v7222, %v1022
      %v7255 = vadd.f32 %v7223, %v1024
      %v7256 = vadd.f32 %v7224, %v1026
      %v7257 = vadd.f32 %v7225, %v1028
      %v7258 = vadd.f32 %v7226, %v1030
      %v7259 = vadd.f32 %v7227, %v1032
      %v7260 = vadd.f32 %v7228, %v1034
      %v7261 = vadd.f32 %v7229, %v1036
      %v7262 = vadd.f32 %v7230, %v1038
      %7263 = vst [vmem:[%s224] sm:$0xff] %v7231
      %7264 = vst [vmem:[%s224 + $0x8] sm:$0xff] %v7232
      %7265 = vst [vmem:[%s224 + $0x10] sm:$0xff] %v7233
      %7266 = vst [vmem:[%s224 + $0x18] sm:$0xff] %v7234
      %7267 = vst [vmem:[%s224 + $0x20] sm:$0xff] %v7235
      %7268 = vst [vmem:[%s224 + $0x28] sm:$0xff] %v7236
      %7269 = vst [vmem:[%s224 + $0x30] sm:$0xff] %v7237
      %7270 = vst [vmem:[%s224 + $0x38] sm:$0xff] %v7238
      %7271 = vst [vmem:[%s224 + $0x40] sm:$0xff] %v7239
      %7272 = vst [vmem:[%s224 + $0x48] sm:$0xff] %v7240
      %7273 = vst [vmem:[%s224 + $0x50] sm:$0xff] %v7241
      %7274 = vst [vmem:[%s224 + $0x58] sm:$0xff] %v7242
      %7275 = vst [vmem:[%s224 + $0x60] sm:$0xff] %v7243
      %7276 = vst [vmem:[%s224 + $0x68] sm:$0xff] %v7244
      %7277 = vst [vmem:[%s224 + $0x70] sm:$0xff] %v7245
      %7278 = vst [vmem:[%s224 + $0x78] sm:$0xff] %v7246
      %7279 = vst [vmem:[%s224 + $0x80] sm:$0xff] %v7247
      %7280 = vst [vmem:[%s224 + $0x88] sm:$0xff] %v7248
      %7281 = vst [vmem:[%s224 + $0x90] sm:$0xff] %v7249
      %7282 = vst [vmem:[%s224 + $0x98] sm:$0xff] %v7250
      %7283 = vst [vmem:[%s224 + $0xa0] sm:$0xff] %v7251
      %7284 = vst [vmem:[%s224 + $0xa8] sm:$0xff] %v7252
      %7285 = vst [vmem:[%s224 + $0xb0] sm:$0xff] %v7253
      %7286 = vst [vmem:[%s224 + $0xb8] sm:$0xff] %v7254
      %7287 = vst [vmem:[%s224 + $0xc0] sm:$0xff] %v7255
      %7288 = vst [vmem:[%s224 + $0xc8] sm:$0xff] %v7256
      %7289 = vst [vmem:[%s224 + $0xd0] sm:$0xff] %v7257
      %7290 = vst [vmem:[%s224 + $0xd8] sm:$0xff] %v7258
      %7291 = vst [vmem:[%s224 + $0xe0] sm:$0xff] %v7259
      %7292 = vst [vmem:[%s224 + $0xe8] sm:$0xff] %v7260
      %7293 = vst [vmem:[%s224 + $0xf0] sm:$0xff] %v7261
      %7294 = vst [vmem:[%s224 + $0xf8] sm:$0xff] %v7262
      %p7295 = scmp.lt.s32.totalorder %s16, 1
      %s7296 = scalar_select %p7295, %s16, 1
      %s7297 = smul.addr %s7296, 32
      %s7298 = smul.addr %s7297, 8
      %s7299 = scalar_lea.vmem %s5, %s7298
      // Predicated region
      $region41: #{repc3_forward.1} parent=39 // pred_check
        %p7300 = pneg %p144
      $region42: #{repc3_forward.1} parent=39 // pred_check_branch
        %7302 = sbr.rel (%p7300) target = $region44
      $region43: #{repc3_forward.1} parent=39 // pred_region
        _
      $region44: #{repc3_forward.1} parent=39 // pred_fallthru
        _
    $region40: #{repc3_forward.1} parent=5 // pred_fallthru
      _
    %p7303 = scmp.le.s32.totalorder 2, %s11
    // Predicated region
    $region45: #{repc3_forward.1} parent=5 // pred_check
      %p7304 = pneg %p7303
    $region46: #{repc3_forward.1} parent=5 // pred_check_branch
      %7306 = sbr.rel (%p7304) target = $region48
    $region47: #{repc3_forward.1} parent=5 // pred_region
      %s7307 = ssub.s32 %s11, 2
      // Predicated region
      $region49: #{repc3_forward.1} parent=47 // pred_check
        %p7308 = pneg %p150
      $region50: #{repc3_forward.1} parent=47 // pred_check_branch
        %7310 = sbr.rel (%p7308) target = $region52
      $region51: #{repc3_forward.1} parent=47 // pred_region
        %p7311 = scmp.lt.s32.totalorder %s17, 1
        %s7312 = scalar_select %p7311, %s17, 1
        %s7313 = smul.addr %s7312, 32
        %s7314 = smul.addr %s7313, 8
        %s7315 = scalar_lea.vmem %s5, %s7314
      $region52: #{repc3_forward.1} parent=47 // pred_fallthru
        _
    $region48: #{repc3_forward.1} parent=5 // pred_fallthru
      _
  $region6: #{repc3_forward.1} parent=0 // loop_footer
    %s15 = sadd.s32 1, %s11
  $region7: #{repc3_forward.1} parent=0 // loop_footer_branch
    %10 = sbr.rel target = $region3
  $region8: #{repc3_forward.1} parent=0 // loop_exit
    _

</llo_original>
